<compile_context>
chip_gen: v7x
topology: tpu7x:2x2x1
jax: 0.10.0
libtpu: 0.0.40
codegen_flags: <defaults>
</compile_context>

<pallas_src>
import functools

import jax
import jax.numpy as jnp
from jax.experimental import pallas as pl
from jax.experimental.pallas import tpu as pltpu


# ----------------------------------------------------------------------------
# Fused bidirectional LSTM recurrence.
#   grid = (NT,)  — time blocks, strictly sequential ("arbitrary").
#   Each grid step processes TT time steps for BOTH directions:
#     forward walks block i rows 0..TT-1  (time  i*TT + s),
#     backward walks block NT-1-i rows TT-1..0 (time (NT-1-i)*TT + r).
#   gate order along the 4H axis is (i, f, o, g); x @ W_ih + b is pre-folded
#   into the gathered gx tables.  h/c carries live in VMEM scratch.
# ----------------------------------------------------------------------------
def _bilstm_kernel(T, gxf_ref, gxb_ref, whh_ref,
                   sf_ref, sb_ref, hT_ref, cT_ref,
                   hf_scr, cf_scr, hb_scr, cb_scr):
    i = pl.program_id(0)
    NT = pl.num_programs(0)
    TT = gxf_ref.shape[0]
    H = hf_scr.shape[-1]

    @pl.when(i == 0)
    def _():
        hf_scr[...] = jnp.zeros_like(hf_scr)
        cf_scr[...] = jnp.zeros_like(cf_scr)
        hb_scr[...] = jnp.zeros_like(hb_scr)
        cb_scr[...] = jnp.zeros_like(cb_scr)

    w_f = whh_ref[0]          # (H, 4H) — resident across all time blocks
    w_b = whh_ref[1]

    h_f, c_f = hf_scr[...], cf_scr[...]
    h_b, c_b = hb_scr[...], cb_scr[...]

    t0_f = i * TT             # forward block start time
    t0_b = (NT - 1 - i) * TT  # backward block start time

    def lstm_step(g, w, h, c):
        gates = g + jnp.dot(h, w, preferred_element_type=jnp.float32)
        # gate order (i, f, o, g): one contiguous sigmoid over 3H + one tanh
        sig = jax.nn.sigmoid(gates[:, :3 * H])
        g_g = jnp.tanh(gates[:, 3 * H:])
        c_new = sig[:, H:2 * H] * c + sig[:, 0:H] * g_g
        h_new = sig[:, 2 * H:3 * H] * jnp.tanh(c_new)
        return h_new, c_new

    # Static Python loop: every gx row load / state store has a compile-time
    # offset; the two direction chains interleave in the VLIW schedule.
    for s in range(TT):
        # -- forward direction: row s of block i ------------------------------
        hf_new, cf_new = lstm_step(gxf_ref[s], w_f, h_f, c_f)
        valid_f = (t0_f + s) < T        # mask padded time steps
        h_f = jnp.where(valid_f, hf_new, h_f)
        c_f = jnp.where(valid_f, cf_new, c_f)
        sf_ref[s] = h_f

        # -- backward direction: row TT-1-s of block NT-1-i (time descending) --
        r = TT - 1 - s
        hb_new, cb_new = lstm_step(gxb_ref[r], w_b, h_b, c_b)
        valid_b = (t0_b + r) < T
        h_b = jnp.where(valid_b, hb_new, h_b)
        c_b = jnp.where(valid_b, cb_new, c_b)
        sb_ref[r] = h_b

    hf_scr[...] = h_f
    cf_scr[...] = c_f
    hb_scr[...] = h_b
    cb_scr[...] = c_b

    # Only the last grid step holds the true final states (fwd @ t=T-1,
    # bwd @ t=0); skip the redundant resident-block stores elsewhere.
    @pl.when(i == NT - 1)
    def _():
        hT_ref[0] = h_f
        hT_ref[1] = h_b
        cT_ref[0] = c_f
        cT_ref[1] = c_b


def run_bilstm(gxf, gxb, w_hh, *, tt=32):
    """gxf/gxb: (T, B, 4H) precomputed x @ W_ih + b per direction;
       w_hh: (2, H, 4H).  Returns (states_f (T,B,H), states_b (T,B,H),
       hT (2,B,H), cT (2,B,H))."""
    T, B, G4 = gxf.shape
    H = w_hh.shape[1]
    assert G4 == 4 * H and w_hh.shape == (2, H, 4 * H)

    # Pad T up to a multiple of a fixed TT (padded steps are masked in-kernel),
    # so awkward T never degenerates to one step per grid iteration.
    TT = tt
    T_pad = pl.cdiv(T, TT) * TT
    if T_pad != T:
        pad = ((0, T_pad - T), (0, 0), (0, 0))
        gxf = jnp.pad(gxf, pad)
        gxb = jnp.pad(gxb, pad)
    NT = T_pad // TT

    kernel = functools.partial(_bilstm_kernel, T)

    states_f, states_b, hT, cT = pl.pallas_call(
        kernel,
        out_shape=(jax.ShapeDtypeStruct((T_pad, B, H), jnp.float32),
                   jax.ShapeDtypeStruct((T_pad, B, H), jnp.float32),
                   jax.ShapeDtypeStruct((2, B, H), jnp.float32),
                   jax.ShapeDtypeStruct((2, B, H), jnp.float32)),
        grid_spec=pltpu.PrefetchScalarGridSpec(
            num_scalar_prefetch=0,
            grid=(NT,),
            in_specs=[
                # forward gx slab: block i
                pl.BlockSpec((TT, B, 4 * H), lambda i: (i, 0, 0)),
                # backward gx slab: block NT-1-i (time reversal lives in the
                # index_map — no materialized [::-1] pass over HBM)
                pl.BlockSpec((TT, B, 4 * H), lambda i: (NT - 1 - i, 0, 0)),
                # recurrent weights for both directions, resident in VMEM
                pl.BlockSpec((2, H, 4 * H), lambda i: (0, 0, 0)),
            ],
            out_specs=[
                pl.BlockSpec((TT, B, H), lambda i: (i, 0, 0)),
                pl.BlockSpec((TT, B, H), lambda i: (NT - 1 - i, 0, 0)),
                pl.BlockSpec((2, B, H), lambda i: (0, 0, 0)),
                pl.BlockSpec((2, B, H), lambda i: (0, 0, 0)),
            ],
            scratch_shapes=[pltpu.VMEM((B, H), jnp.float32)] * 4,
        ),
        compiler_params=pltpu.CompilerParams(
            # recurrence: strictly sequential time axis
            dimension_semantics=("arbitrary",)),
    )(gxf, gxb, w_hh)

    return states_f[:T], states_b[:T], hT, cT


# ----------------------------------------------------------------------------
# Encoder forward
# ----------------------------------------------------------------------------
def encoder_forward(source, params):
    """source: (T, B) int32 token ids.  Returns (encoder_states, hidden, cell)."""
    T, B = source.shape
    H = params["w_hh"].shape[1]

    # Fold the embedding into the input projection:
    #   embedding[ids] @ W_ih + b  ==  (embedding @ W_ih + b)[ids]
    # One (VOCAB, 8H) table (built once under jit; precompute offline in
    # production), then a single gather — no input GEMM, no (T,B,E) tensor.
    g_table = params["embedding"] @ params["w_ih_all"] + params["b_all"]  # (V, 8H)
    gx = g_table[source]                                                  # (T, B, 8H)
    gxf = gx[..., :4 * H]
    gxb = gx[..., 4 * H:]
    # TODO(synk): dropout (p=0.4) applied as identity (inference mode).

    # Fused bidirectional recurrence (the Pallas kernel).
    states_f, states_b, hT, cT = run_bilstm(gxf, gxb, params["w_hh"])

    encoder_states = jnp.concatenate([states_f, states_b], axis=-1)       # (T,B,2H)

    # cat_hidden / cat_cell: tiny (B,2H)@(2H,H) projections — plain XLA ops,
    # with W stored as (2, H, H) so no concatenation of h/c is needed.
    hidden = (hT[0] @ params["w_cat_h"][0] + hT[1] @ params["w_cat_h"][1]
              + params["b_cat_h"])
    cell = (cT[0] @ params["w_cat_c"][0] + cT[1] @ params["w_cat_c"][1]
            + params["b_cat_c"])
    return encoder_states, hidden[None], cell[None]   # (T,B,2H),(1,B,H),(1,B,H)


encoder_forward_jit = jax.jit(encoder_forward)


# ----------------------------------------------------------------------------
# Pure-JAX reference (same parameter layout; gate order i, f, o, g).
# ----------------------------------------------------------------------------
def _ref_lstm(x, w_ih, w_hh, b):
    H = w_hh.shape[0]
    B = x.shape[1]

    def step(carry, xt):
        h, c = carry
        gates = xt @ w_ih + h @ w_hh + b
        i_g = jax.nn.sigmoid(gates[:, 0:H])
        f_g = jax.nn.sigmoid(gates[:, H:2 * H])
        o_g = jax.nn.sigmoid(gates[:, 2 * H:3 * H])
        g_g = jnp.tanh(gates[:, 3 * H:4 * H])
        c = f_g * c + i_g * g_g
        h = o_g * jnp.tanh(c)
        return (h, c), h

    init = (jnp.zeros((B, H), jnp.float32), jnp.zeros((B, H), jnp.float32))
    (hT, cT), hs = jax.lax.scan(step, init, x)
    return hs, hT, cT


def _ref_encoder(source, params):
    H = params["w_hh"].shape[1]
    emb = params["embedding"][source]
    w_ih_f = params["w_ih_all"][:, :4 * H]
    w_ih_b = params["w_ih_all"][:, 4 * H:]
    b_f = params["b_all"][0, :4 * H]
    b_b = params["b_all"][0, 4 * H:]
    s_f, h_f, c_f = _ref_lstm(emb, w_ih_f, params["w_hh"][0], b_f)
    s_b_rev, h_b, c_b = _ref_lstm(emb[::-1], w_ih_b, params["w_hh"][1], b_b)
    s_b = s_b_rev[::-1]
    states = jnp.concatenate([s_f, s_b], axis=-1)
    hidden = (h_f @ params["w_cat_h"][0] + h_b @ params["w_cat_h"][1]
              + params["b_cat_h"][0])[None]
    cell = (c_f @ params["w_cat_c"][0] + c_b @ params["w_cat_c"][1]
            + params["b_cat_c"][0])[None]
    return states, hidden, cell


# ----------------------------------------------------------------------------
if __name__ == "__main__":
    VOCAB, EMB, HID = 50, 16, 32
    T, B = 8, 2

    key = jax.random.PRNGKey(0)
    ks = jax.random.split(key, 9)
    scale = 0.1

    params = {
        "embedding": scale * jax.random.normal(ks[0], (VOCAB, EMB), jnp.float32),
        # Input-projection weights for BOTH directions packed as (E, 8H):
        # columns = [fwd | bwd], each 4H group in gate order (i, f, o, g).
        # (To load PyTorch weights, permute the torch (i,f,g,o) gate blocks.)
        "w_ih_all": scale * jax.random.normal(ks[1], (EMB, 8 * HID), jnp.float32),
        # Combined b_ih + b_hh biases, packed [fwd | bwd].
        "b_all": scale * jax.random.normal(ks[2], (1, 8 * HID), jnp.float32),
        # Recurrent weights stacked per direction: (2, H, 4H), gates (i,f,o,g).
        "w_hh": scale * jax.random.normal(ks[3], (2, HID, 4 * HID), jnp.float32),
        # cat_hidden / cat_cell (2H, H) weights stored as (2, H, H) = [fwd; bwd].
        "w_cat_h": scale * jax.random.normal(ks[4], (2, HID, HID), jnp.float32),
        "b_cat_h": scale * jax.random.normal(ks[5], (1, HID), jnp.float32),
        "w_cat_c": scale * jax.random.normal(ks[6], (2, HID, HID), jnp.float32),
        "b_cat_c": scale * jax.random.normal(ks[7], (1, HID), jnp.float32),
    }

    source = jax.random.randint(ks[8], (T, B), 0, VOCAB, dtype=jnp.int32)

    states, hidden, cell = jax.block_until_ready(
        encoder_forward_jit(source, params))

    # Verify against pure-JAX reference.
    ref_states, ref_hidden, ref_cell = _ref_encoder(source, params)
    assert states.shape == (T, B, 2 * HID)
    assert hidden.shape == (1, B, HID)
    assert cell.shape == (1, B, HID)
    assert jnp.allclose(states, ref_states, atol=1e-5, rtol=1e-5)
    assert jnp.allclose(hidden, ref_hidden, atol=1e-5, rtol=1e-5)
    assert jnp.allclose(cell, ref_cell, atol=1e-5, rtol=1e-5)

    print("KERNEL_OK")
</pallas_src>

<mosaic_0001>
module attributes {stable_mosaic.version = 11 : i64} {
  func.func @_bilstm_kernel(%arg0: i32, %arg1: memref<32x2x128xf32, #tpu.memory_space<vmem>>, %arg2: memref<32x2x128xf32, #tpu.memory_space<vmem>>, %arg3: memref<2x32x128xf32, #tpu.memory_space<vmem>>, %arg4: memref<32x2x32xf32, #tpu.memory_space<vmem>>, %arg5: memref<32x2x32xf32, #tpu.memory_space<vmem>>, %arg6: memref<2x2x32xf32, #tpu.memory_space<vmem>>, %arg7: memref<2x2x32xf32, #tpu.memory_space<vmem>>, %arg8: memref<2x32xf32, #tpu.memory_space<vmem>>, %arg9: memref<2x32xf32, #tpu.memory_space<vmem>>, %arg10: memref<2x32xf32, #tpu.memory_space<vmem>>, %arg11: memref<2x32xf32, #tpu.memory_space<vmem>>) attributes {dimension_semantics = [#tpu.dimension_semantics<arbitrary>], iteration_bounds = array<i64: 1>, scalar_prefetch = 0 : i64, scratch_operands = 4 : i64, tpu.core_type = #tpu.core_type<tc>, window_params = [{transform_indices = @transform_0, window_bounds = array<i64: 32, 2, 128>}, {transform_indices = @transform_1, window_bounds = array<i64: 32, 2, 128>}, {pipeline_mode = #tpu.pipeline_mode<synchronous>, transform_indices = @transform_2, window_bounds = array<i64: 2, 32, 128>}, {transform_indices = @transform_3, window_bounds = array<i64: 32, 2, 32>}, {transform_indices = @transform_4, window_bounds = array<i64: 32, 2, 32>}, {pipeline_mode = #tpu.pipeline_mode<synchronous>, transform_indices = @transform_5, window_bounds = array<i64: 2, 2, 32>}, {pipeline_mode = #tpu.pipeline_mode<synchronous>, transform_indices = @transform_6, window_bounds = array<i64: 2, 2, 32>}]} {
    %c0_i32 = arith.constant 0 : i32
    %0 = arith.cmpi eq, %arg0, %c0_i32 : i32
    %1 = arith.extui %0 : i1 to i32
    %c0_i32_0 = arith.constant 0 : i32
    %2 = arith.cmpi ne, %1, %c0_i32_0 : i32
    scf.if %2 {
      %cst_603 = arith.constant 0.000000e+00 : f32
      %1749 = vector.broadcast %cst_603 : f32 to vector<2x32xf32>
      %c0_604 = arith.constant 0 : index
      %c0_605 = arith.constant 0 : index
      %1750 = vector.load %arg8[%c0_604, %c0_605] : memref<2x32xf32, #tpu.memory_space<vmem>>, vector<2x32xf32>
      tpu.vector_store %arg8[%c0_604, %c0_605], %1749 {strides = array<i32>} : memref<2x32xf32, #tpu.memory_space<vmem>>, vector<2x32xf32>,
      %cst_606 = arith.constant 0.000000e+00 : f32
      %1751 = vector.broadcast %cst_606 : f32 to vector<2x32xf32>
      %c0_607 = arith.constant 0 : index
      %c0_608 = arith.constant 0 : index
      %1752 = vector.load %arg9[%c0_607, %c0_608] : memref<2x32xf32, #tpu.memory_space<vmem>>, vector<2x32xf32>
      tpu.vector_store %arg9[%c0_607, %c0_608], %1751 {strides = array<i32>} : memref<2x32xf32, #tpu.memory_space<vmem>>, vector<2x32xf32>,
      %cst_609 = arith.constant 0.000000e+00 : f32
      %1753 = vector.broadcast %cst_609 : f32 to vector<2x32xf32>
      %c0_610 = arith.constant 0 : index
      %c0_611 = arith.constant 0 : index
      %1754 = vector.load %arg10[%c0_610, %c0_611] : memref<2x32xf32, #tpu.memory_space<vmem>>, vector<2x32xf32>
      tpu.vector_store %arg10[%c0_610, %c0_611], %1753 {strides = array<i32>} : memref<2x32xf32, #tpu.memory_space<vmem>>, vector<2x32xf32>,
      %cst_612 = arith.constant 0.000000e+00 : f32
      %1755 = vector.broadcast %cst_612 : f32 to vector<2x32xf32>
      %c0_613 = arith.constant 0 : index
      %c0_614 = arith.constant 0 : index
      %1756 = vector.load %arg11[%c0_613, %c0_614] : memref<2x32xf32, #tpu.memory_space<vmem>>, vector<2x32xf32>
      tpu.vector_store %arg11[%c0_613, %c0_614], %1755 {strides = array<i32>} : memref<2x32xf32, #tpu.memory_space<vmem>>, vector<2x32xf32>,
    } else {
    }
    %c0 = arith.constant 0 : index
    %c0_1 = arith.constant 0 : index
    %c0_2 = arith.constant 0 : index
    %3 = vector.load %arg3[%c0, %c0_1, %c0_2] : memref<2x32x128xf32, #tpu.memory_space<vmem>>, vector<1x32x128xf32>
    %4 = vector.shape_cast %3 : vector<1x32x128xf32> to vector<32x128xf32>
    %c1 = arith.constant 1 : index
    %c0_3 = arith.constant 0 : index
    %c0_4 = arith.constant 0 : index
    %5 = vector.load %arg3[%c1, %c0_3, %c0_4] : memref<2x32x128xf32, #tpu.memory_space<vmem>>, vector<1x32x128xf32>
    %6 = vector.shape_cast %5 : vector<1x32x128xf32> to vector<32x128xf32>
    %c0_5 = arith.constant 0 : index
    %c0_6 = arith.constant 0 : index
    %7 = vector.load %arg8[%c0_5, %c0_6] : memref<2x32xf32, #tpu.memory_space<vmem>>, vector<2x32xf32>
    %c0_7 = arith.constant 0 : index
    %c0_8 = arith.constant 0 : index
    %8 = vector.load %arg9[%c0_7, %c0_8] : memref<2x32xf32, #tpu.memory_space<vmem>>, vector<2x32xf32>
    %c0_9 = arith.constant 0 : index
    %c0_10 = arith.constant 0 : index
    %9 = vector.load %arg10[%c0_9, %c0_10] : memref<2x32xf32, #tpu.memory_space<vmem>>, vector<2x32xf32>
    %c0_11 = arith.constant 0 : index
    %c0_12 = arith.constant 0 : index
    %10 = vector.load %arg11[%c0_11, %c0_12] : memref<2x32xf32, #tpu.memory_space<vmem>>, vector<2x32xf32>
    %c32_i32 = arith.constant 32 : i32
    %11 = arith.muli %arg0, %c32_i32 : i32
    %c0_i32_13 = arith.constant 0 : i32
    %12 = arith.subi %c0_i32_13, %arg0 : i32
    %c32_i32_14 = arith.constant 32 : i32
    %13 = arith.muli %12, %c32_i32_14 : i32
    %c0_15 = arith.constant 0 : index
    %c0_16 = arith.constant 0 : index
    %c0_17 = arith.constant 0 : index
    %14 = vector.load %arg1[%c0_15, %c0_16, %c0_17] : memref<32x2x128xf32, #tpu.memory_space<vmem>>, vector<1x2x128xf32>
    %15 = vector.shape_cast %14 : vector<1x2x128xf32> to vector<2x128xf32>
    %cst = arith.constant dense<0.000000e+00> : vector<2x128xf32>
    %16 = tpu.matmul %7, %4, %cst {dimension_numbers = #tpu.dot_dimension_numbers<[1], [0], [0], [1], [0, 0, 1, 1], [], []>} : vector<2x32xf32>, vector<32x128xf32>, vector<2x128xf32> -> vector<2x128xf32>
    %17 = arith.addf %15, %16 : vector<2x128xf32>
    %18 = vector.extract_strided_slice %17 {offsets = [0, 0], sizes = [2, 96], strides = [1, 1]} : vector<2x128xf32> to vector<2x96xf32>
    %19 = arith.negf %18 : vector<2x96xf32>
    %20 = math.exp %19 : vector<2x96xf32>
    %cst_18 = arith.constant 1.000000e+00 : f32
    %21 = vector.broadcast %cst_18 : f32 to vector<2x96xf32>
    %22 = arith.addf %21, %20 : vector<2x96xf32>
    %23 = arith.divf %21, %22 : vector<2x96xf32>
    %24 = vector.extract_strided_slice %17 {offsets = [0, 96], sizes = [2, 32], strides = [1, 1]} : vector<2x128xf32> to vector<2x32xf32>
    %25 = math.tanh %24 : vector<2x32xf32>
    %26 = vector.extract_strided_slice %23 {offsets = [0, 32], sizes = [2, 32], strides = [1, 1]} : vector<2x96xf32> to vector<2x32xf32>
    %27 = arith.mulf %26, %8 : vector<2x32xf32>
    %28 = vector.extract_strided_slice %23 {offsets = [0, 0], sizes = [2, 32], strides = [1, 1]} : vector<2x96xf32> to vector<2x32xf32>
    %29 = arith.mulf %28, %25 : vector<2x32xf32>
    %30 = arith.addf %27, %29 : vector<2x32xf32>
    %31 = vector.extract_strided_slice %23 {offsets = [0, 64], sizes = [2, 32], strides = [1, 1]} : vector<2x96xf32> to vector<2x32xf32>
    %32 = math.tanh %30 : vector<2x32xf32>
    %33 = arith.mulf %31, %32 : vector<2x32xf32>
    %c0_i32_19 = arith.constant 0 : i32
    %34 = arith.addi %11, %c0_i32_19 : i32
    %c8_i32 = arith.constant 8 : i32
    %35 = arith.cmpi slt, %34, %c8_i32 : i32
    %36 = arith.select %35, %33, %7 : vector<2x32xf32>
    %37 = arith.select %35, %30, %8 : vector<2x32xf32>
    %c0_20 = arith.constant 0 : index
    %c0_21 = arith.constant 0 : index
    %c0_22 = arith.constant 0 : index
    %38 = vector.load %arg4[%c0_20, %c0_21, %c0_22] : memref<32x2x32xf32, #tpu.memory_space<vmem>>, vector<1x2x32xf32>
    %39 = vector.shape_cast %38 : vector<1x2x32xf32> to vector<2x32xf32>
    %40 = vector.shape_cast %36 : vector<2x32xf32> to vector<1x2x32xf32>
    tpu.vector_store %arg4[%c0_20, %c0_21, %c0_22], %40 {strides = array<i32>} : memref<32x2x32xf32, #tpu.memory_space<vmem>>, vector<1x2x32xf32>,
    %c31 = arith.constant 31 : index
    %c0_23 = arith.constant 0 : index
    %c0_24 = arith.constant 0 : index
    %41 = vector.load %arg2[%c31, %c0_23, %c0_24] : memref<32x2x128xf32, #tpu.memory_space<vmem>>, vector<1x2x128xf32>
    %42 = vector.shape_cast %41 : vector<1x2x128xf32> to vector<2x128xf32>
    %cst_25 = arith.constant dense<0.000000e+00> : vector<2x128xf32>
    %43 = tpu.matmul %9, %6, %cst_25 {dimension_numbers = #tpu.dot_dimension_numbers<[1], [0], [0], [1], [0, 0, 1, 1], [], []>} : vector<2x32xf32>, vector<32x128xf32>, vector<2x128xf32> -> vector<2x128xf32>
    %44 = arith.addf %42, %43 : vector<2x128xf32>
    %45 = vector.extract_strided_slice %44 {offsets = [0, 0], sizes = [2, 96], strides = [1, 1]} : vector<2x128xf32> to vector<2x96xf32>
    %46 = arith.negf %45 : vector<2x96xf32>
    %47 = math.exp %46 : vector<2x96xf32>
    %cst_26 = arith.constant 1.000000e+00 : f32
    %48 = vector.broadcast %cst_26 : f32 to vector<2x96xf32>
    %49 = arith.addf %48, %47 : vector<2x96xf32>
    %50 = arith.divf %48, %49 : vector<2x96xf32>
    %51 = vector.extract_strided_slice %44 {offsets = [0, 96], sizes = [2, 32], strides = [1, 1]} : vector<2x128xf32> to vector<2x32xf32>
    %52 = math.tanh %51 : vector<2x32xf32>
    %53 = vector.extract_strided_slice %50 {offsets = [0, 32], sizes = [2, 32], strides = [1, 1]} : vector<2x96xf32> to vector<2x32xf32>
    %54 = arith.mulf %53, %10 : vector<2x32xf32>
    %55 = vector.extract_strided_slice %50 {offsets = [0, 0], sizes = [2, 32], strides = [1, 1]} : vector<2x96xf32> to vector<2x32xf32>
    %56 = arith.mulf %55, %52 : vector<2x32xf32>
    %57 = arith.addf %54, %56 : vector<2x32xf32>
    %58 = vector.extract_strided_slice %50 {offsets = [0, 64], sizes = [2, 32], strides = [1, 1]} : vector<2x96xf32> to vector<2x32xf32>
    %59 = math.tanh %57 : vector<2x32xf32>
    %60 = arith.mulf %58, %59 : vector<2x32xf32>
    %c31_i32 = arith.constant 31 : i32
    %61 = arith.addi %13, %c31_i32 : i32
    %c8_i32_27 = arith.constant 8 : i32
    %62 = arith.cmpi slt, %61, %c8_i32_27 : i32
    %63 = arith.select %62, %60, %9 : vector<2x32xf32>
    %64 = arith.select %62, %57, %10 : vector<2x32xf32>
    %c31_28 = arith.constant 31 : index
    %c0_29 = arith.constant 0 : index
    %c0_30 = arith.constant 0 : index
    %65 = vector.load %arg5[%c31_28, %c0_29, %c0_30] : memref<32x2x32xf32, #tpu.memory_space<vmem>>, vector<1x2x32xf32>
    %66 = vector.shape_cast %65 : vector<1x2x32xf32> to vector<2x32xf32>
    %67 = vector.shape_cast %63 : vector<2x32xf32> to vector<1x2x32xf32>
    tpu.vector_store %arg5[%c31_28, %c0_29, %c0_30], %67 {strides = array<i32>} : memref<32x2x32xf32, #tpu.memory_space<vmem>>, vector<1x2x32xf32>,
    %c1_31 = arith.constant 1 : index
    %c0_32 = arith.constant 0 : index
    %c0_33 = arith.constant 0 : index
    %68 = vector.load %arg1[%c1_31, %c0_32, %c0_33] : memref<32x2x128xf32, #tpu.memory_space<vmem>>, vector<1x2x128xf32>
    %69 = vector.shape_cast %68 : vector<1x2x128xf32> to vector<2x128xf32>
    %cst_34 = arith.constant dense<0.000000e+00> : vector<2x128xf32>
    %70 = tpu.matmul %36, %4, %cst_34 {dimension_numbers = #tpu.dot_dimension_numbers<[1], [0], [0], [1], [0, 0, 1, 1], [], []>} : vector<2x32xf32>, vector<32x128xf32>, vector<2x128xf32> -> vector<2x128xf32>
    %71 = arith.addf %69, %70 : vector<2x128xf32>
    %72 = vector.extract_strided_slice %71 {offsets = [0, 0], sizes = [2, 96], strides = [1, 1]} : vector<2x128xf32> to vector<2x96xf32>
    %73 = arith.negf %72 : vector<2x96xf32>
    %74 = math.exp %73 : vector<2x96xf32>
    %cst_35 = arith.constant 1.000000e+00 : f32
    %75 = vector.broadcast %cst_35 : f32 to vector<2x96xf32>
    %76 = arith.addf %75, %74 : vector<2x96xf32>
    %77 = arith.divf %75, %76 : vector<2x96xf32>
    %78 = vector.extract_strided_slice %71 {offsets = [0, 96], sizes = [2, 32], strides = [1, 1]} : vector<2x128xf32> to vector<2x32xf32>
    %79 = math.tanh %78 : vector<2x32xf32>
    %80 = vector.extract_strided_slice %77 {offsets = [0, 32], sizes = [2, 32], strides = [1, 1]} : vector<2x96xf32> to vector<2x32xf32>
    %81 = arith.mulf %80, %37 : vector<2x32xf32>
    %82 = vector.extract_strided_slice %77 {offsets = [0, 0], sizes = [2, 32], strides = [1, 1]} : vector<2x96xf32> to vector<2x32xf32>
    %83 = arith.mulf %82, %79 : vector<2x32xf32>
    %84 = arith.addf %81, %83 : vector<2x32xf32>
    %85 = vector.extract_strided_slice %77 {offsets = [0, 64], sizes = [2, 32], strides = [1, 1]} : vector<2x96xf32> to vector<2x32xf32>
    %86 = math.tanh %84 : vector<2x32xf32>
    %87 = arith.mulf %85, %86 : vector<2x32xf32>
    %c1_i32 = arith.constant 1 : i32
    %88 = arith.addi %11, %c1_i32 : i32
    %c8_i32_36 = arith.constant 8 : i32
    %89 = arith.cmpi slt, %88, %c8_i32_36 : i32
    %90 = arith.select %89, %87, %36 : vector<2x32xf32>
    %91 = arith.select %89, %84, %37 : vector<2x32xf32>
    %c1_37 = arith.constant 1 : index
    %c0_38 = arith.constant 0 : index
    %c0_39 = arith.constant 0 : index
    %92 = vector.load %arg4[%c1_37, %c0_38, %c0_39] : memref<32x2x32xf32, #tpu.memory_space<vmem>>, vector<1x2x32xf32>
    %93 = vector.shape_cast %92 : vector<1x2x32xf32> to vector<2x32xf32>
    %94 = vector.shape_cast %90 : vector<2x32xf32> to vector<1x2x32xf32>
    tpu.vector_store %arg4[%c1_37, %c0_38, %c0_39], %94 {strides = array<i32>} : memref<32x2x32xf32, #tpu.memory_space<vmem>>, vector<1x2x32xf32>,
    %c30 = arith.constant 30 : index
    %c0_40 = arith.constant 0 : index
    %c0_41 = arith.constant 0 : index
    %95 = vector.load %arg2[%c30, %c0_40, %c0_41] : memref<32x2x128xf32, #tpu.memory_space<vmem>>, vector<1x2x128xf32>
    %96 = vector.shape_cast %95 : vector<1x2x128xf32> to vector<2x128xf32>
    %cst_42 = arith.constant dense<0.000000e+00> : vector<2x128xf32>
    %97 = tpu.matmul %63, %6, %cst_42 {dimension_numbers = #tpu.dot_dimension_numbers<[1], [0], [0], [1], [0, 0, 1, 1], [], []>} : vector<2x32xf32>, vector<32x128xf32>, vector<2x128xf32> -> vector<2x128xf32>
    %98 = arith.addf %96, %97 : vector<2x128xf32>
    %99 = vector.extract_strided_slice %98 {offsets = [0, 0], sizes = [2, 96], strides = [1, 1]} : vector<2x128xf32> to vector<2x96xf32>
    %100 = arith.negf %99 : vector<2x96xf32>
    %101 = math.exp %100 : vector<2x96xf32>
    %cst_43 = arith.constant 1.000000e+00 : f32
    %102 = vector.broadcast %cst_43 : f32 to vector<2x96xf32>
    %103 = arith.addf %102, %101 : vector<2x96xf32>
    %104 = arith.divf %102, %103 : vector<2x96xf32>
    %105 = vector.extract_strided_slice %98 {offsets = [0, 96], sizes = [2, 32], strides = [1, 1]} : vector<2x128xf32> to vector<2x32xf32>
    %106 = math.tanh %105 : vector<2x32xf32>
    %107 = vector.extract_strided_slice %104 {offsets = [0, 32], sizes = [2, 32], strides = [1, 1]} : vector<2x96xf32> to vector<2x32xf32>
    %108 = arith.mulf %107, %64 : vector<2x32xf32>
    %109 = vector.extract_strided_slice %104 {offsets = [0, 0], sizes = [2, 32], strides = [1, 1]} : vector<2x96xf32> to vector<2x32xf32>
    %110 = arith.mulf %109, %106 : vector<2x32xf32>
    %111 = arith.addf %108, %110 : vector<2x32xf32>
    %112 = vector.extract_strided_slice %104 {offsets = [0, 64], sizes = [2, 32], strides = [1, 1]} : vector<2x96xf32> to vector<2x32xf32>
    %113 = math.tanh %111 : vector<2x32xf32>
    %114 = arith.mulf %112, %113 : vector<2x32xf32>
    %c30_i32 = arith.constant 30 : i32
    %115 = arith.addi %13, %c30_i32 : i32
    %c8_i32_44 = arith.constant 8 : i32
    %116 = arith.cmpi slt, %115, %c8_i32_44 : i32
    %117 = arith.select %116, %114, %63 : vector<2x32xf32>
    %118 = arith.select %116, %111, %64 : vector<2x32xf32>
    %c30_45 = arith.constant 30 : index
    %c0_46 = arith.constant 0 : index
    %c0_47 = arith.constant 0 : index
    %119 = vector.load %arg5[%c30_45, %c0_46, %c0_47] : memref<32x2x32xf32, #tpu.memory_space<vmem>>, vector<1x2x32xf32>
    %120 = vector.shape_cast %119 : vector<1x2x32xf32> to vector<2x32xf32>
    %121 = vector.shape_cast %117 : vector<2x32xf32> to vector<1x2x32xf32>
    tpu.vector_store %arg5[%c30_45, %c0_46, %c0_47], %121 {strides = array<i32>} : memref<32x2x32xf32, #tpu.memory_space<vmem>>, vector<1x2x32xf32>,
    %c2 = arith.constant 2 : index
    %c0_48 = arith.constant 0 : index
    %c0_49 = arith.constant 0 : index
    %122 = vector.load %arg1[%c2, %c0_48, %c0_49] : memref<32x2x128xf32, #tpu.memory_space<vmem>>, vector<1x2x128xf32>
    %123 = vector.shape_cast %122 : vector<1x2x128xf32> to vector<2x128xf32>
    %cst_50 = arith.constant dense<0.000000e+00> : vector<2x128xf32>
    %124 = tpu.matmul %90, %4, %cst_50 {dimension_numbers = #tpu.dot_dimension_numbers<[1], [0], [0], [1], [0, 0, 1, 1], [], []>} : vector<2x32xf32>, vector<32x128xf32>, vector<2x128xf32> -> vector<2x128xf32>
    %125 = arith.addf %123, %124 : vector<2x128xf32>
    %126 = vector.extract_strided_slice %125 {offsets = [0, 0], sizes = [2, 96], strides = [1, 1]} : vector<2x128xf32> to vector<2x96xf32>
    %127 = arith.negf %126 : vector<2x96xf32>
    %128 = math.exp %127 : vector<2x96xf32>
    %cst_51 = arith.constant 1.000000e+00 : f32
    %129 = vector.broadcast %cst_51 : f32 to vector<2x96xf32>
    %130 = arith.addf %129, %128 : vector<2x96xf32>
    %131 = arith.divf %129, %130 : vector<2x96xf32>
    %132 = vector.extract_strided_slice %125 {offsets = [0, 96], sizes = [2, 32], strides = [1, 1]} : vector<2x128xf32> to vector<2x32xf32>
    %133 = math.tanh %132 : vector<2x32xf32>
    %134 = vector.extract_strided_slice %131 {offsets = [0, 32], sizes = [2, 32], strides = [1, 1]} : vector<2x96xf32> to vector<2x32xf32>
    %135 = arith.mulf %134, %91 : vector<2x32xf32>
    %136 = vector.extract_strided_slice %131 {offsets = [0, 0], sizes = [2, 32], strides = [1, 1]} : vector<2x96xf32> to vector<2x32xf32>
    %137 = arith.mulf %136, %133 : vector<2x32xf32>
    %138 = arith.addf %135, %137 : vector<2x32xf32>
    %139 = vector.extract_strided_slice %131 {offsets = [0, 64], sizes = [2, 32], strides = [1, 1]} : vector<2x96xf32> to vector<2x32xf32>
    %140 = math.tanh %138 : vector<2x32xf32>
    %141 = arith.mulf %139, %140 : vector<2x32xf32>
    %c2_i32 = arith.constant 2 : i32
    %142 = arith.addi %11, %c2_i32 : i32
    %c8_i32_52 = arith.constant 8 : i32
    %143 = arith.cmpi slt, %142, %c8_i32_52 : i32
    %144 = arith.select %143, %141, %90 : vector<2x32xf32>
    %145 = arith.select %143, %138, %91 : vector<2x32xf32>
    %c2_53 = arith.constant 2 : index
    %c0_54 = arith.constant 0 : index
    %c0_55 = arith.constant 0 : index
    %146 = vector.load %arg4[%c2_53, %c0_54, %c0_55] : memref<32x2x32xf32, #tpu.memory_space<vmem>>, vector<1x2x32xf32>
    %147 = vector.shape_cast %146 : vector<1x2x32xf32> to vector<2x32xf32>
    %148 = vector.shape_cast %144 : vector<2x32xf32> to vector<1x2x32xf32>
    tpu.vector_store %arg4[%c2_53, %c0_54, %c0_55], %148 {strides = array<i32>} : memref<32x2x32xf32, #tpu.memory_space<vmem>>, vector<1x2x32xf32>,
    %c29 = arith.constant 29 : index
    %c0_56 = arith.constant 0 : index
    %c0_57 = arith.constant 0 : index
    %149 = vector.load %arg2[%c29, %c0_56, %c0_57] : memref<32x2x128xf32, #tpu.memory_space<vmem>>, vector<1x2x128xf32>
    %150 = vector.shape_cast %149 : vector<1x2x128xf32> to vector<2x128xf32>
    %cst_58 = arith.constant dense<0.000000e+00> : vector<2x128xf32>
    %151 = tpu.matmul %117, %6, %cst_58 {dimension_numbers = #tpu.dot_dimension_numbers<[1], [0], [0], [1], [0, 0, 1, 1], [], []>} : vector<2x32xf32>, vector<32x128xf32>, vector<2x128xf32> -> vector<2x128xf32>
    %152 = arith.addf %150, %151 : vector<2x128xf32>
    %153 = vector.extract_strided_slice %152 {offsets = [0, 0], sizes = [2, 96], strides = [1, 1]} : vector<2x128xf32> to vector<2x96xf32>
    %154 = arith.negf %153 : vector<2x96xf32>
    %155 = math.exp %154 : vector<2x96xf32>
    %cst_59 = arith.constant 1.000000e+00 : f32
    %156 = vector.broadcast %cst_59 : f32 to vector<2x96xf32>
    %157 = arith.addf %156, %155 : vector<2x96xf32>
    %158 = arith.divf %156, %157 : vector<2x96xf32>
    %159 = vector.extract_strided_slice %152 {offsets = [0, 96], sizes = [2, 32], strides = [1, 1]} : vector<2x128xf32> to vector<2x32xf32>
    %160 = math.tanh %159 : vector<2x32xf32>
    %161 = vector.extract_strided_slice %158 {offsets = [0, 32], sizes = [2, 32], strides = [1, 1]} : vector<2x96xf32> to vector<2x32xf32>
    %162 = arith.mulf %161, %118 : vector<2x32xf32>
    %163 = vector.extract_strided_slice %158 {offsets = [0, 0], sizes = [2, 32], strides = [1, 1]} : vector<2x96xf32> to vector<2x32xf32>
    %164 = arith.mulf %163, %160 : vector<2x32xf32>
    %165 = arith.addf %162, %164 : vector<2x32xf32>
    %166 = vector.extract_strided_slice %158 {offsets = [0, 64], sizes = [2, 32], strides = [1, 1]} : vector<2x96xf32> to vector<2x32xf32>
    %167 = math.tanh %165 : vector<2x32xf32>
    %168 = arith.mulf %166, %167 : vector<2x32xf32>
    %c29_i32 = arith.constant 29 : i32
    %169 = arith.addi %13, %c29_i32 : i32
    %c8_i32_60 = arith.constant 8 : i32
    %170 = arith.cmpi slt, %169, %c8_i32_60 : i32
    %171 = arith.select %170, %168, %117 : vector<2x32xf32>
    %172 = arith.select %170, %165, %118 : vector<2x32xf32>
    %c29_61 = arith.constant 29 : index
    %c0_62 = arith.constant 0 : index
    %c0_63 = arith.constant 0 : index
    %173 = vector.load %arg5[%c29_61, %c0_62, %c0_63] : memref<32x2x32xf32, #tpu.memory_space<vmem>>, vector<1x2x32xf32>
    %174 = vector.shape_cast %173 : vector<1x2x32xf32> to vector<2x32xf32>
    %175 = vector.shape_cast %171 : vector<2x32xf32> to vector<1x2x32xf32>
    tpu.vector_store %arg5[%c29_61, %c0_62, %c0_63], %175 {strides = array<i32>} : memref<32x2x32xf32, #tpu.memory_space<vmem>>, vector<1x2x32xf32>,
    %c3 = arith.constant 3 : index
    %c0_64 = arith.constant 0 : index
    %c0_65 = arith.constant 0 : index
    %176 = vector.load %arg1[%c3, %c0_64, %c0_65] : memref<32x2x128xf32, #tpu.memory_space<vmem>>, vector<1x2x128xf32>
    %177 = vector.shape_cast %176 : vector<1x2x128xf32> to vector<2x128xf32>
    %cst_66 = arith.constant dense<0.000000e+00> : vector<2x128xf32>
    %178 = tpu.matmul %144, %4, %cst_66 {dimension_numbers = #tpu.dot_dimension_numbers<[1], [0], [0], [1], [0, 0, 1, 1], [], []>} : vector<2x32xf32>, vector<32x128xf32>, vector<2x128xf32> -> vector<2x128xf32>
    %179 = arith.addf %177, %178 : vector<2x128xf32>
    %180 = vector.extract_strided_slice %179 {offsets = [0, 0], sizes = [2, 96], strides = [1, 1]} : vector<2x128xf32> to vector<2x96xf32>
    %181 = arith.negf %180 : vector<2x96xf32>
    %182 = math.exp %181 : vector<2x96xf32>
    %cst_67 = arith.constant 1.000000e+00 : f32
    %183 = vector.broadcast %cst_67 : f32 to vector<2x96xf32>
    %184 = arith.addf %183, %182 : vector<2x96xf32>
    %185 = arith.divf %183, %184 : vector<2x96xf32>
    %186 = vector.extract_strided_slice %179 {offsets = [0, 96], sizes = [2, 32], strides = [1, 1]} : vector<2x128xf32> to vector<2x32xf32>
    %187 = math.tanh %186 : vector<2x32xf32>
    %188 = vector.extract_strided_slice %185 {offsets = [0, 32], sizes = [2, 32], strides = [1, 1]} : vector<2x96xf32> to vector<2x32xf32>
    %189 = arith.mulf %188, %145 : vector<2x32xf32>
    %190 = vector.extract_strided_slice %185 {offsets = [0, 0], sizes = [2, 32], strides = [1, 1]} : vector<2x96xf32> to vector<2x32xf32>
    %191 = arith.mulf %190, %187 : vector<2x32xf32>
    %192 = arith.addf %189, %191 : vector<2x32xf32>
    %193 = vector.extract_strided_slice %185 {offsets = [0, 64], sizes = [2, 32], strides = [1, 1]} : vector<2x96xf32> to vector<2x32xf32>
    %194 = math.tanh %192 : vector<2x32xf32>
    %195 = arith.mulf %193, %194 : vector<2x32xf32>
    %c3_i32 = arith.constant 3 : i32
    %196 = arith.addi %11, %c3_i32 : i32
    %c8_i32_68 = arith.constant 8 : i32
    %197 = arith.cmpi slt, %196, %c8_i32_68 : i32
    %198 = arith.select %197, %195, %144 : vector<2x32xf32>
    %199 = arith.select %197, %192, %145 : vector<2x32xf32>
    %c3_69 = arith.constant 3 : index
    %c0_70 = arith.constant 0 : index
    %c0_71 = arith.constant 0 : index
    %200 = vector.load %arg4[%c3_69, %c0_70, %c0_71] : memref<32x2x32xf32, #tpu.memory_space<vmem>>, vector<1x2x32xf32>
    %201 = vector.shape_cast %200 : vector<1x2x32xf32> to vector<2x32xf32>
    %202 = vector.shape_cast %198 : vector<2x32xf32> to vector<1x2x32xf32>
    tpu.vector_store %arg4[%c3_69, %c0_70, %c0_71], %202 {strides = array<i32>} : memref<32x2x32xf32, #tpu.memory_space<vmem>>, vector<1x2x32xf32>,
    %c28 = arith.constant 28 : index
    %c0_72 = arith.constant 0 : index
    %c0_73 = arith.constant 0 : index
    %203 = vector.load %arg2[%c28, %c0_72, %c0_73] : memref<32x2x128xf32, #tpu.memory_space<vmem>>, vector<1x2x128xf32>
    %204 = vector.shape_cast %203 : vector<1x2x128xf32> to vector<2x128xf32>
    %cst_74 = arith.constant dense<0.000000e+00> : vector<2x128xf32>
    %205 = tpu.matmul %171, %6, %cst_74 {dimension_numbers = #tpu.dot_dimension_numbers<[1], [0], [0], [1], [0, 0, 1, 1], [], []>} : vector<2x32xf32>, vector<32x128xf32>, vector<2x128xf32> -> vector<2x128xf32>
    %206 = arith.addf %204, %205 : vector<2x128xf32>
    %207 = vector.extract_strided_slice %206 {offsets = [0, 0], sizes = [2, 96], strides = [1, 1]} : vector<2x128xf32> to vector<2x96xf32>
    %208 = arith.negf %207 : vector<2x96xf32>
    %209 = math.exp %208 : vector<2x96xf32>
    %cst_75 = arith.constant 1.000000e+00 : f32
    %210 = vector.broadcast %cst_75 : f32 to vector<2x96xf32>
    %211 = arith.addf %210, %209 : vector<2x96xf32>
    %212 = arith.divf %210, %211 : vector<2x96xf32>
    %213 = vector.extract_strided_slice %206 {offsets = [0, 96], sizes = [2, 32], strides = [1, 1]} : vector<2x128xf32> to vector<2x32xf32>
    %214 = math.tanh %213 : vector<2x32xf32>
    %215 = vector.extract_strided_slice %212 {offsets = [0, 32], sizes = [2, 32], strides = [1, 1]} : vector<2x96xf32> to vector<2x32xf32>
    %216 = arith.mulf %215, %172 : vector<2x32xf32>
    %217 = vector.extract_strided_slice %212 {offsets = [0, 0], sizes = [2, 32], strides = [1, 1]} : vector<2x96xf32> to vector<2x32xf32>
    %218 = arith.mulf %217, %214 : vector<2x32xf32>
    %219 = arith.addf %216, %218 : vector<2x32xf32>
    %220 = vector.extract_strided_slice %212 {offsets = [0, 64], sizes = [2, 32], strides = [1, 1]} : vector<2x96xf32> to vector<2x32xf32>
    %221 = math.tanh %219 : vector<2x32xf32>
    %222 = arith.mulf %220, %221 : vector<2x32xf32>
    %c28_i32 = arith.constant 28 : i32
    %223 = arith.addi %13, %c28_i32 : i32
    %c8_i32_76 = arith.constant 8 : i32
    %224 = arith.cmpi slt, %223, %c8_i32_76 : i32
    %225 = arith.select %224, %222, %171 : vector<2x32xf32>
    %226 = arith.select %224, %219, %172 : vector<2x32xf32>
    %c28_77 = arith.constant 28 : index
    %c0_78 = arith.constant 0 : index
    %c0_79 = arith.constant 0 : index
    %227 = vector.load %arg5[%c28_77, %c0_78, %c0_79] : memref<32x2x32xf32, #tpu.memory_space<vmem>>, vector<1x2x32xf32>
    %228 = vector.shape_cast %227 : vector<1x2x32xf32> to vector<2x32xf32>
    %229 = vector.shape_cast %225 : vector<2x32xf32> to vector<1x2x32xf32>
    tpu.vector_store %arg5[%c28_77, %c0_78, %c0_79], %229 {strides = array<i32>} : memref<32x2x32xf32, #tpu.memory_space<vmem>>, vector<1x2x32xf32>,
    %c4 = arith.constant 4 : index
    %c0_80 = arith.constant 0 : index
    %c0_81 = arith.constant 0 : index
    %230 = vector.load %arg1[%c4, %c0_80, %c0_81] : memref<32x2x128xf32, #tpu.memory_space<vmem>>, vector<1x2x128xf32>
    %231 = vector.shape_cast %230 : vector<1x2x128xf32> to vector<2x128xf32>
    %cst_82 = arith.constant dense<0.000000e+00> : vector<2x128xf32>
    %232 = tpu.matmul %198, %4, %cst_82 {dimension_numbers = #tpu.dot_dimension_numbers<[1], [0], [0], [1], [0, 0, 1, 1], [], []>} : vector<2x32xf32>, vector<32x128xf32>, vector<2x128xf32> -> vector<2x128xf32>
    %233 = arith.addf %231, %232 : vector<2x128xf32>
    %234 = vector.extract_strided_slice %233 {offsets = [0, 0], sizes = [2, 96], strides = [1, 1]} : vector<2x128xf32> to vector<2x96xf32>
    %235 = arith.negf %234 : vector<2x96xf32>
    %236 = math.exp %235 : vector<2x96xf32>
    %cst_83 = arith.constant 1.000000e+00 : f32
    %237 = vector.broadcast %cst_83 : f32 to vector<2x96xf32>
    %238 = arith.addf %237, %236 : vector<2x96xf32>
    %239 = arith.divf %237, %238 : vector<2x96xf32>
    %240 = vector.extract_strided_slice %233 {offsets = [0, 96], sizes = [2, 32], strides = [1, 1]} : vector<2x128xf32> to vector<2x32xf32>
    %241 = math.tanh %240 : vector<2x32xf32>
    %242 = vector.extract_strided_slice %239 {offsets = [0, 32], sizes = [2, 32], strides = [1, 1]} : vector<2x96xf32> to vector<2x32xf32>
    %243 = arith.mulf %242, %199 : vector<2x32xf32>
    %244 = vector.extract_strided_slice %239 {offsets = [0, 0], sizes = [2, 32], strides = [1, 1]} : vector<2x96xf32> to vector<2x32xf32>
    %245 = arith.mulf %244, %241 : vector<2x32xf32>
    %246 = arith.addf %243, %245 : vector<2x32xf32>
    %247 = vector.extract_strided_slice %239 {offsets = [0, 64], sizes = [2, 32], strides = [1, 1]} : vector<2x96xf32> to vector<2x32xf32>
    %248 = math.tanh %246 : vector<2x32xf32>
    %249 = arith.mulf %247, %248 : vector<2x32xf32>
    %c4_i32 = arith.constant 4 : i32
    %250 = arith.addi %11, %c4_i32 : i32
    %c8_i32_84 = arith.constant 8 : i32
    %251 = arith.cmpi slt, %250, %c8_i32_84 : i32
    %252 = arith.select %251, %249, %198 : vector<2x32xf32>
    %253 = arith.select %251, %246, %199 : vector<2x32xf32>
    %c4_85 = arith.constant 4 : index
    %c0_86 = arith.constant 0 : index
    %c0_87 = arith.constant 0 : index
    %254 = vector.load %arg4[%c4_85, %c0_86, %c0_87] : memref<32x2x32xf32, #tpu.memory_space<vmem>>, vector<1x2x32xf32>
    %255 = vector.shape_cast %254 : vector<1x2x32xf32> to vector<2x32xf32>
    %256 = vector.shape_cast %252 : vector<2x32xf32> to vector<1x2x32xf32>
    tpu.vector_store %arg4[%c4_85, %c0_86, %c0_87], %256 {strides = array<i32>} : memref<32x2x32xf32, #tpu.memory_space<vmem>>, vector<1x2x32xf32>,
    %c27 = arith.constant 27 : index
    %c0_88 = arith.constant 0 : index
    %c0_89 = arith.constant 0 : index
    %257 = vector.load %arg2[%c27, %c0_88, %c0_89] : memref<32x2x128xf32, #tpu.memory_space<vmem>>, vector<1x2x128xf32>
    %258 = vector.shape_cast %257 : vector<1x2x128xf32> to vector<2x128xf32>
    %cst_90 = arith.constant dense<0.000000e+00> : vector<2x128xf32>
    %259 = tpu.matmul %225, %6, %cst_90 {dimension_numbers = #tpu.dot_dimension_numbers<[1], [0], [0], [1], [0, 0, 1, 1], [], []>} : vector<2x32xf32>, vector<32x128xf32>, vector<2x128xf32> -> vector<2x128xf32>
    %260 = arith.addf %258, %259 : vector<2x128xf32>
    %261 = vector.extract_strided_slice %260 {offsets = [0, 0], sizes = [2, 96], strides = [1, 1]} : vector<2x128xf32> to vector<2x96xf32>
    %262 = arith.negf %261 : vector<2x96xf32>
    %263 = math.exp %262 : vector<2x96xf32>
    %cst_91 = arith.constant 1.000000e+00 : f32
    %264 = vector.broadcast %cst_91 : f32 to vector<2x96xf32>
    %265 = arith.addf %264, %263 : vector<2x96xf32>
    %266 = arith.divf %264, %265 : vector<2x96xf32>
    %267 = vector.extract_strided_slice %260 {offsets = [0, 96], sizes = [2, 32], strides = [1, 1]} : vector<2x128xf32> to vector<2x32xf32>
    %268 = math.tanh %267 : vector<2x32xf32>
    %269 = vector.extract_strided_slice %266 {offsets = [0, 32], sizes = [2, 32], strides = [1, 1]} : vector<2x96xf32> to vector<2x32xf32>
    %270 = arith.mulf %269, %226 : vector<2x32xf32>
    %271 = vector.extract_strided_slice %266 {offsets = [0, 0], sizes = [2, 32], strides = [1, 1]} : vector<2x96xf32> to vector<2x32xf32>
    %272 = arith.mulf %271, %268 : vector<2x32xf32>
    %273 = arith.addf %270, %272 : vector<2x32xf32>
    %274 = vector.extract_strided_slice %266 {offsets = [0, 64], sizes = [2, 32], strides = [1, 1]} : vector<2x96xf32> to vector<2x32xf32>
    %275 = math.tanh %273 : vector<2x32xf32>
    %276 = arith.mulf %274, %275 : vector<2x32xf32>
    %c27_i32 = arith.constant 27 : i32
    %277 = arith.addi %13, %c27_i32 : i32
    %c8_i32_92 = arith.constant 8 : i32
    %278 = arith.cmpi slt, %277, %c8_i32_92 : i32
    %279 = arith.select %278, %276, %225 : vector<2x32xf32>
    %280 = arith.select %278, %273, %226 : vector<2x32xf32>
    %c27_93 = arith.constant 27 : index
    %c0_94 = arith.constant 0 : index
    %c0_95 = arith.constant 0 : index
    %281 = vector.load %arg5[%c27_93, %c0_94, %c0_95] : memref<32x2x32xf32, #tpu.memory_space<vmem>>, vector<1x2x32xf32>
    %282 = vector.shape_cast %281 : vector<1x2x32xf32> to vector<2x32xf32>
    %283 = vector.shape_cast %279 : vector<2x32xf32> to vector<1x2x32xf32>
    tpu.vector_store %arg5[%c27_93, %c0_94, %c0_95], %283 {strides = array<i32>} : memref<32x2x32xf32, #tpu.memory_space<vmem>>, vector<1x2x32xf32>,
    %c5 = arith.constant 5 : index
    %c0_96 = arith.constant 0 : index
    %c0_97 = arith.constant 0 : index
    %284 = vector.load %arg1[%c5, %c0_96, %c0_97] : memref<32x2x128xf32, #tpu.memory_space<vmem>>, vector<1x2x128xf32>
    %285 = vector.shape_cast %284 : vector<1x2x128xf32> to vector<2x128xf32>
    %cst_98 = arith.constant dense<0.000000e+00> : vector<2x128xf32>
    %286 = tpu.matmul %252, %4, %cst_98 {dimension_numbers = #tpu.dot_dimension_numbers<[1], [0], [0], [1], [0, 0, 1, 1], [], []>} : vector<2x32xf32>, vector<32x128xf32>, vector<2x128xf32> -> vector<2x128xf32>
    %287 = arith.addf %285, %286 : vector<2x128xf32>
    %288 = vector.extract_strided_slice %287 {offsets = [0, 0], sizes = [2, 96], strides = [1, 1]} : vector<2x128xf32> to vector<2x96xf32>
    %289 = arith.negf %288 : vector<2x96xf32>
    %290 = math.exp %289 : vector<2x96xf32>
    %cst_99 = arith.constant 1.000000e+00 : f32
    %291 = vector.broadcast %cst_99 : f32 to vector<2x96xf32>
    %292 = arith.addf %291, %290 : vector<2x96xf32>
    %293 = arith.divf %291, %292 : vector<2x96xf32>
    %294 = vector.extract_strided_slice %287 {offsets = [0, 96], sizes = [2, 32], strides = [1, 1]} : vector<2x128xf32> to vector<2x32xf32>
    %295 = math.tanh %294 : vector<2x32xf32>
    %296 = vector.extract_strided_slice %293 {offsets = [0, 32], sizes = [2, 32], strides = [1, 1]} : vector<2x96xf32> to vector<2x32xf32>
    %297 = arith.mulf %296, %253 : vector<2x32xf32>
    %298 = vector.extract_strided_slice %293 {offsets = [0, 0], sizes = [2, 32], strides = [1, 1]} : vector<2x96xf32> to vector<2x32xf32>
    %299 = arith.mulf %298, %295 : vector<2x32xf32>
    %300 = arith.addf %297, %299 : vector<2x32xf32>
    %301 = vector.extract_strided_slice %293 {offsets = [0, 64], sizes = [2, 32], strides = [1, 1]} : vector<2x96xf32> to vector<2x32xf32>
    %302 = math.tanh %300 : vector<2x32xf32>
    %303 = arith.mulf %301, %302 : vector<2x32xf32>
    %c5_i32 = arith.constant 5 : i32
    %304 = arith.addi %11, %c5_i32 : i32
    %c8_i32_100 = arith.constant 8 : i32
    %305 = arith.cmpi slt, %304, %c8_i32_100 : i32
    %306 = arith.select %305, %303, %252 : vector<2x32xf32>
    %307 = arith.select %305, %300, %253 : vector<2x32xf32>
    %c5_101 = arith.constant 5 : index
    %c0_102 = arith.constant 0 : index
    %c0_103 = arith.constant 0 : index
    %308 = vector.load %arg4[%c5_101, %c0_102, %c0_103] : memref<32x2x32xf32, #tpu.memory_space<vmem>>, vector<1x2x32xf32>
    %309 = vector.shape_cast %308 : vector<1x2x32xf32> to vector<2x32xf32>
    %310 = vector.shape_cast %306 : vector<2x32xf32> to vector<1x2x32xf32>
    tpu.vector_store %arg4[%c5_101, %c0_102, %c0_103], %310 {strides = array<i32>} : memref<32x2x32xf32, #tpu.memory_space<vmem>>, vector<1x2x32xf32>,
    %c26 = arith.constant 26 : index
    %c0_104 = arith.constant 0 : index
    %c0_105 = arith.constant 0 : index
    %311 = vector.load %arg2[%c26, %c0_104, %c0_105] : memref<32x2x128xf32, #tpu.memory_space<vmem>>, vector<1x2x128xf32>
    %312 = vector.shape_cast %311 : vector<1x2x128xf32> to vector<2x128xf32>
    %cst_106 = arith.constant dense<0.000000e+00> : vector<2x128xf32>
    %313 = tpu.matmul %279, %6, %cst_106 {dimension_numbers = #tpu.dot_dimension_numbers<[1], [0], [0], [1], [0, 0, 1, 1], [], []>} : vector<2x32xf32>, vector<32x128xf32>, vector<2x128xf32> -> vector<2x128xf32>
    %314 = arith.addf %312, %313 : vector<2x128xf32>
    %315 = vector.extract_strided_slice %314 {offsets = [0, 0], sizes = [2, 96], strides = [1, 1]} : vector<2x128xf32> to vector<2x96xf32>
    %316 = arith.negf %315 : vector<2x96xf32>
    %317 = math.exp %316 : vector<2x96xf32>
    %cst_107 = arith.constant 1.000000e+00 : f32
    %318 = vector.broadcast %cst_107 : f32 to vector<2x96xf32>
    %319 = arith.addf %318, %317 : vector<2x96xf32>
    %320 = arith.divf %318, %319 : vector<2x96xf32>
    %321 = vector.extract_strided_slice %314 {offsets = [0, 96], sizes = [2, 32], strides = [1, 1]} : vector<2x128xf32> to vector<2x32xf32>
    %322 = math.tanh %321 : vector<2x32xf32>
    %323 = vector.extract_strided_slice %320 {offsets = [0, 32], sizes = [2, 32], strides = [1, 1]} : vector<2x96xf32> to vector<2x32xf32>
    %324 = arith.mulf %323, %280 : vector<2x32xf32>
    %325 = vector.extract_strided_slice %320 {offsets = [0, 0], sizes = [2, 32], strides = [1, 1]} : vector<2x96xf32> to vector<2x32xf32>
    %326 = arith.mulf %325, %322 : vector<2x32xf32>
    %327 = arith.addf %324, %326 : vector<2x32xf32>
    %328 = vector.extract_strided_slice %320 {offsets = [0, 64], sizes = [2, 32], strides = [1, 1]} : vector<2x96xf32> to vector<2x32xf32>
    %329 = math.tanh %327 : vector<2x32xf32>
    %330 = arith.mulf %328, %329 : vector<2x32xf32>
    %c26_i32 = arith.constant 26 : i32
    %331 = arith.addi %13, %c26_i32 : i32
    %c8_i32_108 = arith.constant 8 : i32
    %332 = arith.cmpi slt, %331, %c8_i32_108 : i32
    %333 = arith.select %332, %330, %279 : vector<2x32xf32>
    %334 = arith.select %332, %327, %280 : vector<2x32xf32>
    %c26_109 = arith.constant 26 : index
    %c0_110 = arith.constant 0 : index
    %c0_111 = arith.constant 0 : index
    %335 = vector.load %arg5[%c26_109, %c0_110, %c0_111] : memref<32x2x32xf32, #tpu.memory_space<vmem>>, vector<1x2x32xf32>
    %336 = vector.shape_cast %335 : vector<1x2x32xf32> to vector<2x32xf32>
    %337 = vector.shape_cast %333 : vector<2x32xf32> to vector<1x2x32xf32>
    tpu.vector_store %arg5[%c26_109, %c0_110, %c0_111], %337 {strides = array<i32>} : memref<32x2x32xf32, #tpu.memory_space<vmem>>, vector<1x2x32xf32>,
    %c6 = arith.constant 6 : index
    %c0_112 = arith.constant 0 : index
    %c0_113 = arith.constant 0 : index
    %338 = vector.load %arg1[%c6, %c0_112, %c0_113] : memref<32x2x128xf32, #tpu.memory_space<vmem>>, vector<1x2x128xf32>
    %339 = vector.shape_cast %338 : vector<1x2x128xf32> to vector<2x128xf32>
    %cst_114 = arith.constant dense<0.000000e+00> : vector<2x128xf32>
    %340 = tpu.matmul %306, %4, %cst_114 {dimension_numbers = #tpu.dot_dimension_numbers<[1], [0], [0], [1], [0, 0, 1, 1], [], []>} : vector<2x32xf32>, vector<32x128xf32>, vector<2x128xf32> -> vector<2x128xf32>
    %341 = arith.addf %339, %340 : vector<2x128xf32>
    %342 = vector.extract_strided_slice %341 {offsets = [0, 0], sizes = [2, 96], strides = [1, 1]} : vector<2x128xf32> to vector<2x96xf32>
    %343 = arith.negf %342 : vector<2x96xf32>
    %344 = math.exp %343 : vector<2x96xf32>
    %cst_115 = arith.constant 1.000000e+00 : f32
    %345 = vector.broadcast %cst_115 : f32 to vector<2x96xf32>
    %346 = arith.addf %345, %344 : vector<2x96xf32>
    %347 = arith.divf %345, %346 : vector<2x96xf32>
    %348 = vector.extract_strided_slice %341 {offsets = [0, 96], sizes = [2, 32], strides = [1, 1]} : vector<2x128xf32> to vector<2x32xf32>
    %349 = math.tanh %348 : vector<2x32xf32>
    %350 = vector.extract_strided_slice %347 {offsets = [0, 32], sizes = [2, 32], strides = [1, 1]} : vector<2x96xf32> to vector<2x32xf32>
    %351 = arith.mulf %350, %307 : vector<2x32xf32>
    %352 = vector.extract_strided_slice %347 {offsets = [0, 0], sizes = [2, 32], strides = [1, 1]} : vector<2x96xf32> to vector<2x32xf32>
    %353 = arith.mulf %352, %349 : vector<2x32xf32>
    %354 = arith.addf %351, %353 : vector<2x32xf32>
    %355 = vector.extract_strided_slice %347 {offsets = [0, 64], sizes = [2, 32], strides = [1, 1]} : vector<2x96xf32> to vector<2x32xf32>
    %356 = math.tanh %354 : vector<2x32xf32>
    %357 = arith.mulf %355, %356 : vector<2x32xf32>
    %c6_i32 = arith.constant 6 : i32
    %358 = arith.addi %11, %c6_i32 : i32
    %c8_i32_116 = arith.constant 8 : i32
    %359 = arith.cmpi slt, %358, %c8_i32_116 : i32
    %360 = arith.select %359, %357, %306 : vector<2x32xf32>
    %361 = arith.select %359, %354, %307 : vector<2x32xf32>
    %c6_117 = arith.constant 6 : index
    %c0_118 = arith.constant 0 : index
    %c0_119 = arith.constant 0 : index
    %362 = vector.load %arg4[%c6_117, %c0_118, %c0_119] : memref<32x2x32xf32, #tpu.memory_space<vmem>>, vector<1x2x32xf32>
    %363 = vector.shape_cast %362 : vector<1x2x32xf32> to vector<2x32xf32>
    %364 = vector.shape_cast %360 : vector<2x32xf32> to vector<1x2x32xf32>
    tpu.vector_store %arg4[%c6_117, %c0_118, %c0_119], %364 {strides = array<i32>} : memref<32x2x32xf32, #tpu.memory_space<vmem>>, vector<1x2x32xf32>,
    %c25 = arith.constant 25 : index
    %c0_120 = arith.constant 0 : index
    %c0_121 = arith.constant 0 : index
    %365 = vector.load %arg2[%c25, %c0_120, %c0_121] : memref<32x2x128xf32, #tpu.memory_space<vmem>>, vector<1x2x128xf32>
    %366 = vector.shape_cast %365 : vector<1x2x128xf32> to vector<2x128xf32>
    %cst_122 = arith.constant dense<0.000000e+00> : vector<2x128xf32>
    %367 = tpu.matmul %333, %6, %cst_122 {dimension_numbers = #tpu.dot_dimension_numbers<[1], [0], [0], [1], [0, 0, 1, 1], [], []>} : vector<2x32xf32>, vector<32x128xf32>, vector<2x128xf32> -> vector<2x128xf32>
    %368 = arith.addf %366, %367 : vector<2x128xf32>
    %369 = vector.extract_strided_slice %368 {offsets = [0, 0], sizes = [2, 96], strides = [1, 1]} : vector<2x128xf32> to vector<2x96xf32>
    %370 = arith.negf %369 : vector<2x96xf32>
    %371 = math.exp %370 : vector<2x96xf32>
    %cst_123 = arith.constant 1.000000e+00 : f32
    %372 = vector.broadcast %cst_123 : f32 to vector<2x96xf32>
    %373 = arith.addf %372, %371 : vector<2x96xf32>
    %374 = arith.divf %372, %373 : vector<2x96xf32>
    %375 = vector.extract_strided_slice %368 {offsets = [0, 96], sizes = [2, 32], strides = [1, 1]} : vector<2x128xf32> to vector<2x32xf32>
    %376 = math.tanh %375 : vector<2x32xf32>
    %377 = vector.extract_strided_slice %374 {offsets = [0, 32], sizes = [2, 32], strides = [1, 1]} : vector<2x96xf32> to vector<2x32xf32>
    %378 = arith.mulf %377, %334 : vector<2x32xf32>
    %379 = vector.extract_strided_slice %374 {offsets = [0, 0], sizes = [2, 32], strides = [1, 1]} : vector<2x96xf32> to vector<2x32xf32>
    %380 = arith.mulf %379, %376 : vector<2x32xf32>
    %381 = arith.addf %378, %380 : vector<2x32xf32>
    %382 = vector.extract_strided_slice %374 {offsets = [0, 64], sizes = [2, 32], strides = [1, 1]} : vector<2x96xf32> to vector<2x32xf32>
    %383 = math.tanh %381 : vector<2x32xf32>
    %384 = arith.mulf %382, %383 : vector<2x32xf32>
    %c25_i32 = arith.constant 25 : i32
    %385 = arith.addi %13, %c25_i32 : i32
    %c8_i32_124 = arith.constant 8 : i32
    %386 = arith.cmpi slt, %385, %c8_i32_124 : i32
    %387 = arith.select %386, %384, %333 : vector<2x32xf32>
    %388 = arith.select %386, %381, %334 : vector<2x32xf32>
    %c25_125 = arith.constant 25 : index
    %c0_126 = arith.constant 0 : index
    %c0_127 = arith.constant 0 : index
    %389 = vector.load %arg5[%c25_125, %c0_126, %c0_127] : memref<32x2x32xf32, #tpu.memory_space<vmem>>, vector<1x2x32xf32>
    %390 = vector.shape_cast %389 : vector<1x2x32xf32> to vector<2x32xf32>
    %391 = vector.shape_cast %387 : vector<2x32xf32> to vector<1x2x32xf32>
    tpu.vector_store %arg5[%c25_125, %c0_126, %c0_127], %391 {strides = array<i32>} : memref<32x2x32xf32, #tpu.memory_space<vmem>>, vector<1x2x32xf32>,
    %c7 = arith.constant 7 : index
    %c0_128 = arith.constant 0 : index
    %c0_129 = arith.constant 0 : index
    %392 = vector.load %arg1[%c7, %c0_128, %c0_129] : memref<32x2x128xf32, #tpu.memory_space<vmem>>, vector<1x2x128xf32>
    %393 = vector.shape_cast %392 : vector<1x2x128xf32> to vector<2x128xf32>
    %cst_130 = arith.constant dense<0.000000e+00> : vector<2x128xf32>
    %394 = tpu.matmul %360, %4, %cst_130 {dimension_numbers = #tpu.dot_dimension_numbers<[1], [0], [0], [1], [0, 0, 1, 1], [], []>} : vector<2x32xf32>, vector<32x128xf32>, vector<2x128xf32> -> vector<2x128xf32>
    %395 = arith.addf %393, %394 : vector<2x128xf32>
    %396 = vector.extract_strided_slice %395 {offsets = [0, 0], sizes = [2, 96], strides = [1, 1]} : vector<2x128xf32> to vector<2x96xf32>
    %397 = arith.negf %396 : vector<2x96xf32>
    %398 = math.exp %397 : vector<2x96xf32>
    %cst_131 = arith.constant 1.000000e+00 : f32
    %399 = vector.broadcast %cst_131 : f32 to vector<2x96xf32>
    %400 = arith.addf %399, %398 : vector<2x96xf32>
    %401 = arith.divf %399, %400 : vector<2x96xf32>
    %402 = vector.extract_strided_slice %395 {offsets = [0, 96], sizes = [2, 32], strides = [1, 1]} : vector<2x128xf32> to vector<2x32xf32>
    %403 = math.tanh %402 : vector<2x32xf32>
    %404 = vector.extract_strided_slice %401 {offsets = [0, 32], sizes = [2, 32], strides = [1, 1]} : vector<2x96xf32> to vector<2x32xf32>
    %405 = arith.mulf %404, %361 : vector<2x32xf32>
    %406 = vector.extract_strided_slice %401 {offsets = [0, 0], sizes = [2, 32], strides = [1, 1]} : vector<2x96xf32> to vector<2x32xf32>
    %407 = arith.mulf %406, %403 : vector<2x32xf32>
    %408 = arith.addf %405, %407 : vector<2x32xf32>
    %409 = vector.extract_strided_slice %401 {offsets = [0, 64], sizes = [2, 32], strides = [1, 1]} : vector<2x96xf32> to vector<2x32xf32>
    %410 = math.tanh %408 : vector<2x32xf32>
    %411 = arith.mulf %409, %410 : vector<2x32xf32>
    %c7_i32 = arith.constant 7 : i32
    %412 = arith.addi %11, %c7_i32 : i32
    %c8_i32_132 = arith.constant 8 : i32
    %413 = arith.cmpi slt, %412, %c8_i32_132 : i32
    %414 = arith.select %413, %411, %360 : vector<2x32xf32>
    %415 = arith.select %413, %408, %361 : vector<2x32xf32>
    %c7_133 = arith.constant 7 : index
    %c0_134 = arith.constant 0 : index
    %c0_135 = arith.constant 0 : index
    %416 = vector.load %arg4[%c7_133, %c0_134, %c0_135] : memref<32x2x32xf32, #tpu.memory_space<vmem>>, vector<1x2x32xf32>
    %417 = vector.shape_cast %416 : vector<1x2x32xf32> to vector<2x32xf32>
    %418 = vector.shape_cast %414 : vector<2x32xf32> to vector<1x2x32xf32>
    tpu.vector_store %arg4[%c7_133, %c0_134, %c0_135], %418 {strides = array<i32>} : memref<32x2x32xf32, #tpu.memory_space<vmem>>, vector<1x2x32xf32>,
    %c24 = arith.constant 24 : index
    %c0_136 = arith.constant 0 : index
    %c0_137 = arith.constant 0 : index
    %419 = vector.load %arg2[%c24, %c0_136, %c0_137] : memref<32x2x128xf32, #tpu.memory_space<vmem>>, vector<1x2x128xf32>
    %420 = vector.shape_cast %419 : vector<1x2x128xf32> to vector<2x128xf32>
    %cst_138 = arith.constant dense<0.000000e+00> : vector<2x128xf32>
    %421 = tpu.matmul %387, %6, %cst_138 {dimension_numbers = #tpu.dot_dimension_numbers<[1], [0], [0], [1], [0, 0, 1, 1], [], []>} : vector<2x32xf32>, vector<32x128xf32>, vector<2x128xf32> -> vector<2x128xf32>
    %422 = arith.addf %420, %421 : vector<2x128xf32>
    %423 = vector.extract_strided_slice %422 {offsets = [0, 0], sizes = [2, 96], strides = [1, 1]} : vector<2x128xf32> to vector<2x96xf32>
    %424 = arith.negf %423 : vector<2x96xf32>
    %425 = math.exp %424 : vector<2x96xf32>
    %cst_139 = arith.constant 1.000000e+00 : f32
    %426 = vector.broadcast %cst_139 : f32 to vector<2x96xf32>
    %427 = arith.addf %426, %425 : vector<2x96xf32>
    %428 = arith.divf %426, %427 : vector<2x96xf32>
    %429 = vector.extract_strided_slice %422 {offsets = [0, 96], sizes = [2, 32], strides = [1, 1]} : vector<2x128xf32> to vector<2x32xf32>
    %430 = math.tanh %429 : vector<2x32xf32>
    %431 = vector.extract_strided_slice %428 {offsets = [0, 32], sizes = [2, 32], strides = [1, 1]} : vector<2x96xf32> to vector<2x32xf32>
    %432 = arith.mulf %431, %388 : vector<2x32xf32>
    %433 = vector.extract_strided_slice %428 {offsets = [0, 0], sizes = [2, 32], strides = [1, 1]} : vector<2x96xf32> to vector<2x32xf32>
    %434 = arith.mulf %433, %430 : vector<2x32xf32>
    %435 = arith.addf %432, %434 : vector<2x32xf32>
    %436 = vector.extract_strided_slice %428 {offsets = [0, 64], sizes = [2, 32], strides = [1, 1]} : vector<2x96xf32> to vector<2x32xf32>
    %437 = math.tanh %435 : vector<2x32xf32>
    %438 = arith.mulf %436, %437 : vector<2x32xf32>
    %c24_i32 = arith.constant 24 : i32
    %439 = arith.addi %13, %c24_i32 : i32
    %c8_i32_140 = arith.constant 8 : i32
    %440 = arith.cmpi slt, %439, %c8_i32_140 : i32
    %441 = arith.select %440, %438, %387 : vector<2x32xf32>
    %442 = arith.select %440, %435, %388 : vector<2x32xf32>
    %c24_141 = arith.constant 24 : index
    %c0_142 = arith.constant 0 : index
    %c0_143 = arith.constant 0 : index
    %443 = vector.load %arg5[%c24_141, %c0_142, %c0_143] : memref<32x2x32xf32, #tpu.memory_space<vmem>>, vector<1x2x32xf32>
    %444 = vector.shape_cast %443 : vector<1x2x32xf32> to vector<2x32xf32>
    %445 = vector.shape_cast %441 : vector<2x32xf32> to vector<1x2x32xf32>
    tpu.vector_store %arg5[%c24_141, %c0_142, %c0_143], %445 {strides = array<i32>} : memref<32x2x32xf32, #tpu.memory_space<vmem>>, vector<1x2x32xf32>,
    %c8 = arith.constant 8 : index
    %c0_144 = arith.constant 0 : index
    %c0_145 = arith.constant 0 : index
    %446 = vector.load %arg1[%c8, %c0_144, %c0_145] : memref<32x2x128xf32, #tpu.memory_space<vmem>>, vector<1x2x128xf32>
    %447 = vector.shape_cast %446 : vector<1x2x128xf32> to vector<2x128xf32>
    %cst_146 = arith.constant dense<0.000000e+00> : vector<2x128xf32>
    %448 = tpu.matmul %414, %4, %cst_146 {dimension_numbers = #tpu.dot_dimension_numbers<[1], [0], [0], [1], [0, 0, 1, 1], [], []>} : vector<2x32xf32>, vector<32x128xf32>, vector<2x128xf32> -> vector<2x128xf32>
    %449 = arith.addf %447, %448 : vector<2x128xf32>
    %450 = vector.extract_strided_slice %449 {offsets = [0, 0], sizes = [2, 96], strides = [1, 1]} : vector<2x128xf32> to vector<2x96xf32>
    %451 = arith.negf %450 : vector<2x96xf32>
    %452 = math.exp %451 : vector<2x96xf32>
    %cst_147 = arith.constant 1.000000e+00 : f32
    %453 = vector.broadcast %cst_147 : f32 to vector<2x96xf32>
    %454 = arith.addf %453, %452 : vector<2x96xf32>
    %455 = arith.divf %453, %454 : vector<2x96xf32>
    %456 = vector.extract_strided_slice %449 {offsets = [0, 96], sizes = [2, 32], strides = [1, 1]} : vector<2x128xf32> to vector<2x32xf32>
    %457 = math.tanh %456 : vector<2x32xf32>
    %458 = vector.extract_strided_slice %455 {offsets = [0, 32], sizes = [2, 32], strides = [1, 1]} : vector<2x96xf32> to vector<2x32xf32>
    %459 = arith.mulf %458, %415 : vector<2x32xf32>
    %460 = vector.extract_strided_slice %455 {offsets = [0, 0], sizes = [2, 32], strides = [1, 1]} : vector<2x96xf32> to vector<2x32xf32>
    %461 = arith.mulf %460, %457 : vector<2x32xf32>
    %462 = arith.addf %459, %461 : vector<2x32xf32>
    %463 = vector.extract_strided_slice %455 {offsets = [0, 64], sizes = [2, 32], strides = [1, 1]} : vector<2x96xf32> to vector<2x32xf32>
    %464 = math.tanh %462 : vector<2x32xf32>
    %465 = arith.mulf %463, %464 : vector<2x32xf32>
    %c8_i32_148 = arith.constant 8 : i32
    %466 = arith.addi %11, %c8_i32_148 : i32
    %c8_i32_149 = arith.constant 8 : i32
    %467 = arith.cmpi slt, %466, %c8_i32_149 : i32
    %468 = arith.select %467, %465, %414 : vector<2x32xf32>
    %469 = arith.select %467, %462, %415 : vector<2x32xf32>
    %c8_150 = arith.constant 8 : index
    %c0_151 = arith.constant 0 : index
    %c0_152 = arith.constant 0 : index
    %470 = vector.load %arg4[%c8_150, %c0_151, %c0_152] : memref<32x2x32xf32, #tpu.memory_space<vmem>>, vector<1x2x32xf32>
    %471 = vector.shape_cast %470 : vector<1x2x32xf32> to vector<2x32xf32>
    %472 = vector.shape_cast %468 : vector<2x32xf32> to vector<1x2x32xf32>
    tpu.vector_store %arg4[%c8_150, %c0_151, %c0_152], %472 {strides = array<i32>} : memref<32x2x32xf32, #tpu.memory_space<vmem>>, vector<1x2x32xf32>,
    %c23 = arith.constant 23 : index
    %c0_153 = arith.constant 0 : index
    %c0_154 = arith.constant 0 : index
    %473 = vector.load %arg2[%c23, %c0_153, %c0_154] : memref<32x2x128xf32, #tpu.memory_space<vmem>>, vector<1x2x128xf32>
    %474 = vector.shape_cast %473 : vector<1x2x128xf32> to vector<2x128xf32>
    %cst_155 = arith.constant dense<0.000000e+00> : vector<2x128xf32>
    %475 = tpu.matmul %441, %6, %cst_155 {dimension_numbers = #tpu.dot_dimension_numbers<[1], [0], [0], [1], [0, 0, 1, 1], [], []>} : vector<2x32xf32>, vector<32x128xf32>, vector<2x128xf32> -> vector<2x128xf32>
    %476 = arith.addf %474, %475 : vector<2x128xf32>
    %477 = vector.extract_strided_slice %476 {offsets = [0, 0], sizes = [2, 96], strides = [1, 1]} : vector<2x128xf32> to vector<2x96xf32>
    %478 = arith.negf %477 : vector<2x96xf32>
    %479 = math.exp %478 : vector<2x96xf32>
    %cst_156 = arith.constant 1.000000e+00 : f32
    %480 = vector.broadcast %cst_156 : f32 to vector<2x96xf32>
    %481 = arith.addf %480, %479 : vector<2x96xf32>
    %482 = arith.divf %480, %481 : vector<2x96xf32>
    %483 = vector.extract_strided_slice %476 {offsets = [0, 96], sizes = [2, 32], strides = [1, 1]} : vector<2x128xf32> to vector<2x32xf32>
    %484 = math.tanh %483 : vector<2x32xf32>
    %485 = vector.extract_strided_slice %482 {offsets = [0, 32], sizes = [2, 32], strides = [1, 1]} : vector<2x96xf32> to vector<2x32xf32>
    %486 = arith.mulf %485, %442 : vector<2x32xf32>
    %487 = vector.extract_strided_slice %482 {offsets = [0, 0], sizes = [2, 32], strides = [1, 1]} : vector<2x96xf32> to vector<2x32xf32>
    %488 = arith.mulf %487, %484 : vector<2x32xf32>
    %489 = arith.addf %486, %488 : vector<2x32xf32>
    %490 = vector.extract_strided_slice %482 {offsets = [0, 64], sizes = [2, 32], strides = [1, 1]} : vector<2x96xf32> to vector<2x32xf32>
    %491 = math.tanh %489 : vector<2x32xf32>
    %492 = arith.mulf %490, %491 : vector<2x32xf32>
    %c23_i32 = arith.constant 23 : i32
    %493 = arith.addi %13, %c23_i32 : i32
    %c8_i32_157 = arith.constant 8 : i32
    %494 = arith.cmpi slt, %493, %c8_i32_157 : i32
    %495 = arith.select %494, %492, %441 : vector<2x32xf32>
    %496 = arith.select %494, %489, %442 : vector<2x32xf32>
    %c23_158 = arith.constant 23 : index
    %c0_159 = arith.constant 0 : index
    %c0_160 = arith.constant 0 : index
    %497 = vector.load %arg5[%c23_158, %c0_159, %c0_160] : memref<32x2x32xf32, #tpu.memory_space<vmem>>, vector<1x2x32xf32>
    %498 = vector.shape_cast %497 : vector<1x2x32xf32> to vector<2x32xf32>
    %499 = vector.shape_cast %495 : vector<2x32xf32> to vector<1x2x32xf32>
    tpu.vector_store %arg5[%c23_158, %c0_159, %c0_160], %499 {strides = array<i32>} : memref<32x2x32xf32, #tpu.memory_space<vmem>>, vector<1x2x32xf32>,
    %c9 = arith.constant 9 : index
    %c0_161 = arith.constant 0 : index
    %c0_162 = arith.constant 0 : index
    %500 = vector.load %arg1[%c9, %c0_161, %c0_162] : memref<32x2x128xf32, #tpu.memory_space<vmem>>, vector<1x2x128xf32>
    %501 = vector.shape_cast %500 : vector<1x2x128xf32> to vector<2x128xf32>
    %cst_163 = arith.constant dense<0.000000e+00> : vector<2x128xf32>
    %502 = tpu.matmul %468, %4, %cst_163 {dimension_numbers = #tpu.dot_dimension_numbers<[1], [0], [0], [1], [0, 0, 1, 1], [], []>} : vector<2x32xf32>, vector<32x128xf32>, vector<2x128xf32> -> vector<2x128xf32>
    %503 = arith.addf %501, %502 : vector<2x128xf32>
    %504 = vector.extract_strided_slice %503 {offsets = [0, 0], sizes = [2, 96], strides = [1, 1]} : vector<2x128xf32> to vector<2x96xf32>
    %505 = arith.negf %504 : vector<2x96xf32>
    %506 = math.exp %505 : vector<2x96xf32>
    %cst_164 = arith.constant 1.000000e+00 : f32
    %507 = vector.broadcast %cst_164 : f32 to vector<2x96xf32>
    %508 = arith.addf %507, %506 : vector<2x96xf32>
    %509 = arith.divf %507, %508 : vector<2x96xf32>
    %510 = vector.extract_strided_slice %503 {offsets = [0, 96], sizes = [2, 32], strides = [1, 1]} : vector<2x128xf32> to vector<2x32xf32>
    %511 = math.tanh %510 : vector<2x32xf32>
    %512 = vector.extract_strided_slice %509 {offsets = [0, 32], sizes = [2, 32], strides = [1, 1]} : vector<2x96xf32> to vector<2x32xf32>
    %513 = arith.mulf %512, %469 : vector<2x32xf32>
    %514 = vector.extract_strided_slice %509 {offsets = [0, 0], sizes = [2, 32], strides = [1, 1]} : vector<2x96xf32> to vector<2x32xf32>
    %515 = arith.mulf %514, %511 : vector<2x32xf32>
    %516 = arith.addf %513, %515 : vector<2x32xf32>
    %517 = vector.extract_strided_slice %509 {offsets = [0, 64], sizes = [2, 32], strides = [1, 1]} : vector<2x96xf32> to vector<2x32xf32>
    %518 = math.tanh %516 : vector<2x32xf32>
    %519 = arith.mulf %517, %518 : vector<2x32xf32>
    %c9_i32 = arith.constant 9 : i32
    %520 = arith.addi %11, %c9_i32 : i32
    %c8_i32_165 = arith.constant 8 : i32
    %521 = arith.cmpi slt, %520, %c8_i32_165 : i32
    %522 = arith.select %521, %519, %468 : vector<2x32xf32>
    %523 = arith.select %521, %516, %469 : vector<2x32xf32>
    %c9_166 = arith.constant 9 : index
    %c0_167 = arith.constant 0 : index
    %c0_168 = arith.constant 0 : index
    %524 = vector.load %arg4[%c9_166, %c0_167, %c0_168] : memref<32x2x32xf32, #tpu.memory_space<vmem>>, vector<1x2x32xf32>
    %525 = vector.shape_cast %524 : vector<1x2x32xf32> to vector<2x32xf32>
    %526 = vector.shape_cast %522 : vector<2x32xf32> to vector<1x2x32xf32>
    tpu.vector_store %arg4[%c9_166, %c0_167, %c0_168], %526 {strides = array<i32>} : memref<32x2x32xf32, #tpu.memory_space<vmem>>, vector<1x2x32xf32>,
    %c22 = arith.constant 22 : index
    %c0_169 = arith.constant 0 : index
    %c0_170 = arith.constant 0 : index
    %527 = vector.load %arg2[%c22, %c0_169, %c0_170] : memref<32x2x128xf32, #tpu.memory_space<vmem>>, vector<1x2x128xf32>
    %528 = vector.shape_cast %527 : vector<1x2x128xf32> to vector<2x128xf32>
    %cst_171 = arith.constant dense<0.000000e+00> : vector<2x128xf32>
    %529 = tpu.matmul %495, %6, %cst_171 {dimension_numbers = #tpu.dot_dimension_numbers<[1], [0], [0], [1], [0, 0, 1, 1], [], []>} : vector<2x32xf32>, vector<32x128xf32>, vector<2x128xf32> -> vector<2x128xf32>
    %530 = arith.addf %528, %529 : vector<2x128xf32>
    %531 = vector.extract_strided_slice %530 {offsets = [0, 0], sizes = [2, 96], strides = [1, 1]} : vector<2x128xf32> to vector<2x96xf32>
    %532 = arith.negf %531 : vector<2x96xf32>
    %533 = math.exp %532 : vector<2x96xf32>
    %cst_172 = arith.constant 1.000000e+00 : f32
    %534 = vector.broadcast %cst_172 : f32 to vector<2x96xf32>
    %535 = arith.addf %534, %533 : vector<2x96xf32>
    %536 = arith.divf %534, %535 : vector<2x96xf32>
    %537 = vector.extract_strided_slice %530 {offsets = [0, 96], sizes = [2, 32], strides = [1, 1]} : vector<2x128xf32> to vector<2x32xf32>
    %538 = math.tanh %537 : vector<2x32xf32>
    %539 = vector.extract_strided_slice %536 {offsets = [0, 32], sizes = [2, 32], strides = [1, 1]} : vector<2x96xf32> to vector<2x32xf32>
    %540 = arith.mulf %539, %496 : vector<2x32xf32>
    %541 = vector.extract_strided_slice %536 {offsets = [0, 0], sizes = [2, 32], strides = [1, 1]} : vector<2x96xf32> to vector<2x32xf32>
    %542 = arith.mulf %541, %538 : vector<2x32xf32>
    %543 = arith.addf %540, %542 : vector<2x32xf32>
    %544 = vector.extract_strided_slice %536 {offsets = [0, 64], sizes = [2, 32], strides = [1, 1]} : vector<2x96xf32> to vector<2x32xf32>
    %545 = math.tanh %543 : vector<2x32xf32>
    %546 = arith.mulf %544, %545 : vector<2x32xf32>
    %c22_i32 = arith.constant 22 : i32
    %547 = arith.addi %13, %c22_i32 : i32
    %c8_i32_173 = arith.constant 8 : i32
    %548 = arith.cmpi slt, %547, %c8_i32_173 : i32
    %549 = arith.select %548, %546, %495 : vector<2x32xf32>
    %550 = arith.select %548, %543, %496 : vector<2x32xf32>
    %c22_174 = arith.constant 22 : index
    %c0_175 = arith.constant 0 : index
    %c0_176 = arith.constant 0 : index
    %551 = vector.load %arg5[%c22_174, %c0_175, %c0_176] : memref<32x2x32xf32, #tpu.memory_space<vmem>>, vector<1x2x32xf32>
    %552 = vector.shape_cast %551 : vector<1x2x32xf32> to vector<2x32xf32>
    %553 = vector.shape_cast %549 : vector<2x32xf32> to vector<1x2x32xf32>
    tpu.vector_store %arg5[%c22_174, %c0_175, %c0_176], %553 {strides = array<i32>} : memref<32x2x32xf32, #tpu.memory_space<vmem>>, vector<1x2x32xf32>,
    %c10 = arith.constant 10 : index
    %c0_177 = arith.constant 0 : index
    %c0_178 = arith.constant 0 : index
    %554 = vector.load %arg1[%c10, %c0_177, %c0_178] : memref<32x2x128xf32, #tpu.memory_space<vmem>>, vector<1x2x128xf32>
    %555 = vector.shape_cast %554 : vector<1x2x128xf32> to vector<2x128xf32>
    %cst_179 = arith.constant dense<0.000000e+00> : vector<2x128xf32>
    %556 = tpu.matmul %522, %4, %cst_179 {dimension_numbers = #tpu.dot_dimension_numbers<[1], [0], [0], [1], [0, 0, 1, 1], [], []>} : vector<2x32xf32>, vector<32x128xf32>, vector<2x128xf32> -> vector<2x128xf32>
    %557 = arith.addf %555, %556 : vector<2x128xf32>
    %558 = vector.extract_strided_slice %557 {offsets = [0, 0], sizes = [2, 96], strides = [1, 1]} : vector<2x128xf32> to vector<2x96xf32>
    %559 = arith.negf %558 : vector<2x96xf32>
    %560 = math.exp %559 : vector<2x96xf32>
    %cst_180 = arith.constant 1.000000e+00 : f32
    %561 = vector.broadcast %cst_180 : f32 to vector<2x96xf32>
    %562 = arith.addf %561, %560 : vector<2x96xf32>
    %563 = arith.divf %561, %562 : vector<2x96xf32>
    %564 = vector.extract_strided_slice %557 {offsets = [0, 96], sizes = [2, 32], strides = [1, 1]} : vector<2x128xf32> to vector<2x32xf32>
    %565 = math.tanh %564 : vector<2x32xf32>
    %566 = vector.extract_strided_slice %563 {offsets = [0, 32], sizes = [2, 32], strides = [1, 1]} : vector<2x96xf32> to vector<2x32xf32>
    %567 = arith.mulf %566, %523 : vector<2x32xf32>
    %568 = vector.extract_strided_slice %563 {offsets = [0, 0], sizes = [2, 32], strides = [1, 1]} : vector<2x96xf32> to vector<2x32xf32>
    %569 = arith.mulf %568, %565 : vector<2x32xf32>
    %570 = arith.addf %567, %569 : vector<2x32xf32>
    %571 = vector.extract_strided_slice %563 {offsets = [0, 64], sizes = [2, 32], strides = [1, 1]} : vector<2x96xf32> to vector<2x32xf32>
    %572 = math.tanh %570 : vector<2x32xf32>
    %573 = arith.mulf %571, %572 : vector<2x32xf32>
    %c10_i32 = arith.constant 10 : i32
    %574 = arith.addi %11, %c10_i32 : i32
    %c8_i32_181 = arith.constant 8 : i32
    %575 = arith.cmpi slt, %574, %c8_i32_181 : i32
    %576 = arith.select %575, %573, %522 : vector<2x32xf32>
    %577 = arith.select %575, %570, %523 : vector<2x32xf32>
    %c10_182 = arith.constant 10 : index
    %c0_183 = arith.constant 0 : index
    %c0_184 = arith.constant 0 : index
    %578 = vector.load %arg4[%c10_182, %c0_183, %c0_184] : memref<32x2x32xf32, #tpu.memory_space<vmem>>, vector<1x2x32xf32>
    %579 = vector.shape_cast %578 : vector<1x2x32xf32> to vector<2x32xf32>
    %580 = vector.shape_cast %576 : vector<2x32xf32> to vector<1x2x32xf32>
    tpu.vector_store %arg4[%c10_182, %c0_183, %c0_184], %580 {strides = array<i32>} : memref<32x2x32xf32, #tpu.memory_space<vmem>>, vector<1x2x32xf32>,
    %c21 = arith.constant 21 : index
    %c0_185 = arith.constant 0 : index
    %c0_186 = arith.constant 0 : index
    %581 = vector.load %arg2[%c21, %c0_185, %c0_186] : memref<32x2x128xf32, #tpu.memory_space<vmem>>, vector<1x2x128xf32>
    %582 = vector.shape_cast %581 : vector<1x2x128xf32> to vector<2x128xf32>
    %cst_187 = arith.constant dense<0.000000e+00> : vector<2x128xf32>
    %583 = tpu.matmul %549, %6, %cst_187 {dimension_numbers = #tpu.dot_dimension_numbers<[1], [0], [0], [1], [0, 0, 1, 1], [], []>} : vector<2x32xf32>, vector<32x128xf32>, vector<2x128xf32> -> vector<2x128xf32>
    %584 = arith.addf %582, %583 : vector<2x128xf32>
    %585 = vector.extract_strided_slice %584 {offsets = [0, 0], sizes = [2, 96], strides = [1, 1]} : vector<2x128xf32> to vector<2x96xf32>
    %586 = arith.negf %585 : vector<2x96xf32>
    %587 = math.exp %586 : vector<2x96xf32>
    %cst_188 = arith.constant 1.000000e+00 : f32
    %588 = vector.broadcast %cst_188 : f32 to vector<2x96xf32>
    %589 = arith.addf %588, %587 : vector<2x96xf32>
    %590 = arith.divf %588, %589 : vector<2x96xf32>
    %591 = vector.extract_strided_slice %584 {offsets = [0, 96], sizes = [2, 32], strides = [1, 1]} : vector<2x128xf32> to vector<2x32xf32>
    %592 = math.tanh %591 : vector<2x32xf32>
    %593 = vector.extract_strided_slice %590 {offsets = [0, 32], sizes = [2, 32], strides = [1, 1]} : vector<2x96xf32> to vector<2x32xf32>
    %594 = arith.mulf %593, %550 : vector<2x32xf32>
    %595 = vector.extract_strided_slice %590 {offsets = [0, 0], sizes = [2, 32], strides = [1, 1]} : vector<2x96xf32> to vector<2x32xf32>
    %596 = arith.mulf %595, %592 : vector<2x32xf32>
    %597 = arith.addf %594, %596 : vector<2x32xf32>
    %598 = vector.extract_strided_slice %590 {offsets = [0, 64], sizes = [2, 32], strides = [1, 1]} : vector<2x96xf32> to vector<2x32xf32>
    %599 = math.tanh %597 : vector<2x32xf32>
    %600 = arith.mulf %598, %599 : vector<2x32xf32>
    %c21_i32 = arith.constant 21 : i32
    %601 = arith.addi %13, %c21_i32 : i32
    %c8_i32_189 = arith.constant 8 : i32
    %602 = arith.cmpi slt, %601, %c8_i32_189 : i32
    %603 = arith.select %602, %600, %549 : vector<2x32xf32>
    %604 = arith.select %602, %597, %550 : vector<2x32xf32>
    %c21_190 = arith.constant 21 : index
    %c0_191 = arith.constant 0 : index
    %c0_192 = arith.constant 0 : index
    %605 = vector.load %arg5[%c21_190, %c0_191, %c0_192] : memref<32x2x32xf32, #tpu.memory_space<vmem>>, vector<1x2x32xf32>
    %606 = vector.shape_cast %605 : vector<1x2x32xf32> to vector<2x32xf32>
    %607 = vector.shape_cast %603 : vector<2x32xf32> to vector<1x2x32xf32>
    tpu.vector_store %arg5[%c21_190, %c0_191, %c0_192], %607 {strides = array<i32>} : memref<32x2x32xf32, #tpu.memory_space<vmem>>, vector<1x2x32xf32>,
    %c11 = arith.constant 11 : index
    %c0_193 = arith.constant 0 : index
    %c0_194 = arith.constant 0 : index
    %608 = vector.load %arg1[%c11, %c0_193, %c0_194] : memref<32x2x128xf32, #tpu.memory_space<vmem>>, vector<1x2x128xf32>
    %609 = vector.shape_cast %608 : vector<1x2x128xf32> to vector<2x128xf32>
    %cst_195 = arith.constant dense<0.000000e+00> : vector<2x128xf32>
    %610 = tpu.matmul %576, %4, %cst_195 {dimension_numbers = #tpu.dot_dimension_numbers<[1], [0], [0], [1], [0, 0, 1, 1], [], []>} : vector<2x32xf32>, vector<32x128xf32>, vector<2x128xf32> -> vector<2x128xf32>
    %611 = arith.addf %609, %610 : vector<2x128xf32>
    %612 = vector.extract_strided_slice %611 {offsets = [0, 0], sizes = [2, 96], strides = [1, 1]} : vector<2x128xf32> to vector<2x96xf32>
    %613 = arith.negf %612 : vector<2x96xf32>
    %614 = math.exp %613 : vector<2x96xf32>
    %cst_196 = arith.constant 1.000000e+00 : f32
    %615 = vector.broadcast %cst_196 : f32 to vector<2x96xf32>
    %616 = arith.addf %615, %614 : vector<2x96xf32>
    %617 = arith.divf %615, %616 : vector<2x96xf32>
    %618 = vector.extract_strided_slice %611 {offsets = [0, 96], sizes = [2, 32], strides = [1, 1]} : vector<2x128xf32> to vector<2x32xf32>
    %619 = math.tanh %618 : vector<2x32xf32>
    %620 = vector.extract_strided_slice %617 {offsets = [0, 32], sizes = [2, 32], strides = [1, 1]} : vector<2x96xf32> to vector<2x32xf32>
    %621 = arith.mulf %620, %577 : vector<2x32xf32>
    %622 = vector.extract_strided_slice %617 {offsets = [0, 0], sizes = [2, 32], strides = [1, 1]} : vector<2x96xf32> to vector<2x32xf32>
    %623 = arith.mulf %622, %619 : vector<2x32xf32>
    %624 = arith.addf %621, %623 : vector<2x32xf32>
    %625 = vector.extract_strided_slice %617 {offsets = [0, 64], sizes = [2, 32], strides = [1, 1]} : vector<2x96xf32> to vector<2x32xf32>
    %626 = math.tanh %624 : vector<2x32xf32>
    %627 = arith.mulf %625, %626 : vector<2x32xf32>
    %c11_i32 = arith.constant 11 : i32
    %628 = arith.addi %11, %c11_i32 : i32
    %c8_i32_197 = arith.constant 8 : i32
    %629 = arith.cmpi slt, %628, %c8_i32_197 : i32
    %630 = arith.select %629, %627, %576 : vector<2x32xf32>
    %631 = arith.select %629, %624, %577 : vector<2x32xf32>
    %c11_198 = arith.constant 11 : index
    %c0_199 = arith.constant 0 : index
    %c0_200 = arith.constant 0 : index
    %632 = vector.load %arg4[%c11_198, %c0_199, %c0_200] : memref<32x2x32xf32, #tpu.memory_space<vmem>>, vector<1x2x32xf32>
    %633 = vector.shape_cast %632 : vector<1x2x32xf32> to vector<2x32xf32>
    %634 = vector.shape_cast %630 : vector<2x32xf32> to vector<1x2x32xf32>
    tpu.vector_store %arg4[%c11_198, %c0_199, %c0_200], %634 {strides = array<i32>} : memref<32x2x32xf32, #tpu.memory_space<vmem>>, vector<1x2x32xf32>,
    %c20 = arith.constant 20 : index
    %c0_201 = arith.constant 0 : index
    %c0_202 = arith.constant 0 : index
    %635 = vector.load %arg2[%c20, %c0_201, %c0_202] : memref<32x2x128xf32, #tpu.memory_space<vmem>>, vector<1x2x128xf32>
    %636 = vector.shape_cast %635 : vector<1x2x128xf32> to vector<2x128xf32>
    %cst_203 = arith.constant dense<0.000000e+00> : vector<2x128xf32>
    %637 = tpu.matmul %603, %6, %cst_203 {dimension_numbers = #tpu.dot_dimension_numbers<[1], [0], [0], [1], [0, 0, 1, 1], [], []>} : vector<2x32xf32>, vector<32x128xf32>, vector<2x128xf32> -> vector<2x128xf32>
    %638 = arith.addf %636, %637 : vector<2x128xf32>
    %639 = vector.extract_strided_slice %638 {offsets = [0, 0], sizes = [2, 96], strides = [1, 1]} : vector<2x128xf32> to vector<2x96xf32>
    %640 = arith.negf %639 : vector<2x96xf32>
    %641 = math.exp %640 : vector<2x96xf32>
    %cst_204 = arith.constant 1.000000e+00 : f32
    %642 = vector.broadcast %cst_204 : f32 to vector<2x96xf32>
    %643 = arith.addf %642, %641 : vector<2x96xf32>
    %644 = arith.divf %642, %643 : vector<2x96xf32>
    %645 = vector.extract_strided_slice %638 {offsets = [0, 96], sizes = [2, 32], strides = [1, 1]} : vector<2x128xf32> to vector<2x32xf32>
    %646 = math.tanh %645 : vector<2x32xf32>
    %647 = vector.extract_strided_slice %644 {offsets = [0, 32], sizes = [2, 32], strides = [1, 1]} : vector<2x96xf32> to vector<2x32xf32>
    %648 = arith.mulf %647, %604 : vector<2x32xf32>
    %649 = vector.extract_strided_slice %644 {offsets = [0, 0], sizes = [2, 32], strides = [1, 1]} : vector<2x96xf32> to vector<2x32xf32>
    %650 = arith.mulf %649, %646 : vector<2x32xf32>
    %651 = arith.addf %648, %650 : vector<2x32xf32>
    %652 = vector.extract_strided_slice %644 {offsets = [0, 64], sizes = [2, 32], strides = [1, 1]} : vector<2x96xf32> to vector<2x32xf32>
    %653 = math.tanh %651 : vector<2x32xf32>
    %654 = arith.mulf %652, %653 : vector<2x32xf32>
    %c20_i32 = arith.constant 20 : i32
    %655 = arith.addi %13, %c20_i32 : i32
    %c8_i32_205 = arith.constant 8 : i32
    %656 = arith.cmpi slt, %655, %c8_i32_205 : i32
    %657 = arith.select %656, %654, %603 : vector<2x32xf32>
    %658 = arith.select %656, %651, %604 : vector<2x32xf32>
    %c20_206 = arith.constant 20 : index
    %c0_207 = arith.constant 0 : index
    %c0_208 = arith.constant 0 : index
    %659 = vector.load %arg5[%c20_206, %c0_207, %c0_208] : memref<32x2x32xf32, #tpu.memory_space<vmem>>, vector<1x2x32xf32>
    %660 = vector.shape_cast %659 : vector<1x2x32xf32> to vector<2x32xf32>
    %661 = vector.shape_cast %657 : vector<2x32xf32> to vector<1x2x32xf32>
    tpu.vector_store %arg5[%c20_206, %c0_207, %c0_208], %661 {strides = array<i32>} : memref<32x2x32xf32, #tpu.memory_space<vmem>>, vector<1x2x32xf32>,
    %c12 = arith.constant 12 : index
    %c0_209 = arith.constant 0 : index
    %c0_210 = arith.constant 0 : index
    %662 = vector.load %arg1[%c12, %c0_209, %c0_210] : memref<32x2x128xf32, #tpu.memory_space<vmem>>, vector<1x2x128xf32>
    %663 = vector.shape_cast %662 : vector<1x2x128xf32> to vector<2x128xf32>
    %cst_211 = arith.constant dense<0.000000e+00> : vector<2x128xf32>
    %664 = tpu.matmul %630, %4, %cst_211 {dimension_numbers = #tpu.dot_dimension_numbers<[1], [0], [0], [1], [0, 0, 1, 1], [], []>} : vector<2x32xf32>, vector<32x128xf32>, vector<2x128xf32> -> vector<2x128xf32>
    %665 = arith.addf %663, %664 : vector<2x128xf32>
    %666 = vector.extract_strided_slice %665 {offsets = [0, 0], sizes = [2, 96], strides = [1, 1]} : vector<2x128xf32> to vector<2x96xf32>
    %667 = arith.negf %666 : vector<2x96xf32>
    %668 = math.exp %667 : vector<2x96xf32>
    %cst_212 = arith.constant 1.000000e+00 : f32
    %669 = vector.broadcast %cst_212 : f32 to vector<2x96xf32>
    %670 = arith.addf %669, %668 : vector<2x96xf32>
    %671 = arith.divf %669, %670 : vector<2x96xf32>
    %672 = vector.extract_strided_slice %665 {offsets = [0, 96], sizes = [2, 32], strides = [1, 1]} : vector<2x128xf32> to vector<2x32xf32>
    %673 = math.tanh %672 : vector<2x32xf32>
    %674 = vector.extract_strided_slice %671 {offsets = [0, 32], sizes = [2, 32], strides = [1, 1]} : vector<2x96xf32> to vector<2x32xf32>
    %675 = arith.mulf %674, %631 : vector<2x32xf32>
    %676 = vector.extract_strided_slice %671 {offsets = [0, 0], sizes = [2, 32], strides = [1, 1]} : vector<2x96xf32> to vector<2x32xf32>
    %677 = arith.mulf %676, %673 : vector<2x32xf32>
    %678 = arith.addf %675, %677 : vector<2x32xf32>
    %679 = vector.extract_strided_slice %671 {offsets = [0, 64], sizes = [2, 32], strides = [1, 1]} : vector<2x96xf32> to vector<2x32xf32>
    %680 = math.tanh %678 : vector<2x32xf32>
    %681 = arith.mulf %679, %680 : vector<2x32xf32>
    %c12_i32 = arith.constant 12 : i32
    %682 = arith.addi %11, %c12_i32 : i32
    %c8_i32_213 = arith.constant 8 : i32
    %683 = arith.cmpi slt, %682, %c8_i32_213 : i32
    %684 = arith.select %683, %681, %630 : vector<2x32xf32>
    %685 = arith.select %683, %678, %631 : vector<2x32xf32>
    %c12_214 = arith.constant 12 : index
    %c0_215 = arith.constant 0 : index
    %c0_216 = arith.constant 0 : index
    %686 = vector.load %arg4[%c12_214, %c0_215, %c0_216] : memref<32x2x32xf32, #tpu.memory_space<vmem>>, vector<1x2x32xf32>
    %687 = vector.shape_cast %686 : vector<1x2x32xf32> to vector<2x32xf32>
    %688 = vector.shape_cast %684 : vector<2x32xf32> to vector<1x2x32xf32>
    tpu.vector_store %arg4[%c12_214, %c0_215, %c0_216], %688 {strides = array<i32>} : memref<32x2x32xf32, #tpu.memory_space<vmem>>, vector<1x2x32xf32>,
    %c19 = arith.constant 19 : index
    %c0_217 = arith.constant 0 : index
    %c0_218 = arith.constant 0 : index
    %689 = vector.load %arg2[%c19, %c0_217, %c0_218] : memref<32x2x128xf32, #tpu.memory_space<vmem>>, vector<1x2x128xf32>
    %690 = vector.shape_cast %689 : vector<1x2x128xf32> to vector<2x128xf32>
    %cst_219 = arith.constant dense<0.000000e+00> : vector<2x128xf32>
    %691 = tpu.matmul %657, %6, %cst_219 {dimension_numbers = #tpu.dot_dimension_numbers<[1], [0], [0], [1], [0, 0, 1, 1], [], []>} : vector<2x32xf32>, vector<32x128xf32>, vector<2x128xf32> -> vector<2x128xf32>
    %692 = arith.addf %690, %691 : vector<2x128xf32>
    %693 = vector.extract_strided_slice %692 {offsets = [0, 0], sizes = [2, 96], strides = [1, 1]} : vector<2x128xf32> to vector<2x96xf32>
    %694 = arith.negf %693 : vector<2x96xf32>
    %695 = math.exp %694 : vector<2x96xf32>
    %cst_220 = arith.constant 1.000000e+00 : f32
    %696 = vector.broadcast %cst_220 : f32 to vector<2x96xf32>
    %697 = arith.addf %696, %695 : vector<2x96xf32>
    %698 = arith.divf %696, %697 : vector<2x96xf32>
    %699 = vector.extract_strided_slice %692 {offsets = [0, 96], sizes = [2, 32], strides = [1, 1]} : vector<2x128xf32> to vector<2x32xf32>
    %700 = math.tanh %699 : vector<2x32xf32>
    %701 = vector.extract_strided_slice %698 {offsets = [0, 32], sizes = [2, 32], strides = [1, 1]} : vector<2x96xf32> to vector<2x32xf32>
    %702 = arith.mulf %701, %658 : vector<2x32xf32>
    %703 = vector.extract_strided_slice %698 {offsets = [0, 0], sizes = [2, 32], strides = [1, 1]} : vector<2x96xf32> to vector<2x32xf32>
    %704 = arith.mulf %703, %700 : vector<2x32xf32>
    %705 = arith.addf %702, %704 : vector<2x32xf32>
    %706 = vector.extract_strided_slice %698 {offsets = [0, 64], sizes = [2, 32], strides = [1, 1]} : vector<2x96xf32> to vector<2x32xf32>
    %707 = math.tanh %705 : vector<2x32xf32>
    %708 = arith.mulf %706, %707 : vector<2x32xf32>
    %c19_i32 = arith.constant 19 : i32
    %709 = arith.addi %13, %c19_i32 : i32
    %c8_i32_221 = arith.constant 8 : i32
    %710 = arith.cmpi slt, %709, %c8_i32_221 : i32
    %711 = arith.select %710, %708, %657 : vector<2x32xf32>
    %712 = arith.select %710, %705, %658 : vector<2x32xf32>
    %c19_222 = arith.constant 19 : index
    %c0_223 = arith.constant 0 : index
    %c0_224 = arith.constant 0 : index
    %713 = vector.load %arg5[%c19_222, %c0_223, %c0_224] : memref<32x2x32xf32, #tpu.memory_space<vmem>>, vector<1x2x32xf32>
    %714 = vector.shape_cast %713 : vector<1x2x32xf32> to vector<2x32xf32>
    %715 = vector.shape_cast %711 : vector<2x32xf32> to vector<1x2x32xf32>
    tpu.vector_store %arg5[%c19_222, %c0_223, %c0_224], %715 {strides = array<i32>} : memref<32x2x32xf32, #tpu.memory_space<vmem>>, vector<1x2x32xf32>,
    %c13 = arith.constant 13 : index
    %c0_225 = arith.constant 0 : index
    %c0_226 = arith.constant 0 : index
    %716 = vector.load %arg1[%c13, %c0_225, %c0_226] : memref<32x2x128xf32, #tpu.memory_space<vmem>>, vector<1x2x128xf32>
    %717 = vector.shape_cast %716 : vector<1x2x128xf32> to vector<2x128xf32>
    %cst_227 = arith.constant dense<0.000000e+00> : vector<2x128xf32>
    %718 = tpu.matmul %684, %4, %cst_227 {dimension_numbers = #tpu.dot_dimension_numbers<[1], [0], [0], [1], [0, 0, 1, 1], [], []>} : vector<2x32xf32>, vector<32x128xf32>, vector<2x128xf32> -> vector<2x128xf32>
    %719 = arith.addf %717, %718 : vector<2x128xf32>
    %720 = vector.extract_strided_slice %719 {offsets = [0, 0], sizes = [2, 96], strides = [1, 1]} : vector<2x128xf32> to vector<2x96xf32>
    %721 = arith.negf %720 : vector<2x96xf32>
    %722 = math.exp %721 : vector<2x96xf32>
    %cst_228 = arith.constant 1.000000e+00 : f32
    %723 = vector.broadcast %cst_228 : f32 to vector<2x96xf32>
    %724 = arith.addf %723, %722 : vector<2x96xf32>
    %725 = arith.divf %723, %724 : vector<2x96xf32>
    %726 = vector.extract_strided_slice %719 {offsets = [0, 96], sizes = [2, 32], strides = [1, 1]} : vector<2x128xf32> to vector<2x32xf32>
    %727 = math.tanh %726 : vector<2x32xf32>
    %728 = vector.extract_strided_slice %725 {offsets = [0, 32], sizes = [2, 32], strides = [1, 1]} : vector<2x96xf32> to vector<2x32xf32>
    %729 = arith.mulf %728, %685 : vector<2x32xf32>
    %730 = vector.extract_strided_slice %725 {offsets = [0, 0], sizes = [2, 32], strides = [1, 1]} : vector<2x96xf32> to vector<2x32xf32>
    %731 = arith.mulf %730, %727 : vector<2x32xf32>
    %732 = arith.addf %729, %731 : vector<2x32xf32>
    %733 = vector.extract_strided_slice %725 {offsets = [0, 64], sizes = [2, 32], strides = [1, 1]} : vector<2x96xf32> to vector<2x32xf32>
    %734 = math.tanh %732 : vector<2x32xf32>
    %735 = arith.mulf %733, %734 : vector<2x32xf32>
    %c13_i32 = arith.constant 13 : i32
    %736 = arith.addi %11, %c13_i32 : i32
    %c8_i32_229 = arith.constant 8 : i32
    %737 = arith.cmpi slt, %736, %c8_i32_229 : i32
    %738 = arith.select %737, %735, %684 : vector<2x32xf32>
    %739 = arith.select %737, %732, %685 : vector<2x32xf32>
    %c13_230 = arith.constant 13 : index
    %c0_231 = arith.constant 0 : index
    %c0_232 = arith.constant 0 : index
    %740 = vector.load %arg4[%c13_230, %c0_231, %c0_232] : memref<32x2x32xf32, #tpu.memory_space<vmem>>, vector<1x2x32xf32>
    %741 = vector.shape_cast %740 : vector<1x2x32xf32> to vector<2x32xf32>
    %742 = vector.shape_cast %738 : vector<2x32xf32> to vector<1x2x32xf32>
    tpu.vector_store %arg4[%c13_230, %c0_231, %c0_232], %742 {strides = array<i32>} : memref<32x2x32xf32, #tpu.memory_space<vmem>>, vector<1x2x32xf32>,
    %c18 = arith.constant 18 : index
    %c0_233 = arith.constant 0 : index
    %c0_234 = arith.constant 0 : index
    %743 = vector.load %arg2[%c18, %c0_233, %c0_234] : memref<32x2x128xf32, #tpu.memory_space<vmem>>, vector<1x2x128xf32>
    %744 = vector.shape_cast %743 : vector<1x2x128xf32> to vector<2x128xf32>
    %cst_235 = arith.constant dense<0.000000e+00> : vector<2x128xf32>
    %745 = tpu.matmul %711, %6, %cst_235 {dimension_numbers = #tpu.dot_dimension_numbers<[1], [0], [0], [1], [0, 0, 1, 1], [], []>} : vector<2x32xf32>, vector<32x128xf32>, vector<2x128xf32> -> vector<2x128xf32>
    %746 = arith.addf %744, %745 : vector<2x128xf32>
    %747 = vector.extract_strided_slice %746 {offsets = [0, 0], sizes = [2, 96], strides = [1, 1]} : vector<2x128xf32> to vector<2x96xf32>
    %748 = arith.negf %747 : vector<2x96xf32>
    %749 = math.exp %748 : vector<2x96xf32>
    %cst_236 = arith.constant 1.000000e+00 : f32
    %750 = vector.broadcast %cst_236 : f32 to vector<2x96xf32>
    %751 = arith.addf %750, %749 : vector<2x96xf32>
    %752 = arith.divf %750, %751 : vector<2x96xf32>
    %753 = vector.extract_strided_slice %746 {offsets = [0, 96], sizes = [2, 32], strides = [1, 1]} : vector<2x128xf32> to vector<2x32xf32>
    %754 = math.tanh %753 : vector<2x32xf32>
    %755 = vector.extract_strided_slice %752 {offsets = [0, 32], sizes = [2, 32], strides = [1, 1]} : vector<2x96xf32> to vector<2x32xf32>
    %756 = arith.mulf %755, %712 : vector<2x32xf32>
    %757 = vector.extract_strided_slice %752 {offsets = [0, 0], sizes = [2, 32], strides = [1, 1]} : vector<2x96xf32> to vector<2x32xf32>
    %758 = arith.mulf %757, %754 : vector<2x32xf32>
    %759 = arith.addf %756, %758 : vector<2x32xf32>
    %760 = vector.extract_strided_slice %752 {offsets = [0, 64], sizes = [2, 32], strides = [1, 1]} : vector<2x96xf32> to vector<2x32xf32>
    %761 = math.tanh %759 : vector<2x32xf32>
    %762 = arith.mulf %760, %761 : vector<2x32xf32>
    %c18_i32 = arith.constant 18 : i32
    %763 = arith.addi %13, %c18_i32 : i32
    %c8_i32_237 = arith.constant 8 : i32
    %764 = arith.cmpi slt, %763, %c8_i32_237 : i32
    %765 = arith.select %764, %762, %711 : vector<2x32xf32>
    %766 = arith.select %764, %759, %712 : vector<2x32xf32>
    %c18_238 = arith.constant 18 : index
    %c0_239 = arith.constant 0 : index
    %c0_240 = arith.constant 0 : index
    %767 = vector.load %arg5[%c18_238, %c0_239, %c0_240] : memref<32x2x32xf32, #tpu.memory_space<vmem>>, vector<1x2x32xf32>
    %768 = vector.shape_cast %767 : vector<1x2x32xf32> to vector<2x32xf32>
    %769 = vector.shape_cast %765 : vector<2x32xf32> to vector<1x2x32xf32>
    tpu.vector_store %arg5[%c18_238, %c0_239, %c0_240], %769 {strides = array<i32>} : memref<32x2x32xf32, #tpu.memory_space<vmem>>, vector<1x2x32xf32>,
    %c14 = arith.constant 14 : index
    %c0_241 = arith.constant 0 : index
    %c0_242 = arith.constant 0 : index
    %770 = vector.load %arg1[%c14, %c0_241, %c0_242] : memref<32x2x128xf32, #tpu.memory_space<vmem>>, vector<1x2x128xf32>
    %771 = vector.shape_cast %770 : vector<1x2x128xf32> to vector<2x128xf32>
    %cst_243 = arith.constant dense<0.000000e+00> : vector<2x128xf32>
    %772 = tpu.matmul %738, %4, %cst_243 {dimension_numbers = #tpu.dot_dimension_numbers<[1], [0], [0], [1], [0, 0, 1, 1], [], []>} : vector<2x32xf32>, vector<32x128xf32>, vector<2x128xf32> -> vector<2x128xf32>
    %773 = arith.addf %771, %772 : vector<2x128xf32>
    %774 = vector.extract_strided_slice %773 {offsets = [0, 0], sizes = [2, 96], strides = [1, 1]} : vector<2x128xf32> to vector<2x96xf32>
    %775 = arith.negf %774 : vector<2x96xf32>
    %776 = math.exp %775 : vector<2x96xf32>
    %cst_244 = arith.constant 1.000000e+00 : f32
    %777 = vector.broadcast %cst_244 : f32 to vector<2x96xf32>
    %778 = arith.addf %777, %776 : vector<2x96xf32>
    %779 = arith.divf %777, %778 : vector<2x96xf32>
    %780 = vector.extract_strided_slice %773 {offsets = [0, 96], sizes = [2, 32], strides = [1, 1]} : vector<2x128xf32> to vector<2x32xf32>
    %781 = math.tanh %780 : vector<2x32xf32>
    %782 = vector.extract_strided_slice %779 {offsets = [0, 32], sizes = [2, 32], strides = [1, 1]} : vector<2x96xf32> to vector<2x32xf32>
    %783 = arith.mulf %782, %739 : vector<2x32xf32>
    %784 = vector.extract_strided_slice %779 {offsets = [0, 0], sizes = [2, 32], strides = [1, 1]} : vector<2x96xf32> to vector<2x32xf32>
    %785 = arith.mulf %784, %781 : vector<2x32xf32>
    %786 = arith.addf %783, %785 : vector<2x32xf32>
    %787 = vector.extract_strided_slice %779 {offsets = [0, 64], sizes = [2, 32], strides = [1, 1]} : vector<2x96xf32> to vector<2x32xf32>
    %788 = math.tanh %786 : vector<2x32xf32>
    %789 = arith.mulf %787, %788 : vector<2x32xf32>
    %c14_i32 = arith.constant 14 : i32
    %790 = arith.addi %11, %c14_i32 : i32
    %c8_i32_245 = arith.constant 8 : i32
    %791 = arith.cmpi slt, %790, %c8_i32_245 : i32
    %792 = arith.select %791, %789, %738 : vector<2x32xf32>
    %793 = arith.select %791, %786, %739 : vector<2x32xf32>
    %c14_246 = arith.constant 14 : index
    %c0_247 = arith.constant 0 : index
    %c0_248 = arith.constant 0 : index
    %794 = vector.load %arg4[%c14_246, %c0_247, %c0_248] : memref<32x2x32xf32, #tpu.memory_space<vmem>>, vector<1x2x32xf32>
    %795 = vector.shape_cast %794 : vector<1x2x32xf32> to vector<2x32xf32>
    %796 = vector.shape_cast %792 : vector<2x32xf32> to vector<1x2x32xf32>
    tpu.vector_store %arg4[%c14_246, %c0_247, %c0_248], %796 {strides = array<i32>} : memref<32x2x32xf32, #tpu.memory_space<vmem>>, vector<1x2x32xf32>,
    %c17 = arith.constant 17 : index
    %c0_249 = arith.constant 0 : index
    %c0_250 = arith.constant 0 : index
    %797 = vector.load %arg2[%c17, %c0_249, %c0_250] : memref<32x2x128xf32, #tpu.memory_space<vmem>>, vector<1x2x128xf32>
    %798 = vector.shape_cast %797 : vector<1x2x128xf32> to vector<2x128xf32>
    %cst_251 = arith.constant dense<0.000000e+00> : vector<2x128xf32>
    %799 = tpu.matmul %765, %6, %cst_251 {dimension_numbers = #tpu.dot_dimension_numbers<[1], [0], [0], [1], [0, 0, 1, 1], [], []>} : vector<2x32xf32>, vector<32x128xf32>, vector<2x128xf32> -> vector<2x128xf32>
    %800 = arith.addf %798, %799 : vector<2x128xf32>
    %801 = vector.extract_strided_slice %800 {offsets = [0, 0], sizes = [2, 96], strides = [1, 1]} : vector<2x128xf32> to vector<2x96xf32>
    %802 = arith.negf %801 : vector<2x96xf32>
    %803 = math.exp %802 : vector<2x96xf32>
    %cst_252 = arith.constant 1.000000e+00 : f32
    %804 = vector.broadcast %cst_252 : f32 to vector<2x96xf32>
    %805 = arith.addf %804, %803 : vector<2x96xf32>
    %806 = arith.divf %804, %805 : vector<2x96xf32>
    %807 = vector.extract_strided_slice %800 {offsets = [0, 96], sizes = [2, 32], strides = [1, 1]} : vector<2x128xf32> to vector<2x32xf32>
    %808 = math.tanh %807 : vector<2x32xf32>
    %809 = vector.extract_strided_slice %806 {offsets = [0, 32], sizes = [2, 32], strides = [1, 1]} : vector<2x96xf32> to vector<2x32xf32>
    %810 = arith.mulf %809, %766 : vector<2x32xf32>
    %811 = vector.extract_strided_slice %806 {offsets = [0, 0], sizes = [2, 32], strides = [1, 1]} : vector<2x96xf32> to vector<2x32xf32>
    %812 = arith.mulf %811, %808 : vector<2x32xf32>
    %813 = arith.addf %810, %812 : vector<2x32xf32>
    %814 = vector.extract_strided_slice %806 {offsets = [0, 64], sizes = [2, 32], strides = [1, 1]} : vector<2x96xf32> to vector<2x32xf32>
    %815 = math.tanh %813 : vector<2x32xf32>
    %816 = arith.mulf %814, %815 : vector<2x32xf32>
    %c17_i32 = arith.constant 17 : i32
    %817 = arith.addi %13, %c17_i32 : i32
    %c8_i32_253 = arith.constant 8 : i32
    %818 = arith.cmpi slt, %817, %c8_i32_253 : i32
    %819 = arith.select %818, %816, %765 : vector<2x32xf32>
    %820 = arith.select %818, %813, %766 : vector<2x32xf32>
    %c17_254 = arith.constant 17 : index
    %c0_255 = arith.constant 0 : index
    %c0_256 = arith.constant 0 : index
    %821 = vector.load %arg5[%c17_254, %c0_255, %c0_256] : memref<32x2x32xf32, #tpu.memory_space<vmem>>, vector<1x2x32xf32>
    %822 = vector.shape_cast %821 : vector<1x2x32xf32> to vector<2x32xf32>
    %823 = vector.shape_cast %819 : vector<2x32xf32> to vector<1x2x32xf32>
    tpu.vector_store %arg5[%c17_254, %c0_255, %c0_256], %823 {strides = array<i32>} : memref<32x2x32xf32, #tpu.memory_space<vmem>>, vector<1x2x32xf32>,
    %c15 = arith.constant 15 : index
    %c0_257 = arith.constant 0 : index
    %c0_258 = arith.constant 0 : index
    %824 = vector.load %arg1[%c15, %c0_257, %c0_258] : memref<32x2x128xf32, #tpu.memory_space<vmem>>, vector<1x2x128xf32>
    %825 = vector.shape_cast %824 : vector<1x2x128xf32> to vector<2x128xf32>
    %cst_259 = arith.constant dense<0.000000e+00> : vector<2x128xf32>
    %826 = tpu.matmul %792, %4, %cst_259 {dimension_numbers = #tpu.dot_dimension_numbers<[1], [0], [0], [1], [0, 0, 1, 1], [], []>} : vector<2x32xf32>, vector<32x128xf32>, vector<2x128xf32> -> vector<2x128xf32>
    %827 = arith.addf %825, %826 : vector<2x128xf32>
    %828 = vector.extract_strided_slice %827 {offsets = [0, 0], sizes = [2, 96], strides = [1, 1]} : vector<2x128xf32> to vector<2x96xf32>
    %829 = arith.negf %828 : vector<2x96xf32>
    %830 = math.exp %829 : vector<2x96xf32>
    %cst_260 = arith.constant 1.000000e+00 : f32
    %831 = vector.broadcast %cst_260 : f32 to vector<2x96xf32>
    %832 = arith.addf %831, %830 : vector<2x96xf32>
    %833 = arith.divf %831, %832 : vector<2x96xf32>
    %834 = vector.extract_strided_slice %827 {offsets = [0, 96], sizes = [2, 32], strides = [1, 1]} : vector<2x128xf32> to vector<2x32xf32>
    %835 = math.tanh %834 : vector<2x32xf32>
    %836 = vector.extract_strided_slice %833 {offsets = [0, 32], sizes = [2, 32], strides = [1, 1]} : vector<2x96xf32> to vector<2x32xf32>
    %837 = arith.mulf %836, %793 : vector<2x32xf32>
    %838 = vector.extract_strided_slice %833 {offsets = [0, 0], sizes = [2, 32], strides = [1, 1]} : vector<2x96xf32> to vector<2x32xf32>
    %839 = arith.mulf %838, %835 : vector<2x32xf32>
    %840 = arith.addf %837, %839 : vector<2x32xf32>
    %841 = vector.extract_strided_slice %833 {offsets = [0, 64], sizes = [2, 32], strides = [1, 1]} : vector<2x96xf32> to vector<2x32xf32>
    %842 = math.tanh %840 : vector<2x32xf32>
    %843 = arith.mulf %841, %842 : vector<2x32xf32>
    %c15_i32 = arith.constant 15 : i32
    %844 = arith.addi %11, %c15_i32 : i32
    %c8_i32_261 = arith.constant 8 : i32
    %845 = arith.cmpi slt, %844, %c8_i32_261 : i32
    %846 = arith.select %845, %843, %792 : vector<2x32xf32>
    %847 = arith.select %845, %840, %793 : vector<2x32xf32>
    %c15_262 = arith.constant 15 : index
    %c0_263 = arith.constant 0 : index
    %c0_264 = arith.constant 0 : index
    %848 = vector.load %arg4[%c15_262, %c0_263, %c0_264] : memref<32x2x32xf32, #tpu.memory_space<vmem>>, vector<1x2x32xf32>
    %849 = vector.shape_cast %848 : vector<1x2x32xf32> to vector<2x32xf32>
    %850 = vector.shape_cast %846 : vector<2x32xf32> to vector<1x2x32xf32>
    tpu.vector_store %arg4[%c15_262, %c0_263, %c0_264], %850 {strides = array<i32>} : memref<32x2x32xf32, #tpu.memory_space<vmem>>, vector<1x2x32xf32>,
    %c16 = arith.constant 16 : index
    %c0_265 = arith.constant 0 : index
    %c0_266 = arith.constant 0 : index
    %851 = vector.load %arg2[%c16, %c0_265, %c0_266] : memref<32x2x128xf32, #tpu.memory_space<vmem>>, vector<1x2x128xf32>
    %852 = vector.shape_cast %851 : vector<1x2x128xf32> to vector<2x128xf32>
    %cst_267 = arith.constant dense<0.000000e+00> : vector<2x128xf32>
    %853 = tpu.matmul %819, %6, %cst_267 {dimension_numbers = #tpu.dot_dimension_numbers<[1], [0], [0], [1], [0, 0, 1, 1], [], []>} : vector<2x32xf32>, vector<32x128xf32>, vector<2x128xf32> -> vector<2x128xf32>
    %854 = arith.addf %852, %853 : vector<2x128xf32>
    %855 = vector.extract_strided_slice %854 {offsets = [0, 0], sizes = [2, 96], strides = [1, 1]} : vector<2x128xf32> to vector<2x96xf32>
    %856 = arith.negf %855 : vector<2x96xf32>
    %857 = math.exp %856 : vector<2x96xf32>
    %cst_268 = arith.constant 1.000000e+00 : f32
    %858 = vector.broadcast %cst_268 : f32 to vector<2x96xf32>
    %859 = arith.addf %858, %857 : vector<2x96xf32>
    %860 = arith.divf %858, %859 : vector<2x96xf32>
    %861 = vector.extract_strided_slice %854 {offsets = [0, 96], sizes = [2, 32], strides = [1, 1]} : vector<2x128xf32> to vector<2x32xf32>
    %862 = math.tanh %861 : vector<2x32xf32>
    %863 = vector.extract_strided_slice %860 {offsets = [0, 32], sizes = [2, 32], strides = [1, 1]} : vector<2x96xf32> to vector<2x32xf32>
    %864 = arith.mulf %863, %820 : vector<2x32xf32>
    %865 = vector.extract_strided_slice %860 {offsets = [0, 0], sizes = [2, 32], strides = [1, 1]} : vector<2x96xf32> to vector<2x32xf32>
    %866 = arith.mulf %865, %862 : vector<2x32xf32>
    %867 = arith.addf %864, %866 : vector<2x32xf32>
    %868 = vector.extract_strided_slice %860 {offsets = [0, 64], sizes = [2, 32], strides = [1, 1]} : vector<2x96xf32> to vector<2x32xf32>
    %869 = math.tanh %867 : vector<2x32xf32>
    %870 = arith.mulf %868, %869 : vector<2x32xf32>
    %c16_i32 = arith.constant 16 : i32
    %871 = arith.addi %13, %c16_i32 : i32
    %c8_i32_269 = arith.constant 8 : i32
    %872 = arith.cmpi slt, %871, %c8_i32_269 : i32
    %873 = arith.select %872, %870, %819 : vector<2x32xf32>
    %874 = arith.select %872, %867, %820 : vector<2x32xf32>
    %c16_270 = arith.constant 16 : index
    %c0_271 = arith.constant 0 : index
    %c0_272 = arith.constant 0 : index
    %875 = vector.load %arg5[%c16_270, %c0_271, %c0_272] : memref<32x2x32xf32, #tpu.memory_space<vmem>>, vector<1x2x32xf32>
    %876 = vector.shape_cast %875 : vector<1x2x32xf32> to vector<2x32xf32>
    %877 = vector.shape_cast %873 : vector<2x32xf32> to vector<1x2x32xf32>
    tpu.vector_store %arg5[%c16_270, %c0_271, %c0_272], %877 {strides = array<i32>} : memref<32x2x32xf32, #tpu.memory_space<vmem>>, vector<1x2x32xf32>,
    %c16_273 = arith.constant 16 : index
    %c0_274 = arith.constant 0 : index
    %c0_275 = arith.constant 0 : index
    %878 = vector.load %arg1[%c16_273, %c0_274, %c0_275] : memref<32x2x128xf32, #tpu.memory_space<vmem>>, vector<1x2x128xf32>
    %879 = vector.shape_cast %878 : vector<1x2x128xf32> to vector<2x128xf32>
    %cst_276 = arith.constant dense<0.000000e+00> : vector<2x128xf32>
    %880 = tpu.matmul %846, %4, %cst_276 {dimension_numbers = #tpu.dot_dimension_numbers<[1], [0], [0], [1], [0, 0, 1, 1], [], []>} : vector<2x32xf32>, vector<32x128xf32>, vector<2x128xf32> -> vector<2x128xf32>
    %881 = arith.addf %879, %880 : vector<2x128xf32>
    %882 = vector.extract_strided_slice %881 {offsets = [0, 0], sizes = [2, 96], strides = [1, 1]} : vector<2x128xf32> to vector<2x96xf32>
    %883 = arith.negf %882 : vector<2x96xf32>
    %884 = math.exp %883 : vector<2x96xf32>
    %cst_277 = arith.constant 1.000000e+00 : f32
    %885 = vector.broadcast %cst_277 : f32 to vector<2x96xf32>
    %886 = arith.addf %885, %884 : vector<2x96xf32>
    %887 = arith.divf %885, %886 : vector<2x96xf32>
    %888 = vector.extract_strided_slice %881 {offsets = [0, 96], sizes = [2, 32], strides = [1, 1]} : vector<2x128xf32> to vector<2x32xf32>
    %889 = math.tanh %888 : vector<2x32xf32>
    %890 = vector.extract_strided_slice %887 {offsets = [0, 32], sizes = [2, 32], strides = [1, 1]} : vector<2x96xf32> to vector<2x32xf32>
    %891 = arith.mulf %890, %847 : vector<2x32xf32>
    %892 = vector.extract_strided_slice %887 {offsets = [0, 0], sizes = [2, 32], strides = [1, 1]} : vector<2x96xf32> to vector<2x32xf32>
    %893 = arith.mulf %892, %889 : vector<2x32xf32>
    %894 = arith.addf %891, %893 : vector<2x32xf32>
    %895 = vector.extract_strided_slice %887 {offsets = [0, 64], sizes = [2, 32], strides = [1, 1]} : vector<2x96xf32> to vector<2x32xf32>
    %896 = math.tanh %894 : vector<2x32xf32>
    %897 = arith.mulf %895, %896 : vector<2x32xf32>
    %c16_i32_278 = arith.constant 16 : i32
    %898 = arith.addi %11, %c16_i32_278 : i32
    %c8_i32_279 = arith.constant 8 : i32
    %899 = arith.cmpi slt, %898, %c8_i32_279 : i32
    %900 = arith.select %899, %897, %846 : vector<2x32xf32>
    %901 = arith.select %899, %894, %847 : vector<2x32xf32>
    %c16_280 = arith.constant 16 : index
    %c0_281 = arith.constant 0 : index
    %c0_282 = arith.constant 0 : index
    %902 = vector.load %arg4[%c16_280, %c0_281, %c0_282] : memref<32x2x32xf32, #tpu.memory_space<vmem>>, vector<1x2x32xf32>
    %903 = vector.shape_cast %902 : vector<1x2x32xf32> to vector<2x32xf32>
    %904 = vector.shape_cast %900 : vector<2x32xf32> to vector<1x2x32xf32>
    tpu.vector_store %arg4[%c16_280, %c0_281, %c0_282], %904 {strides = array<i32>} : memref<32x2x32xf32, #tpu.memory_space<vmem>>, vector<1x2x32xf32>,
    %c15_283 = arith.constant 15 : index
    %c0_284 = arith.constant 0 : index
    %c0_285 = arith.constant 0 : index
    %905 = vector.load %arg2[%c15_283, %c0_284, %c0_285] : memref<32x2x128xf32, #tpu.memory_space<vmem>>, vector<1x2x128xf32>
    %906 = vector.shape_cast %905 : vector<1x2x128xf32> to vector<2x128xf32>
    %cst_286 = arith.constant dense<0.000000e+00> : vector<2x128xf32>
    %907 = tpu.matmul %873, %6, %cst_286 {dimension_numbers = #tpu.dot_dimension_numbers<[1], [0], [0], [1], [0, 0, 1, 1], [], []>} : vector<2x32xf32>, vector<32x128xf32>, vector<2x128xf32> -> vector<2x128xf32>
    %908 = arith.addf %906, %907 : vector<2x128xf32>
    %909 = vector.extract_strided_slice %908 {offsets = [0, 0], sizes = [2, 96], strides = [1, 1]} : vector<2x128xf32> to vector<2x96xf32>
    %910 = arith.negf %909 : vector<2x96xf32>
    %911 = math.exp %910 : vector<2x96xf32>
    %cst_287 = arith.constant 1.000000e+00 : f32
    %912 = vector.broadcast %cst_287 : f32 to vector<2x96xf32>
    %913 = arith.addf %912, %911 : vector<2x96xf32>
    %914 = arith.divf %912, %913 : vector<2x96xf32>
    %915 = vector.extract_strided_slice %908 {offsets = [0, 96], sizes = [2, 32], strides = [1, 1]} : vector<2x128xf32> to vector<2x32xf32>
    %916 = math.tanh %915 : vector<2x32xf32>
    %917 = vector.extract_strided_slice %914 {offsets = [0, 32], sizes = [2, 32], strides = [1, 1]} : vector<2x96xf32> to vector<2x32xf32>
    %918 = arith.mulf %917, %874 : vector<2x32xf32>
    %919 = vector.extract_strided_slice %914 {offsets = [0, 0], sizes = [2, 32], strides = [1, 1]} : vector<2x96xf32> to vector<2x32xf32>
    %920 = arith.mulf %919, %916 : vector<2x32xf32>
    %921 = arith.addf %918, %920 : vector<2x32xf32>
    %922 = vector.extract_strided_slice %914 {offsets = [0, 64], sizes = [2, 32], strides = [1, 1]} : vector<2x96xf32> to vector<2x32xf32>
    %923 = math.tanh %921 : vector<2x32xf32>
    %924 = arith.mulf %922, %923 : vector<2x32xf32>
    %c15_i32_288 = arith.constant 15 : i32
    %925 = arith.addi %13, %c15_i32_288 : i32
    %c8_i32_289 = arith.constant 8 : i32
    %926 = arith.cmpi slt, %925, %c8_i32_289 : i32
    %927 = arith.select %926, %924, %873 : vector<2x32xf32>
    %928 = arith.select %926, %921, %874 : vector<2x32xf32>
    %c15_290 = arith.constant 15 : index
    %c0_291 = arith.constant 0 : index
    %c0_292 = arith.constant 0 : index
    %929 = vector.load %arg5[%c15_290, %c0_291, %c0_292] : memref<32x2x32xf32, #tpu.memory_space<vmem>>, vector<1x2x32xf32>
    %930 = vector.shape_cast %929 : vector<1x2x32xf32> to vector<2x32xf32>
    %931 = vector.shape_cast %927 : vector<2x32xf32> to vector<1x2x32xf32>
    tpu.vector_store %arg5[%c15_290, %c0_291, %c0_292], %931 {strides = array<i32>} : memref<32x2x32xf32, #tpu.memory_space<vmem>>, vector<1x2x32xf32>,
    %c17_293 = arith.constant 17 : index
    %c0_294 = arith.constant 0 : index
    %c0_295 = arith.constant 0 : index
    %932 = vector.load %arg1[%c17_293, %c0_294, %c0_295] : memref<32x2x128xf32, #tpu.memory_space<vmem>>, vector<1x2x128xf32>
    %933 = vector.shape_cast %932 : vector<1x2x128xf32> to vector<2x128xf32>
    %cst_296 = arith.constant dense<0.000000e+00> : vector<2x128xf32>
    %934 = tpu.matmul %900, %4, %cst_296 {dimension_numbers = #tpu.dot_dimension_numbers<[1], [0], [0], [1], [0, 0, 1, 1], [], []>} : vector<2x32xf32>, vector<32x128xf32>, vector<2x128xf32> -> vector<2x128xf32>
    %935 = arith.addf %933, %934 : vector<2x128xf32>
    %936 = vector.extract_strided_slice %935 {offsets = [0, 0], sizes = [2, 96], strides = [1, 1]} : vector<2x128xf32> to vector<2x96xf32>
    %937 = arith.negf %936 : vector<2x96xf32>
    %938 = math.exp %937 : vector<2x96xf32>
    %cst_297 = arith.constant 1.000000e+00 : f32
    %939 = vector.broadcast %cst_297 : f32 to vector<2x96xf32>
    %940 = arith.addf %939, %938 : vector<2x96xf32>
    %941 = arith.divf %939, %940 : vector<2x96xf32>
    %942 = vector.extract_strided_slice %935 {offsets = [0, 96], sizes = [2, 32], strides = [1, 1]} : vector<2x128xf32> to vector<2x32xf32>
    %943 = math.tanh %942 : vector<2x32xf32>
    %944 = vector.extract_strided_slice %941 {offsets = [0, 32], sizes = [2, 32], strides = [1, 1]} : vector<2x96xf32> to vector<2x32xf32>
    %945 = arith.mulf %944, %901 : vector<2x32xf32>
    %946 = vector.extract_strided_slice %941 {offsets = [0, 0], sizes = [2, 32], strides = [1, 1]} : vector<2x96xf32> to vector<2x32xf32>
    %947 = arith.mulf %946, %943 : vector<2x32xf32>
    %948 = arith.addf %945, %947 : vector<2x32xf32>
    %949 = vector.extract_strided_slice %941 {offsets = [0, 64], sizes = [2, 32], strides = [1, 1]} : vector<2x96xf32> to vector<2x32xf32>
    %950 = math.tanh %948 : vector<2x32xf32>
    %951 = arith.mulf %949, %950 : vector<2x32xf32>
    %c17_i32_298 = arith.constant 17 : i32
    %952 = arith.addi %11, %c17_i32_298 : i32
    %c8_i32_299 = arith.constant 8 : i32
    %953 = arith.cmpi slt, %952, %c8_i32_299 : i32
    %954 = arith.select %953, %951, %900 : vector<2x32xf32>
    %955 = arith.select %953, %948, %901 : vector<2x32xf32>
    %c17_300 = arith.constant 17 : index
    %c0_301 = arith.constant 0 : index
    %c0_302 = arith.constant 0 : index
    %956 = vector.load %arg4[%c17_300, %c0_301, %c0_302] : memref<32x2x32xf32, #tpu.memory_space<vmem>>, vector<1x2x32xf32>
    %957 = vector.shape_cast %956 : vector<1x2x32xf32> to vector<2x32xf32>
    %958 = vector.shape_cast %954 : vector<2x32xf32> to vector<1x2x32xf32>
    tpu.vector_store %arg4[%c17_300, %c0_301, %c0_302], %958 {strides = array<i32>} : memref<32x2x32xf32, #tpu.memory_space<vmem>>, vector<1x2x32xf32>,
    %c14_303 = arith.constant 14 : index
    %c0_304 = arith.constant 0 : index
    %c0_305 = arith.constant 0 : index
    %959 = vector.load %arg2[%c14_303, %c0_304, %c0_305] : memref<32x2x128xf32, #tpu.memory_space<vmem>>, vector<1x2x128xf32>
    %960 = vector.shape_cast %959 : vector<1x2x128xf32> to vector<2x128xf32>
    %cst_306 = arith.constant dense<0.000000e+00> : vector<2x128xf32>
    %961 = tpu.matmul %927, %6, %cst_306 {dimension_numbers = #tpu.dot_dimension_numbers<[1], [0], [0], [1], [0, 0, 1, 1], [], []>} : vector<2x32xf32>, vector<32x128xf32>, vector<2x128xf32> -> vector<2x128xf32>
    %962 = arith.addf %960, %961 : vector<2x128xf32>
    %963 = vector.extract_strided_slice %962 {offsets = [0, 0], sizes = [2, 96], strides = [1, 1]} : vector<2x128xf32> to vector<2x96xf32>
    %964 = arith.negf %963 : vector<2x96xf32>
    %965 = math.exp %964 : vector<2x96xf32>
    %cst_307 = arith.constant 1.000000e+00 : f32
    %966 = vector.broadcast %cst_307 : f32 to vector<2x96xf32>
    %967 = arith.addf %966, %965 : vector<2x96xf32>
    %968 = arith.divf %966, %967 : vector<2x96xf32>
    %969 = vector.extract_strided_slice %962 {offsets = [0, 96], sizes = [2, 32], strides = [1, 1]} : vector<2x128xf32> to vector<2x32xf32>
    %970 = math.tanh %969 : vector<2x32xf32>
    %971 = vector.extract_strided_slice %968 {offsets = [0, 32], sizes = [2, 32], strides = [1, 1]} : vector<2x96xf32> to vector<2x32xf32>
    %972 = arith.mulf %971, %928 : vector<2x32xf32>
    %973 = vector.extract_strided_slice %968 {offsets = [0, 0], sizes = [2, 32], strides = [1, 1]} : vector<2x96xf32> to vector<2x32xf32>
    %974 = arith.mulf %973, %970 : vector<2x32xf32>
    %975 = arith.addf %972, %974 : vector<2x32xf32>
    %976 = vector.extract_strided_slice %968 {offsets = [0, 64], sizes = [2, 32], strides = [1, 1]} : vector<2x96xf32> to vector<2x32xf32>
    %977 = math.tanh %975 : vector<2x32xf32>
    %978 = arith.mulf %976, %977 : vector<2x32xf32>
    %c14_i32_308 = arith.constant 14 : i32
    %979 = arith.addi %13, %c14_i32_308 : i32
    %c8_i32_309 = arith.constant 8 : i32
    %980 = arith.cmpi slt, %979, %c8_i32_309 : i32
    %981 = arith.select %980, %978, %927 : vector<2x32xf32>
    %982 = arith.select %980, %975, %928 : vector<2x32xf32>
    %c14_310 = arith.constant 14 : index
    %c0_311 = arith.constant 0 : index
    %c0_312 = arith.constant 0 : index
    %983 = vector.load %arg5[%c14_310, %c0_311, %c0_312] : memref<32x2x32xf32, #tpu.memory_space<vmem>>, vector<1x2x32xf32>
    %984 = vector.shape_cast %983 : vector<1x2x32xf32> to vector<2x32xf32>
    %985 = vector.shape_cast %981 : vector<2x32xf32> to vector<1x2x32xf32>
    tpu.vector_store %arg5[%c14_310, %c0_311, %c0_312], %985 {strides = array<i32>} : memref<32x2x32xf32, #tpu.memory_space<vmem>>, vector<1x2x32xf32>,
    %c18_313 = arith.constant 18 : index
    %c0_314 = arith.constant 0 : index
    %c0_315 = arith.constant 0 : index
    %986 = vector.load %arg1[%c18_313, %c0_314, %c0_315] : memref<32x2x128xf32, #tpu.memory_space<vmem>>, vector<1x2x128xf32>
    %987 = vector.shape_cast %986 : vector<1x2x128xf32> to vector<2x128xf32>
    %cst_316 = arith.constant dense<0.000000e+00> : vector<2x128xf32>
    %988 = tpu.matmul %954, %4, %cst_316 {dimension_numbers = #tpu.dot_dimension_numbers<[1], [0], [0], [1], [0, 0, 1, 1], [], []>} : vector<2x32xf32>, vector<32x128xf32>, vector<2x128xf32> -> vector<2x128xf32>
    %989 = arith.addf %987, %988 : vector<2x128xf32>
    %990 = vector.extract_strided_slice %989 {offsets = [0, 0], sizes = [2, 96], strides = [1, 1]} : vector<2x128xf32> to vector<2x96xf32>
    %991 = arith.negf %990 : vector<2x96xf32>
    %992 = math.exp %991 : vector<2x96xf32>
    %cst_317 = arith.constant 1.000000e+00 : f32
    %993 = vector.broadcast %cst_317 : f32 to vector<2x96xf32>
    %994 = arith.addf %993, %992 : vector<2x96xf32>
    %995 = arith.divf %993, %994 : vector<2x96xf32>
    %996 = vector.extract_strided_slice %989 {offsets = [0, 96], sizes = [2, 32], strides = [1, 1]} : vector<2x128xf32> to vector<2x32xf32>
    %997 = math.tanh %996 : vector<2x32xf32>
    %998 = vector.extract_strided_slice %995 {offsets = [0, 32], sizes = [2, 32], strides = [1, 1]} : vector<2x96xf32> to vector<2x32xf32>
    %999 = arith.mulf %998, %955 : vector<2x32xf32>
    %1000 = vector.extract_strided_slice %995 {offsets = [0, 0], sizes = [2, 32], strides = [1, 1]} : vector<2x96xf32> to vector<2x32xf32>
    %1001 = arith.mulf %1000, %997 : vector<2x32xf32>
    %1002 = arith.addf %999, %1001 : vector<2x32xf32>
    %1003 = vector.extract_strided_slice %995 {offsets = [0, 64], sizes = [2, 32], strides = [1, 1]} : vector<2x96xf32> to vector<2x32xf32>
    %1004 = math.tanh %1002 : vector<2x32xf32>
    %1005 = arith.mulf %1003, %1004 : vector<2x32xf32>
    %c18_i32_318 = arith.constant 18 : i32
    %1006 = arith.addi %11, %c18_i32_318 : i32
    %c8_i32_319 = arith.constant 8 : i32
    %1007 = arith.cmpi slt, %1006, %c8_i32_319 : i32
    %1008 = arith.select %1007, %1005, %954 : vector<2x32xf32>
    %1009 = arith.select %1007, %1002, %955 : vector<2x32xf32>
    %c18_320 = arith.constant 18 : index
    %c0_321 = arith.constant 0 : index
    %c0_322 = arith.constant 0 : index
    %1010 = vector.load %arg4[%c18_320, %c0_321, %c0_322] : memref<32x2x32xf32, #tpu.memory_space<vmem>>, vector<1x2x32xf32>
    %1011 = vector.shape_cast %1010 : vector<1x2x32xf32> to vector<2x32xf32>
    %1012 = vector.shape_cast %1008 : vector<2x32xf32> to vector<1x2x32xf32>
    tpu.vector_store %arg4[%c18_320, %c0_321, %c0_322], %1012 {strides = array<i32>} : memref<32x2x32xf32, #tpu.memory_space<vmem>>, vector<1x2x32xf32>,
    %c13_323 = arith.constant 13 : index
    %c0_324 = arith.constant 0 : index
    %c0_325 = arith.constant 0 : index
    %1013 = vector.load %arg2[%c13_323, %c0_324, %c0_325] : memref<32x2x128xf32, #tpu.memory_space<vmem>>, vector<1x2x128xf32>
    %1014 = vector.shape_cast %1013 : vector<1x2x128xf32> to vector<2x128xf32>
    %cst_326 = arith.constant dense<0.000000e+00> : vector<2x128xf32>
    %1015 = tpu.matmul %981, %6, %cst_326 {dimension_numbers = #tpu.dot_dimension_numbers<[1], [0], [0], [1], [0, 0, 1, 1], [], []>} : vector<2x32xf32>, vector<32x128xf32>, vector<2x128xf32> -> vector<2x128xf32>
    %1016 = arith.addf %1014, %1015 : vector<2x128xf32>
    %1017 = vector.extract_strided_slice %1016 {offsets = [0, 0], sizes = [2, 96], strides = [1, 1]} : vector<2x128xf32> to vector<2x96xf32>
    %1018 = arith.negf %1017 : vector<2x96xf32>
    %1019 = math.exp %1018 : vector<2x96xf32>
    %cst_327 = arith.constant 1.000000e+00 : f32
    %1020 = vector.broadcast %cst_327 : f32 to vector<2x96xf32>
    %1021 = arith.addf %1020, %1019 : vector<2x96xf32>
    %1022 = arith.divf %1020, %1021 : vector<2x96xf32>
    %1023 = vector.extract_strided_slice %1016 {offsets = [0, 96], sizes = [2, 32], strides = [1, 1]} : vector<2x128xf32> to vector<2x32xf32>
    %1024 = math.tanh %1023 : vector<2x32xf32>
    %1025 = vector.extract_strided_slice %1022 {offsets = [0, 32], sizes = [2, 32], strides = [1, 1]} : vector<2x96xf32> to vector<2x32xf32>
    %1026 = arith.mulf %1025, %982 : vector<2x32xf32>
    %1027 = vector.extract_strided_slice %1022 {offsets = [0, 0], sizes = [2, 32], strides = [1, 1]} : vector<2x96xf32> to vector<2x32xf32>
    %1028 = arith.mulf %1027, %1024 : vector<2x32xf32>
    %1029 = arith.addf %1026, %1028 : vector<2x32xf32>
    %1030 = vector.extract_strided_slice %1022 {offsets = [0, 64], sizes = [2, 32], strides = [1, 1]} : vector<2x96xf32> to vector<2x32xf32>
    %1031 = math.tanh %1029 : vector<2x32xf32>
    %1032 = arith.mulf %1030, %1031 : vector<2x32xf32>
    %c13_i32_328 = arith.constant 13 : i32
    %1033 = arith.addi %13, %c13_i32_328 : i32
    %c8_i32_329 = arith.constant 8 : i32
    %1034 = arith.cmpi slt, %1033, %c8_i32_329 : i32
    %1035 = arith.select %1034, %1032, %981 : vector<2x32xf32>
    %1036 = arith.select %1034, %1029, %982 : vector<2x32xf32>
    %c13_330 = arith.constant 13 : index
    %c0_331 = arith.constant 0 : index
    %c0_332 = arith.constant 0 : index
    %1037 = vector.load %arg5[%c13_330, %c0_331, %c0_332] : memref<32x2x32xf32, #tpu.memory_space<vmem>>, vector<1x2x32xf32>
    %1038 = vector.shape_cast %1037 : vector<1x2x32xf32> to vector<2x32xf32>
    %1039 = vector.shape_cast %1035 : vector<2x32xf32> to vector<1x2x32xf32>
    tpu.vector_store %arg5[%c13_330, %c0_331, %c0_332], %1039 {strides = array<i32>} : memref<32x2x32xf32, #tpu.memory_space<vmem>>, vector<1x2x32xf32>,
    %c19_333 = arith.constant 19 : index
    %c0_334 = arith.constant 0 : index
    %c0_335 = arith.constant 0 : index
    %1040 = vector.load %arg1[%c19_333, %c0_334, %c0_335] : memref<32x2x128xf32, #tpu.memory_space<vmem>>, vector<1x2x128xf32>
    %1041 = vector.shape_cast %1040 : vector<1x2x128xf32> to vector<2x128xf32>
    %cst_336 = arith.constant dense<0.000000e+00> : vector<2x128xf32>
    %1042 = tpu.matmul %1008, %4, %cst_336 {dimension_numbers = #tpu.dot_dimension_numbers<[1], [0], [0], [1], [0, 0, 1, 1], [], []>} : vector<2x32xf32>, vector<32x128xf32>, vector<2x128xf32> -> vector<2x128xf32>
    %1043 = arith.addf %1041, %1042 : vector<2x128xf32>
    %1044 = vector.extract_strided_slice %1043 {offsets = [0, 0], sizes = [2, 96], strides = [1, 1]} : vector<2x128xf32> to vector<2x96xf32>
    %1045 = arith.negf %1044 : vector<2x96xf32>
    %1046 = math.exp %1045 : vector<2x96xf32>
    %cst_337 = arith.constant 1.000000e+00 : f32
    %1047 = vector.broadcast %cst_337 : f32 to vector<2x96xf32>
    %1048 = arith.addf %1047, %1046 : vector<2x96xf32>
    %1049 = arith.divf %1047, %1048 : vector<2x96xf32>
    %1050 = vector.extract_strided_slice %1043 {offsets = [0, 96], sizes = [2, 32], strides = [1, 1]} : vector<2x128xf32> to vector<2x32xf32>
    %1051 = math.tanh %1050 : vector<2x32xf32>
    %1052 = vector.extract_strided_slice %1049 {offsets = [0, 32], sizes = [2, 32], strides = [1, 1]} : vector<2x96xf32> to vector<2x32xf32>
    %1053 = arith.mulf %1052, %1009 : vector<2x32xf32>
    %1054 = vector.extract_strided_slice %1049 {offsets = [0, 0], sizes = [2, 32], strides = [1, 1]} : vector<2x96xf32> to vector<2x32xf32>
    %1055 = arith.mulf %1054, %1051 : vector<2x32xf32>
    %1056 = arith.addf %1053, %1055 : vector<2x32xf32>
    %1057 = vector.extract_strided_slice %1049 {offsets = [0, 64], sizes = [2, 32], strides = [1, 1]} : vector<2x96xf32> to vector<2x32xf32>
    %1058 = math.tanh %1056 : vector<2x32xf32>
    %1059 = arith.mulf %1057, %1058 : vector<2x32xf32>
    %c19_i32_338 = arith.constant 19 : i32
    %1060 = arith.addi %11, %c19_i32_338 : i32
    %c8_i32_339 = arith.constant 8 : i32
    %1061 = arith.cmpi slt, %1060, %c8_i32_339 : i32
    %1062 = arith.select %1061, %1059, %1008 : vector<2x32xf32>
    %1063 = arith.select %1061, %1056, %1009 : vector<2x32xf32>
    %c19_340 = arith.constant 19 : index
    %c0_341 = arith.constant 0 : index
    %c0_342 = arith.constant 0 : index
    %1064 = vector.load %arg4[%c19_340, %c0_341, %c0_342] : memref<32x2x32xf32, #tpu.memory_space<vmem>>, vector<1x2x32xf32>
    %1065 = vector.shape_cast %1064 : vector<1x2x32xf32> to vector<2x32xf32>
    %1066 = vector.shape_cast %1062 : vector<2x32xf32> to vector<1x2x32xf32>
    tpu.vector_store %arg4[%c19_340, %c0_341, %c0_342], %1066 {strides = array<i32>} : memref<32x2x32xf32, #tpu.memory_space<vmem>>, vector<1x2x32xf32>,
    %c12_343 = arith.constant 12 : index
    %c0_344 = arith.constant 0 : index
    %c0_345 = arith.constant 0 : index
    %1067 = vector.load %arg2[%c12_343, %c0_344, %c0_345] : memref<32x2x128xf32, #tpu.memory_space<vmem>>, vector<1x2x128xf32>
    %1068 = vector.shape_cast %1067 : vector<1x2x128xf32> to vector<2x128xf32>
    %cst_346 = arith.constant dense<0.000000e+00> : vector<2x128xf32>
    %1069 = tpu.matmul %1035, %6, %cst_346 {dimension_numbers = #tpu.dot_dimension_numbers<[1], [0], [0], [1], [0, 0, 1, 1], [], []>} : vector<2x32xf32>, vector<32x128xf32>, vector<2x128xf32> -> vector<2x128xf32>
    %1070 = arith.addf %1068, %1069 : vector<2x128xf32>
    %1071 = vector.extract_strided_slice %1070 {offsets = [0, 0], sizes = [2, 96], strides = [1, 1]} : vector<2x128xf32> to vector<2x96xf32>
    %1072 = arith.negf %1071 : vector<2x96xf32>
    %1073 = math.exp %1072 : vector<2x96xf32>
    %cst_347 = arith.constant 1.000000e+00 : f32
    %1074 = vector.broadcast %cst_347 : f32 to vector<2x96xf32>
    %1075 = arith.addf %1074, %1073 : vector<2x96xf32>
    %1076 = arith.divf %1074, %1075 : vector<2x96xf32>
    %1077 = vector.extract_strided_slice %1070 {offsets = [0, 96], sizes = [2, 32], strides = [1, 1]} : vector<2x128xf32> to vector<2x32xf32>
    %1078 = math.tanh %1077 : vector<2x32xf32>
    %1079 = vector.extract_strided_slice %1076 {offsets = [0, 32], sizes = [2, 32], strides = [1, 1]} : vector<2x96xf32> to vector<2x32xf32>
    %1080 = arith.mulf %1079, %1036 : vector<2x32xf32>
    %1081 = vector.extract_strided_slice %1076 {offsets = [0, 0], sizes = [2, 32], strides = [1, 1]} : vector<2x96xf32> to vector<2x32xf32>
    %1082 = arith.mulf %1081, %1078 : vector<2x32xf32>
    %1083 = arith.addf %1080, %1082 : vector<2x32xf32>
    %1084 = vector.extract_strided_slice %1076 {offsets = [0, 64], sizes = [2, 32], strides = [1, 1]} : vector<2x96xf32> to vector<2x32xf32>
    %1085 = math.tanh %1083 : vector<2x32xf32>
    %1086 = arith.mulf %1084, %1085 : vector<2x32xf32>
    %c12_i32_348 = arith.constant 12 : i32
    %1087 = arith.addi %13, %c12_i32_348 : i32
    %c8_i32_349 = arith.constant 8 : i32
    %1088 = arith.cmpi slt, %1087, %c8_i32_349 : i32
    %1089 = arith.select %1088, %1086, %1035 : vector<2x32xf32>
    %1090 = arith.select %1088, %1083, %1036 : vector<2x32xf32>
    %c12_350 = arith.constant 12 : index
    %c0_351 = arith.constant 0 : index
    %c0_352 = arith.constant 0 : index
    %1091 = vector.load %arg5[%c12_350, %c0_351, %c0_352] : memref<32x2x32xf32, #tpu.memory_space<vmem>>, vector<1x2x32xf32>
    %1092 = vector.shape_cast %1091 : vector<1x2x32xf32> to vector<2x32xf32>
    %1093 = vector.shape_cast %1089 : vector<2x32xf32> to vector<1x2x32xf32>
    tpu.vector_store %arg5[%c12_350, %c0_351, %c0_352], %1093 {strides = array<i32>} : memref<32x2x32xf32, #tpu.memory_space<vmem>>, vector<1x2x32xf32>,
    %c20_353 = arith.constant 20 : index
    %c0_354 = arith.constant 0 : index
    %c0_355 = arith.constant 0 : index
    %1094 = vector.load %arg1[%c20_353, %c0_354, %c0_355] : memref<32x2x128xf32, #tpu.memory_space<vmem>>, vector<1x2x128xf32>
    %1095 = vector.shape_cast %1094 : vector<1x2x128xf32> to vector<2x128xf32>
    %cst_356 = arith.constant dense<0.000000e+00> : vector<2x128xf32>
    %1096 = tpu.matmul %1062, %4, %cst_356 {dimension_numbers = #tpu.dot_dimension_numbers<[1], [0], [0], [1], [0, 0, 1, 1], [], []>} : vector<2x32xf32>, vector<32x128xf32>, vector<2x128xf32> -> vector<2x128xf32>
    %1097 = arith.addf %1095, %1096 : vector<2x128xf32>
    %1098 = vector.extract_strided_slice %1097 {offsets = [0, 0], sizes = [2, 96], strides = [1, 1]} : vector<2x128xf32> to vector<2x96xf32>
    %1099 = arith.negf %1098 : vector<2x96xf32>
    %1100 = math.exp %1099 : vector<2x96xf32>
    %cst_357 = arith.constant 1.000000e+00 : f32
    %1101 = vector.broadcast %cst_357 : f32 to vector<2x96xf32>
    %1102 = arith.addf %1101, %1100 : vector<2x96xf32>
    %1103 = arith.divf %1101, %1102 : vector<2x96xf32>
    %1104 = vector.extract_strided_slice %1097 {offsets = [0, 96], sizes = [2, 32], strides = [1, 1]} : vector<2x128xf32> to vector<2x32xf32>
    %1105 = math.tanh %1104 : vector<2x32xf32>
    %1106 = vector.extract_strided_slice %1103 {offsets = [0, 32], sizes = [2, 32], strides = [1, 1]} : vector<2x96xf32> to vector<2x32xf32>
    %1107 = arith.mulf %1106, %1063 : vector<2x32xf32>
    %1108 = vector.extract_strided_slice %1103 {offsets = [0, 0], sizes = [2, 32], strides = [1, 1]} : vector<2x96xf32> to vector<2x32xf32>
    %1109 = arith.mulf %1108, %1105 : vector<2x32xf32>
    %1110 = arith.addf %1107, %1109 : vector<2x32xf32>
    %1111 = vector.extract_strided_slice %1103 {offsets = [0, 64], sizes = [2, 32], strides = [1, 1]} : vector<2x96xf32> to vector<2x32xf32>
    %1112 = math.tanh %1110 : vector<2x32xf32>
    %1113 = arith.mulf %1111, %1112 : vector<2x32xf32>
    %c20_i32_358 = arith.constant 20 : i32
    %1114 = arith.addi %11, %c20_i32_358 : i32
    %c8_i32_359 = arith.constant 8 : i32
    %1115 = arith.cmpi slt, %1114, %c8_i32_359 : i32
    %1116 = arith.select %1115, %1113, %1062 : vector<2x32xf32>
    %1117 = arith.select %1115, %1110, %1063 : vector<2x32xf32>
    %c20_360 = arith.constant 20 : index
    %c0_361 = arith.constant 0 : index
    %c0_362 = arith.constant 0 : index
    %1118 = vector.load %arg4[%c20_360, %c0_361, %c0_362] : memref<32x2x32xf32, #tpu.memory_space<vmem>>, vector<1x2x32xf32>
    %1119 = vector.shape_cast %1118 : vector<1x2x32xf32> to vector<2x32xf32>
    %1120 = vector.shape_cast %1116 : vector<2x32xf32> to vector<1x2x32xf32>
    tpu.vector_store %arg4[%c20_360, %c0_361, %c0_362], %1120 {strides = array<i32>} : memref<32x2x32xf32, #tpu.memory_space<vmem>>, vector<1x2x32xf32>,
    %c11_363 = arith.constant 11 : index
    %c0_364 = arith.constant 0 : index
    %c0_365 = arith.constant 0 : index
    %1121 = vector.load %arg2[%c11_363, %c0_364, %c0_365] : memref<32x2x128xf32, #tpu.memory_space<vmem>>, vector<1x2x128xf32>
    %1122 = vector.shape_cast %1121 : vector<1x2x128xf32> to vector<2x128xf32>
    %cst_366 = arith.constant dense<0.000000e+00> : vector<2x128xf32>
    %1123 = tpu.matmul %1089, %6, %cst_366 {dimension_numbers = #tpu.dot_dimension_numbers<[1], [0], [0], [1], [0, 0, 1, 1], [], []>} : vector<2x32xf32>, vector<32x128xf32>, vector<2x128xf32> -> vector<2x128xf32>
    %1124 = arith.addf %1122, %1123 : vector<2x128xf32>
    %1125 = vector.extract_strided_slice %1124 {offsets = [0, 0], sizes = [2, 96], strides = [1, 1]} : vector<2x128xf32> to vector<2x96xf32>
    %1126 = arith.negf %1125 : vector<2x96xf32>
    %1127 = math.exp %1126 : vector<2x96xf32>
    %cst_367 = arith.constant 1.000000e+00 : f32
    %1128 = vector.broadcast %cst_367 : f32 to vector<2x96xf32>
    %1129 = arith.addf %1128, %1127 : vector<2x96xf32>
    %1130 = arith.divf %1128, %1129 : vector<2x96xf32>
    %1131 = vector.extract_strided_slice %1124 {offsets = [0, 96], sizes = [2, 32], strides = [1, 1]} : vector<2x128xf32> to vector<2x32xf32>
    %1132 = math.tanh %1131 : vector<2x32xf32>
    %1133 = vector.extract_strided_slice %1130 {offsets = [0, 32], sizes = [2, 32], strides = [1, 1]} : vector<2x96xf32> to vector<2x32xf32>
    %1134 = arith.mulf %1133, %1090 : vector<2x32xf32>
    %1135 = vector.extract_strided_slice %1130 {offsets = [0, 0], sizes = [2, 32], strides = [1, 1]} : vector<2x96xf32> to vector<2x32xf32>
    %1136 = arith.mulf %1135, %1132 : vector<2x32xf32>
    %1137 = arith.addf %1134, %1136 : vector<2x32xf32>
    %1138 = vector.extract_strided_slice %1130 {offsets = [0, 64], sizes = [2, 32], strides = [1, 1]} : vector<2x96xf32> to vector<2x32xf32>
    %1139 = math.tanh %1137 : vector<2x32xf32>
    %1140 = arith.mulf %1138, %1139 : vector<2x32xf32>
    %c11_i32_368 = arith.constant 11 : i32
    %1141 = arith.addi %13, %c11_i32_368 : i32
    %c8_i32_369 = arith.constant 8 : i32
    %1142 = arith.cmpi slt, %1141, %c8_i32_369 : i32
    %1143 = arith.select %1142, %1140, %1089 : vector<2x32xf32>
    %1144 = arith.select %1142, %1137, %1090 : vector<2x32xf32>
    %c11_370 = arith.constant 11 : index
    %c0_371 = arith.constant 0 : index
    %c0_372 = arith.constant 0 : index
    %1145 = vector.load %arg5[%c11_370, %c0_371, %c0_372] : memref<32x2x32xf32, #tpu.memory_space<vmem>>, vector<1x2x32xf32>
    %1146 = vector.shape_cast %1145 : vector<1x2x32xf32> to vector<2x32xf32>
    %1147 = vector.shape_cast %1143 : vector<2x32xf32> to vector<1x2x32xf32>
    tpu.vector_store %arg5[%c11_370, %c0_371, %c0_372], %1147 {strides = array<i32>} : memref<32x2x32xf32, #tpu.memory_space<vmem>>, vector<1x2x32xf32>,
    %c21_373 = arith.constant 21 : index
    %c0_374 = arith.constant 0 : index
    %c0_375 = arith.constant 0 : index
    %1148 = vector.load %arg1[%c21_373, %c0_374, %c0_375] : memref<32x2x128xf32, #tpu.memory_space<vmem>>, vector<1x2x128xf32>
    %1149 = vector.shape_cast %1148 : vector<1x2x128xf32> to vector<2x128xf32>
    %cst_376 = arith.constant dense<0.000000e+00> : vector<2x128xf32>
    %1150 = tpu.matmul %1116, %4, %cst_376 {dimension_numbers = #tpu.dot_dimension_numbers<[1], [0], [0], [1], [0, 0, 1, 1], [], []>} : vector<2x32xf32>, vector<32x128xf32>, vector<2x128xf32> -> vector<2x128xf32>
    %1151 = arith.addf %1149, %1150 : vector<2x128xf32>
    %1152 = vector.extract_strided_slice %1151 {offsets = [0, 0], sizes = [2, 96], strides = [1, 1]} : vector<2x128xf32> to vector<2x96xf32>
    %1153 = arith.negf %1152 : vector<2x96xf32>
    %1154 = math.exp %1153 : vector<2x96xf32>
    %cst_377 = arith.constant 1.000000e+00 : f32
    %1155 = vector.broadcast %cst_377 : f32 to vector<2x96xf32>
    %1156 = arith.addf %1155, %1154 : vector<2x96xf32>
    %1157 = arith.divf %1155, %1156 : vector<2x96xf32>
    %1158 = vector.extract_strided_slice %1151 {offsets = [0, 96], sizes = [2, 32], strides = [1, 1]} : vector<2x128xf32> to vector<2x32xf32>
    %1159 = math.tanh %1158 : vector<2x32xf32>
    %1160 = vector.extract_strided_slice %1157 {offsets = [0, 32], sizes = [2, 32], strides = [1, 1]} : vector<2x96xf32> to vector<2x32xf32>
    %1161 = arith.mulf %1160, %1117 : vector<2x32xf32>
    %1162 = vector.extract_strided_slice %1157 {offsets = [0, 0], sizes = [2, 32], strides = [1, 1]} : vector<2x96xf32> to vector<2x32xf32>
    %1163 = arith.mulf %1162, %1159 : vector<2x32xf32>
    %1164 = arith.addf %1161, %1163 : vector<2x32xf32>
    %1165 = vector.extract_strided_slice %1157 {offsets = [0, 64], sizes = [2, 32], strides = [1, 1]} : vector<2x96xf32> to vector<2x32xf32>
    %1166 = math.tanh %1164 : vector<2x32xf32>
    %1167 = arith.mulf %1165, %1166 : vector<2x32xf32>
    %c21_i32_378 = arith.constant 21 : i32
    %1168 = arith.addi %11, %c21_i32_378 : i32
    %c8_i32_379 = arith.constant 8 : i32
    %1169 = arith.cmpi slt, %1168, %c8_i32_379 : i32
    %1170 = arith.select %1169, %1167, %1116 : vector<2x32xf32>
    %1171 = arith.select %1169, %1164, %1117 : vector<2x32xf32>
    %c21_380 = arith.constant 21 : index
    %c0_381 = arith.constant 0 : index
    %c0_382 = arith.constant 0 : index
    %1172 = vector.load %arg4[%c21_380, %c0_381, %c0_382] : memref<32x2x32xf32, #tpu.memory_space<vmem>>, vector<1x2x32xf32>
    %1173 = vector.shape_cast %1172 : vector<1x2x32xf32> to vector<2x32xf32>
    %1174 = vector.shape_cast %1170 : vector<2x32xf32> to vector<1x2x32xf32>
    tpu.vector_store %arg4[%c21_380, %c0_381, %c0_382], %1174 {strides = array<i32>} : memref<32x2x32xf32, #tpu.memory_space<vmem>>, vector<1x2x32xf32>,
    %c10_383 = arith.constant 10 : index
    %c0_384 = arith.constant 0 : index
    %c0_385 = arith.constant 0 : index
    %1175 = vector.load %arg2[%c10_383, %c0_384, %c0_385] : memref<32x2x128xf32, #tpu.memory_space<vmem>>, vector<1x2x128xf32>
    %1176 = vector.shape_cast %1175 : vector<1x2x128xf32> to vector<2x128xf32>
    %cst_386 = arith.constant dense<0.000000e+00> : vector<2x128xf32>
    %1177 = tpu.matmul %1143, %6, %cst_386 {dimension_numbers = #tpu.dot_dimension_numbers<[1], [0], [0], [1], [0, 0, 1, 1], [], []>} : vector<2x32xf32>, vector<32x128xf32>, vector<2x128xf32> -> vector<2x128xf32>
    %1178 = arith.addf %1176, %1177 : vector<2x128xf32>
    %1179 = vector.extract_strided_slice %1178 {offsets = [0, 0], sizes = [2, 96], strides = [1, 1]} : vector<2x128xf32> to vector<2x96xf32>
    %1180 = arith.negf %1179 : vector<2x96xf32>
    %1181 = math.exp %1180 : vector<2x96xf32>
    %cst_387 = arith.constant 1.000000e+00 : f32
    %1182 = vector.broadcast %cst_387 : f32 to vector<2x96xf32>
    %1183 = arith.addf %1182, %1181 : vector<2x96xf32>
    %1184 = arith.divf %1182, %1183 : vector<2x96xf32>
    %1185 = vector.extract_strided_slice %1178 {offsets = [0, 96], sizes = [2, 32], strides = [1, 1]} : vector<2x128xf32> to vector<2x32xf32>
    %1186 = math.tanh %1185 : vector<2x32xf32>
    %1187 = vector.extract_strided_slice %1184 {offsets = [0, 32], sizes = [2, 32], strides = [1, 1]} : vector<2x96xf32> to vector<2x32xf32>
    %1188 = arith.mulf %1187, %1144 : vector<2x32xf32>
    %1189 = vector.extract_strided_slice %1184 {offsets = [0, 0], sizes = [2, 32], strides = [1, 1]} : vector<2x96xf32> to vector<2x32xf32>
    %1190 = arith.mulf %1189, %1186 : vector<2x32xf32>
    %1191 = arith.addf %1188, %1190 : vector<2x32xf32>
    %1192 = vector.extract_strided_slice %1184 {offsets = [0, 64], sizes = [2, 32], strides = [1, 1]} : vector<2x96xf32> to vector<2x32xf32>
    %1193 = math.tanh %1191 : vector<2x32xf32>
    %1194 = arith.mulf %1192, %1193 : vector<2x32xf32>
    %c10_i32_388 = arith.constant 10 : i32
    %1195 = arith.addi %13, %c10_i32_388 : i32
    %c8_i32_389 = arith.constant 8 : i32
    %1196 = arith.cmpi slt, %1195, %c8_i32_389 : i32
    %1197 = arith.select %1196, %1194, %1143 : vector<2x32xf32>
    %1198 = arith.select %1196, %1191, %1144 : vector<2x32xf32>
    %c10_390 = arith.constant 10 : index
    %c0_391 = arith.constant 0 : index
    %c0_392 = arith.constant 0 : index
    %1199 = vector.load %arg5[%c10_390, %c0_391, %c0_392] : memref<32x2x32xf32, #tpu.memory_space<vmem>>, vector<1x2x32xf32>
    %1200 = vector.shape_cast %1199 : vector<1x2x32xf32> to vector<2x32xf32>
    %1201 = vector.shape_cast %1197 : vector<2x32xf32> to vector<1x2x32xf32>
    tpu.vector_store %arg5[%c10_390, %c0_391, %c0_392], %1201 {strides = array<i32>} : memref<32x2x32xf32, #tpu.memory_space<vmem>>, vector<1x2x32xf32>,
    %c22_393 = arith.constant 22 : index
    %c0_394 = arith.constant 0 : index
    %c0_395 = arith.constant 0 : index
    %1202 = vector.load %arg1[%c22_393, %c0_394, %c0_395] : memref<32x2x128xf32, #tpu.memory_space<vmem>>, vector<1x2x128xf32>
    %1203 = vector.shape_cast %1202 : vector<1x2x128xf32> to vector<2x128xf32>
    %cst_396 = arith.constant dense<0.000000e+00> : vector<2x128xf32>
    %1204 = tpu.matmul %1170, %4, %cst_396 {dimension_numbers = #tpu.dot_dimension_numbers<[1], [0], [0], [1], [0, 0, 1, 1], [], []>} : vector<2x32xf32>, vector<32x128xf32>, vector<2x128xf32> -> vector<2x128xf32>
    %1205 = arith.addf %1203, %1204 : vector<2x128xf32>
    %1206 = vector.extract_strided_slice %1205 {offsets = [0, 0], sizes = [2, 96], strides = [1, 1]} : vector<2x128xf32> to vector<2x96xf32>
    %1207 = arith.negf %1206 : vector<2x96xf32>
    %1208 = math.exp %1207 : vector<2x96xf32>
    %cst_397 = arith.constant 1.000000e+00 : f32
    %1209 = vector.broadcast %cst_397 : f32 to vector<2x96xf32>
    %1210 = arith.addf %1209, %1208 : vector<2x96xf32>
    %1211 = arith.divf %1209, %1210 : vector<2x96xf32>
    %1212 = vector.extract_strided_slice %1205 {offsets = [0, 96], sizes = [2, 32], strides = [1, 1]} : vector<2x128xf32> to vector<2x32xf32>
    %1213 = math.tanh %1212 : vector<2x32xf32>
    %1214 = vector.extract_strided_slice %1211 {offsets = [0, 32], sizes = [2, 32], strides = [1, 1]} : vector<2x96xf32> to vector<2x32xf32>
    %1215 = arith.mulf %1214, %1171 : vector<2x32xf32>
    %1216 = vector.extract_strided_slice %1211 {offsets = [0, 0], sizes = [2, 32], strides = [1, 1]} : vector<2x96xf32> to vector<2x32xf32>
    %1217 = arith.mulf %1216, %1213 : vector<2x32xf32>
    %1218 = arith.addf %1215, %1217 : vector<2x32xf32>
    %1219 = vector.extract_strided_slice %1211 {offsets = [0, 64], sizes = [2, 32], strides = [1, 1]} : vector<2x96xf32> to vector<2x32xf32>
    %1220 = math.tanh %1218 : vector<2x32xf32>
    %1221 = arith.mulf %1219, %1220 : vector<2x32xf32>
    %c22_i32_398 = arith.constant 22 : i32
    %1222 = arith.addi %11, %c22_i32_398 : i32
    %c8_i32_399 = arith.constant 8 : i32
    %1223 = arith.cmpi slt, %1222, %c8_i32_399 : i32
    %1224 = arith.select %1223, %1221, %1170 : vector<2x32xf32>
    %1225 = arith.select %1223, %1218, %1171 : vector<2x32xf32>
    %c22_400 = arith.constant 22 : index
    %c0_401 = arith.constant 0 : index
    %c0_402 = arith.constant 0 : index
    %1226 = vector.load %arg4[%c22_400, %c0_401, %c0_402] : memref<32x2x32xf32, #tpu.memory_space<vmem>>, vector<1x2x32xf32>
    %1227 = vector.shape_cast %1226 : vector<1x2x32xf32> to vector<2x32xf32>
    %1228 = vector.shape_cast %1224 : vector<2x32xf32> to vector<1x2x32xf32>
    tpu.vector_store %arg4[%c22_400, %c0_401, %c0_402], %1228 {strides = array<i32>} : memref<32x2x32xf32, #tpu.memory_space<vmem>>, vector<1x2x32xf32>,
    %c9_403 = arith.constant 9 : index
    %c0_404 = arith.constant 0 : index
    %c0_405 = arith.constant 0 : index
    %1229 = vector.load %arg2[%c9_403, %c0_404, %c0_405] : memref<32x2x128xf32, #tpu.memory_space<vmem>>, vector<1x2x128xf32>
    %1230 = vector.shape_cast %1229 : vector<1x2x128xf32> to vector<2x128xf32>
    %cst_406 = arith.constant dense<0.000000e+00> : vector<2x128xf32>
    %1231 = tpu.matmul %1197, %6, %cst_406 {dimension_numbers = #tpu.dot_dimension_numbers<[1], [0], [0], [1], [0, 0, 1, 1], [], []>} : vector<2x32xf32>, vector<32x128xf32>, vector<2x128xf32> -> vector<2x128xf32>
    %1232 = arith.addf %1230, %1231 : vector<2x128xf32>
    %1233 = vector.extract_strided_slice %1232 {offsets = [0, 0], sizes = [2, 96], strides = [1, 1]} : vector<2x128xf32> to vector<2x96xf32>
    %1234 = arith.negf %1233 : vector<2x96xf32>
    %1235 = math.exp %1234 : vector<2x96xf32>
    %cst_407 = arith.constant 1.000000e+00 : f32
    %1236 = vector.broadcast %cst_407 : f32 to vector<2x96xf32>
    %1237 = arith.addf %1236, %1235 : vector<2x96xf32>
    %1238 = arith.divf %1236, %1237 : vector<2x96xf32>
    %1239 = vector.extract_strided_slice %1232 {offsets = [0, 96], sizes = [2, 32], strides = [1, 1]} : vector<2x128xf32> to vector<2x32xf32>
    %1240 = math.tanh %1239 : vector<2x32xf32>
    %1241 = vector.extract_strided_slice %1238 {offsets = [0, 32], sizes = [2, 32], strides = [1, 1]} : vector<2x96xf32> to vector<2x32xf32>
    %1242 = arith.mulf %1241, %1198 : vector<2x32xf32>
    %1243 = vector.extract_strided_slice %1238 {offsets = [0, 0], sizes = [2, 32], strides = [1, 1]} : vector<2x96xf32> to vector<2x32xf32>
    %1244 = arith.mulf %1243, %1240 : vector<2x32xf32>
    %1245 = arith.addf %1242, %1244 : vector<2x32xf32>
    %1246 = vector.extract_strided_slice %1238 {offsets = [0, 64], sizes = [2, 32], strides = [1, 1]} : vector<2x96xf32> to vector<2x32xf32>
    %1247 = math.tanh %1245 : vector<2x32xf32>
    %1248 = arith.mulf %1246, %1247 : vector<2x32xf32>
    %c9_i32_408 = arith.constant 9 : i32
    %1249 = arith.addi %13, %c9_i32_408 : i32
    %c8_i32_409 = arith.constant 8 : i32
    %1250 = arith.cmpi slt, %1249, %c8_i32_409 : i32
    %1251 = arith.select %1250, %1248, %1197 : vector<2x32xf32>
    %1252 = arith.select %1250, %1245, %1198 : vector<2x32xf32>
    %c9_410 = arith.constant 9 : index
    %c0_411 = arith.constant 0 : index
    %c0_412 = arith.constant 0 : index
    %1253 = vector.load %arg5[%c9_410, %c0_411, %c0_412] : memref<32x2x32xf32, #tpu.memory_space<vmem>>, vector<1x2x32xf32>
    %1254 = vector.shape_cast %1253 : vector<1x2x32xf32> to vector<2x32xf32>
    %1255 = vector.shape_cast %1251 : vector<2x32xf32> to vector<1x2x32xf32>
    tpu.vector_store %arg5[%c9_410, %c0_411, %c0_412], %1255 {strides = array<i32>} : memref<32x2x32xf32, #tpu.memory_space<vmem>>, vector<1x2x32xf32>,
    %c23_413 = arith.constant 23 : index
    %c0_414 = arith.constant 0 : index
    %c0_415 = arith.constant 0 : index
    %1256 = vector.load %arg1[%c23_413, %c0_414, %c0_415] : memref<32x2x128xf32, #tpu.memory_space<vmem>>, vector<1x2x128xf32>
    %1257 = vector.shape_cast %1256 : vector<1x2x128xf32> to vector<2x128xf32>
    %cst_416 = arith.constant dense<0.000000e+00> : vector<2x128xf32>
    %1258 = tpu.matmul %1224, %4, %cst_416 {dimension_numbers = #tpu.dot_dimension_numbers<[1], [0], [0], [1], [0, 0, 1, 1], [], []>} : vector<2x32xf32>, vector<32x128xf32>, vector<2x128xf32> -> vector<2x128xf32>
    %1259 = arith.addf %1257, %1258 : vector<2x128xf32>
    %1260 = vector.extract_strided_slice %1259 {offsets = [0, 0], sizes = [2, 96], strides = [1, 1]} : vector<2x128xf32> to vector<2x96xf32>
    %1261 = arith.negf %1260 : vector<2x96xf32>
    %1262 = math.exp %1261 : vector<2x96xf32>
    %cst_417 = arith.constant 1.000000e+00 : f32
    %1263 = vector.broadcast %cst_417 : f32 to vector<2x96xf32>
    %1264 = arith.addf %1263, %1262 : vector<2x96xf32>
    %1265 = arith.divf %1263, %1264 : vector<2x96xf32>
    %1266 = vector.extract_strided_slice %1259 {offsets = [0, 96], sizes = [2, 32], strides = [1, 1]} : vector<2x128xf32> to vector<2x32xf32>
    %1267 = math.tanh %1266 : vector<2x32xf32>
    %1268 = vector.extract_strided_slice %1265 {offsets = [0, 32], sizes = [2, 32], strides = [1, 1]} : vector<2x96xf32> to vector<2x32xf32>
    %1269 = arith.mulf %1268, %1225 : vector<2x32xf32>
    %1270 = vector.extract_strided_slice %1265 {offsets = [0, 0], sizes = [2, 32], strides = [1, 1]} : vector<2x96xf32> to vector<2x32xf32>
    %1271 = arith.mulf %1270, %1267 : vector<2x32xf32>
    %1272 = arith.addf %1269, %1271 : vector<2x32xf32>
    %1273 = vector.extract_strided_slice %1265 {offsets = [0, 64], sizes = [2, 32], strides = [1, 1]} : vector<2x96xf32> to vector<2x32xf32>
    %1274 = math.tanh %1272 : vector<2x32xf32>
    %1275 = arith.mulf %1273, %1274 : vector<2x32xf32>
    %c23_i32_418 = arith.constant 23 : i32
    %1276 = arith.addi %11, %c23_i32_418 : i32
    %c8_i32_419 = arith.constant 8 : i32
    %1277 = arith.cmpi slt, %1276, %c8_i32_419 : i32
    %1278 = arith.select %1277, %1275, %1224 : vector<2x32xf32>
    %1279 = arith.select %1277, %1272, %1225 : vector<2x32xf32>
    %c23_420 = arith.constant 23 : index
    %c0_421 = arith.constant 0 : index
    %c0_422 = arith.constant 0 : index
    %1280 = vector.load %arg4[%c23_420, %c0_421, %c0_422] : memref<32x2x32xf32, #tpu.memory_space<vmem>>, vector<1x2x32xf32>
    %1281 = vector.shape_cast %1280 : vector<1x2x32xf32> to vector<2x32xf32>
    %1282 = vector.shape_cast %1278 : vector<2x32xf32> to vector<1x2x32xf32>
    tpu.vector_store %arg4[%c23_420, %c0_421, %c0_422], %1282 {strides = array<i32>} : memref<32x2x32xf32, #tpu.memory_space<vmem>>, vector<1x2x32xf32>,
    %c8_423 = arith.constant 8 : index
    %c0_424 = arith.constant 0 : index
    %c0_425 = arith.constant 0 : index
    %1283 = vector.load %arg2[%c8_423, %c0_424, %c0_425] : memref<32x2x128xf32, #tpu.memory_space<vmem>>, vector<1x2x128xf32>
    %1284 = vector.shape_cast %1283 : vector<1x2x128xf32> to vector<2x128xf32>
    %cst_426 = arith.constant dense<0.000000e+00> : vector<2x128xf32>
    %1285 = tpu.matmul %1251, %6, %cst_426 {dimension_numbers = #tpu.dot_dimension_numbers<[1], [0], [0], [1], [0, 0, 1, 1], [], []>} : vector<2x32xf32>, vector<32x128xf32>, vector<2x128xf32> -> vector<2x128xf32>
    %1286 = arith.addf %1284, %1285 : vector<2x128xf32>
    %1287 = vector.extract_strided_slice %1286 {offsets = [0, 0], sizes = [2, 96], strides = [1, 1]} : vector<2x128xf32> to vector<2x96xf32>
    %1288 = arith.negf %1287 : vector<2x96xf32>
    %1289 = math.exp %1288 : vector<2x96xf32>
    %cst_427 = arith.constant 1.000000e+00 : f32
    %1290 = vector.broadcast %cst_427 : f32 to vector<2x96xf32>
    %1291 = arith.addf %1290, %1289 : vector<2x96xf32>
    %1292 = arith.divf %1290, %1291 : vector<2x96xf32>
    %1293 = vector.extract_strided_slice %1286 {offsets = [0, 96], sizes = [2, 32], strides = [1, 1]} : vector<2x128xf32> to vector<2x32xf32>
    %1294 = math.tanh %1293 : vector<2x32xf32>
    %1295 = vector.extract_strided_slice %1292 {offsets = [0, 32], sizes = [2, 32], strides = [1, 1]} : vector<2x96xf32> to vector<2x32xf32>
    %1296 = arith.mulf %1295, %1252 : vector<2x32xf32>
    %1297 = vector.extract_strided_slice %1292 {offsets = [0, 0], sizes = [2, 32], strides = [1, 1]} : vector<2x96xf32> to vector<2x32xf32>
    %1298 = arith.mulf %1297, %1294 : vector<2x32xf32>
    %1299 = arith.addf %1296, %1298 : vector<2x32xf32>
    %1300 = vector.extract_strided_slice %1292 {offsets = [0, 64], sizes = [2, 32], strides = [1, 1]} : vector<2x96xf32> to vector<2x32xf32>
    %1301 = math.tanh %1299 : vector<2x32xf32>
    %1302 = arith.mulf %1300, %1301 : vector<2x32xf32>
    %c8_i32_428 = arith.constant 8 : i32
    %1303 = arith.addi %13, %c8_i32_428 : i32
    %c8_i32_429 = arith.constant 8 : i32
    %1304 = arith.cmpi slt, %1303, %c8_i32_429 : i32
    %1305 = arith.select %1304, %1302, %1251 : vector<2x32xf32>
    %1306 = arith.select %1304, %1299, %1252 : vector<2x32xf32>
    %c8_430 = arith.constant 8 : index
    %c0_431 = arith.constant 0 : index
    %c0_432 = arith.constant 0 : index
    %1307 = vector.load %arg5[%c8_430, %c0_431, %c0_432] : memref<32x2x32xf32, #tpu.memory_space<vmem>>, vector<1x2x32xf32>
    %1308 = vector.shape_cast %1307 : vector<1x2x32xf32> to vector<2x32xf32>
    %1309 = vector.shape_cast %1305 : vector<2x32xf32> to vector<1x2x32xf32>
    tpu.vector_store %arg5[%c8_430, %c0_431, %c0_432], %1309 {strides = array<i32>} : memref<32x2x32xf32, #tpu.memory_space<vmem>>, vector<1x2x32xf32>,
    %c24_433 = arith.constant 24 : index
    %c0_434 = arith.constant 0 : index
    %c0_435 = arith.constant 0 : index
    %1310 = vector.load %arg1[%c24_433, %c0_434, %c0_435] : memref<32x2x128xf32, #tpu.memory_space<vmem>>, vector<1x2x128xf32>
    %1311 = vector.shape_cast %1310 : vector<1x2x128xf32> to vector<2x128xf32>
    %cst_436 = arith.constant dense<0.000000e+00> : vector<2x128xf32>
    %1312 = tpu.matmul %1278, %4, %cst_436 {dimension_numbers = #tpu.dot_dimension_numbers<[1], [0], [0], [1], [0, 0, 1, 1], [], []>} : vector<2x32xf32>, vector<32x128xf32>, vector<2x128xf32> -> vector<2x128xf32>
    %1313 = arith.addf %1311, %1312 : vector<2x128xf32>
    %1314 = vector.extract_strided_slice %1313 {offsets = [0, 0], sizes = [2, 96], strides = [1, 1]} : vector<2x128xf32> to vector<2x96xf32>
    %1315 = arith.negf %1314 : vector<2x96xf32>
    %1316 = math.exp %1315 : vector<2x96xf32>
    %cst_437 = arith.constant 1.000000e+00 : f32
    %1317 = vector.broadcast %cst_437 : f32 to vector<2x96xf32>
    %1318 = arith.addf %1317, %1316 : vector<2x96xf32>
    %1319 = arith.divf %1317, %1318 : vector<2x96xf32>
    %1320 = vector.extract_strided_slice %1313 {offsets = [0, 96], sizes = [2, 32], strides = [1, 1]} : vector<2x128xf32> to vector<2x32xf32>
    %1321 = math.tanh %1320 : vector<2x32xf32>
    %1322 = vector.extract_strided_slice %1319 {offsets = [0, 32], sizes = [2, 32], strides = [1, 1]} : vector<2x96xf32> to vector<2x32xf32>
    %1323 = arith.mulf %1322, %1279 : vector<2x32xf32>
    %1324 = vector.extract_strided_slice %1319 {offsets = [0, 0], sizes = [2, 32], strides = [1, 1]} : vector<2x96xf32> to vector<2x32xf32>
    %1325 = arith.mulf %1324, %1321 : vector<2x32xf32>
    %1326 = arith.addf %1323, %1325 : vector<2x32xf32>
    %1327 = vector.extract_strided_slice %1319 {offsets = [0, 64], sizes = [2, 32], strides = [1, 1]} : vector<2x96xf32> to vector<2x32xf32>
    %1328 = math.tanh %1326 : vector<2x32xf32>
    %1329 = arith.mulf %1327, %1328 : vector<2x32xf32>
    %c24_i32_438 = arith.constant 24 : i32
    %1330 = arith.addi %11, %c24_i32_438 : i32
    %c8_i32_439 = arith.constant 8 : i32
    %1331 = arith.cmpi slt, %1330, %c8_i32_439 : i32
    %1332 = arith.select %1331, %1329, %1278 : vector<2x32xf32>
    %1333 = arith.select %1331, %1326, %1279 : vector<2x32xf32>
    %c24_440 = arith.constant 24 : index
    %c0_441 = arith.constant 0 : index
    %c0_442 = arith.constant 0 : index
    %1334 = vector.load %arg4[%c24_440, %c0_441, %c0_442] : memref<32x2x32xf32, #tpu.memory_space<vmem>>, vector<1x2x32xf32>
    %1335 = vector.shape_cast %1334 : vector<1x2x32xf32> to vector<2x32xf32>
    %1336 = vector.shape_cast %1332 : vector<2x32xf32> to vector<1x2x32xf32>
    tpu.vector_store %arg4[%c24_440, %c0_441, %c0_442], %1336 {strides = array<i32>} : memref<32x2x32xf32, #tpu.memory_space<vmem>>, vector<1x2x32xf32>,
    %c7_443 = arith.constant 7 : index
    %c0_444 = arith.constant 0 : index
    %c0_445 = arith.constant 0 : index
    %1337 = vector.load %arg2[%c7_443, %c0_444, %c0_445] : memref<32x2x128xf32, #tpu.memory_space<vmem>>, vector<1x2x128xf32>
    %1338 = vector.shape_cast %1337 : vector<1x2x128xf32> to vector<2x128xf32>
    %cst_446 = arith.constant dense<0.000000e+00> : vector<2x128xf32>
    %1339 = tpu.matmul %1305, %6, %cst_446 {dimension_numbers = #tpu.dot_dimension_numbers<[1], [0], [0], [1], [0, 0, 1, 1], [], []>} : vector<2x32xf32>, vector<32x128xf32>, vector<2x128xf32> -> vector<2x128xf32>
    %1340 = arith.addf %1338, %1339 : vector<2x128xf32>
    %1341 = vector.extract_strided_slice %1340 {offsets = [0, 0], sizes = [2, 96], strides = [1, 1]} : vector<2x128xf32> to vector<2x96xf32>
    %1342 = arith.negf %1341 : vector<2x96xf32>
    %1343 = math.exp %1342 : vector<2x96xf32>
    %cst_447 = arith.constant 1.000000e+00 : f32
    %1344 = vector.broadcast %cst_447 : f32 to vector<2x96xf32>
    %1345 = arith.addf %1344, %1343 : vector<2x96xf32>
    %1346 = arith.divf %1344, %1345 : vector<2x96xf32>
    %1347 = vector.extract_strided_slice %1340 {offsets = [0, 96], sizes = [2, 32], strides = [1, 1]} : vector<2x128xf32> to vector<2x32xf32>
    %1348 = math.tanh %1347 : vector<2x32xf32>
    %1349 = vector.extract_strided_slice %1346 {offsets = [0, 32], sizes = [2, 32], strides = [1, 1]} : vector<2x96xf32> to vector<2x32xf32>
    %1350 = arith.mulf %1349, %1306 : vector<2x32xf32>
    %1351 = vector.extract_strided_slice %1346 {offsets = [0, 0], sizes = [2, 32], strides = [1, 1]} : vector<2x96xf32> to vector<2x32xf32>
    %1352 = arith.mulf %1351, %1348 : vector<2x32xf32>
    %1353 = arith.addf %1350, %1352 : vector<2x32xf32>
    %1354 = vector.extract_strided_slice %1346 {offsets = [0, 64], sizes = [2, 32], strides = [1, 1]} : vector<2x96xf32> to vector<2x32xf32>
    %1355 = math.tanh %1353 : vector<2x32xf32>
    %1356 = arith.mulf %1354, %1355 : vector<2x32xf32>
    %c7_i32_448 = arith.constant 7 : i32
    %1357 = arith.addi %13, %c7_i32_448 : i32
    %c8_i32_449 = arith.constant 8 : i32
    %1358 = arith.cmpi slt, %1357, %c8_i32_449 : i32
    %1359 = arith.select %1358, %1356, %1305 : vector<2x32xf32>
    %1360 = arith.select %1358, %1353, %1306 : vector<2x32xf32>
    %c7_450 = arith.constant 7 : index
    %c0_451 = arith.constant 0 : index
    %c0_452 = arith.constant 0 : index
    %1361 = vector.load %arg5[%c7_450, %c0_451, %c0_452] : memref<32x2x32xf32, #tpu.memory_space<vmem>>, vector<1x2x32xf32>
    %1362 = vector.shape_cast %1361 : vector<1x2x32xf32> to vector<2x32xf32>
    %1363 = vector.shape_cast %1359 : vector<2x32xf32> to vector<1x2x32xf32>
    tpu.vector_store %arg5[%c7_450, %c0_451, %c0_452], %1363 {strides = array<i32>} : memref<32x2x32xf32, #tpu.memory_space<vmem>>, vector<1x2x32xf32>,
    %c25_453 = arith.constant 25 : index
    %c0_454 = arith.constant 0 : index
    %c0_455 = arith.constant 0 : index
    %1364 = vector.load %arg1[%c25_453, %c0_454, %c0_455] : memref<32x2x128xf32, #tpu.memory_space<vmem>>, vector<1x2x128xf32>
    %1365 = vector.shape_cast %1364 : vector<1x2x128xf32> to vector<2x128xf32>
    %cst_456 = arith.constant dense<0.000000e+00> : vector<2x128xf32>
    %1366 = tpu.matmul %1332, %4, %cst_456 {dimension_numbers = #tpu.dot_dimension_numbers<[1], [0], [0], [1], [0, 0, 1, 1], [], []>} : vector<2x32xf32>, vector<32x128xf32>, vector<2x128xf32> -> vector<2x128xf32>
    %1367 = arith.addf %1365, %1366 : vector<2x128xf32>
    %1368 = vector.extract_strided_slice %1367 {offsets = [0, 0], sizes = [2, 96], strides = [1, 1]} : vector<2x128xf32> to vector<2x96xf32>
    %1369 = arith.negf %1368 : vector<2x96xf32>
    %1370 = math.exp %1369 : vector<2x96xf32>
    %cst_457 = arith.constant 1.000000e+00 : f32
    %1371 = vector.broadcast %cst_457 : f32 to vector<2x96xf32>
    %1372 = arith.addf %1371, %1370 : vector<2x96xf32>
    %1373 = arith.divf %1371, %1372 : vector<2x96xf32>
    %1374 = vector.extract_strided_slice %1367 {offsets = [0, 96], sizes = [2, 32], strides = [1, 1]} : vector<2x128xf32> to vector<2x32xf32>
    %1375 = math.tanh %1374 : vector<2x32xf32>
    %1376 = vector.extract_strided_slice %1373 {offsets = [0, 32], sizes = [2, 32], strides = [1, 1]} : vector<2x96xf32> to vector<2x32xf32>
    %1377 = arith.mulf %1376, %1333 : vector<2x32xf32>
    %1378 = vector.extract_strided_slice %1373 {offsets = [0, 0], sizes = [2, 32], strides = [1, 1]} : vector<2x96xf32> to vector<2x32xf32>
    %1379 = arith.mulf %1378, %1375 : vector<2x32xf32>
    %1380 = arith.addf %1377, %1379 : vector<2x32xf32>
    %1381 = vector.extract_strided_slice %1373 {offsets = [0, 64], sizes = [2, 32], strides = [1, 1]} : vector<2x96xf32> to vector<2x32xf32>
    %1382 = math.tanh %1380 : vector<2x32xf32>
    %1383 = arith.mulf %1381, %1382 : vector<2x32xf32>
    %c25_i32_458 = arith.constant 25 : i32
    %1384 = arith.addi %11, %c25_i32_458 : i32
    %c8_i32_459 = arith.constant 8 : i32
    %1385 = arith.cmpi slt, %1384, %c8_i32_459 : i32
    %1386 = arith.select %1385, %1383, %1332 : vector<2x32xf32>
    %1387 = arith.select %1385, %1380, %1333 : vector<2x32xf32>
    %c25_460 = arith.constant 25 : index
    %c0_461 = arith.constant 0 : index
    %c0_462 = arith.constant 0 : index
    %1388 = vector.load %arg4[%c25_460, %c0_461, %c0_462] : memref<32x2x32xf32, #tpu.memory_space<vmem>>, vector<1x2x32xf32>
    %1389 = vector.shape_cast %1388 : vector<1x2x32xf32> to vector<2x32xf32>
    %1390 = vector.shape_cast %1386 : vector<2x32xf32> to vector<1x2x32xf32>
    tpu.vector_store %arg4[%c25_460, %c0_461, %c0_462], %1390 {strides = array<i32>} : memref<32x2x32xf32, #tpu.memory_space<vmem>>, vector<1x2x32xf32>,
    %c6_463 = arith.constant 6 : index
    %c0_464 = arith.constant 0 : index
    %c0_465 = arith.constant 0 : index
    %1391 = vector.load %arg2[%c6_463, %c0_464, %c0_465] : memref<32x2x128xf32, #tpu.memory_space<vmem>>, vector<1x2x128xf32>
    %1392 = vector.shape_cast %1391 : vector<1x2x128xf32> to vector<2x128xf32>
    %cst_466 = arith.constant dense<0.000000e+00> : vector<2x128xf32>
    %1393 = tpu.matmul %1359, %6, %cst_466 {dimension_numbers = #tpu.dot_dimension_numbers<[1], [0], [0], [1], [0, 0, 1, 1], [], []>} : vector<2x32xf32>, vector<32x128xf32>, vector<2x128xf32> -> vector<2x128xf32>
    %1394 = arith.addf %1392, %1393 : vector<2x128xf32>
    %1395 = vector.extract_strided_slice %1394 {offsets = [0, 0], sizes = [2, 96], strides = [1, 1]} : vector<2x128xf32> to vector<2x96xf32>
    %1396 = arith.negf %1395 : vector<2x96xf32>
    %1397 = math.exp %1396 : vector<2x96xf32>
    %cst_467 = arith.constant 1.000000e+00 : f32
    %1398 = vector.broadcast %cst_467 : f32 to vector<2x96xf32>
    %1399 = arith.addf %1398, %1397 : vector<2x96xf32>
    %1400 = arith.divf %1398, %1399 : vector<2x96xf32>
    %1401 = vector.extract_strided_slice %1394 {offsets = [0, 96], sizes = [2, 32], strides = [1, 1]} : vector<2x128xf32> to vector<2x32xf32>
    %1402 = math.tanh %1401 : vector<2x32xf32>
    %1403 = vector.extract_strided_slice %1400 {offsets = [0, 32], sizes = [2, 32], strides = [1, 1]} : vector<2x96xf32> to vector<2x32xf32>
    %1404 = arith.mulf %1403, %1360 : vector<2x32xf32>
    %1405 = vector.extract_strided_slice %1400 {offsets = [0, 0], sizes = [2, 32], strides = [1, 1]} : vector<2x96xf32> to vector<2x32xf32>
    %1406 = arith.mulf %1405, %1402 : vector<2x32xf32>
    %1407 = arith.addf %1404, %1406 : vector<2x32xf32>
    %1408 = vector.extract_strided_slice %1400 {offsets = [0, 64], sizes = [2, 32], strides = [1, 1]} : vector<2x96xf32> to vector<2x32xf32>
    %1409 = math.tanh %1407 : vector<2x32xf32>
    %1410 = arith.mulf %1408, %1409 : vector<2x32xf32>
    %c6_i32_468 = arith.constant 6 : i32
    %1411 = arith.addi %13, %c6_i32_468 : i32
    %c8_i32_469 = arith.constant 8 : i32
    %1412 = arith.cmpi slt, %1411, %c8_i32_469 : i32
    %1413 = arith.select %1412, %1410, %1359 : vector<2x32xf32>
    %1414 = arith.select %1412, %1407, %1360 : vector<2x32xf32>
    %c6_470 = arith.constant 6 : index
    %c0_471 = arith.constant 0 : index
    %c0_472 = arith.constant 0 : index
    %1415 = vector.load %arg5[%c6_470, %c0_471, %c0_472] : memref<32x2x32xf32, #tpu.memory_space<vmem>>, vector<1x2x32xf32>
    %1416 = vector.shape_cast %1415 : vector<1x2x32xf32> to vector<2x32xf32>
    %1417 = vector.shape_cast %1413 : vector<2x32xf32> to vector<1x2x32xf32>
    tpu.vector_store %arg5[%c6_470, %c0_471, %c0_472], %1417 {strides = array<i32>} : memref<32x2x32xf32, #tpu.memory_space<vmem>>, vector<1x2x32xf32>,
    %c26_473 = arith.constant 26 : index
    %c0_474 = arith.constant 0 : index
    %c0_475 = arith.constant 0 : index
    %1418 = vector.load %arg1[%c26_473, %c0_474, %c0_475] : memref<32x2x128xf32, #tpu.memory_space<vmem>>, vector<1x2x128xf32>
    %1419 = vector.shape_cast %1418 : vector<1x2x128xf32> to vector<2x128xf32>
    %cst_476 = arith.constant dense<0.000000e+00> : vector<2x128xf32>
    %1420 = tpu.matmul %1386, %4, %cst_476 {dimension_numbers = #tpu.dot_dimension_numbers<[1], [0], [0], [1], [0, 0, 1, 1], [], []>} : vector<2x32xf32>, vector<32x128xf32>, vector<2x128xf32> -> vector<2x128xf32>
    %1421 = arith.addf %1419, %1420 : vector<2x128xf32>
    %1422 = vector.extract_strided_slice %1421 {offsets = [0, 0], sizes = [2, 96], strides = [1, 1]} : vector<2x128xf32> to vector<2x96xf32>
    %1423 = arith.negf %1422 : vector<2x96xf32>
    %1424 = math.exp %1423 : vector<2x96xf32>
    %cst_477 = arith.constant 1.000000e+00 : f32
    %1425 = vector.broadcast %cst_477 : f32 to vector<2x96xf32>
    %1426 = arith.addf %1425, %1424 : vector<2x96xf32>
    %1427 = arith.divf %1425, %1426 : vector<2x96xf32>
    %1428 = vector.extract_strided_slice %1421 {offsets = [0, 96], sizes = [2, 32], strides = [1, 1]} : vector<2x128xf32> to vector<2x32xf32>
    %1429 = math.tanh %1428 : vector<2x32xf32>
    %1430 = vector.extract_strided_slice %1427 {offsets = [0, 32], sizes = [2, 32], strides = [1, 1]} : vector<2x96xf32> to vector<2x32xf32>
    %1431 = arith.mulf %1430, %1387 : vector<2x32xf32>
    %1432 = vector.extract_strided_slice %1427 {offsets = [0, 0], sizes = [2, 32], strides = [1, 1]} : vector<2x96xf32> to vector<2x32xf32>
    %1433 = arith.mulf %1432, %1429 : vector<2x32xf32>
    %1434 = arith.addf %1431, %1433 : vector<2x32xf32>
    %1435 = vector.extract_strided_slice %1427 {offsets = [0, 64], sizes = [2, 32], strides = [1, 1]} : vector<2x96xf32> to vector<2x32xf32>
    %1436 = math.tanh %1434 : vector<2x32xf32>
    %1437 = arith.mulf %1435, %1436 : vector<2x32xf32>
    %c26_i32_478 = arith.constant 26 : i32
    %1438 = arith.addi %11, %c26_i32_478 : i32
    %c8_i32_479 = arith.constant 8 : i32
    %1439 = arith.cmpi slt, %1438, %c8_i32_479 : i32
    %1440 = arith.select %1439, %1437, %1386 : vector<2x32xf32>
    %1441 = arith.select %1439, %1434, %1387 : vector<2x32xf32>
    %c26_480 = arith.constant 26 : index
    %c0_481 = arith.constant 0 : index
    %c0_482 = arith.constant 0 : index
    %1442 = vector.load %arg4[%c26_480, %c0_481, %c0_482] : memref<32x2x32xf32, #tpu.memory_space<vmem>>, vector<1x2x32xf32>
    %1443 = vector.shape_cast %1442 : vector<1x2x32xf32> to vector<2x32xf32>
    %1444 = vector.shape_cast %1440 : vector<2x32xf32> to vector<1x2x32xf32>
    tpu.vector_store %arg4[%c26_480, %c0_481, %c0_482], %1444 {strides = array<i32>} : memref<32x2x32xf32, #tpu.memory_space<vmem>>, vector<1x2x32xf32>,
    %c5_483 = arith.constant 5 : index
    %c0_484 = arith.constant 0 : index
    %c0_485 = arith.constant 0 : index
    %1445 = vector.load %arg2[%c5_483, %c0_484, %c0_485] : memref<32x2x128xf32, #tpu.memory_space<vmem>>, vector<1x2x128xf32>
    %1446 = vector.shape_cast %1445 : vector<1x2x128xf32> to vector<2x128xf32>
    %cst_486 = arith.constant dense<0.000000e+00> : vector<2x128xf32>
    %1447 = tpu.matmul %1413, %6, %cst_486 {dimension_numbers = #tpu.dot_dimension_numbers<[1], [0], [0], [1], [0, 0, 1, 1], [], []>} : vector<2x32xf32>, vector<32x128xf32>, vector<2x128xf32> -> vector<2x128xf32>
    %1448 = arith.addf %1446, %1447 : vector<2x128xf32>
    %1449 = vector.extract_strided_slice %1448 {offsets = [0, 0], sizes = [2, 96], strides = [1, 1]} : vector<2x128xf32> to vector<2x96xf32>
    %1450 = arith.negf %1449 : vector<2x96xf32>
    %1451 = math.exp %1450 : vector<2x96xf32>
    %cst_487 = arith.constant 1.000000e+00 : f32
    %1452 = vector.broadcast %cst_487 : f32 to vector<2x96xf32>
    %1453 = arith.addf %1452, %1451 : vector<2x96xf32>
    %1454 = arith.divf %1452, %1453 : vector<2x96xf32>
    %1455 = vector.extract_strided_slice %1448 {offsets = [0, 96], sizes = [2, 32], strides = [1, 1]} : vector<2x128xf32> to vector<2x32xf32>
    %1456 = math.tanh %1455 : vector<2x32xf32>
    %1457 = vector.extract_strided_slice %1454 {offsets = [0, 32], sizes = [2, 32], strides = [1, 1]} : vector<2x96xf32> to vector<2x32xf32>
    %1458 = arith.mulf %1457, %1414 : vector<2x32xf32>
    %1459 = vector.extract_strided_slice %1454 {offsets = [0, 0], sizes = [2, 32], strides = [1, 1]} : vector<2x96xf32> to vector<2x32xf32>
    %1460 = arith.mulf %1459, %1456 : vector<2x32xf32>
    %1461 = arith.addf %1458, %1460 : vector<2x32xf32>
    %1462 = vector.extract_strided_slice %1454 {offsets = [0, 64], sizes = [2, 32], strides = [1, 1]} : vector<2x96xf32> to vector<2x32xf32>
    %1463 = math.tanh %1461 : vector<2x32xf32>
    %1464 = arith.mulf %1462, %1463 : vector<2x32xf32>
    %c5_i32_488 = arith.constant 5 : i32
    %1465 = arith.addi %13, %c5_i32_488 : i32
    %c8_i32_489 = arith.constant 8 : i32
    %1466 = arith.cmpi slt, %1465, %c8_i32_489 : i32
    %1467 = arith.select %1466, %1464, %1413 : vector<2x32xf32>
    %1468 = arith.select %1466, %1461, %1414 : vector<2x32xf32>
    %c5_490 = arith.constant 5 : index
    %c0_491 = arith.constant 0 : index
    %c0_492 = arith.constant 0 : index
    %1469 = vector.load %arg5[%c5_490, %c0_491, %c0_492] : memref<32x2x32xf32, #tpu.memory_space<vmem>>, vector<1x2x32xf32>
    %1470 = vector.shape_cast %1469 : vector<1x2x32xf32> to vector<2x32xf32>
    %1471 = vector.shape_cast %1467 : vector<2x32xf32> to vector<1x2x32xf32>
    tpu.vector_store %arg5[%c5_490, %c0_491, %c0_492], %1471 {strides = array<i32>} : memref<32x2x32xf32, #tpu.memory_space<vmem>>, vector<1x2x32xf32>,
    %c27_493 = arith.constant 27 : index
    %c0_494 = arith.constant 0 : index
    %c0_495 = arith.constant 0 : index
    %1472 = vector.load %arg1[%c27_493, %c0_494, %c0_495] : memref<32x2x128xf32, #tpu.memory_space<vmem>>, vector<1x2x128xf32>
    %1473 = vector.shape_cast %1472 : vector<1x2x128xf32> to vector<2x128xf32>
    %cst_496 = arith.constant dense<0.000000e+00> : vector<2x128xf32>
    %1474 = tpu.matmul %1440, %4, %cst_496 {dimension_numbers = #tpu.dot_dimension_numbers<[1], [0], [0], [1], [0, 0, 1, 1], [], []>} : vector<2x32xf32>, vector<32x128xf32>, vector<2x128xf32> -> vector<2x128xf32>
    %1475 = arith.addf %1473, %1474 : vector<2x128xf32>
    %1476 = vector.extract_strided_slice %1475 {offsets = [0, 0], sizes = [2, 96], strides = [1, 1]} : vector<2x128xf32> to vector<2x96xf32>
    %1477 = arith.negf %1476 : vector<2x96xf32>
    %1478 = math.exp %1477 : vector<2x96xf32>
    %cst_497 = arith.constant 1.000000e+00 : f32
    %1479 = vector.broadcast %cst_497 : f32 to vector<2x96xf32>
    %1480 = arith.addf %1479, %1478 : vector<2x96xf32>
    %1481 = arith.divf %1479, %1480 : vector<2x96xf32>
    %1482 = vector.extract_strided_slice %1475 {offsets = [0, 96], sizes = [2, 32], strides = [1, 1]} : vector<2x128xf32> to vector<2x32xf32>
    %1483 = math.tanh %1482 : vector<2x32xf32>
    %1484 = vector.extract_strided_slice %1481 {offsets = [0, 32], sizes = [2, 32], strides = [1, 1]} : vector<2x96xf32> to vector<2x32xf32>
    %1485 = arith.mulf %1484, %1441 : vector<2x32xf32>
    %1486 = vector.extract_strided_slice %1481 {offsets = [0, 0], sizes = [2, 32], strides = [1, 1]} : vector<2x96xf32> to vector<2x32xf32>
    %1487 = arith.mulf %1486, %1483 : vector<2x32xf32>
    %1488 = arith.addf %1485, %1487 : vector<2x32xf32>
    %1489 = vector.extract_strided_slice %1481 {offsets = [0, 64], sizes = [2, 32], strides = [1, 1]} : vector<2x96xf32> to vector<2x32xf32>
    %1490 = math.tanh %1488 : vector<2x32xf32>
    %1491 = arith.mulf %1489, %1490 : vector<2x32xf32>
    %c27_i32_498 = arith.constant 27 : i32
    %1492 = arith.addi %11, %c27_i32_498 : i32
    %c8_i32_499 = arith.constant 8 : i32
    %1493 = arith.cmpi slt, %1492, %c8_i32_499 : i32
    %1494 = arith.select %1493, %1491, %1440 : vector<2x32xf32>
    %1495 = arith.select %1493, %1488, %1441 : vector<2x32xf32>
    %c27_500 = arith.constant 27 : index
    %c0_501 = arith.constant 0 : index
    %c0_502 = arith.constant 0 : index
    %1496 = vector.load %arg4[%c27_500, %c0_501, %c0_502] : memref<32x2x32xf32, #tpu.memory_space<vmem>>, vector<1x2x32xf32>
    %1497 = vector.shape_cast %1496 : vector<1x2x32xf32> to vector<2x32xf32>
    %1498 = vector.shape_cast %1494 : vector<2x32xf32> to vector<1x2x32xf32>
    tpu.vector_store %arg4[%c27_500, %c0_501, %c0_502], %1498 {strides = array<i32>} : memref<32x2x32xf32, #tpu.memory_space<vmem>>, vector<1x2x32xf32>,
    %c4_503 = arith.constant 4 : index
    %c0_504 = arith.constant 0 : index
    %c0_505 = arith.constant 0 : index
    %1499 = vector.load %arg2[%c4_503, %c0_504, %c0_505] : memref<32x2x128xf32, #tpu.memory_space<vmem>>, vector<1x2x128xf32>
    %1500 = vector.shape_cast %1499 : vector<1x2x128xf32> to vector<2x128xf32>
    %cst_506 = arith.constant dense<0.000000e+00> : vector<2x128xf32>
    %1501 = tpu.matmul %1467, %6, %cst_506 {dimension_numbers = #tpu.dot_dimension_numbers<[1], [0], [0], [1], [0, 0, 1, 1], [], []>} : vector<2x32xf32>, vector<32x128xf32>, vector<2x128xf32> -> vector<2x128xf32>
    %1502 = arith.addf %1500, %1501 : vector<2x128xf32>
    %1503 = vector.extract_strided_slice %1502 {offsets = [0, 0], sizes = [2, 96], strides = [1, 1]} : vector<2x128xf32> to vector<2x96xf32>
    %1504 = arith.negf %1503 : vector<2x96xf32>
    %1505 = math.exp %1504 : vector<2x96xf32>
    %cst_507 = arith.constant 1.000000e+00 : f32
    %1506 = vector.broadcast %cst_507 : f32 to vector<2x96xf32>
    %1507 = arith.addf %1506, %1505 : vector<2x96xf32>
    %1508 = arith.divf %1506, %1507 : vector<2x96xf32>
    %1509 = vector.extract_strided_slice %1502 {offsets = [0, 96], sizes = [2, 32], strides = [1, 1]} : vector<2x128xf32> to vector<2x32xf32>
    %1510 = math.tanh %1509 : vector<2x32xf32>
    %1511 = vector.extract_strided_slice %1508 {offsets = [0, 32], sizes = [2, 32], strides = [1, 1]} : vector<2x96xf32> to vector<2x32xf32>
    %1512 = arith.mulf %1511, %1468 : vector<2x32xf32>
    %1513 = vector.extract_strided_slice %1508 {offsets = [0, 0], sizes = [2, 32], strides = [1, 1]} : vector<2x96xf32> to vector<2x32xf32>
    %1514 = arith.mulf %1513, %1510 : vector<2x32xf32>
    %1515 = arith.addf %1512, %1514 : vector<2x32xf32>
    %1516 = vector.extract_strided_slice %1508 {offsets = [0, 64], sizes = [2, 32], strides = [1, 1]} : vector<2x96xf32> to vector<2x32xf32>
    %1517 = math.tanh %1515 : vector<2x32xf32>
    %1518 = arith.mulf %1516, %1517 : vector<2x32xf32>
    %c4_i32_508 = arith.constant 4 : i32
    %1519 = arith.addi %13, %c4_i32_508 : i32
    %c8_i32_509 = arith.constant 8 : i32
    %1520 = arith.cmpi slt, %1519, %c8_i32_509 : i32
    %1521 = arith.select %1520, %1518, %1467 : vector<2x32xf32>
    %1522 = arith.select %1520, %1515, %1468 : vector<2x32xf32>
    %c4_510 = arith.constant 4 : index
    %c0_511 = arith.constant 0 : index
    %c0_512 = arith.constant 0 : index
    %1523 = vector.load %arg5[%c4_510, %c0_511, %c0_512] : memref<32x2x32xf32, #tpu.memory_space<vmem>>, vector<1x2x32xf32>
    %1524 = vector.shape_cast %1523 : vector<1x2x32xf32> to vector<2x32xf32>
    %1525 = vector.shape_cast %1521 : vector<2x32xf32> to vector<1x2x32xf32>
    tpu.vector_store %arg5[%c4_510, %c0_511, %c0_512], %1525 {strides = array<i32>} : memref<32x2x32xf32, #tpu.memory_space<vmem>>, vector<1x2x32xf32>,
    %c28_513 = arith.constant 28 : index
    %c0_514 = arith.constant 0 : index
    %c0_515 = arith.constant 0 : index
    %1526 = vector.load %arg1[%c28_513, %c0_514, %c0_515] : memref<32x2x128xf32, #tpu.memory_space<vmem>>, vector<1x2x128xf32>
    %1527 = vector.shape_cast %1526 : vector<1x2x128xf32> to vector<2x128xf32>
    %cst_516 = arith.constant dense<0.000000e+00> : vector<2x128xf32>
    %1528 = tpu.matmul %1494, %4, %cst_516 {dimension_numbers = #tpu.dot_dimension_numbers<[1], [0], [0], [1], [0, 0, 1, 1], [], []>} : vector<2x32xf32>, vector<32x128xf32>, vector<2x128xf32> -> vector<2x128xf32>
    %1529 = arith.addf %1527, %1528 : vector<2x128xf32>
    %1530 = vector.extract_strided_slice %1529 {offsets = [0, 0], sizes = [2, 96], strides = [1, 1]} : vector<2x128xf32> to vector<2x96xf32>
    %1531 = arith.negf %1530 : vector<2x96xf32>
    %1532 = math.exp %1531 : vector<2x96xf32>
    %cst_517 = arith.constant 1.000000e+00 : f32
    %1533 = vector.broadcast %cst_517 : f32 to vector<2x96xf32>
    %1534 = arith.addf %1533, %1532 : vector<2x96xf32>
    %1535 = arith.divf %1533, %1534 : vector<2x96xf32>
    %1536 = vector.extract_strided_slice %1529 {offsets = [0, 96], sizes = [2, 32], strides = [1, 1]} : vector<2x128xf32> to vector<2x32xf32>
    %1537 = math.tanh %1536 : vector<2x32xf32>
    %1538 = vector.extract_strided_slice %1535 {offsets = [0, 32], sizes = [2, 32], strides = [1, 1]} : vector<2x96xf32> to vector<2x32xf32>
    %1539 = arith.mulf %1538, %1495 : vector<2x32xf32>
    %1540 = vector.extract_strided_slice %1535 {offsets = [0, 0], sizes = [2, 32], strides = [1, 1]} : vector<2x96xf32> to vector<2x32xf32>
    %1541 = arith.mulf %1540, %1537 : vector<2x32xf32>
    %1542 = arith.addf %1539, %1541 : vector<2x32xf32>
    %1543 = vector.extract_strided_slice %1535 {offsets = [0, 64], sizes = [2, 32], strides = [1, 1]} : vector<2x96xf32> to vector<2x32xf32>
    %1544 = math.tanh %1542 : vector<2x32xf32>
    %1545 = arith.mulf %1543, %1544 : vector<2x32xf32>
    %c28_i32_518 = arith.constant 28 : i32
    %1546 = arith.addi %11, %c28_i32_518 : i32
    %c8_i32_519 = arith.constant 8 : i32
    %1547 = arith.cmpi slt, %1546, %c8_i32_519 : i32
    %1548 = arith.select %1547, %1545, %1494 : vector<2x32xf32>
    %1549 = arith.select %1547, %1542, %1495 : vector<2x32xf32>
    %c28_520 = arith.constant 28 : index
    %c0_521 = arith.constant 0 : index
    %c0_522 = arith.constant 0 : index
    %1550 = vector.load %arg4[%c28_520, %c0_521, %c0_522] : memref<32x2x32xf32, #tpu.memory_space<vmem>>, vector<1x2x32xf32>
    %1551 = vector.shape_cast %1550 : vector<1x2x32xf32> to vector<2x32xf32>
    %1552 = vector.shape_cast %1548 : vector<2x32xf32> to vector<1x2x32xf32>
    tpu.vector_store %arg4[%c28_520, %c0_521, %c0_522], %1552 {strides = array<i32>} : memref<32x2x32xf32, #tpu.memory_space<vmem>>, vector<1x2x32xf32>,
    %c3_523 = arith.constant 3 : index
    %c0_524 = arith.constant 0 : index
    %c0_525 = arith.constant 0 : index
    %1553 = vector.load %arg2[%c3_523, %c0_524, %c0_525] : memref<32x2x128xf32, #tpu.memory_space<vmem>>, vector<1x2x128xf32>
    %1554 = vector.shape_cast %1553 : vector<1x2x128xf32> to vector<2x128xf32>
    %cst_526 = arith.constant dense<0.000000e+00> : vector<2x128xf32>
    %1555 = tpu.matmul %1521, %6, %cst_526 {dimension_numbers = #tpu.dot_dimension_numbers<[1], [0], [0], [1], [0, 0, 1, 1], [], []>} : vector<2x32xf32>, vector<32x128xf32>, vector<2x128xf32> -> vector<2x128xf32>
    %1556 = arith.addf %1554, %1555 : vector<2x128xf32>
    %1557 = vector.extract_strided_slice %1556 {offsets = [0, 0], sizes = [2, 96], strides = [1, 1]} : vector<2x128xf32> to vector<2x96xf32>
    %1558 = arith.negf %1557 : vector<2x96xf32>
    %1559 = math.exp %1558 : vector<2x96xf32>
    %cst_527 = arith.constant 1.000000e+00 : f32
    %1560 = vector.broadcast %cst_527 : f32 to vector<2x96xf32>
    %1561 = arith.addf %1560, %1559 : vector<2x96xf32>
    %1562 = arith.divf %1560, %1561 : vector<2x96xf32>
    %1563 = vector.extract_strided_slice %1556 {offsets = [0, 96], sizes = [2, 32], strides = [1, 1]} : vector<2x128xf32> to vector<2x32xf32>
    %1564 = math.tanh %1563 : vector<2x32xf32>
    %1565 = vector.extract_strided_slice %1562 {offsets = [0, 32], sizes = [2, 32], strides = [1, 1]} : vector<2x96xf32> to vector<2x32xf32>
    %1566 = arith.mulf %1565, %1522 : vector<2x32xf32>
    %1567 = vector.extract_strided_slice %1562 {offsets = [0, 0], sizes = [2, 32], strides = [1, 1]} : vector<2x96xf32> to vector<2x32xf32>
    %1568 = arith.mulf %1567, %1564 : vector<2x32xf32>
    %1569 = arith.addf %1566, %1568 : vector<2x32xf32>
    %1570 = vector.extract_strided_slice %1562 {offsets = [0, 64], sizes = [2, 32], strides = [1, 1]} : vector<2x96xf32> to vector<2x32xf32>
    %1571 = math.tanh %1569 : vector<2x32xf32>
    %1572 = arith.mulf %1570, %1571 : vector<2x32xf32>
    %c3_i32_528 = arith.constant 3 : i32
    %1573 = arith.addi %13, %c3_i32_528 : i32
    %c8_i32_529 = arith.constant 8 : i32
    %1574 = arith.cmpi slt, %1573, %c8_i32_529 : i32
    %1575 = arith.select %1574, %1572, %1521 : vector<2x32xf32>
    %1576 = arith.select %1574, %1569, %1522 : vector<2x32xf32>
    %c3_530 = arith.constant 3 : index
    %c0_531 = arith.constant 0 : index
    %c0_532 = arith.constant 0 : index
    %1577 = vector.load %arg5[%c3_530, %c0_531, %c0_532] : memref<32x2x32xf32, #tpu.memory_space<vmem>>, vector<1x2x32xf32>
    %1578 = vector.shape_cast %1577 : vector<1x2x32xf32> to vector<2x32xf32>
    %1579 = vector.shape_cast %1575 : vector<2x32xf32> to vector<1x2x32xf32>
    tpu.vector_store %arg5[%c3_530, %c0_531, %c0_532], %1579 {strides = array<i32>} : memref<32x2x32xf32, #tpu.memory_space<vmem>>, vector<1x2x32xf32>,
    %c29_533 = arith.constant 29 : index
    %c0_534 = arith.constant 0 : index
    %c0_535 = arith.constant 0 : index
    %1580 = vector.load %arg1[%c29_533, %c0_534, %c0_535] : memref<32x2x128xf32, #tpu.memory_space<vmem>>, vector<1x2x128xf32>
    %1581 = vector.shape_cast %1580 : vector<1x2x128xf32> to vector<2x128xf32>
    %cst_536 = arith.constant dense<0.000000e+00> : vector<2x128xf32>
    %1582 = tpu.matmul %1548, %4, %cst_536 {dimension_numbers = #tpu.dot_dimension_numbers<[1], [0], [0], [1], [0, 0, 1, 1], [], []>} : vector<2x32xf32>, vector<32x128xf32>, vector<2x128xf32> -> vector<2x128xf32>
    %1583 = arith.addf %1581, %1582 : vector<2x128xf32>
    %1584 = vector.extract_strided_slice %1583 {offsets = [0, 0], sizes = [2, 96], strides = [1, 1]} : vector<2x128xf32> to vector<2x96xf32>
    %1585 = arith.negf %1584 : vector<2x96xf32>
    %1586 = math.exp %1585 : vector<2x96xf32>
    %cst_537 = arith.constant 1.000000e+00 : f32
    %1587 = vector.broadcast %cst_537 : f32 to vector<2x96xf32>
    %1588 = arith.addf %1587, %1586 : vector<2x96xf32>
    %1589 = arith.divf %1587, %1588 : vector<2x96xf32>
    %1590 = vector.extract_strided_slice %1583 {offsets = [0, 96], sizes = [2, 32], strides = [1, 1]} : vector<2x128xf32> to vector<2x32xf32>
    %1591 = math.tanh %1590 : vector<2x32xf32>
    %1592 = vector.extract_strided_slice %1589 {offsets = [0, 32], sizes = [2, 32], strides = [1, 1]} : vector<2x96xf32> to vector<2x32xf32>
    %1593 = arith.mulf %1592, %1549 : vector<2x32xf32>
    %1594 = vector.extract_strided_slice %1589 {offsets = [0, 0], sizes = [2, 32], strides = [1, 1]} : vector<2x96xf32> to vector<2x32xf32>
    %1595 = arith.mulf %1594, %1591 : vector<2x32xf32>
    %1596 = arith.addf %1593, %1595 : vector<2x32xf32>
    %1597 = vector.extract_strided_slice %1589 {offsets = [0, 64], sizes = [2, 32], strides = [1, 1]} : vector<2x96xf32> to vector<2x32xf32>
    %1598 = math.tanh %1596 : vector<2x32xf32>
    %1599 = arith.mulf %1597, %1598 : vector<2x32xf32>
    %c29_i32_538 = arith.constant 29 : i32
    %1600 = arith.addi %11, %c29_i32_538 : i32
    %c8_i32_539 = arith.constant 8 : i32
    %1601 = arith.cmpi slt, %1600, %c8_i32_539 : i32
    %1602 = arith.select %1601, %1599, %1548 : vector<2x32xf32>
    %1603 = arith.select %1601, %1596, %1549 : vector<2x32xf32>
    %c29_540 = arith.constant 29 : index
    %c0_541 = arith.constant 0 : index
    %c0_542 = arith.constant 0 : index
    %1604 = vector.load %arg4[%c29_540, %c0_541, %c0_542] : memref<32x2x32xf32, #tpu.memory_space<vmem>>, vector<1x2x32xf32>
    %1605 = vector.shape_cast %1604 : vector<1x2x32xf32> to vector<2x32xf32>
    %1606 = vector.shape_cast %1602 : vector<2x32xf32> to vector<1x2x32xf32>
    tpu.vector_store %arg4[%c29_540, %c0_541, %c0_542], %1606 {strides = array<i32>} : memref<32x2x32xf32, #tpu.memory_space<vmem>>, vector<1x2x32xf32>,
    %c2_543 = arith.constant 2 : index
    %c0_544 = arith.constant 0 : index
    %c0_545 = arith.constant 0 : index
    %1607 = vector.load %arg2[%c2_543, %c0_544, %c0_545] : memref<32x2x128xf32, #tpu.memory_space<vmem>>, vector<1x2x128xf32>
    %1608 = vector.shape_cast %1607 : vector<1x2x128xf32> to vector<2x128xf32>
    %cst_546 = arith.constant dense<0.000000e+00> : vector<2x128xf32>
    %1609 = tpu.matmul %1575, %6, %cst_546 {dimension_numbers = #tpu.dot_dimension_numbers<[1], [0], [0], [1], [0, 0, 1, 1], [], []>} : vector<2x32xf32>, vector<32x128xf32>, vector<2x128xf32> -> vector<2x128xf32>
    %1610 = arith.addf %1608, %1609 : vector<2x128xf32>
    %1611 = vector.extract_strided_slice %1610 {offsets = [0, 0], sizes = [2, 96], strides = [1, 1]} : vector<2x128xf32> to vector<2x96xf32>
    %1612 = arith.negf %1611 : vector<2x96xf32>
    %1613 = math.exp %1612 : vector<2x96xf32>
    %cst_547 = arith.constant 1.000000e+00 : f32
    %1614 = vector.broadcast %cst_547 : f32 to vector<2x96xf32>
    %1615 = arith.addf %1614, %1613 : vector<2x96xf32>
    %1616 = arith.divf %1614, %1615 : vector<2x96xf32>
    %1617 = vector.extract_strided_slice %1610 {offsets = [0, 96], sizes = [2, 32], strides = [1, 1]} : vector<2x128xf32> to vector<2x32xf32>
    %1618 = math.tanh %1617 : vector<2x32xf32>
    %1619 = vector.extract_strided_slice %1616 {offsets = [0, 32], sizes = [2, 32], strides = [1, 1]} : vector<2x96xf32> to vector<2x32xf32>
    %1620 = arith.mulf %1619, %1576 : vector<2x32xf32>
    %1621 = vector.extract_strided_slice %1616 {offsets = [0, 0], sizes = [2, 32], strides = [1, 1]} : vector<2x96xf32> to vector<2x32xf32>
    %1622 = arith.mulf %1621, %1618 : vector<2x32xf32>
    %1623 = arith.addf %1620, %1622 : vector<2x32xf32>
    %1624 = vector.extract_strided_slice %1616 {offsets = [0, 64], sizes = [2, 32], strides = [1, 1]} : vector<2x96xf32> to vector<2x32xf32>
    %1625 = math.tanh %1623 : vector<2x32xf32>
    %1626 = arith.mulf %1624, %1625 : vector<2x32xf32>
    %c2_i32_548 = arith.constant 2 : i32
    %1627 = arith.addi %13, %c2_i32_548 : i32
    %c8_i32_549 = arith.constant 8 : i32
    %1628 = arith.cmpi slt, %1627, %c8_i32_549 : i32
    %1629 = arith.select %1628, %1626, %1575 : vector<2x32xf32>
    %1630 = arith.select %1628, %1623, %1576 : vector<2x32xf32>
    %c2_550 = arith.constant 2 : index
    %c0_551 = arith.constant 0 : index
    %c0_552 = arith.constant 0 : index
    %1631 = vector.load %arg5[%c2_550, %c0_551, %c0_552] : memref<32x2x32xf32, #tpu.memory_space<vmem>>, vector<1x2x32xf32>
    %1632 = vector.shape_cast %1631 : vector<1x2x32xf32> to vector<2x32xf32>
    %1633 = vector.shape_cast %1629 : vector<2x32xf32> to vector<1x2x32xf32>
    tpu.vector_store %arg5[%c2_550, %c0_551, %c0_552], %1633 {strides = array<i32>} : memref<32x2x32xf32, #tpu.memory_space<vmem>>, vector<1x2x32xf32>,
    %c30_553 = arith.constant 30 : index
    %c0_554 = arith.constant 0 : index
    %c0_555 = arith.constant 0 : index
    %1634 = vector.load %arg1[%c30_553, %c0_554, %c0_555] : memref<32x2x128xf32, #tpu.memory_space<vmem>>, vector<1x2x128xf32>
    %1635 = vector.shape_cast %1634 : vector<1x2x128xf32> to vector<2x128xf32>
    %cst_556 = arith.constant dense<0.000000e+00> : vector<2x128xf32>
    %1636 = tpu.matmul %1602, %4, %cst_556 {dimension_numbers = #tpu.dot_dimension_numbers<[1], [0], [0], [1], [0, 0, 1, 1], [], []>} : vector<2x32xf32>, vector<32x128xf32>, vector<2x128xf32> -> vector<2x128xf32>
    %1637 = arith.addf %1635, %1636 : vector<2x128xf32>
    %1638 = vector.extract_strided_slice %1637 {offsets = [0, 0], sizes = [2, 96], strides = [1, 1]} : vector<2x128xf32> to vector<2x96xf32>
    %1639 = arith.negf %1638 : vector<2x96xf32>
    %1640 = math.exp %1639 : vector<2x96xf32>
    %cst_557 = arith.constant 1.000000e+00 : f32
    %1641 = vector.broadcast %cst_557 : f32 to vector<2x96xf32>
    %1642 = arith.addf %1641, %1640 : vector<2x96xf32>
    %1643 = arith.divf %1641, %1642 : vector<2x96xf32>
    %1644 = vector.extract_strided_slice %1637 {offsets = [0, 96], sizes = [2, 32], strides = [1, 1]} : vector<2x128xf32> to vector<2x32xf32>
    %1645 = math.tanh %1644 : vector<2x32xf32>
    %1646 = vector.extract_strided_slice %1643 {offsets = [0, 32], sizes = [2, 32], strides = [1, 1]} : vector<2x96xf32> to vector<2x32xf32>
    %1647 = arith.mulf %1646, %1603 : vector<2x32xf32>
    %1648 = vector.extract_strided_slice %1643 {offsets = [0, 0], sizes = [2, 32], strides = [1, 1]} : vector<2x96xf32> to vector<2x32xf32>
    %1649 = arith.mulf %1648, %1645 : vector<2x32xf32>
    %1650 = arith.addf %1647, %1649 : vector<2x32xf32>
    %1651 = vector.extract_strided_slice %1643 {offsets = [0, 64], sizes = [2, 32], strides = [1, 1]} : vector<2x96xf32> to vector<2x32xf32>
    %1652 = math.tanh %1650 : vector<2x32xf32>
    %1653 = arith.mulf %1651, %1652 : vector<2x32xf32>
    %c30_i32_558 = arith.constant 30 : i32
    %1654 = arith.addi %11, %c30_i32_558 : i32
    %c8_i32_559 = arith.constant 8 : i32
    %1655 = arith.cmpi slt, %1654, %c8_i32_559 : i32
    %1656 = arith.select %1655, %1653, %1602 : vector<2x32xf32>
    %1657 = arith.select %1655, %1650, %1603 : vector<2x32xf32>
    %c30_560 = arith.constant 30 : index
    %c0_561 = arith.constant 0 : index
    %c0_562 = arith.constant 0 : index
    %1658 = vector.load %arg4[%c30_560, %c0_561, %c0_562] : memref<32x2x32xf32, #tpu.memory_space<vmem>>, vector<1x2x32xf32>
    %1659 = vector.shape_cast %1658 : vector<1x2x32xf32> to vector<2x32xf32>
    %1660 = vector.shape_cast %1656 : vector<2x32xf32> to vector<1x2x32xf32>
    tpu.vector_store %arg4[%c30_560, %c0_561, %c0_562], %1660 {strides = array<i32>} : memref<32x2x32xf32, #tpu.memory_space<vmem>>, vector<1x2x32xf32>,
    %c1_563 = arith.constant 1 : index
    %c0_564 = arith.constant 0 : index
    %c0_565 = arith.constant 0 : index
    %1661 = vector.load %arg2[%c1_563, %c0_564, %c0_565] : memref<32x2x128xf32, #tpu.memory_space<vmem>>, vector<1x2x128xf32>
    %1662 = vector.shape_cast %1661 : vector<1x2x128xf32> to vector<2x128xf32>
    %cst_566 = arith.constant dense<0.000000e+00> : vector<2x128xf32>
    %1663 = tpu.matmul %1629, %6, %cst_566 {dimension_numbers = #tpu.dot_dimension_numbers<[1], [0], [0], [1], [0, 0, 1, 1], [], []>} : vector<2x32xf32>, vector<32x128xf32>, vector<2x128xf32> -> vector<2x128xf32>
    %1664 = arith.addf %1662, %1663 : vector<2x128xf32>
    %1665 = vector.extract_strided_slice %1664 {offsets = [0, 0], sizes = [2, 96], strides = [1, 1]} : vector<2x128xf32> to vector<2x96xf32>
    %1666 = arith.negf %1665 : vector<2x96xf32>
    %1667 = math.exp %1666 : vector<2x96xf32>
    %cst_567 = arith.constant 1.000000e+00 : f32
    %1668 = vector.broadcast %cst_567 : f32 to vector<2x96xf32>
    %1669 = arith.addf %1668, %1667 : vector<2x96xf32>
    %1670 = arith.divf %1668, %1669 : vector<2x96xf32>
    %1671 = vector.extract_strided_slice %1664 {offsets = [0, 96], sizes = [2, 32], strides = [1, 1]} : vector<2x128xf32> to vector<2x32xf32>
    %1672 = math.tanh %1671 : vector<2x32xf32>
    %1673 = vector.extract_strided_slice %1670 {offsets = [0, 32], sizes = [2, 32], strides = [1, 1]} : vector<2x96xf32> to vector<2x32xf32>
    %1674 = arith.mulf %1673, %1630 : vector<2x32xf32>
    %1675 = vector.extract_strided_slice %1670 {offsets = [0, 0], sizes = [2, 32], strides = [1, 1]} : vector<2x96xf32> to vector<2x32xf32>
    %1676 = arith.mulf %1675, %1672 : vector<2x32xf32>
    %1677 = arith.addf %1674, %1676 : vector<2x32xf32>
    %1678 = vector.extract_strided_slice %1670 {offsets = [0, 64], sizes = [2, 32], strides = [1, 1]} : vector<2x96xf32> to vector<2x32xf32>
    %1679 = math.tanh %1677 : vector<2x32xf32>
    %1680 = arith.mulf %1678, %1679 : vector<2x32xf32>
    %c1_i32_568 = arith.constant 1 : i32
    %1681 = arith.addi %13, %c1_i32_568 : i32
    %c8_i32_569 = arith.constant 8 : i32
    %1682 = arith.cmpi slt, %1681, %c8_i32_569 : i32
    %1683 = arith.select %1682, %1680, %1629 : vector<2x32xf32>
    %1684 = arith.select %1682, %1677, %1630 : vector<2x32xf32>
    %c1_570 = arith.constant 1 : index
    %c0_571 = arith.constant 0 : index
    %c0_572 = arith.constant 0 : index
    %1685 = vector.load %arg5[%c1_570, %c0_571, %c0_572] : memref<32x2x32xf32, #tpu.memory_space<vmem>>, vector<1x2x32xf32>
    %1686 = vector.shape_cast %1685 : vector<1x2x32xf32> to vector<2x32xf32>
    %1687 = vector.shape_cast %1683 : vector<2x32xf32> to vector<1x2x32xf32>
    tpu.vector_store %arg5[%c1_570, %c0_571, %c0_572], %1687 {strides = array<i32>} : memref<32x2x32xf32, #tpu.memory_space<vmem>>, vector<1x2x32xf32>,
    %c31_573 = arith.constant 31 : index
    %c0_574 = arith.constant 0 : index
    %c0_575 = arith.constant 0 : index
    %1688 = vector.load %arg1[%c31_573, %c0_574, %c0_575] : memref<32x2x128xf32, #tpu.memory_space<vmem>>, vector<1x2x128xf32>
    %1689 = vector.shape_cast %1688 : vector<1x2x128xf32> to vector<2x128xf32>
    %cst_576 = arith.constant dense<0.000000e+00> : vector<2x128xf32>
    %1690 = tpu.matmul %1656, %4, %cst_576 {dimension_numbers = #tpu.dot_dimension_numbers<[1], [0], [0], [1], [0, 0, 1, 1], [], []>} : vector<2x32xf32>, vector<32x128xf32>, vector<2x128xf32> -> vector<2x128xf32>
    %1691 = arith.addf %1689, %1690 : vector<2x128xf32>
    %1692 = vector.extract_strided_slice %1691 {offsets = [0, 0], sizes = [2, 96], strides = [1, 1]} : vector<2x128xf32> to vector<2x96xf32>
    %1693 = arith.negf %1692 : vector<2x96xf32>
    %1694 = math.exp %1693 : vector<2x96xf32>
    %cst_577 = arith.constant 1.000000e+00 : f32
    %1695 = vector.broadcast %cst_577 : f32 to vector<2x96xf32>
    %1696 = arith.addf %1695, %1694 : vector<2x96xf32>
    %1697 = arith.divf %1695, %1696 : vector<2x96xf32>
    %1698 = vector.extract_strided_slice %1691 {offsets = [0, 96], sizes = [2, 32], strides = [1, 1]} : vector<2x128xf32> to vector<2x32xf32>
    %1699 = math.tanh %1698 : vector<2x32xf32>
    %1700 = vector.extract_strided_slice %1697 {offsets = [0, 32], sizes = [2, 32], strides = [1, 1]} : vector<2x96xf32> to vector<2x32xf32>
    %1701 = arith.mulf %1700, %1657 : vector<2x32xf32>
    %1702 = vector.extract_strided_slice %1697 {offsets = [0, 0], sizes = [2, 32], strides = [1, 1]} : vector<2x96xf32> to vector<2x32xf32>
    %1703 = arith.mulf %1702, %1699 : vector<2x32xf32>
    %1704 = arith.addf %1701, %1703 : vector<2x32xf32>
    %1705 = vector.extract_strided_slice %1697 {offsets = [0, 64], sizes = [2, 32], strides = [1, 1]} : vector<2x96xf32> to vector<2x32xf32>
    %1706 = math.tanh %1704 : vector<2x32xf32>
    %1707 = arith.mulf %1705, %1706 : vector<2x32xf32>
    %c31_i32_578 = arith.constant 31 : i32
    %1708 = arith.addi %11, %c31_i32_578 : i32
    %c8_i32_579 = arith.constant 8 : i32
    %1709 = arith.cmpi slt, %1708, %c8_i32_579 : i32
    %1710 = arith.select %1709, %1707, %1656 : vector<2x32xf32>
    %1711 = arith.select %1709, %1704, %1657 : vector<2x32xf32>
    %c31_580 = arith.constant 31 : index
    %c0_581 = arith.constant 0 : index
    %c0_582 = arith.constant 0 : index
    %1712 = vector.load %arg4[%c31_580, %c0_581, %c0_582] : memref<32x2x32xf32, #tpu.memory_space<vmem>>, vector<1x2x32xf32>
    %1713 = vector.shape_cast %1712 : vector<1x2x32xf32> to vector<2x32xf32>
    %1714 = vector.shape_cast %1710 : vector<2x32xf32> to vector<1x2x32xf32>
    tpu.vector_store %arg4[%c31_580, %c0_581, %c0_582], %1714 {strides = array<i32>} : memref<32x2x32xf32, #tpu.memory_space<vmem>>, vector<1x2x32xf32>,
    %c0_583 = arith.constant 0 : index
    %c0_584 = arith.constant 0 : index
    %c0_585 = arith.constant 0 : index
    %1715 = vector.load %arg2[%c0_583, %c0_584, %c0_585] : memref<32x2x128xf32, #tpu.memory_space<vmem>>, vector<1x2x128xf32>
    %1716 = vector.shape_cast %1715 : vector<1x2x128xf32> to vector<2x128xf32>
    %cst_586 = arith.constant dense<0.000000e+00> : vector<2x128xf32>
    %1717 = tpu.matmul %1683, %6, %cst_586 {dimension_numbers = #tpu.dot_dimension_numbers<[1], [0], [0], [1], [0, 0, 1, 1], [], []>} : vector<2x32xf32>, vector<32x128xf32>, vector<2x128xf32> -> vector<2x128xf32>
    %1718 = arith.addf %1716, %1717 : vector<2x128xf32>
    %1719 = vector.extract_strided_slice %1718 {offsets = [0, 0], sizes = [2, 96], strides = [1, 1]} : vector<2x128xf32> to vector<2x96xf32>
    %1720 = arith.negf %1719 : vector<2x96xf32>
    %1721 = math.exp %1720 : vector<2x96xf32>
    %cst_587 = arith.constant 1.000000e+00 : f32
    %1722 = vector.broadcast %cst_587 : f32 to vector<2x96xf32>
    %1723 = arith.addf %1722, %1721 : vector<2x96xf32>
    %1724 = arith.divf %1722, %1723 : vector<2x96xf32>
    %1725 = vector.extract_strided_slice %1718 {offsets = [0, 96], sizes = [2, 32], strides = [1, 1]} : vector<2x128xf32> to vector<2x32xf32>
    %1726 = math.tanh %1725 : vector<2x32xf32>
    %1727 = vector.extract_strided_slice %1724 {offsets = [0, 32], sizes = [2, 32], strides = [1, 1]} : vector<2x96xf32> to vector<2x32xf32>
    %1728 = arith.mulf %1727, %1684 : vector<2x32xf32>
    %1729 = vector.extract_strided_slice %1724 {offsets = [0, 0], sizes = [2, 32], strides = [1, 1]} : vector<2x96xf32> to vector<2x32xf32>
    %1730 = arith.mulf %1729, %1726 : vector<2x32xf32>
    %1731 = arith.addf %1728, %1730 : vector<2x32xf32>
    %1732 = vector.extract_strided_slice %1724 {offsets = [0, 64], sizes = [2, 32], strides = [1, 1]} : vector<2x96xf32> to vector<2x32xf32>
    %1733 = math.tanh %1731 : vector<2x32xf32>
    %1734 = arith.mulf %1732, %1733 : vector<2x32xf32>
    %c0_i32_588 = arith.constant 0 : i32
    %1735 = arith.addi %13, %c0_i32_588 : i32
    %c8_i32_589 = arith.constant 8 : i32
    %1736 = arith.cmpi slt, %1735, %c8_i32_589 : i32
    %1737 = arith.select %1736, %1734, %1683 : vector<2x32xf32>
    %1738 = arith.select %1736, %1731, %1684 : vector<2x32xf32>
    %c0_590 = arith.constant 0 : index
    %c0_591 = arith.constant 0 : index
    %c0_592 = arith.constant 0 : index
    %1739 = vector.load %arg5[%c0_590, %c0_591, %c0_592] : memref<32x2x32xf32, #tpu.memory_space<vmem>>, vector<1x2x32xf32>
    %1740 = vector.shape_cast %1739 : vector<1x2x32xf32> to vector<2x32xf32>
    %1741 = vector.shape_cast %1737 : vector<2x32xf32> to vector<1x2x32xf32>
    tpu.vector_store %arg5[%c0_590, %c0_591, %c0_592], %1741 {strides = array<i32>} : memref<32x2x32xf32, #tpu.memory_space<vmem>>, vector<1x2x32xf32>,
    %c0_593 = arith.constant 0 : index
    %c0_594 = arith.constant 0 : index
    %1742 = vector.load %arg8[%c0_593, %c0_594] : memref<2x32xf32, #tpu.memory_space<vmem>>, vector<2x32xf32>
    tpu.vector_store %arg8[%c0_593, %c0_594], %1710 {strides = array<i32>} : memref<2x32xf32, #tpu.memory_space<vmem>>, vector<2x32xf32>,
    %c0_595 = arith.constant 0 : index
    %c0_596 = arith.constant 0 : index
    %1743 = vector.load %arg9[%c0_595, %c0_596] : memref<2x32xf32, #tpu.memory_space<vmem>>, vector<2x32xf32>
    tpu.vector_store %arg9[%c0_595, %c0_596], %1711 {strides = array<i32>} : memref<2x32xf32, #tpu.memory_space<vmem>>, vector<2x32xf32>,
    %c0_597 = arith.constant 0 : index
    %c0_598 = arith.constant 0 : index
    %1744 = vector.load %arg10[%c0_597, %c0_598] : memref<2x32xf32, #tpu.memory_space<vmem>>, vector<2x32xf32>
    tpu.vector_store %arg10[%c0_597, %c0_598], %1737 {strides = array<i32>} : memref<2x32xf32, #tpu.memory_space<vmem>>, vector<2x32xf32>,
    %c0_599 = arith.constant 0 : index
    %c0_600 = arith.constant 0 : index
    %1745 = vector.load %arg11[%c0_599, %c0_600] : memref<2x32xf32, #tpu.memory_space<vmem>>, vector<2x32xf32>
    tpu.vector_store %arg11[%c0_599, %c0_600], %1738 {strides = array<i32>} : memref<2x32xf32, #tpu.memory_space<vmem>>, vector<2x32xf32>,
    %c0_i32_601 = arith.constant 0 : i32
    %1746 = arith.cmpi eq, %arg0, %c0_i32_601 : i32
    %1747 = arith.extui %1746 : i1 to i32
    %c0_i32_602 = arith.constant 0 : i32
    %1748 = arith.cmpi ne, %1747, %c0_i32_602 : i32
    scf.if %1748 {
      %c0_603 = arith.constant 0 : index
      %c0_604 = arith.constant 0 : index
      %c0_605 = arith.constant 0 : index
      %1749 = vector.load %arg6[%c0_603, %c0_604, %c0_605] : memref<2x2x32xf32, #tpu.memory_space<vmem>>, vector<1x2x32xf32>
      %1750 = vector.shape_cast %1749 : vector<1x2x32xf32> to vector<2x32xf32>
      %1751 = vector.shape_cast %1710 : vector<2x32xf32> to vector<1x2x32xf32>
      tpu.vector_store %arg6[%c0_603, %c0_604, %c0_605], %1751 {strides = array<i32>} : memref<2x2x32xf32, #tpu.memory_space<vmem>>, vector<1x2x32xf32>,
      %c1_606 = arith.constant 1 : index
      %c0_607 = arith.constant 0 : index
      %c0_608 = arith.constant 0 : index
      %1752 = vector.load %arg6[%c1_606, %c0_607, %c0_608] : memref<2x2x32xf32, #tpu.memory_space<vmem>>, vector<1x2x32xf32>
      %1753 = vector.shape_cast %1752 : vector<1x2x32xf32> to vector<2x32xf32>
      %1754 = vector.shape_cast %1737 : vector<2x32xf32> to vector<1x2x32xf32>
      tpu.vector_store %arg6[%c1_606, %c0_607, %c0_608], %1754 {strides = array<i32>} : memref<2x2x32xf32, #tpu.memory_space<vmem>>, vector<1x2x32xf32>,
      %c0_609 = arith.constant 0 : index
      %c0_610 = arith.constant 0 : index
      %c0_611 = arith.constant 0 : index
      %1755 = vector.load %arg7[%c0_609, %c0_610, %c0_611] : memref<2x2x32xf32, #tpu.memory_space<vmem>>, vector<1x2x32xf32>
      %1756 = vector.shape_cast %1755 : vector<1x2x32xf32> to vector<2x32xf32>
      %1757 = vector.shape_cast %1711 : vector<2x32xf32> to vector<1x2x32xf32>
      tpu.vector_store %arg7[%c0_609, %c0_610, %c0_611], %1757 {strides = array<i32>} : memref<2x2x32xf32, #tpu.memory_space<vmem>>, vector<1x2x32xf32>,
      %c1_612 = arith.constant 1 : index
      %c0_613 = arith.constant 0 : index
      %c0_614 = arith.constant 0 : index
      %1758 = vector.load %arg7[%c1_612, %c0_613, %c0_614] : memref<2x2x32xf32, #tpu.memory_space<vmem>>, vector<1x2x32xf32>
      %1759 = vector.shape_cast %1758 : vector<1x2x32xf32> to vector<2x32xf32>
      %1760 = vector.shape_cast %1738 : vector<2x32xf32> to vector<1x2x32xf32>
      tpu.vector_store %arg7[%c1_612, %c0_613, %c0_614], %1760 {strides = array<i32>} : memref<2x2x32xf32, #tpu.memory_space<vmem>>, vector<1x2x32xf32>,
    } else {
    }
    return
  }
  func.func @transform_0(%arg0: i32) -> (i32, i32, i32) {
    %c0_i32 = arith.constant 0 : i32
    %c0_i32_0 = arith.constant 0 : i32
    %c0_i32_1 = arith.constant 0 : i32
    return %arg0, %c0_i32, %c0_i32_0 : i32, i32, i32
  }
  func.func @transform_1(%arg0: i32) -> (i32, i32, i32) {
    %c0_i32 = arith.constant 0 : i32
    %0 = arith.subi %c0_i32, %arg0 : i32
    %c0_i32_0 = arith.constant 0 : i32
    %c0_i32_1 = arith.constant 0 : i32
    %c0_i32_2 = arith.constant 0 : i32
    return %0, %c0_i32_0, %c0_i32_1 : i32, i32, i32
  }
  func.func @transform_2(%arg0: i32) -> (i32, i32, i32) {
    %c0_i32 = arith.constant 0 : i32
    %c0_i32_0 = arith.constant 0 : i32
    %c0_i32_1 = arith.constant 0 : i32
    %c0_i32_2 = arith.constant 0 : i32
    return %c0_i32, %c0_i32_0, %c0_i32_1 : i32, i32, i32
  }
  func.func @transform_3(%arg0: i32) -> (i32, i32, i32) {
    %c0_i32 = arith.constant 0 : i32
    %c0_i32_0 = arith.constant 0 : i32
    %c0_i32_1 = arith.constant 0 : i32
    return %arg0, %c0_i32, %c0_i32_0 : i32, i32, i32
  }
  func.func @transform_4(%arg0: i32) -> (i32, i32, i32) {
    %c0_i32 = arith.constant 0 : i32
    %0 = arith.subi %c0_i32, %arg0 : i32
    %c0_i32_0 = arith.constant 0 : i32
    %c0_i32_1 = arith.constant 0 : i32
    %c0_i32_2 = arith.constant 0 : i32
    return %0, %c0_i32_0, %c0_i32_1 : i32, i32, i32
  }
  func.func @transform_5(%arg0: i32) -> (i32, i32, i32) {
    %c0_i32 = arith.constant 0 : i32
    %c0_i32_0 = arith.constant 0 : i32
    %c0_i32_1 = arith.constant 0 : i32
    %c0_i32_2 = arith.constant 0 : i32
    return %c0_i32, %c0_i32_0, %c0_i32_1 : i32, i32, i32
  }
  func.func @transform_6(%arg0: i32) -> (i32, i32, i32) {
    %c0_i32 = arith.constant 0 : i32
    %c0_i32_0 = arith.constant 0 : i32
    %c0_i32_1 = arith.constant 0 : i32
    %c0_i32_2 = arith.constant 0 : i32
    return %c0_i32, %c0_i32_0, %c0_i32_1 : i32, i32, i32
  }
}

</mosaic_0001>

<llo_original>
// kernel: encoder_forward.1
$region0: #{encoder_forward.1}
  #allocation0 [shape = 'u32[]', space=smem, size = 0x4, offset = 0x4, fixed_abs, tag = 'smem constant byte address 0x4 - core index']
  #allocation1 [shape = 'u32[144,128]{1,0:T(1,128)}', space=vmem, size = 0x12000, scoped, tag = 'internal scratch']
  #allocation2 [shape = 'f32[2,32]{1,0:T(2,128)}', space=vmem, size = 0x400, scoped, tag = 'scratch operand']
  #allocation3 [shape = 'f32[2,32]{1,0:T(2,128)}', space=vmem, size = 0x400, scoped, tag = 'scratch operand']
  #allocation4 [shape = 'f32[2,32]{1,0:T(2,128)}', space=vmem, size = 0x400, scoped, tag = 'scratch operand']
  #allocation5 [shape = 'f32[2,32]{1,0:T(2,128)}', space=vmem, size = 0x400, scoped, tag = 'scratch operand']
  %s0 = inlined_call_operand.vmem [shape: f32[32,2,128], index: 0, kind: input, shape index: {}]
  %s1 = inlined_call_operand.vmem [shape: f32[32,2,128], index: 1, kind: input, shape index: {}]
  %s2 = inlined_call_operand.vmem [shape: f32[2,32,128], index: 2, kind: input, shape index: {}]
  %s3 = inlined_call_operand.vmem [shape: f32[32,2,32], index: 3, kind: output, shape index: {0}]
  %s4 = inlined_call_operand.vmem [shape: f32[32,2,32], index: 4, kind: output, shape index: {1}]
  %s5 = inlined_call_operand.vmem [shape: f32[2,2,32], index: 5, kind: output, shape index: {2}]
  %s6 = inlined_call_operand.vmem [shape: f32[2,2,32], index: 6, kind: output, shape index: {3}]
  %7 = xla_tuple %s3, %s4, %s5, %s6
  %s8 = sld [smem:[#allocation0]]
  $region54: #{encoder_forward.1} parent=0
    _
  %s10 = ssub.s32 1, %s8
  %s11 = scalar_select 0, %s10, %s8
  // Predicated region
  $region2: #{encoder_forward.1} parent=0 // pred_check
    _
  $region3: #{encoder_forward.1} parent=0 // pred_check_branch
    %13 = sbr.rel (0) target = $region5
  $region4: #{encoder_forward.1} parent=0 // pred_region
    _
  $region5: #{encoder_forward.1} parent=0 // pred_fallthru
    _
  // Predicated region
  $region6: #{encoder_forward.1} parent=0 // pred_check
    _
  $region7: #{encoder_forward.1} parent=0 // pred_check_branch
    %15 = sbr.rel (0) target = $region9
  $region8: #{encoder_forward.1} parent=0 // pred_region
    %s16 = ssub.s32 0, 0
    %s17 = smul.u32 32, %s16
    %p18 = scmp.lt.s32.totalorder %s17, 31
    %s19 = scalar_select %p18, %s17, 31
    %s20 = smul.addr %s19, 2
    %s21 = scalar_lea.vmem %s1, %s20
    %s22 = ssub.s32 0, 0
    %s23 = smul.u32 32, %s22
  $region9: #{encoder_forward.1} parent=0 // pred_fallthru
    _
  // Predicated region
  $region10: #{encoder_forward.1} parent=0 // pred_check
    _
  $region11: #{encoder_forward.1} parent=0 // pred_check_branch
    %25 = sbr.rel (0) target = $region13
  $region12: #{encoder_forward.1} parent=0 // pred_region
    _
  $region13: #{encoder_forward.1} parent=0 // pred_fallthru
    _
  %s26 = ssub.s32 0, 0
  %s27 = smul.u32 32, %s26
  %p28 = scmp.lt.s32.totalorder %s27, 31
  %s29 = scalar_select %p28, %s27, 31
  %s30 = smul.addr %s29, 2
  %s31 = scalar_lea.vmem %s1, %s30
  %s32 = ssub.s32 0, 0
  %s33 = smul.u32 32, %s32
  %p34 = scmp.lt.s32.totalorder %s33, 31
  %s35 = scalar_select %p34, %s33, 31
  %s36 = smul.addr %s35, 2
  %s37 = scalar_lea.vmem %s4, %s36
  %s38 = ssub.s32 0, 0
  %s39 = smul.u32 32, %s38
  %p40 = scmp.lt.s32.totalorder %s39, 31
  %s41 = scalar_select %p40, %s39, 31
  %s42 = smul.addr %s41, 2
  %s43 = scalar_lea.vmem %s1, %s42
  %s44 = ssub.s32 0, 0
  %s45 = smul.u32 32, %s44
  %s46 = ssub.s32 0, 0
  %s47 = smul.u32 32, %s46
  %p48 = scmp.lt.s32.totalorder %s47, 31
  %s49 = scalar_select %p48, %s47, 31
  %s50 = smul.addr %s49, 2
  %s51 = scalar_lea.vmem %s4, %s50
  %s52 = ssub.s32 0, 0
  %s53 = smul.u32 32, %s52
  %p54 = scmp.eq.s32.totalorder 0, 0
  // Predicated region
  $region14: #{encoder_forward.1} parent=0 // pred_check
    %p55 = pneg %p54
  $region15: #{encoder_forward.1} parent=0 // pred_check_branch
    %57 = sbr.rel (%p55) target = $region17
  $region16: #{encoder_forward.1} parent=0 // pred_region
    %vm58 = vcmask 254976
    %59 = vst.msk [vmem:[#allocation2] sm:$0x3] %vm58, 0.0
    %60 = vst.msk [vmem:[#allocation3] sm:$0x3] %vm58, 0.0
    %61 = vst.msk [vmem:[#allocation4] sm:$0x3] %vm58, 0.0
    %62 = vst.msk [vmem:[#allocation5] sm:$0x3] %vm58, 0.0
  $region17: #{encoder_forward.1} parent=0 // pred_fallthru
    _
  %v63 = vld [vmem:[%s2] sm:$0xff]
  %v64 = vld [vmem:[%s2 + $0x8] sm:$0xff]
  %v65 = vld [vmem:[%s2 + $0x10] sm:$0xff]
  %v66 = vld [vmem:[%s2 + $0x18] sm:$0xff]
  %s67 = scalar_lea.vmem %s2, 32
  %v68 = vld [vmem:[%s67] sm:$0xff]
  %v69 = vld [vmem:[%s67 + $0x8] sm:$0xff]
  %v70 = vld [vmem:[%s67 + $0x10] sm:$0xff]
  %v71 = vld [vmem:[%s67 + $0x18] sm:$0xff]
  %v72 = vld [vmem:[#allocation2] sm:$0x3]
  %v73 = vld [vmem:[#allocation3] sm:$0x3]
  %v74 = vld [vmem:[#allocation4] sm:$0x3]
  %v75 = vld [vmem:[#allocation5] sm:$0x3]
  %s76 = smul.u32 0, 32
  %s77 = ssub.s32 0, 0
  %s78 = smul.u32 %s77, 32
  %v79 = vld [vmem:[%s0] sm:$0x3]
  %vm80 = vcmask 261120
  %v82 = vsel %vm80, %v72, 0
  %84 = vmatprep.subr.mxu0 0.0
  %85 = vmatpush1.msra.mxu0 %v63
  %86 = vmatprep.subr.mxu0 0.0
  %87 = vmatpush1.msra.mxu0 %v64
  %88 = vmatprep.subr.mxu0 0.0
  %89 = vmatpush1.msra.mxu0 %v65
  %90 = vmatprep.subr.mxu0 0.0
  %91 = vmatpush1.msra.mxu0 %v66
  %92 = vmatprep.subr.mxu0 0.0
  %93 = vmatpush1.msra.mxu0 0.0
  %94 = vmatprep.subr.mxu0 0.0
  %95 = vmatpush1.msra.mxu0 0.0
  %96 = vmatprep.subr.mxu0 0.0
  %97 = vmatpush1.msra.mxu0 0.0
  %98 = vmatprep.subr.mxu0 0.0
  %99 = vmatpush1.msra.mxu0 0.0
  %100 = vmatprep.subr.mxu0 0.0
  %101 = vmatpush1.msra.mxu0 0.0
  %102 = vmatprep.subr.mxu0 0.0
  %103 = vmatpush1.msra.mxu0 0.0
  %104 = vmatprep.subr.mxu0 0.0
  %105 = vmatpush1.msra.mxu0 0.0
  %106 = vmatprep.subr.mxu0 0.0
  %107 = vmatpush1.msra.mxu0 0.0
  %108 = vmatprep.subr.mxu0 0.0
  %109 = vmatpush1.msra.mxu0 0.0
  %110 = vmatprep.subr.mxu0 0.0
  %111 = vmatpush1.msra.mxu0 0.0
  %112 = vmatprep.subr.mxu0 0.0
  %113 = vmatpush1.msra.mxu0 0.0
  %114 = vmatprep.subr.mxu0 0.0
  %115 = vmatpush1.msra.mxu0 0.0
  %116 = vmatprep.subr.mxu0 0.0
  %117 = vmatpush1.msra.mxu0 0.0
  %118 = vmatprep.subr.mxu0 0.0
  %119 = vmatpush1.msra.mxu0 0.0
  %120 = vmatprep.subr.mxu0 0.0
  %121 = vmatpush1.msra.mxu0 0.0
  %122 = vmatprep.subr.mxu0 0.0
  %123 = vmatpush1.msra.mxu0 0.0
  %124 = vmatprep.subr.mxu0 0.0
  %125 = vmatpush1.msra.mxu0 0.0
  %126 = vmatprep.subr.mxu0 0.0
  %127 = vmatpush1.msra.mxu0 0.0
  %128 = vmatprep.subr.mxu0 0.0
  %129 = vmatpush1.msra.mxu0 0.0
  %130 = vmatprep.subr.mxu0 0.0
  %131 = vmatpush1.msra.mxu0 0.0
  %132 = vmatprep.subr.mxu0 0.0
  %133 = vmatpush1.msra.mxu0 0.0
  %134 = vmatprep.subr.mxu0 0.0
  %135 = vmatpush1.msra.mxu0 0.0
  %136 = vmatprep.subr.mxu0 0.0
  %137 = vmatpush1.msra.mxu0 0.0
  %138 = vmatprep.subr.mxu0 0.0
  %139 = vmatpush1.msra.mxu0 0.0
  %140 = vmatprep.subr.mxu0 0.0
  %141 = vmatpush1.msra.mxu0 0.0
  %142 = vmatprep.subr.mxu0 0.0
  %143 = vmatpush1.msra.mxu0 0.0
  %144 = vmatprep.subr.mxu0 0.0
  %145 = vmatpush1.msra.mxu0 0.0
  %146 = vmatprep.subr.mxu0 0.0
  %147 = vmatpush1.msra.mxu0 0.0
  %148 = vmatprep.mubr.f32.mxu0 0.0
  %149 = vmatmul.mubr.f32.gmra.mrb[0].mxu0 %v82
  %v150 = vpop.f32.mrb[0].mxu0
  %v151 = vadd.f32 0.0, %v150
  %v152 = vpop.f32.mrb[0].mxu0
  %153 = vdwg.mxu0
  %v154 = vadd.f32 %v79, %v151
  %v155 = vxor.u32 %v154, 2147483648
  %v156 = vmul.f32 %v155, 1.442695
  %v157 = vpow.pop %v156
  %v158 = vadd.f32 %v157, 1.0
  %v159 = vrcp.pop %v158
  %v160 = vmul.f32 1.0, %v159
  %v161 = vtanh.pop %v154
  %163 = vrot.lane.b32.xlu0 %v73, 32
  %v164 = vpop.permute.xlu0 %163
  %v166 = vmul.f32 %v160, %v164
  %168 = vrot.lane.b32.xlu0 %v161, 32
  %v169 = vpop.permute.xlu0 %168
  %v171 = vmul.f32 %v160, %v169
  %173 = vrot.lane.b32.xlu0 %v171, 32
  %v174 = vpop.permute.xlu0 %173
  %v176 = vadd.f32 %v166, %v174
  %v177 = vtanh.pop %v176
  %179 = vrot.lane.b32.xlu0 %v177, 32
  %v180 = vpop.permute.xlu0 %179
  %v182 = vmul.f32 %v160, %v180
  %p183 = scmp.lt.s32.totalorder %s76, 8
  %s184 = scalar_select %p183, 1, 0
  %v185 = vstv %s184
  %vm186 = vcmp.eq.s32.totalorder %v185, 1
  %187 = vrot.lane.b32.xlu0 %v72, 64
  %v188 = vpop.permute.xlu0 %187
  %v190 = vsel %vm186, %v182, %v188
  %v191 = vsel %vm186, %v176, %v164
  %193 = vrot.lane.b32.xlu0 %v190, 64
  %v194 = vpop.permute.xlu0 %193
  %vm196 = vcmask 254976
  %197 = vst.msk [vmem:[%s3] sm:$0x3] %vm196, %v194
  %s198 = scalar_lea.vmem %s43, 62
  %v199 = vld [vmem:[%s198] sm:$0x3]
  %v201 = vsel %vm80, %v74, 0
  %203 = vmatprep.subr.mxu0 0.0
  %204 = vmatpush1.msra.mxu0 %v68
  %205 = vmatprep.subr.mxu0 0.0
  %206 = vmatpush1.msra.mxu0 %v69
  %207 = vmatprep.subr.mxu0 0.0
  %208 = vmatpush1.msra.mxu0 %v70
  %209 = vmatprep.subr.mxu0 0.0
  %210 = vmatpush1.msra.mxu0 %v71
  %211 = vmatprep.subr.mxu0 0.0
  %212 = vmatpush1.msra.mxu0 0.0
  %213 = vmatprep.subr.mxu0 0.0
  %214 = vmatpush1.msra.mxu0 0.0
  %215 = vmatprep.subr.mxu0 0.0
  %216 = vmatpush1.msra.mxu0 0.0
  %217 = vmatprep.subr.mxu0 0.0
  %218 = vmatpush1.msra.mxu0 0.0
  %219 = vmatprep.subr.mxu0 0.0
  %220 = vmatpush1.msra.mxu0 0.0
  %221 = vmatprep.subr.mxu0 0.0
  %222 = vmatpush1.msra.mxu0 0.0
  %223 = vmatprep.subr.mxu0 0.0
  %224 = vmatpush1.msra.mxu0 0.0
  %225 = vmatprep.subr.mxu0 0.0
  %226 = vmatpush1.msra.mxu0 0.0
  %227 = vmatprep.subr.mxu0 0.0
  %228 = vmatpush1.msra.mxu0 0.0
  %229 = vmatprep.subr.mxu0 0.0
  %230 = vmatpush1.msra.mxu0 0.0
  %231 = vmatprep.subr.mxu0 0.0
  %232 = vmatpush1.msra.mxu0 0.0
  %233 = vmatprep.subr.mxu0 0.0
  %234 = vmatpush1.msra.mxu0 0.0
  %235 = vmatprep.subr.mxu0 0.0
  %236 = vmatpush1.msra.mxu0 0.0
  %237 = vmatprep.subr.mxu0 0.0
  %238 = vmatpush1.msra.mxu0 0.0
  %239 = vmatprep.subr.mxu0 0.0
  %240 = vmatpush1.msra.mxu0 0.0
  %241 = vmatprep.subr.mxu0 0.0
  %242 = vmatpush1.msra.mxu0 0.0
  %243 = vmatprep.subr.mxu0 0.0
  %244 = vmatpush1.msra.mxu0 0.0
  %245 = vmatprep.subr.mxu0 0.0
  %246 = vmatpush1.msra.mxu0 0.0
  %247 = vmatprep.subr.mxu0 0.0
  %248 = vmatpush1.msra.mxu0 0.0
  %249 = vmatprep.subr.mxu0 0.0
  %250 = vmatpush1.msra.mxu0 0.0
  %251 = vmatprep.subr.mxu0 0.0
  %252 = vmatpush1.msra.mxu0 0.0
  %253 = vmatprep.subr.mxu0 0.0
  %254 = vmatpush1.msra.mxu0 0.0
  %255 = vmatprep.subr.mxu0 0.0
  %256 = vmatpush1.msra.mxu0 0.0
  %257 = vmatprep.subr.mxu0 0.0
  %258 = vmatpush1.msra.mxu0 0.0
  %259 = vmatprep.subr.mxu0 0.0
  %260 = vmatpush1.msra.mxu0 0.0
  %261 = vmatprep.subr.mxu0 0.0
  %262 = vmatpush1.msra.mxu0 0.0
  %263 = vmatprep.subr.mxu0 0.0
  %264 = vmatpush1.msra.mxu0 0.0
  %265 = vmatprep.subr.mxu0 0.0
  %266 = vmatpush1.msra.mxu0 0.0
  %267 = vmatprep.mubr.f32.mxu0 0.0
  %268 = vmatmul.mubr.f32.gmra.mrb[0].mxu0 %v201
  %v269 = vpop.f32.mrb[0].mxu0
  %v270 = vadd.f32 0.0, %v269
  %v271 = vpop.f32.mrb[0].mxu0
  %272 = vdwg.mxu0
  %v273 = vadd.f32 %v199, %v270
  %v274 = vxor.u32 %v273, 2147483648
  %v275 = vmul.f32 %v274, 1.442695
  %v276 = vpow.pop %v275
  %v277 = vadd.f32 %v276, 1.0
  %v278 = vrcp.pop %v277
  %v279 = vmul.f32 1.0, %v278
  %v280 = vtanh.pop %v273
  %282 = vrot.lane.b32.xlu0 %v75, 32
  %v283 = vpop.permute.xlu0 %282
  %v285 = vmul.f32 %v279, %v283
  %287 = vrot.lane.b32.xlu0 %v280, 32
  %v288 = vpop.permute.xlu0 %287
  %v290 = vmul.f32 %v279, %v288
  %292 = vrot.lane.b32.xlu0 %v290, 32
  %v293 = vpop.permute.xlu0 %292
  %v295 = vadd.f32 %v285, %v293
  %v296 = vtanh.pop %v295
  %298 = vrot.lane.b32.xlu0 %v296, 32
  %v299 = vpop.permute.xlu0 %298
  %v301 = vmul.f32 %v279, %v299
  %s302 = sadd.s32 %s78, 31
  %p303 = scmp.lt.s32.totalorder %s302, 8
  %s304 = scalar_select %p303, 1, 0
  %v305 = vstv %s304
  %vm306 = vcmp.eq.s32.totalorder %v305, 1
  %307 = vrot.lane.b32.xlu0 %v74, 64
  %v308 = vpop.permute.xlu0 %307
  %v310 = vsel %vm306, %v301, %v308
  %v311 = vsel %vm306, %v295, %v283
  %313 = vrot.lane.b32.xlu0 %v310, 64
  %v314 = vpop.permute.xlu0 %313
  %s316 = scalar_lea.vmem %s51, 62
  %317 = vst.msk [vmem:[%s316] sm:$0x3] %vm196, %v314
  %s318 = scalar_lea.vmem %s0, 2
  %v319 = vld [vmem:[%s318] sm:$0x3]
  %v320 = vsel %vm80, %v194, 0
  %322 = vmatprep.subr.mxu0 0.0
  %323 = vmatpush1.msra.mxu0 %v63
  %324 = vmatprep.subr.mxu0 0.0
  %325 = vmatpush1.msra.mxu0 %v64
  %326 = vmatprep.subr.mxu0 0.0
  %327 = vmatpush1.msra.mxu0 %v65
  %328 = vmatprep.subr.mxu0 0.0
  %329 = vmatpush1.msra.mxu0 %v66
  %330 = vmatprep.subr.mxu0 0.0
  %331 = vmatpush1.msra.mxu0 0.0
  %332 = vmatprep.subr.mxu0 0.0
  %333 = vmatpush1.msra.mxu0 0.0
  %334 = vmatprep.subr.mxu0 0.0
  %335 = vmatpush1.msra.mxu0 0.0
  %336 = vmatprep.subr.mxu0 0.0
  %337 = vmatpush1.msra.mxu0 0.0
  %338 = vmatprep.subr.mxu0 0.0
  %339 = vmatpush1.msra.mxu0 0.0
  %340 = vmatprep.subr.mxu0 0.0
  %341 = vmatpush1.msra.mxu0 0.0
  %342 = vmatprep.subr.mxu0 0.0
  %343 = vmatpush1.msra.mxu0 0.0
  %344 = vmatprep.subr.mxu0 0.0
  %345 = vmatpush1.msra.mxu0 0.0
  %346 = vmatprep.subr.mxu0 0.0
  %347 = vmatpush1.msra.mxu0 0.0
  %348 = vmatprep.subr.mxu0 0.0
  %349 = vmatpush1.msra.mxu0 0.0
  %350 = vmatprep.subr.mxu0 0.0
  %351 = vmatpush1.msra.mxu0 0.0
  %352 = vmatprep.subr.mxu0 0.0
  %353 = vmatpush1.msra.mxu0 0.0
  %354 = vmatprep.subr.mxu0 0.0
  %355 = vmatpush1.msra.mxu0 0.0
  %356 = vmatprep.subr.mxu0 0.0
  %357 = vmatpush1.msra.mxu0 0.0
  %358 = vmatprep.subr.mxu0 0.0
  %359 = vmatpush1.msra.mxu0 0.0
  %360 = vmatprep.subr.mxu0 0.0
  %361 = vmatpush1.msra.mxu0 0.0
  %362 = vmatprep.subr.mxu0 0.0
  %363 = vmatpush1.msra.mxu0 0.0
  %364 = vmatprep.subr.mxu0 0.0
  %365 = vmatpush1.msra.mxu0 0.0
  %366 = vmatprep.subr.mxu0 0.0
  %367 = vmatpush1.msra.mxu0 0.0
  %368 = vmatprep.subr.mxu0 0.0
  %369 = vmatpush1.msra.mxu0 0.0
  %370 = vmatprep.subr.mxu0 0.0
  %371 = vmatpush1.msra.mxu0 0.0
  %372 = vmatprep.subr.mxu0 0.0
  %373 = vmatpush1.msra.mxu0 0.0
  %374 = vmatprep.subr.mxu0 0.0
  %375 = vmatpush1.msra.mxu0 0.0
  %376 = vmatprep.subr.mxu0 0.0
  %377 = vmatpush1.msra.mxu0 0.0
  %378 = vmatprep.subr.mxu0 0.0
  %379 = vmatpush1.msra.mxu0 0.0
  %380 = vmatprep.subr.mxu0 0.0
  %381 = vmatpush1.msra.mxu0 0.0
  %382 = vmatprep.subr.mxu0 0.0
  %383 = vmatpush1.msra.mxu0 0.0
  %384 = vmatprep.subr.mxu0 0.0
  %385 = vmatpush1.msra.mxu0 0.0
  %386 = vmatprep.mubr.f32.mxu0 0.0
  %387 = vmatmul.mubr.f32.gmra.mrb[0].mxu0 %v320
  %v388 = vpop.f32.mrb[0].mxu0
  %v389 = vadd.f32 0.0, %v388
  %v390 = vpop.f32.mrb[0].mxu0
  %391 = vdwg.mxu0
  %v392 = vadd.f32 %v319, %v389
  %v393 = vxor.u32 %v392, 2147483648
  %v394 = vmul.f32 %v393, 1.442695
  %v395 = vpow.pop %v394
  %v396 = vadd.f32 %v395, 1.0
  %v397 = vrcp.pop %v396
  %v398 = vmul.f32 1.0, %v397
  %v399 = vtanh.pop %v392
  %v400 = vmul.f32 %v398, %v191
  %402 = vrot.lane.b32.xlu0 %v399, 32
  %v403 = vpop.permute.xlu0 %402
  %v405 = vmul.f32 %v398, %v403
  %407 = vrot.lane.b32.xlu0 %v405, 32
  %v408 = vpop.permute.xlu0 %407
  %v410 = vadd.f32 %v400, %v408
  %v411 = vtanh.pop %v410
  %413 = vrot.lane.b32.xlu0 %v411, 32
  %v414 = vpop.permute.xlu0 %413
  %v416 = vmul.f32 %v398, %v414
  %s417 = sadd.s32 %s76, 1
  %p418 = scmp.lt.s32.totalorder %s417, 8
  %s419 = scalar_select %p418, 1, 0
  %v420 = vstv %s419
  %vm421 = vcmp.eq.s32.totalorder %v420, 1
  %v422 = vsel %vm421, %v416, %v190
  %v423 = vsel %vm421, %v410, %v191
  %425 = vrot.lane.b32.xlu0 %v422, 64
  %v426 = vpop.permute.xlu0 %425
  %s428 = scalar_lea.vmem %s3, 2
  %429 = vst.msk [vmem:[%s428] sm:$0x3] %vm196, %v426
  %s430 = scalar_lea.vmem %s43, 60
  %v431 = vld [vmem:[%s430] sm:$0x3]
  %v432 = vsel %vm80, %v314, 0
  %434 = vmatprep.subr.mxu0 0.0
  %435 = vmatpush1.msra.mxu0 %v68
  %436 = vmatprep.subr.mxu0 0.0
  %437 = vmatpush1.msra.mxu0 %v69
  %438 = vmatprep.subr.mxu0 0.0
  %439 = vmatpush1.msra.mxu0 %v70
  %440 = vmatprep.subr.mxu0 0.0
  %441 = vmatpush1.msra.mxu0 %v71
  %442 = vmatprep.subr.mxu0 0.0
  %443 = vmatpush1.msra.mxu0 0.0
  %444 = vmatprep.subr.mxu0 0.0
  %445 = vmatpush1.msra.mxu0 0.0
  %446 = vmatprep.subr.mxu0 0.0
  %447 = vmatpush1.msra.mxu0 0.0
  %448 = vmatprep.subr.mxu0 0.0
  %449 = vmatpush1.msra.mxu0 0.0
  %450 = vmatprep.subr.mxu0 0.0
  %451 = vmatpush1.msra.mxu0 0.0
  %452 = vmatprep.subr.mxu0 0.0
  %453 = vmatpush1.msra.mxu0 0.0
  %454 = vmatprep.subr.mxu0 0.0
  %455 = vmatpush1.msra.mxu0 0.0
  %456 = vmatprep.subr.mxu0 0.0
  %457 = vmatpush1.msra.mxu0 0.0
  %458 = vmatprep.subr.mxu0 0.0
  %459 = vmatpush1.msra.mxu0 0.0
  %460 = vmatprep.subr.mxu0 0.0
  %461 = vmatpush1.msra.mxu0 0.0
  %462 = vmatprep.subr.mxu0 0.0
  %463 = vmatpush1.msra.mxu0 0.0
  %464 = vmatprep.subr.mxu0 0.0
  %465 = vmatpush1.msra.mxu0 0.0
  %466 = vmatprep.subr.mxu0 0.0
  %467 = vmatpush1.msra.mxu0 0.0
  %468 = vmatprep.subr.mxu0 0.0
  %469 = vmatpush1.msra.mxu0 0.0
  %470 = vmatprep.subr.mxu0 0.0
  %471 = vmatpush1.msra.mxu0 0.0
  %472 = vmatprep.subr.mxu0 0.0
  %473 = vmatpush1.msra.mxu0 0.0
  %474 = vmatprep.subr.mxu0 0.0
  %475 = vmatpush1.msra.mxu0 0.0
  %476 = vmatprep.subr.mxu0 0.0
  %477 = vmatpush1.msra.mxu0 0.0
  %478 = vmatprep.subr.mxu0 0.0
  %479 = vmatpush1.msra.mxu0 0.0
  %480 = vmatprep.subr.mxu0 0.0
  %481 = vmatpush1.msra.mxu0 0.0
  %482 = vmatprep.subr.mxu0 0.0
  %483 = vmatpush1.msra.mxu0 0.0
  %484 = vmatprep.subr.mxu0 0.0
  %485 = vmatpush1.msra.mxu0 0.0
  %486 = vmatprep.subr.mxu0 0.0
  %487 = vmatpush1.msra.mxu0 0.0
  %488 = vmatprep.subr.mxu0 0.0
  %489 = vmatpush1.msra.mxu0 0.0
  %490 = vmatprep.subr.mxu0 0.0
  %491 = vmatpush1.msra.mxu0 0.0
  %492 = vmatprep.subr.mxu0 0.0
  %493 = vmatpush1.msra.mxu0 0.0
  %494 = vmatprep.subr.mxu0 0.0
  %495 = vmatpush1.msra.mxu0 0.0
  %496 = vmatprep.subr.mxu0 0.0
  %497 = vmatpush1.msra.mxu0 0.0
  %498 = vmatprep.mubr.f32.mxu0 0.0
  %499 = vmatmul.mubr.f32.gmra.mrb[0].mxu0 %v432
  %v500 = vpop.f32.mrb[0].mxu0
  %v501 = vadd.f32 0.0, %v500
  %v502 = vpop.f32.mrb[0].mxu0
  %503 = vdwg.mxu0
  %v504 = vadd.f32 %v431, %v501
  %v505 = vxor.u32 %v504, 2147483648
  %v506 = vmul.f32 %v505, 1.442695
  %v507 = vpow.pop %v506
  %v508 = vadd.f32 %v507, 1.0
  %v509 = vrcp.pop %v508
  %v510 = vmul.f32 1.0, %v509
  %v511 = vtanh.pop %v504
  %v512 = vmul.f32 %v510, %v311
  %514 = vrot.lane.b32.xlu0 %v511, 32
  %v515 = vpop.permute.xlu0 %514
  %v517 = vmul.f32 %v510, %v515
  %519 = vrot.lane.b32.xlu0 %v517, 32
  %v520 = vpop.permute.xlu0 %519
  %v522 = vadd.f32 %v512, %v520
  %v523 = vtanh.pop %v522
  %525 = vrot.lane.b32.xlu0 %v523, 32
  %v526 = vpop.permute.xlu0 %525
  %v528 = vmul.f32 %v510, %v526
  %s529 = sadd.s32 %s78, 30
  %p530 = scmp.lt.s32.totalorder %s529, 8
  %s531 = scalar_select %p530, 1, 0
  %v532 = vstv %s531
  %vm533 = vcmp.eq.s32.totalorder %v532, 1
  %v534 = vsel %vm533, %v528, %v310
  %v535 = vsel %vm533, %v522, %v311
  %537 = vrot.lane.b32.xlu0 %v534, 64
  %v538 = vpop.permute.xlu0 %537
  %s540 = scalar_lea.vmem %s51, 60
  %541 = vst.msk [vmem:[%s540] sm:$0x3] %vm196, %v538
  %s542 = scalar_lea.vmem %s0, 4
  %v543 = vld [vmem:[%s542] sm:$0x3]
  %v544 = vsel %vm80, %v426, 0
  %546 = vmatprep.subr.mxu0 0.0
  %547 = vmatpush1.msra.mxu0 %v63
  %548 = vmatprep.subr.mxu0 0.0
  %549 = vmatpush1.msra.mxu0 %v64
  %550 = vmatprep.subr.mxu0 0.0
  %551 = vmatpush1.msra.mxu0 %v65
  %552 = vmatprep.subr.mxu0 0.0
  %553 = vmatpush1.msra.mxu0 %v66
  %554 = vmatprep.subr.mxu0 0.0
  %555 = vmatpush1.msra.mxu0 0.0
  %556 = vmatprep.subr.mxu0 0.0
  %557 = vmatpush1.msra.mxu0 0.0
  %558 = vmatprep.subr.mxu0 0.0
  %559 = vmatpush1.msra.mxu0 0.0
  %560 = vmatprep.subr.mxu0 0.0
  %561 = vmatpush1.msra.mxu0 0.0
  %562 = vmatprep.subr.mxu0 0.0
  %563 = vmatpush1.msra.mxu0 0.0
  %564 = vmatprep.subr.mxu0 0.0
  %565 = vmatpush1.msra.mxu0 0.0
  %566 = vmatprep.subr.mxu0 0.0
  %567 = vmatpush1.msra.mxu0 0.0
  %568 = vmatprep.subr.mxu0 0.0
  %569 = vmatpush1.msra.mxu0 0.0
  %570 = vmatprep.subr.mxu0 0.0
  %571 = vmatpush1.msra.mxu0 0.0
  %572 = vmatprep.subr.mxu0 0.0
  %573 = vmatpush1.msra.mxu0 0.0
  %574 = vmatprep.subr.mxu0 0.0
  %575 = vmatpush1.msra.mxu0 0.0
  %576 = vmatprep.subr.mxu0 0.0
  %577 = vmatpush1.msra.mxu0 0.0
  %578 = vmatprep.subr.mxu0 0.0
  %579 = vmatpush1.msra.mxu0 0.0
  %580 = vmatprep.subr.mxu0 0.0
  %581 = vmatpush1.msra.mxu0 0.0
  %582 = vmatprep.subr.mxu0 0.0
  %583 = vmatpush1.msra.mxu0 0.0
  %584 = vmatprep.subr.mxu0 0.0
  %585 = vmatpush1.msra.mxu0 0.0
  %586 = vmatprep.subr.mxu0 0.0
  %587 = vmatpush1.msra.mxu0 0.0
  %588 = vmatprep.subr.mxu0 0.0
  %589 = vmatpush1.msra.mxu0 0.0
  %590 = vmatprep.subr.mxu0 0.0
  %591 = vmatpush1.msra.mxu0 0.0
  %592 = vmatprep.subr.mxu0 0.0
  %593 = vmatpush1.msra.mxu0 0.0
  %594 = vmatprep.subr.mxu0 0.0
  %595 = vmatpush1.msra.mxu0 0.0
  %596 = vmatprep.subr.mxu0 0.0
  %597 = vmatpush1.msra.mxu0 0.0
  %598 = vmatprep.subr.mxu0 0.0
  %599 = vmatpush1.msra.mxu0 0.0
  %600 = vmatprep.subr.mxu0 0.0
  %601 = vmatpush1.msra.mxu0 0.0
  %602 = vmatprep.subr.mxu0 0.0
  %603 = vmatpush1.msra.mxu0 0.0
  %604 = vmatprep.subr.mxu0 0.0
  %605 = vmatpush1.msra.mxu0 0.0
  %606 = vmatprep.subr.mxu0 0.0
  %607 = vmatpush1.msra.mxu0 0.0
  %608 = vmatprep.subr.mxu0 0.0
  %609 = vmatpush1.msra.mxu0 0.0
  %610 = vmatprep.mubr.f32.mxu0 0.0
  %611 = vmatmul.mubr.f32.gmra.mrb[0].mxu0 %v544
  %v612 = vpop.f32.mrb[0].mxu0
  %v613 = vadd.f32 0.0, %v612
  %v614 = vpop.f32.mrb[0].mxu0
  %615 = vdwg.mxu0
  %v616 = vadd.f32 %v543, %v613
  %v617 = vxor.u32 %v616, 2147483648
  %v618 = vmul.f32 %v617, 1.442695
  %v619 = vpow.pop %v618
  %v620 = vadd.f32 %v619, 1.0
  %v621 = vrcp.pop %v620
  %v622 = vmul.f32 1.0, %v621
  %v623 = vtanh.pop %v616
  %v624 = vmul.f32 %v622, %v423
  %626 = vrot.lane.b32.xlu0 %v623, 32
  %v627 = vpop.permute.xlu0 %626
  %v629 = vmul.f32 %v622, %v627
  %631 = vrot.lane.b32.xlu0 %v629, 32
  %v632 = vpop.permute.xlu0 %631
  %v634 = vadd.f32 %v624, %v632
  %v635 = vtanh.pop %v634
  %637 = vrot.lane.b32.xlu0 %v635, 32
  %v638 = vpop.permute.xlu0 %637
  %v640 = vmul.f32 %v622, %v638
  %s641 = sadd.s32 %s76, 2
  %p642 = scmp.lt.s32.totalorder %s641, 8
  %s643 = scalar_select %p642, 1, 0
  %v644 = vstv %s643
  %vm645 = vcmp.eq.s32.totalorder %v644, 1
  %v646 = vsel %vm645, %v640, %v422
  %v647 = vsel %vm645, %v634, %v423
  %649 = vrot.lane.b32.xlu0 %v646, 64
  %v650 = vpop.permute.xlu0 %649
  %s652 = scalar_lea.vmem %s3, 4
  %653 = vst.msk [vmem:[%s652] sm:$0x3] %vm196, %v650
  %s654 = scalar_lea.vmem %s43, 58
  %v655 = vld [vmem:[%s654] sm:$0x3]
  %v656 = vsel %vm80, %v538, 0
  %658 = vmatprep.subr.mxu0 0.0
  %659 = vmatpush1.msra.mxu0 %v68
  %660 = vmatprep.subr.mxu0 0.0
  %661 = vmatpush1.msra.mxu0 %v69
  %662 = vmatprep.subr.mxu0 0.0
  %663 = vmatpush1.msra.mxu0 %v70
  %664 = vmatprep.subr.mxu0 0.0
  %665 = vmatpush1.msra.mxu0 %v71
  %666 = vmatprep.subr.mxu0 0.0
  %667 = vmatpush1.msra.mxu0 0.0
  %668 = vmatprep.subr.mxu0 0.0
  %669 = vmatpush1.msra.mxu0 0.0
  %670 = vmatprep.subr.mxu0 0.0
  %671 = vmatpush1.msra.mxu0 0.0
  %672 = vmatprep.subr.mxu0 0.0
  %673 = vmatpush1.msra.mxu0 0.0
  %674 = vmatprep.subr.mxu0 0.0
  %675 = vmatpush1.msra.mxu0 0.0
  %676 = vmatprep.subr.mxu0 0.0
  %677 = vmatpush1.msra.mxu0 0.0
  %678 = vmatprep.subr.mxu0 0.0
  %679 = vmatpush1.msra.mxu0 0.0
  %680 = vmatprep.subr.mxu0 0.0
  %681 = vmatpush1.msra.mxu0 0.0
  %682 = vmatprep.subr.mxu0 0.0
  %683 = vmatpush1.msra.mxu0 0.0
  %684 = vmatprep.subr.mxu0 0.0
  %685 = vmatpush1.msra.mxu0 0.0
  %686 = vmatprep.subr.mxu0 0.0
  %687 = vmatpush1.msra.mxu0 0.0
  %688 = vmatprep.subr.mxu0 0.0
  %689 = vmatpush1.msra.mxu0 0.0
  %690 = vmatprep.subr.mxu0 0.0
  %691 = vmatpush1.msra.mxu0 0.0
  %692 = vmatprep.subr.mxu0 0.0
  %693 = vmatpush1.msra.mxu0 0.0
  %694 = vmatprep.subr.mxu0 0.0
  %695 = vmatpush1.msra.mxu0 0.0
  %696 = vmatprep.subr.mxu0 0.0
  %697 = vmatpush1.msra.mxu0 0.0
  %698 = vmatprep.subr.mxu0 0.0
  %699 = vmatpush1.msra.mxu0 0.0
  %700 = vmatprep.subr.mxu0 0.0
  %701 = vmatpush1.msra.mxu0 0.0
  %702 = vmatprep.subr.mxu0 0.0
  %703 = vmatpush1.msra.mxu0 0.0
  %704 = vmatprep.subr.mxu0 0.0
  %705 = vmatpush1.msra.mxu0 0.0
  %706 = vmatprep.subr.mxu0 0.0
  %707 = vmatpush1.msra.mxu0 0.0
  %708 = vmatprep.subr.mxu0 0.0
  %709 = vmatpush1.msra.mxu0 0.0
  %710 = vmatprep.subr.mxu0 0.0
  %711 = vmatpush1.msra.mxu0 0.0
  %712 = vmatprep.subr.mxu0 0.0
  %713 = vmatpush1.msra.mxu0 0.0
  %714 = vmatprep.subr.mxu0 0.0
  %715 = vmatpush1.msra.mxu0 0.0
  %716 = vmatprep.subr.mxu0 0.0
  %717 = vmatpush1.msra.mxu0 0.0
  %718 = vmatprep.subr.mxu0 0.0
  %719 = vmatpush1.msra.mxu0 0.0
  %720 = vmatprep.subr.mxu0 0.0
  %721 = vmatpush1.msra.mxu0 0.0
  %722 = vmatprep.mubr.f32.mxu0 0.0
  %723 = vmatmul.mubr.f32.gmra.mrb[0].mxu0 %v656
  %v724 = vpop.f32.mrb[0].mxu0
  %v725 = vadd.f32 0.0, %v724
  %v726 = vpop.f32.mrb[0].mxu0
  %727 = vdwg.mxu0
  %v728 = vadd.f32 %v655, %v725
  %v729 = vxor.u32 %v728, 2147483648
  %v730 = vmul.f32 %v729, 1.442695
  %v731 = vpow.pop %v730
  %v732 = vadd.f32 %v731, 1.0
  %v733 = vrcp.pop %v732
  %v734 = vmul.f32 1.0, %v733
  %v735 = vtanh.pop %v728
  %v736 = vmul.f32 %v734, %v535
  %738 = vrot.lane.b32.xlu0 %v735, 32
  %v739 = vpop.permute.xlu0 %738
  %v741 = vmul.f32 %v734, %v739
  %743 = vrot.lane.b32.xlu0 %v741, 32
  %v744 = vpop.permute.xlu0 %743
  %v746 = vadd.f32 %v736, %v744
  %v747 = vtanh.pop %v746
  %749 = vrot.lane.b32.xlu0 %v747, 32
  %v750 = vpop.permute.xlu0 %749
  %v752 = vmul.f32 %v734, %v750
  %s753 = sadd.s32 %s78, 29
  %p754 = scmp.lt.s32.totalorder %s753, 8
  %s755 = scalar_select %p754, 1, 0
  %v756 = vstv %s755
  %vm757 = vcmp.eq.s32.totalorder %v756, 1
  %v758 = vsel %vm757, %v752, %v534
  %v759 = vsel %vm757, %v746, %v535
  %761 = vrot.lane.b32.xlu0 %v758, 64
  %v762 = vpop.permute.xlu0 %761
  %s764 = scalar_lea.vmem %s51, 58
  %765 = vst.msk [vmem:[%s764] sm:$0x3] %vm196, %v762
  %s766 = scalar_lea.vmem %s0, 6
  %v767 = vld [vmem:[%s766] sm:$0x3]
  %v768 = vsel %vm80, %v650, 0
  %770 = vmatprep.subr.mxu0 0.0
  %771 = vmatpush1.msra.mxu0 %v63
  %772 = vmatprep.subr.mxu0 0.0
  %773 = vmatpush1.msra.mxu0 %v64
  %774 = vmatprep.subr.mxu0 0.0
  %775 = vmatpush1.msra.mxu0 %v65
  %776 = vmatprep.subr.mxu0 0.0
  %777 = vmatpush1.msra.mxu0 %v66
  %778 = vmatprep.subr.mxu0 0.0
  %779 = vmatpush1.msra.mxu0 0.0
  %780 = vmatprep.subr.mxu0 0.0
  %781 = vmatpush1.msra.mxu0 0.0
  %782 = vmatprep.subr.mxu0 0.0
  %783 = vmatpush1.msra.mxu0 0.0
  %784 = vmatprep.subr.mxu0 0.0
  %785 = vmatpush1.msra.mxu0 0.0
  %786 = vmatprep.subr.mxu0 0.0
  %787 = vmatpush1.msra.mxu0 0.0
  %788 = vmatprep.subr.mxu0 0.0
  %789 = vmatpush1.msra.mxu0 0.0
  %790 = vmatprep.subr.mxu0 0.0
  %791 = vmatpush1.msra.mxu0 0.0
  %792 = vmatprep.subr.mxu0 0.0
  %793 = vmatpush1.msra.mxu0 0.0
  %794 = vmatprep.subr.mxu0 0.0
  %795 = vmatpush1.msra.mxu0 0.0
  %796 = vmatprep.subr.mxu0 0.0
  %797 = vmatpush1.msra.mxu0 0.0
  %798 = vmatprep.subr.mxu0 0.0
  %799 = vmatpush1.msra.mxu0 0.0
  %800 = vmatprep.subr.mxu0 0.0
  %801 = vmatpush1.msra.mxu0 0.0
  %802 = vmatprep.subr.mxu0 0.0
  %803 = vmatpush1.msra.mxu0 0.0
  %804 = vmatprep.subr.mxu0 0.0
  %805 = vmatpush1.msra.mxu0 0.0
  %806 = vmatprep.subr.mxu0 0.0
  %807 = vmatpush1.msra.mxu0 0.0
  %808 = vmatprep.subr.mxu0 0.0
  %809 = vmatpush1.msra.mxu0 0.0
  %810 = vmatprep.subr.mxu0 0.0
  %811 = vmatpush1.msra.mxu0 0.0
  %812 = vmatprep.subr.mxu0 0.0
  %813 = vmatpush1.msra.mxu0 0.0
  %814 = vmatprep.subr.mxu0 0.0
  %815 = vmatpush1.msra.mxu0 0.0
  %816 = vmatprep.subr.mxu0 0.0
  %817 = vmatpush1.msra.mxu0 0.0
  %818 = vmatprep.subr.mxu0 0.0
  %819 = vmatpush1.msra.mxu0 0.0
  %820 = vmatprep.subr.mxu0 0.0
  %821 = vmatpush1.msra.mxu0 0.0
  %822 = vmatprep.subr.mxu0 0.0
  %823 = vmatpush1.msra.mxu0 0.0
  %824 = vmatprep.subr.mxu0 0.0
  %825 = vmatpush1.msra.mxu0 0.0
  %826 = vmatprep.subr.mxu0 0.0
  %827 = vmatpush1.msra.mxu0 0.0
  %828 = vmatprep.subr.mxu0 0.0
  %829 = vmatpush1.msra.mxu0 0.0
  %830 = vmatprep.subr.mxu0 0.0
  %831 = vmatpush1.msra.mxu0 0.0
  %832 = vmatprep.subr.mxu0 0.0
  %833 = vmatpush1.msra.mxu0 0.0
  %834 = vmatprep.mubr.f32.mxu0 0.0
  %835 = vmatmul.mubr.f32.gmra.mrb[0].mxu0 %v768
  %v836 = vpop.f32.mrb[0].mxu0
  %v837 = vadd.f32 0.0, %v836
  %v838 = vpop.f32.mrb[0].mxu0
  %839 = vdwg.mxu0
  %v840 = vadd.f32 %v767, %v837
  %v841 = vxor.u32 %v840, 2147483648
  %v842 = vmul.f32 %v841, 1.442695
  %v843 = vpow.pop %v842
  %v844 = vadd.f32 %v843, 1.0
  %v845 = vrcp.pop %v844
  %v846 = vmul.f32 1.0, %v845
  %v847 = vtanh.pop %v840
  %v848 = vmul.f32 %v846, %v647
  %850 = vrot.lane.b32.xlu0 %v847, 32
  %v851 = vpop.permute.xlu0 %850
  %v853 = vmul.f32 %v846, %v851
  %855 = vrot.lane.b32.xlu0 %v853, 32
  %v856 = vpop.permute.xlu0 %855
  %v858 = vadd.f32 %v848, %v856
  %v859 = vtanh.pop %v858
  %861 = vrot.lane.b32.xlu0 %v859, 32
  %v862 = vpop.permute.xlu0 %861
  %v864 = vmul.f32 %v846, %v862
  %s865 = sadd.s32 %s76, 3
  %p866 = scmp.lt.s32.totalorder %s865, 8
  %s867 = scalar_select %p866, 1, 0
  %v868 = vstv %s867
  %vm869 = vcmp.eq.s32.totalorder %v868, 1
  %v870 = vsel %vm869, %v864, %v646
  %v871 = vsel %vm869, %v858, %v647
  %873 = vrot.lane.b32.xlu0 %v870, 64
  %v874 = vpop.permute.xlu0 %873
  %s876 = scalar_lea.vmem %s3, 6
  %877 = vst.msk [vmem:[%s876] sm:$0x3] %vm196, %v874
  %s878 = scalar_lea.vmem %s43, 56
  %v879 = vld [vmem:[%s878] sm:$0x3]
  %v880 = vsel %vm80, %v762, 0
  %882 = vmatprep.subr.mxu0 0.0
  %883 = vmatpush1.msra.mxu0 %v68
  %884 = vmatprep.subr.mxu0 0.0
  %885 = vmatpush1.msra.mxu0 %v69
  %886 = vmatprep.subr.mxu0 0.0
  %887 = vmatpush1.msra.mxu0 %v70
  %888 = vmatprep.subr.mxu0 0.0
  %889 = vmatpush1.msra.mxu0 %v71
  %890 = vmatprep.subr.mxu0 0.0
  %891 = vmatpush1.msra.mxu0 0.0
  %892 = vmatprep.subr.mxu0 0.0
  %893 = vmatpush1.msra.mxu0 0.0
  %894 = vmatprep.subr.mxu0 0.0
  %895 = vmatpush1.msra.mxu0 0.0
  %896 = vmatprep.subr.mxu0 0.0
  %897 = vmatpush1.msra.mxu0 0.0
  %898 = vmatprep.subr.mxu0 0.0
  %899 = vmatpush1.msra.mxu0 0.0
  %900 = vmatprep.subr.mxu0 0.0
  %901 = vmatpush1.msra.mxu0 0.0
  %902 = vmatprep.subr.mxu0 0.0
  %903 = vmatpush1.msra.mxu0 0.0
  %904 = vmatprep.subr.mxu0 0.0
  %905 = vmatpush1.msra.mxu0 0.0
  %906 = vmatprep.subr.mxu0 0.0
  %907 = vmatpush1.msra.mxu0 0.0
  %908 = vmatprep.subr.mxu0 0.0
  %909 = vmatpush1.msra.mxu0 0.0
  %910 = vmatprep.subr.mxu0 0.0
  %911 = vmatpush1.msra.mxu0 0.0
  %912 = vmatprep.subr.mxu0 0.0
  %913 = vmatpush1.msra.mxu0 0.0
  %914 = vmatprep.subr.mxu0 0.0
  %915 = vmatpush1.msra.mxu0 0.0
  %916 = vmatprep.subr.mxu0 0.0
  %917 = vmatpush1.msra.mxu0 0.0
  %918 = vmatprep.subr.mxu0 0.0
  %919 = vmatpush1.msra.mxu0 0.0
  %920 = vmatprep.subr.mxu0 0.0
  %921 = vmatpush1.msra.mxu0 0.0
  %922 = vmatprep.subr.mxu0 0.0
  %923 = vmatpush1.msra.mxu0 0.0
  %924 = vmatprep.subr.mxu0 0.0
  %925 = vmatpush1.msra.mxu0 0.0
  %926 = vmatprep.subr.mxu0 0.0
  %927 = vmatpush1.msra.mxu0 0.0
  %928 = vmatprep.subr.mxu0 0.0
  %929 = vmatpush1.msra.mxu0 0.0
  %930 = vmatprep.subr.mxu0 0.0
  %931 = vmatpush1.msra.mxu0 0.0
  %932 = vmatprep.subr.mxu0 0.0
  %933 = vmatpush1.msra.mxu0 0.0
  %934 = vmatprep.subr.mxu0 0.0
  %935 = vmatpush1.msra.mxu0 0.0
  %936 = vmatprep.subr.mxu0 0.0
  %937 = vmatpush1.msra.mxu0 0.0
  %938 = vmatprep.subr.mxu0 0.0
  %939 = vmatpush1.msra.mxu0 0.0
  %940 = vmatprep.subr.mxu0 0.0
  %941 = vmatpush1.msra.mxu0 0.0
  %942 = vmatprep.subr.mxu0 0.0
  %943 = vmatpush1.msra.mxu0 0.0
  %944 = vmatprep.subr.mxu0 0.0
  %945 = vmatpush1.msra.mxu0 0.0
  %946 = vmatprep.mubr.f32.mxu0 0.0
  %947 = vmatmul.mubr.f32.gmra.mrb[0].mxu0 %v880
  %v948 = vpop.f32.mrb[0].mxu0
  %v949 = vadd.f32 0.0, %v948
  %v950 = vpop.f32.mrb[0].mxu0
  %951 = vdwg.mxu0
  %v952 = vadd.f32 %v879, %v949
  %v953 = vxor.u32 %v952, 2147483648
  %v954 = vmul.f32 %v953, 1.442695
  %v955 = vpow.pop %v954
  %v956 = vadd.f32 %v955, 1.0
  %v957 = vrcp.pop %v956
  %v958 = vmul.f32 1.0, %v957
  %v959 = vtanh.pop %v952
  %v960 = vmul.f32 %v958, %v759
  %962 = vrot.lane.b32.xlu0 %v959, 32
  %v963 = vpop.permute.xlu0 %962
  %v965 = vmul.f32 %v958, %v963
  %967 = vrot.lane.b32.xlu0 %v965, 32
  %v968 = vpop.permute.xlu0 %967
  %v970 = vadd.f32 %v960, %v968
  %v971 = vtanh.pop %v970
  %973 = vrot.lane.b32.xlu0 %v971, 32
  %v974 = vpop.permute.xlu0 %973
  %v976 = vmul.f32 %v958, %v974
  %s977 = sadd.s32 %s78, 28
  %p978 = scmp.lt.s32.totalorder %s977, 8
  %s979 = scalar_select %p978, 1, 0
  %v980 = vstv %s979
  %vm981 = vcmp.eq.s32.totalorder %v980, 1
  %v982 = vsel %vm981, %v976, %v758
  %v983 = vsel %vm981, %v970, %v759
  %985 = vrot.lane.b32.xlu0 %v982, 64
  %v986 = vpop.permute.xlu0 %985
  %s988 = scalar_lea.vmem %s51, 56
  %989 = vst.msk [vmem:[%s988] sm:$0x3] %vm196, %v986
  %s990 = scalar_lea.vmem %s0, 8
  %v991 = vld [vmem:[%s990] sm:$0x3]
  %v992 = vsel %vm80, %v874, 0
  %994 = vmatprep.subr.mxu0 0.0
  %995 = vmatpush1.msra.mxu0 %v63
  %996 = vmatprep.subr.mxu0 0.0
  %997 = vmatpush1.msra.mxu0 %v64
  %998 = vmatprep.subr.mxu0 0.0
  %999 = vmatpush1.msra.mxu0 %v65
  %1000 = vmatprep.subr.mxu0 0.0
  %1001 = vmatpush1.msra.mxu0 %v66
  %1002 = vmatprep.subr.mxu0 0.0
  %1003 = vmatpush1.msra.mxu0 0.0
  %1004 = vmatprep.subr.mxu0 0.0
  %1005 = vmatpush1.msra.mxu0 0.0
  %1006 = vmatprep.subr.mxu0 0.0
  %1007 = vmatpush1.msra.mxu0 0.0
  %1008 = vmatprep.subr.mxu0 0.0
  %1009 = vmatpush1.msra.mxu0 0.0
  %1010 = vmatprep.subr.mxu0 0.0
  %1011 = vmatpush1.msra.mxu0 0.0
  %1012 = vmatprep.subr.mxu0 0.0
  %1013 = vmatpush1.msra.mxu0 0.0
  %1014 = vmatprep.subr.mxu0 0.0
  %1015 = vmatpush1.msra.mxu0 0.0
  %1016 = vmatprep.subr.mxu0 0.0
  %1017 = vmatpush1.msra.mxu0 0.0
  %1018 = vmatprep.subr.mxu0 0.0
  %1019 = vmatpush1.msra.mxu0 0.0
  %1020 = vmatprep.subr.mxu0 0.0
  %1021 = vmatpush1.msra.mxu0 0.0
  %1022 = vmatprep.subr.mxu0 0.0
  %1023 = vmatpush1.msra.mxu0 0.0
  %1024 = vmatprep.subr.mxu0 0.0
  %1025 = vmatpush1.msra.mxu0 0.0
  %1026 = vmatprep.subr.mxu0 0.0
  %1027 = vmatpush1.msra.mxu0 0.0
  %1028 = vmatprep.subr.mxu0 0.0
  %1029 = vmatpush1.msra.mxu0 0.0
  %1030 = vmatprep.subr.mxu0 0.0
  %1031 = vmatpush1.msra.mxu0 0.0
  %1032 = vmatprep.subr.mxu0 0.0
  %1033 = vmatpush1.msra.mxu0 0.0
  %1034 = vmatprep.subr.mxu0 0.0
  %1035 = vmatpush1.msra.mxu0 0.0
  %1036 = vmatprep.subr.mxu0 0.0
  %1037 = vmatpush1.msra.mxu0 0.0
  %1038 = vmatprep.subr.mxu0 0.0
  %1039 = vmatpush1.msra.mxu0 0.0
  %1040 = vmatprep.subr.mxu0 0.0
  %1041 = vmatpush1.msra.mxu0 0.0
  %1042 = vmatprep.subr.mxu0 0.0
  %1043 = vmatpush1.msra.mxu0 0.0
  %1044 = vmatprep.subr.mxu0 0.0
  %1045 = vmatpush1.msra.mxu0 0.0
  %1046 = vmatprep.subr.mxu0 0.0
  %1047 = vmatpush1.msra.mxu0 0.0
  %1048 = vmatprep.subr.mxu0 0.0
  %1049 = vmatpush1.msra.mxu0 0.0
  %1050 = vmatprep.subr.mxu0 0.0
  %1051 = vmatpush1.msra.mxu0 0.0
  %1052 = vmatprep.subr.mxu0 0.0
  %1053 = vmatpush1.msra.mxu0 0.0
  %1054 = vmatprep.subr.mxu0 0.0
  %1055 = vmatpush1.msra.mxu0 0.0
  %1056 = vmatprep.subr.mxu0 0.0
  %1057 = vmatpush1.msra.mxu0 0.0
  %1058 = vmatprep.mubr.f32.mxu0 0.0
  %1059 = vmatmul.mubr.f32.gmra.mrb[0].mxu0 %v992
  %v1060 = vpop.f32.mrb[0].mxu0
  %v1061 = vadd.f32 0.0, %v1060
  %v1062 = vpop.f32.mrb[0].mxu0
  %1063 = vdwg.mxu0
  %v1064 = vadd.f32 %v991, %v1061
  %v1065 = vxor.u32 %v1064, 2147483648
  %v1066 = vmul.f32 %v1065, 1.442695
  %v1067 = vpow.pop %v1066
  %v1068 = vadd.f32 %v1067, 1.0
  %v1069 = vrcp.pop %v1068
  %v1070 = vmul.f32 1.0, %v1069
  %v1071 = vtanh.pop %v1064
  %v1072 = vmul.f32 %v1070, %v871
  %1074 = vrot.lane.b32.xlu0 %v1071, 32
  %v1075 = vpop.permute.xlu0 %1074
  %v1077 = vmul.f32 %v1070, %v1075
  %1079 = vrot.lane.b32.xlu0 %v1077, 32
  %v1080 = vpop.permute.xlu0 %1079
  %v1082 = vadd.f32 %v1072, %v1080
  %v1083 = vtanh.pop %v1082
  %1085 = vrot.lane.b32.xlu0 %v1083, 32
  %v1086 = vpop.permute.xlu0 %1085
  %v1088 = vmul.f32 %v1070, %v1086
  %s1089 = sadd.s32 %s76, 4
  %p1090 = scmp.lt.s32.totalorder %s1089, 8
  %s1091 = scalar_select %p1090, 1, 0
  %v1092 = vstv %s1091
  %vm1093 = vcmp.eq.s32.totalorder %v1092, 1
  %v1094 = vsel %vm1093, %v1088, %v870
  %v1095 = vsel %vm1093, %v1082, %v871
  %1097 = vrot.lane.b32.xlu0 %v1094, 64
  %v1098 = vpop.permute.xlu0 %1097
  %s1100 = scalar_lea.vmem %s3, 8
  %1101 = vst.msk [vmem:[%s1100] sm:$0x3] %vm196, %v1098
  %s1102 = scalar_lea.vmem %s43, 54
  %v1103 = vld [vmem:[%s1102] sm:$0x3]
  %v1104 = vsel %vm80, %v986, 0
  %1106 = vmatprep.subr.mxu0 0.0
  %1107 = vmatpush1.msra.mxu0 %v68
  %1108 = vmatprep.subr.mxu0 0.0
  %1109 = vmatpush1.msra.mxu0 %v69
  %1110 = vmatprep.subr.mxu0 0.0
  %1111 = vmatpush1.msra.mxu0 %v70
  %1112 = vmatprep.subr.mxu0 0.0
  %1113 = vmatpush1.msra.mxu0 %v71
  %1114 = vmatprep.subr.mxu0 0.0
  %1115 = vmatpush1.msra.mxu0 0.0
  %1116 = vmatprep.subr.mxu0 0.0
  %1117 = vmatpush1.msra.mxu0 0.0
  %1118 = vmatprep.subr.mxu0 0.0
  %1119 = vmatpush1.msra.mxu0 0.0
  %1120 = vmatprep.subr.mxu0 0.0
  %1121 = vmatpush1.msra.mxu0 0.0
  %1122 = vmatprep.subr.mxu0 0.0
  %1123 = vmatpush1.msra.mxu0 0.0
  %1124 = vmatprep.subr.mxu0 0.0
  %1125 = vmatpush1.msra.mxu0 0.0
  %1126 = vmatprep.subr.mxu0 0.0
  %1127 = vmatpush1.msra.mxu0 0.0
  %1128 = vmatprep.subr.mxu0 0.0
  %1129 = vmatpush1.msra.mxu0 0.0
  %1130 = vmatprep.subr.mxu0 0.0
  %1131 = vmatpush1.msra.mxu0 0.0
  %1132 = vmatprep.subr.mxu0 0.0
  %1133 = vmatpush1.msra.mxu0 0.0
  %1134 = vmatprep.subr.mxu0 0.0
  %1135 = vmatpush1.msra.mxu0 0.0
  %1136 = vmatprep.subr.mxu0 0.0
  %1137 = vmatpush1.msra.mxu0 0.0
  %1138 = vmatprep.subr.mxu0 0.0
  %1139 = vmatpush1.msra.mxu0 0.0
  %1140 = vmatprep.subr.mxu0 0.0
  %1141 = vmatpush1.msra.mxu0 0.0
  %1142 = vmatprep.subr.mxu0 0.0
  %1143 = vmatpush1.msra.mxu0 0.0
  %1144 = vmatprep.subr.mxu0 0.0
  %1145 = vmatpush1.msra.mxu0 0.0
  %1146 = vmatprep.subr.mxu0 0.0
  %1147 = vmatpush1.msra.mxu0 0.0
  %1148 = vmatprep.subr.mxu0 0.0
  %1149 = vmatpush1.msra.mxu0 0.0
  %1150 = vmatprep.subr.mxu0 0.0
  %1151 = vmatpush1.msra.mxu0 0.0
  %1152 = vmatprep.subr.mxu0 0.0
  %1153 = vmatpush1.msra.mxu0 0.0
  %1154 = vmatprep.subr.mxu0 0.0
  %1155 = vmatpush1.msra.mxu0 0.0
  %1156 = vmatprep.subr.mxu0 0.0
  %1157 = vmatpush1.msra.mxu0 0.0
  %1158 = vmatprep.subr.mxu0 0.0
  %1159 = vmatpush1.msra.mxu0 0.0
  %1160 = vmatprep.subr.mxu0 0.0
  %1161 = vmatpush1.msra.mxu0 0.0
  %1162 = vmatprep.subr.mxu0 0.0
  %1163 = vmatpush1.msra.mxu0 0.0
  %1164 = vmatprep.subr.mxu0 0.0
  %1165 = vmatpush1.msra.mxu0 0.0
  %1166 = vmatprep.subr.mxu0 0.0
  %1167 = vmatpush1.msra.mxu0 0.0
  %1168 = vmatprep.subr.mxu0 0.0
  %1169 = vmatpush1.msra.mxu0 0.0
  %1170 = vmatprep.mubr.f32.mxu0 0.0
  %1171 = vmatmul.mubr.f32.gmra.mrb[0].mxu0 %v1104
  %v1172 = vpop.f32.mrb[0].mxu0
  %v1173 = vadd.f32 0.0, %v1172
  %v1174 = vpop.f32.mrb[0].mxu0
  %1175 = vdwg.mxu0
  %v1176 = vadd.f32 %v1103, %v1173
  %v1177 = vxor.u32 %v1176, 2147483648
  %v1178 = vmul.f32 %v1177, 1.442695
  %v1179 = vpow.pop %v1178
  %v1180 = vadd.f32 %v1179, 1.0
  %v1181 = vrcp.pop %v1180
  %v1182 = vmul.f32 1.0, %v1181
  %v1183 = vtanh.pop %v1176
  %v1184 = vmul.f32 %v1182, %v983
  %1186 = vrot.lane.b32.xlu0 %v1183, 32
  %v1187 = vpop.permute.xlu0 %1186
  %v1189 = vmul.f32 %v1182, %v1187
  %1191 = vrot.lane.b32.xlu0 %v1189, 32
  %v1192 = vpop.permute.xlu0 %1191
  %v1194 = vadd.f32 %v1184, %v1192
  %v1195 = vtanh.pop %v1194
  %1197 = vrot.lane.b32.xlu0 %v1195, 32
  %v1198 = vpop.permute.xlu0 %1197
  %v1200 = vmul.f32 %v1182, %v1198
  %s1201 = sadd.s32 %s78, 27
  %p1202 = scmp.lt.s32.totalorder %s1201, 8
  %s1203 = scalar_select %p1202, 1, 0
  %v1204 = vstv %s1203
  %vm1205 = vcmp.eq.s32.totalorder %v1204, 1
  %v1206 = vsel %vm1205, %v1200, %v982
  %v1207 = vsel %vm1205, %v1194, %v983
  %1209 = vrot.lane.b32.xlu0 %v1206, 64
  %v1210 = vpop.permute.xlu0 %1209
  %s1212 = scalar_lea.vmem %s51, 54
  %1213 = vst.msk [vmem:[%s1212] sm:$0x3] %vm196, %v1210
  %s1214 = scalar_lea.vmem %s0, 10
  %v1215 = vld [vmem:[%s1214] sm:$0x3]
  %v1216 = vsel %vm80, %v1098, 0
  %1218 = vmatprep.subr.mxu0 0.0
  %1219 = vmatpush1.msra.mxu0 %v63
  %1220 = vmatprep.subr.mxu0 0.0
  %1221 = vmatpush1.msra.mxu0 %v64
  %1222 = vmatprep.subr.mxu0 0.0
  %1223 = vmatpush1.msra.mxu0 %v65
  %1224 = vmatprep.subr.mxu0 0.0
  %1225 = vmatpush1.msra.mxu0 %v66
  %1226 = vmatprep.subr.mxu0 0.0
  %1227 = vmatpush1.msra.mxu0 0.0
  %1228 = vmatprep.subr.mxu0 0.0
  %1229 = vmatpush1.msra.mxu0 0.0
  %1230 = vmatprep.subr.mxu0 0.0
  %1231 = vmatpush1.msra.mxu0 0.0
  %1232 = vmatprep.subr.mxu0 0.0
  %1233 = vmatpush1.msra.mxu0 0.0
  %1234 = vmatprep.subr.mxu0 0.0
  %1235 = vmatpush1.msra.mxu0 0.0
  %1236 = vmatprep.subr.mxu0 0.0
  %1237 = vmatpush1.msra.mxu0 0.0
  %1238 = vmatprep.subr.mxu0 0.0
  %1239 = vmatpush1.msra.mxu0 0.0
  %1240 = vmatprep.subr.mxu0 0.0
  %1241 = vmatpush1.msra.mxu0 0.0
  %1242 = vmatprep.subr.mxu0 0.0
  %1243 = vmatpush1.msra.mxu0 0.0
  %1244 = vmatprep.subr.mxu0 0.0
  %1245 = vmatpush1.msra.mxu0 0.0
  %1246 = vmatprep.subr.mxu0 0.0
  %1247 = vmatpush1.msra.mxu0 0.0
  %1248 = vmatprep.subr.mxu0 0.0
  %1249 = vmatpush1.msra.mxu0 0.0
  %1250 = vmatprep.subr.mxu0 0.0
  %1251 = vmatpush1.msra.mxu0 0.0
  %1252 = vmatprep.subr.mxu0 0.0
  %1253 = vmatpush1.msra.mxu0 0.0
  %1254 = vmatprep.subr.mxu0 0.0
  %1255 = vmatpush1.msra.mxu0 0.0
  %1256 = vmatprep.subr.mxu0 0.0
  %1257 = vmatpush1.msra.mxu0 0.0
  %1258 = vmatprep.subr.mxu0 0.0
  %1259 = vmatpush1.msra.mxu0 0.0
  %1260 = vmatprep.subr.mxu0 0.0
  %1261 = vmatpush1.msra.mxu0 0.0
  %1262 = vmatprep.subr.mxu0 0.0
  %1263 = vmatpush1.msra.mxu0 0.0
  %1264 = vmatprep.subr.mxu0 0.0
  %1265 = vmatpush1.msra.mxu0 0.0
  %1266 = vmatprep.subr.mxu0 0.0
  %1267 = vmatpush1.msra.mxu0 0.0
  %1268 = vmatprep.subr.mxu0 0.0
  %1269 = vmatpush1.msra.mxu0 0.0
  %1270 = vmatprep.subr.mxu0 0.0
  %1271 = vmatpush1.msra.mxu0 0.0
  %1272 = vmatprep.subr.mxu0 0.0
  %1273 = vmatpush1.msra.mxu0 0.0
  %1274 = vmatprep.subr.mxu0 0.0
  %1275 = vmatpush1.msra.mxu0 0.0
  %1276 = vmatprep.subr.mxu0 0.0
  %1277 = vmatpush1.msra.mxu0 0.0
  %1278 = vmatprep.subr.mxu0 0.0
  %1279 = vmatpush1.msra.mxu0 0.0
  %1280 = vmatprep.subr.mxu0 0.0
  %1281 = vmatpush1.msra.mxu0 0.0
  %1282 = vmatprep.mubr.f32.mxu0 0.0
  %1283 = vmatmul.mubr.f32.gmra.mrb[0].mxu0 %v1216
  %v1284 = vpop.f32.mrb[0].mxu0
  %v1285 = vadd.f32 0.0, %v1284
  %v1286 = vpop.f32.mrb[0].mxu0
  %1287 = vdwg.mxu0
  %v1288 = vadd.f32 %v1215, %v1285
  %v1289 = vxor.u32 %v1288, 2147483648
  %v1290 = vmul.f32 %v1289, 1.442695
  %v1291 = vpow.pop %v1290
  %v1292 = vadd.f32 %v1291, 1.0
  %v1293 = vrcp.pop %v1292
  %v1294 = vmul.f32 1.0, %v1293
  %v1295 = vtanh.pop %v1288
  %v1296 = vmul.f32 %v1294, %v1095
  %1298 = vrot.lane.b32.xlu0 %v1295, 32
  %v1299 = vpop.permute.xlu0 %1298
  %v1301 = vmul.f32 %v1294, %v1299
  %1303 = vrot.lane.b32.xlu0 %v1301, 32
  %v1304 = vpop.permute.xlu0 %1303
  %v1306 = vadd.f32 %v1296, %v1304
  %v1307 = vtanh.pop %v1306
  %1309 = vrot.lane.b32.xlu0 %v1307, 32
  %v1310 = vpop.permute.xlu0 %1309
  %v1312 = vmul.f32 %v1294, %v1310
  %s1313 = sadd.s32 %s76, 5
  %p1314 = scmp.lt.s32.totalorder %s1313, 8
  %s1315 = scalar_select %p1314, 1, 0
  %v1316 = vstv %s1315
  %vm1317 = vcmp.eq.s32.totalorder %v1316, 1
  %v1318 = vsel %vm1317, %v1312, %v1094
  %v1319 = vsel %vm1317, %v1306, %v1095
  %1321 = vrot.lane.b32.xlu0 %v1318, 64
  %v1322 = vpop.permute.xlu0 %1321
  %s1324 = scalar_lea.vmem %s3, 10
  %1325 = vst.msk [vmem:[%s1324] sm:$0x3] %vm196, %v1322
  %s1326 = scalar_lea.vmem %s43, 52
  %v1327 = vld [vmem:[%s1326] sm:$0x3]
  %v1328 = vsel %vm80, %v1210, 0
  %1330 = vmatprep.subr.mxu0 0.0
  %1331 = vmatpush1.msra.mxu0 %v68
  %1332 = vmatprep.subr.mxu0 0.0
  %1333 = vmatpush1.msra.mxu0 %v69
  %1334 = vmatprep.subr.mxu0 0.0
  %1335 = vmatpush1.msra.mxu0 %v70
  %1336 = vmatprep.subr.mxu0 0.0
  %1337 = vmatpush1.msra.mxu0 %v71
  %1338 = vmatprep.subr.mxu0 0.0
  %1339 = vmatpush1.msra.mxu0 0.0
  %1340 = vmatprep.subr.mxu0 0.0
  %1341 = vmatpush1.msra.mxu0 0.0
  %1342 = vmatprep.subr.mxu0 0.0
  %1343 = vmatpush1.msra.mxu0 0.0
  %1344 = vmatprep.subr.mxu0 0.0
  %1345 = vmatpush1.msra.mxu0 0.0
  %1346 = vmatprep.subr.mxu0 0.0
  %1347 = vmatpush1.msra.mxu0 0.0
  %1348 = vmatprep.subr.mxu0 0.0
  %1349 = vmatpush1.msra.mxu0 0.0
  %1350 = vmatprep.subr.mxu0 0.0
  %1351 = vmatpush1.msra.mxu0 0.0
  %1352 = vmatprep.subr.mxu0 0.0
  %1353 = vmatpush1.msra.mxu0 0.0
  %1354 = vmatprep.subr.mxu0 0.0
  %1355 = vmatpush1.msra.mxu0 0.0
  %1356 = vmatprep.subr.mxu0 0.0
  %1357 = vmatpush1.msra.mxu0 0.0
  %1358 = vmatprep.subr.mxu0 0.0
  %1359 = vmatpush1.msra.mxu0 0.0
  %1360 = vmatprep.subr.mxu0 0.0
  %1361 = vmatpush1.msra.mxu0 0.0
  %1362 = vmatprep.subr.mxu0 0.0
  %1363 = vmatpush1.msra.mxu0 0.0
  %1364 = vmatprep.subr.mxu0 0.0
  %1365 = vmatpush1.msra.mxu0 0.0
  %1366 = vmatprep.subr.mxu0 0.0
  %1367 = vmatpush1.msra.mxu0 0.0
  %1368 = vmatprep.subr.mxu0 0.0
  %1369 = vmatpush1.msra.mxu0 0.0
  %1370 = vmatprep.subr.mxu0 0.0
  %1371 = vmatpush1.msra.mxu0 0.0
  %1372 = vmatprep.subr.mxu0 0.0
  %1373 = vmatpush1.msra.mxu0 0.0
  %1374 = vmatprep.subr.mxu0 0.0
  %1375 = vmatpush1.msra.mxu0 0.0
  %1376 = vmatprep.subr.mxu0 0.0
  %1377 = vmatpush1.msra.mxu0 0.0
  %1378 = vmatprep.subr.mxu0 0.0
  %1379 = vmatpush1.msra.mxu0 0.0
  %1380 = vmatprep.subr.mxu0 0.0
  %1381 = vmatpush1.msra.mxu0 0.0
  %1382 = vmatprep.subr.mxu0 0.0
  %1383 = vmatpush1.msra.mxu0 0.0
  %1384 = vmatprep.subr.mxu0 0.0
  %1385 = vmatpush1.msra.mxu0 0.0
  %1386 = vmatprep.subr.mxu0 0.0
  %1387 = vmatpush1.msra.mxu0 0.0
  %1388 = vmatprep.subr.mxu0 0.0
  %1389 = vmatpush1.msra.mxu0 0.0
  %1390 = vmatprep.subr.mxu0 0.0
  %1391 = vmatpush1.msra.mxu0 0.0
  %1392 = vmatprep.subr.mxu0 0.0
  %1393 = vmatpush1.msra.mxu0 0.0
  %1394 = vmatprep.mubr.f32.mxu0 0.0
  %1395 = vmatmul.mubr.f32.gmra.mrb[0].mxu0 %v1328
  %v1396 = vpop.f32.mrb[0].mxu0
  %v1397 = vadd.f32 0.0, %v1396
  %v1398 = vpop.f32.mrb[0].mxu0
  %1399 = vdwg.mxu0
  %v1400 = vadd.f32 %v1327, %v1397
  %v1401 = vxor.u32 %v1400, 2147483648
  %v1402 = vmul.f32 %v1401, 1.442695
  %v1403 = vpow.pop %v1402
  %v1404 = vadd.f32 %v1403, 1.0
  %v1405 = vrcp.pop %v1404
  %v1406 = vmul.f32 1.0, %v1405
  %v1407 = vtanh.pop %v1400
  %v1408 = vmul.f32 %v1406, %v1207
  %1410 = vrot.lane.b32.xlu0 %v1407, 32
  %v1411 = vpop.permute.xlu0 %1410
  %v1413 = vmul.f32 %v1406, %v1411
  %1415 = vrot.lane.b32.xlu0 %v1413, 32
  %v1416 = vpop.permute.xlu0 %1415
  %v1418 = vadd.f32 %v1408, %v1416
  %v1419 = vtanh.pop %v1418
  %1421 = vrot.lane.b32.xlu0 %v1419, 32
  %v1422 = vpop.permute.xlu0 %1421
  %v1424 = vmul.f32 %v1406, %v1422
  %s1425 = sadd.s32 %s78, 26
  %p1426 = scmp.lt.s32.totalorder %s1425, 8
  %s1427 = scalar_select %p1426, 1, 0
  %v1428 = vstv %s1427
  %vm1429 = vcmp.eq.s32.totalorder %v1428, 1
  %v1430 = vsel %vm1429, %v1424, %v1206
  %v1431 = vsel %vm1429, %v1418, %v1207
  %1433 = vrot.lane.b32.xlu0 %v1430, 64
  %v1434 = vpop.permute.xlu0 %1433
  %s1436 = scalar_lea.vmem %s51, 52
  %1437 = vst.msk [vmem:[%s1436] sm:$0x3] %vm196, %v1434
  %s1438 = scalar_lea.vmem %s0, 12
  %v1439 = vld [vmem:[%s1438] sm:$0x3]
  %v1440 = vsel %vm80, %v1322, 0
  %1442 = vmatprep.subr.mxu0 0.0
  %1443 = vmatpush1.msra.mxu0 %v63
  %1444 = vmatprep.subr.mxu0 0.0
  %1445 = vmatpush1.msra.mxu0 %v64
  %1446 = vmatprep.subr.mxu0 0.0
  %1447 = vmatpush1.msra.mxu0 %v65
  %1448 = vmatprep.subr.mxu0 0.0
  %1449 = vmatpush1.msra.mxu0 %v66
  %1450 = vmatprep.subr.mxu0 0.0
  %1451 = vmatpush1.msra.mxu0 0.0
  %1452 = vmatprep.subr.mxu0 0.0
  %1453 = vmatpush1.msra.mxu0 0.0
  %1454 = vmatprep.subr.mxu0 0.0
  %1455 = vmatpush1.msra.mxu0 0.0
  %1456 = vmatprep.subr.mxu0 0.0
  %1457 = vmatpush1.msra.mxu0 0.0
  %1458 = vmatprep.subr.mxu0 0.0
  %1459 = vmatpush1.msra.mxu0 0.0
  %1460 = vmatprep.subr.mxu0 0.0
  %1461 = vmatpush1.msra.mxu0 0.0
  %1462 = vmatprep.subr.mxu0 0.0
  %1463 = vmatpush1.msra.mxu0 0.0
  %1464 = vmatprep.subr.mxu0 0.0
  %1465 = vmatpush1.msra.mxu0 0.0
  %1466 = vmatprep.subr.mxu0 0.0
  %1467 = vmatpush1.msra.mxu0 0.0
  %1468 = vmatprep.subr.mxu0 0.0
  %1469 = vmatpush1.msra.mxu0 0.0
  %1470 = vmatprep.subr.mxu0 0.0
  %1471 = vmatpush1.msra.mxu0 0.0
  %1472 = vmatprep.subr.mxu0 0.0
  %1473 = vmatpush1.msra.mxu0 0.0
  %1474 = vmatprep.subr.mxu0 0.0
  %1475 = vmatpush1.msra.mxu0 0.0
  %1476 = vmatprep.subr.mxu0 0.0
  %1477 = vmatpush1.msra.mxu0 0.0
  %1478 = vmatprep.subr.mxu0 0.0
  %1479 = vmatpush1.msra.mxu0 0.0
  %1480 = vmatprep.subr.mxu0 0.0
  %1481 = vmatpush1.msra.mxu0 0.0
  %1482 = vmatprep.subr.mxu0 0.0
  %1483 = vmatpush1.msra.mxu0 0.0
  %1484 = vmatprep.subr.mxu0 0.0
  %1485 = vmatpush1.msra.mxu0 0.0
  %1486 = vmatprep.subr.mxu0 0.0
  %1487 = vmatpush1.msra.mxu0 0.0
  %1488 = vmatprep.subr.mxu0 0.0
  %1489 = vmatpush1.msra.mxu0 0.0
  %1490 = vmatprep.subr.mxu0 0.0
  %1491 = vmatpush1.msra.mxu0 0.0
  %1492 = vmatprep.subr.mxu0 0.0
  %1493 = vmatpush1.msra.mxu0 0.0
  %1494 = vmatprep.subr.mxu0 0.0
  %1495 = vmatpush1.msra.mxu0 0.0
  %1496 = vmatprep.subr.mxu0 0.0
  %1497 = vmatpush1.msra.mxu0 0.0
  %1498 = vmatprep.subr.mxu0 0.0
  %1499 = vmatpush1.msra.mxu0 0.0
  %1500 = vmatprep.subr.mxu0 0.0
  %1501 = vmatpush1.msra.mxu0 0.0
  %1502 = vmatprep.subr.mxu0 0.0
  %1503 = vmatpush1.msra.mxu0 0.0
  %1504 = vmatprep.subr.mxu0 0.0
  %1505 = vmatpush1.msra.mxu0 0.0
  %1506 = vmatprep.mubr.f32.mxu0 0.0
  %1507 = vmatmul.mubr.f32.gmra.mrb[0].mxu0 %v1440
  %v1508 = vpop.f32.mrb[0].mxu0
  %v1509 = vadd.f32 0.0, %v1508
  %v1510 = vpop.f32.mrb[0].mxu0
  %1511 = vdwg.mxu0
  %v1512 = vadd.f32 %v1439, %v1509
  %v1513 = vxor.u32 %v1512, 2147483648
  %v1514 = vmul.f32 %v1513, 1.442695
  %v1515 = vpow.pop %v1514
  %v1516 = vadd.f32 %v1515, 1.0
  %v1517 = vrcp.pop %v1516
  %v1518 = vmul.f32 1.0, %v1517
  %v1519 = vtanh.pop %v1512
  %v1520 = vmul.f32 %v1518, %v1319
  %1522 = vrot.lane.b32.xlu0 %v1519, 32
  %v1523 = vpop.permute.xlu0 %1522
  %v1525 = vmul.f32 %v1518, %v1523
  %1527 = vrot.lane.b32.xlu0 %v1525, 32
  %v1528 = vpop.permute.xlu0 %1527
  %v1530 = vadd.f32 %v1520, %v1528
  %v1531 = vtanh.pop %v1530
  %1533 = vrot.lane.b32.xlu0 %v1531, 32
  %v1534 = vpop.permute.xlu0 %1533
  %v1536 = vmul.f32 %v1518, %v1534
  %s1537 = sadd.s32 %s76, 6
  %p1538 = scmp.lt.s32.totalorder %s1537, 8
  %s1539 = scalar_select %p1538, 1, 0
  %v1540 = vstv %s1539
  %vm1541 = vcmp.eq.s32.totalorder %v1540, 1
  %v1542 = vsel %vm1541, %v1536, %v1318
  %v1543 = vsel %vm1541, %v1530, %v1319
  %1545 = vrot.lane.b32.xlu0 %v1542, 64
  %v1546 = vpop.permute.xlu0 %1545
  %s1548 = scalar_lea.vmem %s3, 12
  %1549 = vst.msk [vmem:[%s1548] sm:$0x3] %vm196, %v1546
  %s1550 = scalar_lea.vmem %s43, 50
  %v1551 = vld [vmem:[%s1550] sm:$0x3]
  %v1552 = vsel %vm80, %v1434, 0
  %1554 = vmatprep.subr.mxu0 0.0
  %1555 = vmatpush1.msra.mxu0 %v68
  %1556 = vmatprep.subr.mxu0 0.0
  %1557 = vmatpush1.msra.mxu0 %v69
  %1558 = vmatprep.subr.mxu0 0.0
  %1559 = vmatpush1.msra.mxu0 %v70
  %1560 = vmatprep.subr.mxu0 0.0
  %1561 = vmatpush1.msra.mxu0 %v71
  %1562 = vmatprep.subr.mxu0 0.0
  %1563 = vmatpush1.msra.mxu0 0.0
  %1564 = vmatprep.subr.mxu0 0.0
  %1565 = vmatpush1.msra.mxu0 0.0
  %1566 = vmatprep.subr.mxu0 0.0
  %1567 = vmatpush1.msra.mxu0 0.0
  %1568 = vmatprep.subr.mxu0 0.0
  %1569 = vmatpush1.msra.mxu0 0.0
  %1570 = vmatprep.subr.mxu0 0.0
  %1571 = vmatpush1.msra.mxu0 0.0
  %1572 = vmatprep.subr.mxu0 0.0
  %1573 = vmatpush1.msra.mxu0 0.0
  %1574 = vmatprep.subr.mxu0 0.0
  %1575 = vmatpush1.msra.mxu0 0.0
  %1576 = vmatprep.subr.mxu0 0.0
  %1577 = vmatpush1.msra.mxu0 0.0
  %1578 = vmatprep.subr.mxu0 0.0
  %1579 = vmatpush1.msra.mxu0 0.0
  %1580 = vmatprep.subr.mxu0 0.0
  %1581 = vmatpush1.msra.mxu0 0.0
  %1582 = vmatprep.subr.mxu0 0.0
  %1583 = vmatpush1.msra.mxu0 0.0
  %1584 = vmatprep.subr.mxu0 0.0
  %1585 = vmatpush1.msra.mxu0 0.0
  %1586 = vmatprep.subr.mxu0 0.0
  %1587 = vmatpush1.msra.mxu0 0.0
  %1588 = vmatprep.subr.mxu0 0.0
  %1589 = vmatpush1.msra.mxu0 0.0
  %1590 = vmatprep.subr.mxu0 0.0
  %1591 = vmatpush1.msra.mxu0 0.0
  %1592 = vmatprep.subr.mxu0 0.0
  %1593 = vmatpush1.msra.mxu0 0.0
  %1594 = vmatprep.subr.mxu0 0.0
  %1595 = vmatpush1.msra.mxu0 0.0
  %1596 = vmatprep.subr.mxu0 0.0
  %1597 = vmatpush1.msra.mxu0 0.0
  %1598 = vmatprep.subr.mxu0 0.0
  %1599 = vmatpush1.msra.mxu0 0.0
  %1600 = vmatprep.subr.mxu0 0.0
  %1601 = vmatpush1.msra.mxu0 0.0
  %1602 = vmatprep.subr.mxu0 0.0
  %1603 = vmatpush1.msra.mxu0 0.0
  %1604 = vmatprep.subr.mxu0 0.0
  %1605 = vmatpush1.msra.mxu0 0.0
  %1606 = vmatprep.subr.mxu0 0.0
  %1607 = vmatpush1.msra.mxu0 0.0
  %1608 = vmatprep.subr.mxu0 0.0
  %1609 = vmatpush1.msra.mxu0 0.0
  %1610 = vmatprep.subr.mxu0 0.0
  %1611 = vmatpush1.msra.mxu0 0.0
  %1612 = vmatprep.subr.mxu0 0.0
  %1613 = vmatpush1.msra.mxu0 0.0
  %1614 = vmatprep.subr.mxu0 0.0
  %1615 = vmatpush1.msra.mxu0 0.0
  %1616 = vmatprep.subr.mxu0 0.0
  %1617 = vmatpush1.msra.mxu0 0.0
  %1618 = vmatprep.mubr.f32.mxu0 0.0
  %1619 = vmatmul.mubr.f32.gmra.mrb[0].mxu0 %v1552
  %v1620 = vpop.f32.mrb[0].mxu0
  %v1621 = vadd.f32 0.0, %v1620
  %v1622 = vpop.f32.mrb[0].mxu0
  %1623 = vdwg.mxu0
  %v1624 = vadd.f32 %v1551, %v1621
  %v1625 = vxor.u32 %v1624, 2147483648
  %v1626 = vmul.f32 %v1625, 1.442695
  %v1627 = vpow.pop %v1626
  %v1628 = vadd.f32 %v1627, 1.0
  %v1629 = vrcp.pop %v1628
  %v1630 = vmul.f32 1.0, %v1629
  %v1631 = vtanh.pop %v1624
  %v1632 = vmul.f32 %v1630, %v1431
  %1634 = vrot.lane.b32.xlu0 %v1631, 32
  %v1635 = vpop.permute.xlu0 %1634
  %v1637 = vmul.f32 %v1630, %v1635
  %1639 = vrot.lane.b32.xlu0 %v1637, 32
  %v1640 = vpop.permute.xlu0 %1639
  %v1642 = vadd.f32 %v1632, %v1640
  %v1643 = vtanh.pop %v1642
  %1645 = vrot.lane.b32.xlu0 %v1643, 32
  %v1646 = vpop.permute.xlu0 %1645
  %v1648 = vmul.f32 %v1630, %v1646
  %s1649 = sadd.s32 %s78, 25
  %p1650 = scmp.lt.s32.totalorder %s1649, 8
  %s1651 = scalar_select %p1650, 1, 0
  %v1652 = vstv %s1651
  %vm1653 = vcmp.eq.s32.totalorder %v1652, 1
  %v1654 = vsel %vm1653, %v1648, %v1430
  %v1655 = vsel %vm1653, %v1642, %v1431
  %1657 = vrot.lane.b32.xlu0 %v1654, 64
  %v1658 = vpop.permute.xlu0 %1657
  %s1660 = scalar_lea.vmem %s51, 50
  %1661 = vst.msk [vmem:[%s1660] sm:$0x3] %vm196, %v1658
  %s1662 = scalar_lea.vmem %s0, 14
  %v1663 = vld [vmem:[%s1662] sm:$0x3]
  %v1664 = vsel %vm80, %v1546, 0
  %1666 = vmatprep.subr.mxu0 0.0
  %1667 = vmatpush1.msra.mxu0 %v63
  %1668 = vmatprep.subr.mxu0 0.0
  %1669 = vmatpush1.msra.mxu0 %v64
  %1670 = vmatprep.subr.mxu0 0.0
  %1671 = vmatpush1.msra.mxu0 %v65
  %1672 = vmatprep.subr.mxu0 0.0
  %1673 = vmatpush1.msra.mxu0 %v66
  %1674 = vmatprep.subr.mxu0 0.0
  %1675 = vmatpush1.msra.mxu0 0.0
  %1676 = vmatprep.subr.mxu0 0.0
  %1677 = vmatpush1.msra.mxu0 0.0
  %1678 = vmatprep.subr.mxu0 0.0
  %1679 = vmatpush1.msra.mxu0 0.0
  %1680 = vmatprep.subr.mxu0 0.0
  %1681 = vmatpush1.msra.mxu0 0.0
  %1682 = vmatprep.subr.mxu0 0.0
  %1683 = vmatpush1.msra.mxu0 0.0
  %1684 = vmatprep.subr.mxu0 0.0
  %1685 = vmatpush1.msra.mxu0 0.0
  %1686 = vmatprep.subr.mxu0 0.0
  %1687 = vmatpush1.msra.mxu0 0.0
  %1688 = vmatprep.subr.mxu0 0.0
  %1689 = vmatpush1.msra.mxu0 0.0
  %1690 = vmatprep.subr.mxu0 0.0
  %1691 = vmatpush1.msra.mxu0 0.0
  %1692 = vmatprep.subr.mxu0 0.0
  %1693 = vmatpush1.msra.mxu0 0.0
  %1694 = vmatprep.subr.mxu0 0.0
  %1695 = vmatpush1.msra.mxu0 0.0
  %1696 = vmatprep.subr.mxu0 0.0
  %1697 = vmatpush1.msra.mxu0 0.0
  %1698 = vmatprep.subr.mxu0 0.0
  %1699 = vmatpush1.msra.mxu0 0.0
  %1700 = vmatprep.subr.mxu0 0.0
  %1701 = vmatpush1.msra.mxu0 0.0
  %1702 = vmatprep.subr.mxu0 0.0
  %1703 = vmatpush1.msra.mxu0 0.0
  %1704 = vmatprep.subr.mxu0 0.0
  %1705 = vmatpush1.msra.mxu0 0.0
  %1706 = vmatprep.subr.mxu0 0.0
  %1707 = vmatpush1.msra.mxu0 0.0
  %1708 = vmatprep.subr.mxu0 0.0
  %1709 = vmatpush1.msra.mxu0 0.0
  %1710 = vmatprep.subr.mxu0 0.0
  %1711 = vmatpush1.msra.mxu0 0.0
  %1712 = vmatprep.subr.mxu0 0.0
  %1713 = vmatpush1.msra.mxu0 0.0
  %1714 = vmatprep.subr.mxu0 0.0
  %1715 = vmatpush1.msra.mxu0 0.0
  %1716 = vmatprep.subr.mxu0 0.0
  %1717 = vmatpush1.msra.mxu0 0.0
  %1718 = vmatprep.subr.mxu0 0.0
  %1719 = vmatpush1.msra.mxu0 0.0
  %1720 = vmatprep.subr.mxu0 0.0
  %1721 = vmatpush1.msra.mxu0 0.0
  %1722 = vmatprep.subr.mxu0 0.0
  %1723 = vmatpush1.msra.mxu0 0.0
  %1724 = vmatprep.subr.mxu0 0.0
  %1725 = vmatpush1.msra.mxu0 0.0
  %1726 = vmatprep.subr.mxu0 0.0
  %1727 = vmatpush1.msra.mxu0 0.0
  %1728 = vmatprep.subr.mxu0 0.0
  %1729 = vmatpush1.msra.mxu0 0.0
  %1730 = vmatprep.mubr.f32.mxu0 0.0
  %1731 = vmatmul.mubr.f32.gmra.mrb[0].mxu0 %v1664
  %v1732 = vpop.f32.mrb[0].mxu0
  %v1733 = vadd.f32 0.0, %v1732
  %v1734 = vpop.f32.mrb[0].mxu0
  %1735 = vdwg.mxu0
  %v1736 = vadd.f32 %v1663, %v1733
  %v1737 = vxor.u32 %v1736, 2147483648
  %v1738 = vmul.f32 %v1737, 1.442695
  %v1739 = vpow.pop %v1738
  %v1740 = vadd.f32 %v1739, 1.0
  %v1741 = vrcp.pop %v1740
  %v1742 = vmul.f32 1.0, %v1741
  %v1743 = vtanh.pop %v1736
  %v1744 = vmul.f32 %v1742, %v1543
  %1746 = vrot.lane.b32.xlu0 %v1743, 32
  %v1747 = vpop.permute.xlu0 %1746
  %v1749 = vmul.f32 %v1742, %v1747
  %1751 = vrot.lane.b32.xlu0 %v1749, 32
  %v1752 = vpop.permute.xlu0 %1751
  %v1754 = vadd.f32 %v1744, %v1752
  %v1755 = vtanh.pop %v1754
  %1757 = vrot.lane.b32.xlu0 %v1755, 32
  %v1758 = vpop.permute.xlu0 %1757
  %v1760 = vmul.f32 %v1742, %v1758
  %s1761 = sadd.s32 %s76, 7
  %p1762 = scmp.lt.s32.totalorder %s1761, 8
  %s1763 = scalar_select %p1762, 1, 0
  %v1764 = vstv %s1763
  %vm1765 = vcmp.eq.s32.totalorder %v1764, 1
  %v1766 = vsel %vm1765, %v1760, %v1542
  %v1767 = vsel %vm1765, %v1754, %v1543
  %1769 = vrot.lane.b32.xlu0 %v1766, 64
  %v1770 = vpop.permute.xlu0 %1769
  %s1772 = scalar_lea.vmem %s3, 14
  %1773 = vst.msk [vmem:[%s1772] sm:$0x3] %vm196, %v1770
  %s1774 = scalar_lea.vmem %s43, 48
  %v1775 = vld [vmem:[%s1774] sm:$0x3]
  %v1776 = vsel %vm80, %v1658, 0
  %1778 = vmatprep.subr.mxu0 0.0
  %1779 = vmatpush1.msra.mxu0 %v68
  %1780 = vmatprep.subr.mxu0 0.0
  %1781 = vmatpush1.msra.mxu0 %v69
  %1782 = vmatprep.subr.mxu0 0.0
  %1783 = vmatpush1.msra.mxu0 %v70
  %1784 = vmatprep.subr.mxu0 0.0
  %1785 = vmatpush1.msra.mxu0 %v71
  %1786 = vmatprep.subr.mxu0 0.0
  %1787 = vmatpush1.msra.mxu0 0.0
  %1788 = vmatprep.subr.mxu0 0.0
  %1789 = vmatpush1.msra.mxu0 0.0
  %1790 = vmatprep.subr.mxu0 0.0
  %1791 = vmatpush1.msra.mxu0 0.0
  %1792 = vmatprep.subr.mxu0 0.0
  %1793 = vmatpush1.msra.mxu0 0.0
  %1794 = vmatprep.subr.mxu0 0.0
  %1795 = vmatpush1.msra.mxu0 0.0
  %1796 = vmatprep.subr.mxu0 0.0
  %1797 = vmatpush1.msra.mxu0 0.0
  %1798 = vmatprep.subr.mxu0 0.0
  %1799 = vmatpush1.msra.mxu0 0.0
  %1800 = vmatprep.subr.mxu0 0.0
  %1801 = vmatpush1.msra.mxu0 0.0
  %1802 = vmatprep.subr.mxu0 0.0
  %1803 = vmatpush1.msra.mxu0 0.0
  %1804 = vmatprep.subr.mxu0 0.0
  %1805 = vmatpush1.msra.mxu0 0.0
  %1806 = vmatprep.subr.mxu0 0.0
  %1807 = vmatpush1.msra.mxu0 0.0
  %1808 = vmatprep.subr.mxu0 0.0
  %1809 = vmatpush1.msra.mxu0 0.0
  %1810 = vmatprep.subr.mxu0 0.0
  %1811 = vmatpush1.msra.mxu0 0.0
  %1812 = vmatprep.subr.mxu0 0.0
  %1813 = vmatpush1.msra.mxu0 0.0
  %1814 = vmatprep.subr.mxu0 0.0
  %1815 = vmatpush1.msra.mxu0 0.0
  %1816 = vmatprep.subr.mxu0 0.0
  %1817 = vmatpush1.msra.mxu0 0.0
  %1818 = vmatprep.subr.mxu0 0.0
  %1819 = vmatpush1.msra.mxu0 0.0
  %1820 = vmatprep.subr.mxu0 0.0
  %1821 = vmatpush1.msra.mxu0 0.0
  %1822 = vmatprep.subr.mxu0 0.0
  %1823 = vmatpush1.msra.mxu0 0.0
  %1824 = vmatprep.subr.mxu0 0.0
  %1825 = vmatpush1.msra.mxu0 0.0
  %1826 = vmatprep.subr.mxu0 0.0
  %1827 = vmatpush1.msra.mxu0 0.0
  %1828 = vmatprep.subr.mxu0 0.0
  %1829 = vmatpush1.msra.mxu0 0.0
  %1830 = vmatprep.subr.mxu0 0.0
  %1831 = vmatpush1.msra.mxu0 0.0
  %1832 = vmatprep.subr.mxu0 0.0
  %1833 = vmatpush1.msra.mxu0 0.0
  %1834 = vmatprep.subr.mxu0 0.0
  %1835 = vmatpush1.msra.mxu0 0.0
  %1836 = vmatprep.subr.mxu0 0.0
  %1837 = vmatpush1.msra.mxu0 0.0
  %1838 = vmatprep.subr.mxu0 0.0
  %1839 = vmatpush1.msra.mxu0 0.0
  %1840 = vmatprep.subr.mxu0 0.0
  %1841 = vmatpush1.msra.mxu0 0.0
  %1842 = vmatprep.mubr.f32.mxu0 0.0
  %1843 = vmatmul.mubr.f32.gmra.mrb[0].mxu0 %v1776
  %v1844 = vpop.f32.mrb[0].mxu0
  %v1845 = vadd.f32 0.0, %v1844
  %v1846 = vpop.f32.mrb[0].mxu0
  %1847 = vdwg.mxu0
  %v1848 = vadd.f32 %v1775, %v1845
  %v1849 = vxor.u32 %v1848, 2147483648
  %v1850 = vmul.f32 %v1849, 1.442695
  %v1851 = vpow.pop %v1850
  %v1852 = vadd.f32 %v1851, 1.0
  %v1853 = vrcp.pop %v1852
  %v1854 = vmul.f32 1.0, %v1853
  %v1855 = vtanh.pop %v1848
  %v1856 = vmul.f32 %v1854, %v1655
  %1858 = vrot.lane.b32.xlu0 %v1855, 32
  %v1859 = vpop.permute.xlu0 %1858
  %v1861 = vmul.f32 %v1854, %v1859
  %1863 = vrot.lane.b32.xlu0 %v1861, 32
  %v1864 = vpop.permute.xlu0 %1863
  %v1866 = vadd.f32 %v1856, %v1864
  %v1867 = vtanh.pop %v1866
  %1869 = vrot.lane.b32.xlu0 %v1867, 32
  %v1870 = vpop.permute.xlu0 %1869
  %v1872 = vmul.f32 %v1854, %v1870
  %s1873 = sadd.s32 %s78, 24
  %p1874 = scmp.lt.s32.totalorder %s1873, 8
  %s1875 = scalar_select %p1874, 1, 0
  %v1876 = vstv %s1875
  %vm1877 = vcmp.eq.s32.totalorder %v1876, 1
  %v1878 = vsel %vm1877, %v1872, %v1654
  %v1879 = vsel %vm1877, %v1866, %v1655
  %1881 = vrot.lane.b32.xlu0 %v1878, 64
  %v1882 = vpop.permute.xlu0 %1881
  %s1884 = scalar_lea.vmem %s51, 48
  %1885 = vst.msk [vmem:[%s1884] sm:$0x3] %vm196, %v1882
  %s1886 = scalar_lea.vmem %s0, 16
  %v1887 = vld [vmem:[%s1886] sm:$0x3]
  %v1888 = vsel %vm80, %v1770, 0
  %1890 = vmatprep.subr.mxu0 0.0
  %1891 = vmatpush1.msra.mxu0 %v63
  %1892 = vmatprep.subr.mxu0 0.0
  %1893 = vmatpush1.msra.mxu0 %v64
  %1894 = vmatprep.subr.mxu0 0.0
  %1895 = vmatpush1.msra.mxu0 %v65
  %1896 = vmatprep.subr.mxu0 0.0
  %1897 = vmatpush1.msra.mxu0 %v66
  %1898 = vmatprep.subr.mxu0 0.0
  %1899 = vmatpush1.msra.mxu0 0.0
  %1900 = vmatprep.subr.mxu0 0.0
  %1901 = vmatpush1.msra.mxu0 0.0
  %1902 = vmatprep.subr.mxu0 0.0
  %1903 = vmatpush1.msra.mxu0 0.0
  %1904 = vmatprep.subr.mxu0 0.0
  %1905 = vmatpush1.msra.mxu0 0.0
  %1906 = vmatprep.subr.mxu0 0.0
  %1907 = vmatpush1.msra.mxu0 0.0
  %1908 = vmatprep.subr.mxu0 0.0
  %1909 = vmatpush1.msra.mxu0 0.0
  %1910 = vmatprep.subr.mxu0 0.0
  %1911 = vmatpush1.msra.mxu0 0.0
  %1912 = vmatprep.subr.mxu0 0.0
  %1913 = vmatpush1.msra.mxu0 0.0
  %1914 = vmatprep.subr.mxu0 0.0
  %1915 = vmatpush1.msra.mxu0 0.0
  %1916 = vmatprep.subr.mxu0 0.0
  %1917 = vmatpush1.msra.mxu0 0.0
  %1918 = vmatprep.subr.mxu0 0.0
  %1919 = vmatpush1.msra.mxu0 0.0
  %1920 = vmatprep.subr.mxu0 0.0
  %1921 = vmatpush1.msra.mxu0 0.0
  %1922 = vmatprep.subr.mxu0 0.0
  %1923 = vmatpush1.msra.mxu0 0.0
  %1924 = vmatprep.subr.mxu0 0.0
  %1925 = vmatpush1.msra.mxu0 0.0
  %1926 = vmatprep.subr.mxu0 0.0
  %1927 = vmatpush1.msra.mxu0 0.0
  %1928 = vmatprep.subr.mxu0 0.0
  %1929 = vmatpush1.msra.mxu0 0.0
  %1930 = vmatprep.subr.mxu0 0.0
  %1931 = vmatpush1.msra.mxu0 0.0
  %1932 = vmatprep.subr.mxu0 0.0
  %1933 = vmatpush1.msra.mxu0 0.0
  %1934 = vmatprep.subr.mxu0 0.0
  %1935 = vmatpush1.msra.mxu0 0.0
  %1936 = vmatprep.subr.mxu0 0.0
  %1937 = vmatpush1.msra.mxu0 0.0
  %1938 = vmatprep.subr.mxu0 0.0
  %1939 = vmatpush1.msra.mxu0 0.0
  %1940 = vmatprep.subr.mxu0 0.0
  %1941 = vmatpush1.msra.mxu0 0.0
  %1942 = vmatprep.subr.mxu0 0.0
  %1943 = vmatpush1.msra.mxu0 0.0
  %1944 = vmatprep.subr.mxu0 0.0
  %1945 = vmatpush1.msra.mxu0 0.0
  %1946 = vmatprep.subr.mxu0 0.0
  %1947 = vmatpush1.msra.mxu0 0.0
  %1948 = vmatprep.subr.mxu0 0.0
  %1949 = vmatpush1.msra.mxu0 0.0
  %1950 = vmatprep.subr.mxu0 0.0
  %1951 = vmatpush1.msra.mxu0 0.0
  %1952 = vmatprep.subr.mxu0 0.0
  %1953 = vmatpush1.msra.mxu0 0.0
  %1954 = vmatprep.mubr.f32.mxu0 0.0
  %1955 = vmatmul.mubr.f32.gmra.mrb[0].mxu0 %v1888
  %v1956 = vpop.f32.mrb[0].mxu0
  %v1957 = vadd.f32 0.0, %v1956
  %v1958 = vpop.f32.mrb[0].mxu0
  %1959 = vdwg.mxu0
  %v1960 = vadd.f32 %v1887, %v1957
  %v1961 = vxor.u32 %v1960, 2147483648
  %v1962 = vmul.f32 %v1961, 1.442695
  %v1963 = vpow.pop %v1962
  %v1964 = vadd.f32 %v1963, 1.0
  %v1965 = vrcp.pop %v1964
  %v1966 = vmul.f32 1.0, %v1965
  %v1967 = vtanh.pop %v1960
  %v1968 = vmul.f32 %v1966, %v1767
  %1970 = vrot.lane.b32.xlu0 %v1967, 32
  %v1971 = vpop.permute.xlu0 %1970
  %v1973 = vmul.f32 %v1966, %v1971
  %1975 = vrot.lane.b32.xlu0 %v1973, 32
  %v1976 = vpop.permute.xlu0 %1975
  %v1978 = vadd.f32 %v1968, %v1976
  %v1979 = vtanh.pop %v1978
  %1981 = vrot.lane.b32.xlu0 %v1979, 32
  %v1982 = vpop.permute.xlu0 %1981
  %v1984 = vmul.f32 %v1966, %v1982
  %s1985 = sadd.s32 %s76, 8
  %p1986 = scmp.lt.s32.totalorder %s1985, 8
  %s1987 = scalar_select %p1986, 1, 0
  %v1988 = vstv %s1987
  %vm1989 = vcmp.eq.s32.totalorder %v1988, 1
  %v1990 = vsel %vm1989, %v1984, %v1766
  %v1991 = vsel %vm1989, %v1978, %v1767
  %1993 = vrot.lane.b32.xlu0 %v1990, 64
  %v1994 = vpop.permute.xlu0 %1993
  %s1996 = scalar_lea.vmem %s3, 16
  %1997 = vst.msk [vmem:[%s1996] sm:$0x3] %vm196, %v1994
  %s1998 = scalar_lea.vmem %s43, 46
  %v1999 = vld [vmem:[%s1998] sm:$0x3]
  %v2000 = vsel %vm80, %v1882, 0
  %2002 = vmatprep.subr.mxu0 0.0
  %2003 = vmatpush1.msra.mxu0 %v68
  %2004 = vmatprep.subr.mxu0 0.0
  %2005 = vmatpush1.msra.mxu0 %v69
  %2006 = vmatprep.subr.mxu0 0.0
  %2007 = vmatpush1.msra.mxu0 %v70
  %2008 = vmatprep.subr.mxu0 0.0
  %2009 = vmatpush1.msra.mxu0 %v71
  %2010 = vmatprep.subr.mxu0 0.0
  %2011 = vmatpush1.msra.mxu0 0.0
  %2012 = vmatprep.subr.mxu0 0.0
  %2013 = vmatpush1.msra.mxu0 0.0
  %2014 = vmatprep.subr.mxu0 0.0
  %2015 = vmatpush1.msra.mxu0 0.0
  %2016 = vmatprep.subr.mxu0 0.0
  %2017 = vmatpush1.msra.mxu0 0.0
  %2018 = vmatprep.subr.mxu0 0.0
  %2019 = vmatpush1.msra.mxu0 0.0
  %2020 = vmatprep.subr.mxu0 0.0
  %2021 = vmatpush1.msra.mxu0 0.0
  %2022 = vmatprep.subr.mxu0 0.0
  %2023 = vmatpush1.msra.mxu0 0.0
  %2024 = vmatprep.subr.mxu0 0.0
  %2025 = vmatpush1.msra.mxu0 0.0
  %2026 = vmatprep.subr.mxu0 0.0
  %2027 = vmatpush1.msra.mxu0 0.0
  %2028 = vmatprep.subr.mxu0 0.0
  %2029 = vmatpush1.msra.mxu0 0.0
  %2030 = vmatprep.subr.mxu0 0.0
  %2031 = vmatpush1.msra.mxu0 0.0
  %2032 = vmatprep.subr.mxu0 0.0
  %2033 = vmatpush1.msra.mxu0 0.0
  %2034 = vmatprep.subr.mxu0 0.0
  %2035 = vmatpush1.msra.mxu0 0.0
  %2036 = vmatprep.subr.mxu0 0.0
  %2037 = vmatpush1.msra.mxu0 0.0
  %2038 = vmatprep.subr.mxu0 0.0
  %2039 = vmatpush1.msra.mxu0 0.0
  %2040 = vmatprep.subr.mxu0 0.0
  %2041 = vmatpush1.msra.mxu0 0.0
  %2042 = vmatprep.subr.mxu0 0.0
  %2043 = vmatpush1.msra.mxu0 0.0
  %2044 = vmatprep.subr.mxu0 0.0
  %2045 = vmatpush1.msra.mxu0 0.0
  %2046 = vmatprep.subr.mxu0 0.0
  %2047 = vmatpush1.msra.mxu0 0.0
  %2048 = vmatprep.subr.mxu0 0.0
  %2049 = vmatpush1.msra.mxu0 0.0
  %2050 = vmatprep.subr.mxu0 0.0
  %2051 = vmatpush1.msra.mxu0 0.0
  %2052 = vmatprep.subr.mxu0 0.0
  %2053 = vmatpush1.msra.mxu0 0.0
  %2054 = vmatprep.subr.mxu0 0.0
  %2055 = vmatpush1.msra.mxu0 0.0
  %2056 = vmatprep.subr.mxu0 0.0
  %2057 = vmatpush1.msra.mxu0 0.0
  %2058 = vmatprep.subr.mxu0 0.0
  %2059 = vmatpush1.msra.mxu0 0.0
  %2060 = vmatprep.subr.mxu0 0.0
  %2061 = vmatpush1.msra.mxu0 0.0
  %2062 = vmatprep.subr.mxu0 0.0
  %2063 = vmatpush1.msra.mxu0 0.0
  %2064 = vmatprep.subr.mxu0 0.0
  %2065 = vmatpush1.msra.mxu0 0.0
  %2066 = vmatprep.mubr.f32.mxu0 0.0
  %2067 = vmatmul.mubr.f32.gmra.mrb[0].mxu0 %v2000
  %v2068 = vpop.f32.mrb[0].mxu0
  %v2069 = vadd.f32 0.0, %v2068
  %v2070 = vpop.f32.mrb[0].mxu0
  %2071 = vdwg.mxu0
  %v2072 = vadd.f32 %v1999, %v2069
  %v2073 = vxor.u32 %v2072, 2147483648
  %v2074 = vmul.f32 %v2073, 1.442695
  %v2075 = vpow.pop %v2074
  %v2076 = vadd.f32 %v2075, 1.0
  %v2077 = vrcp.pop %v2076
  %v2078 = vmul.f32 1.0, %v2077
  %v2079 = vtanh.pop %v2072
  %v2080 = vmul.f32 %v2078, %v1879
  %2082 = vrot.lane.b32.xlu0 %v2079, 32
  %v2083 = vpop.permute.xlu0 %2082
  %v2085 = vmul.f32 %v2078, %v2083
  %2087 = vrot.lane.b32.xlu0 %v2085, 32
  %v2088 = vpop.permute.xlu0 %2087
  %v2090 = vadd.f32 %v2080, %v2088
  %v2091 = vtanh.pop %v2090
  %2093 = vrot.lane.b32.xlu0 %v2091, 32
  %v2094 = vpop.permute.xlu0 %2093
  %v2096 = vmul.f32 %v2078, %v2094
  %s2097 = sadd.s32 %s78, 23
  %p2098 = scmp.lt.s32.totalorder %s2097, 8
  %s2099 = scalar_select %p2098, 1, 0
  %v2100 = vstv %s2099
  %vm2101 = vcmp.eq.s32.totalorder %v2100, 1
  %v2102 = vsel %vm2101, %v2096, %v1878
  %v2103 = vsel %vm2101, %v2090, %v1879
  %2105 = vrot.lane.b32.xlu0 %v2102, 64
  %v2106 = vpop.permute.xlu0 %2105
  %s2108 = scalar_lea.vmem %s51, 46
  %2109 = vst.msk [vmem:[%s2108] sm:$0x3] %vm196, %v2106
  %s2110 = scalar_lea.vmem %s0, 18
  %v2111 = vld [vmem:[%s2110] sm:$0x3]
  %v2112 = vsel %vm80, %v1994, 0
  %2114 = vmatprep.subr.mxu0 0.0
  %2115 = vmatpush1.msra.mxu0 %v63
  %2116 = vmatprep.subr.mxu0 0.0
  %2117 = vmatpush1.msra.mxu0 %v64
  %2118 = vmatprep.subr.mxu0 0.0
  %2119 = vmatpush1.msra.mxu0 %v65
  %2120 = vmatprep.subr.mxu0 0.0
  %2121 = vmatpush1.msra.mxu0 %v66
  %2122 = vmatprep.subr.mxu0 0.0
  %2123 = vmatpush1.msra.mxu0 0.0
  %2124 = vmatprep.subr.mxu0 0.0
  %2125 = vmatpush1.msra.mxu0 0.0
  %2126 = vmatprep.subr.mxu0 0.0
  %2127 = vmatpush1.msra.mxu0 0.0
  %2128 = vmatprep.subr.mxu0 0.0
  %2129 = vmatpush1.msra.mxu0 0.0
  %2130 = vmatprep.subr.mxu0 0.0
  %2131 = vmatpush1.msra.mxu0 0.0
  %2132 = vmatprep.subr.mxu0 0.0
  %2133 = vmatpush1.msra.mxu0 0.0
  %2134 = vmatprep.subr.mxu0 0.0
  %2135 = vmatpush1.msra.mxu0 0.0
  %2136 = vmatprep.subr.mxu0 0.0
  %2137 = vmatpush1.msra.mxu0 0.0
  %2138 = vmatprep.subr.mxu0 0.0
  %2139 = vmatpush1.msra.mxu0 0.0
  %2140 = vmatprep.subr.mxu0 0.0
  %2141 = vmatpush1.msra.mxu0 0.0
  %2142 = vmatprep.subr.mxu0 0.0
  %2143 = vmatpush1.msra.mxu0 0.0
  %2144 = vmatprep.subr.mxu0 0.0
  %2145 = vmatpush1.msra.mxu0 0.0
  %2146 = vmatprep.subr.mxu0 0.0
  %2147 = vmatpush1.msra.mxu0 0.0
  %2148 = vmatprep.subr.mxu0 0.0
  %2149 = vmatpush1.msra.mxu0 0.0
  %2150 = vmatprep.subr.mxu0 0.0
  %2151 = vmatpush1.msra.mxu0 0.0
  %2152 = vmatprep.subr.mxu0 0.0
  %2153 = vmatpush1.msra.mxu0 0.0
  %2154 = vmatprep.subr.mxu0 0.0
  %2155 = vmatpush1.msra.mxu0 0.0
  %2156 = vmatprep.subr.mxu0 0.0
  %2157 = vmatpush1.msra.mxu0 0.0
  %2158 = vmatprep.subr.mxu0 0.0
  %2159 = vmatpush1.msra.mxu0 0.0
  %2160 = vmatprep.subr.mxu0 0.0
  %2161 = vmatpush1.msra.mxu0 0.0
  %2162 = vmatprep.subr.mxu0 0.0
  %2163 = vmatpush1.msra.mxu0 0.0
  %2164 = vmatprep.subr.mxu0 0.0
  %2165 = vmatpush1.msra.mxu0 0.0
  %2166 = vmatprep.subr.mxu0 0.0
  %2167 = vmatpush1.msra.mxu0 0.0
  %2168 = vmatprep.subr.mxu0 0.0
  %2169 = vmatpush1.msra.mxu0 0.0
  %2170 = vmatprep.subr.mxu0 0.0
  %2171 = vmatpush1.msra.mxu0 0.0
  %2172 = vmatprep.subr.mxu0 0.0
  %2173 = vmatpush1.msra.mxu0 0.0
  %2174 = vmatprep.subr.mxu0 0.0
  %2175 = vmatpush1.msra.mxu0 0.0
  %2176 = vmatprep.subr.mxu0 0.0
  %2177 = vmatpush1.msra.mxu0 0.0
  %2178 = vmatprep.mubr.f32.mxu0 0.0
  %2179 = vmatmul.mubr.f32.gmra.mrb[0].mxu0 %v2112
  %v2180 = vpop.f32.mrb[0].mxu0
  %v2181 = vadd.f32 0.0, %v2180
  %v2182 = vpop.f32.mrb[0].mxu0
  %2183 = vdwg.mxu0
  %v2184 = vadd.f32 %v2111, %v2181
  %v2185 = vxor.u32 %v2184, 2147483648
  %v2186 = vmul.f32 %v2185, 1.442695
  %v2187 = vpow.pop %v2186
  %v2188 = vadd.f32 %v2187, 1.0
  %v2189 = vrcp.pop %v2188
  %v2190 = vmul.f32 1.0, %v2189
  %v2191 = vtanh.pop %v2184
  %v2192 = vmul.f32 %v2190, %v1991
  %2194 = vrot.lane.b32.xlu0 %v2191, 32
  %v2195 = vpop.permute.xlu0 %2194
  %v2197 = vmul.f32 %v2190, %v2195
  %2199 = vrot.lane.b32.xlu0 %v2197, 32
  %v2200 = vpop.permute.xlu0 %2199
  %v2202 = vadd.f32 %v2192, %v2200
  %v2203 = vtanh.pop %v2202
  %2205 = vrot.lane.b32.xlu0 %v2203, 32
  %v2206 = vpop.permute.xlu0 %2205
  %v2208 = vmul.f32 %v2190, %v2206
  %s2209 = sadd.s32 %s76, 9
  %p2210 = scmp.lt.s32.totalorder %s2209, 8
  %s2211 = scalar_select %p2210, 1, 0
  %v2212 = vstv %s2211
  %vm2213 = vcmp.eq.s32.totalorder %v2212, 1
  %v2214 = vsel %vm2213, %v2208, %v1990
  %v2215 = vsel %vm2213, %v2202, %v1991
  %2217 = vrot.lane.b32.xlu0 %v2214, 64
  %v2218 = vpop.permute.xlu0 %2217
  %s2220 = scalar_lea.vmem %s3, 18
  %2221 = vst.msk [vmem:[%s2220] sm:$0x3] %vm196, %v2218
  %s2222 = scalar_lea.vmem %s43, 44
  %v2223 = vld [vmem:[%s2222] sm:$0x3]
  %v2224 = vsel %vm80, %v2106, 0
  %2226 = vmatprep.subr.mxu0 0.0
  %2227 = vmatpush1.msra.mxu0 %v68
  %2228 = vmatprep.subr.mxu0 0.0
  %2229 = vmatpush1.msra.mxu0 %v69
  %2230 = vmatprep.subr.mxu0 0.0
  %2231 = vmatpush1.msra.mxu0 %v70
  %2232 = vmatprep.subr.mxu0 0.0
  %2233 = vmatpush1.msra.mxu0 %v71
  %2234 = vmatprep.subr.mxu0 0.0
  %2235 = vmatpush1.msra.mxu0 0.0
  %2236 = vmatprep.subr.mxu0 0.0
  %2237 = vmatpush1.msra.mxu0 0.0
  %2238 = vmatprep.subr.mxu0 0.0
  %2239 = vmatpush1.msra.mxu0 0.0
  %2240 = vmatprep.subr.mxu0 0.0
  %2241 = vmatpush1.msra.mxu0 0.0
  %2242 = vmatprep.subr.mxu0 0.0
  %2243 = vmatpush1.msra.mxu0 0.0
  %2244 = vmatprep.subr.mxu0 0.0
  %2245 = vmatpush1.msra.mxu0 0.0
  %2246 = vmatprep.subr.mxu0 0.0
  %2247 = vmatpush1.msra.mxu0 0.0
  %2248 = vmatprep.subr.mxu0 0.0
  %2249 = vmatpush1.msra.mxu0 0.0
  %2250 = vmatprep.subr.mxu0 0.0
  %2251 = vmatpush1.msra.mxu0 0.0
  %2252 = vmatprep.subr.mxu0 0.0
  %2253 = vmatpush1.msra.mxu0 0.0
  %2254 = vmatprep.subr.mxu0 0.0
  %2255 = vmatpush1.msra.mxu0 0.0
  %2256 = vmatprep.subr.mxu0 0.0
  %2257 = vmatpush1.msra.mxu0 0.0
  %2258 = vmatprep.subr.mxu0 0.0
  %2259 = vmatpush1.msra.mxu0 0.0
  %2260 = vmatprep.subr.mxu0 0.0
  %2261 = vmatpush1.msra.mxu0 0.0
  %2262 = vmatprep.subr.mxu0 0.0
  %2263 = vmatpush1.msra.mxu0 0.0
  %2264 = vmatprep.subr.mxu0 0.0
  %2265 = vmatpush1.msra.mxu0 0.0
  %2266 = vmatprep.subr.mxu0 0.0
  %2267 = vmatpush1.msra.mxu0 0.0
  %2268 = vmatprep.subr.mxu0 0.0
  %2269 = vmatpush1.msra.mxu0 0.0
  %2270 = vmatprep.subr.mxu0 0.0
  %2271 = vmatpush1.msra.mxu0 0.0
  %2272 = vmatprep.subr.mxu0 0.0
  %2273 = vmatpush1.msra.mxu0 0.0
  %2274 = vmatprep.subr.mxu0 0.0
  %2275 = vmatpush1.msra.mxu0 0.0
  %2276 = vmatprep.subr.mxu0 0.0
  %2277 = vmatpush1.msra.mxu0 0.0
  %2278 = vmatprep.subr.mxu0 0.0
  %2279 = vmatpush1.msra.mxu0 0.0
  %2280 = vmatprep.subr.mxu0 0.0
  %2281 = vmatpush1.msra.mxu0 0.0
  %2282 = vmatprep.subr.mxu0 0.0
  %2283 = vmatpush1.msra.mxu0 0.0
  %2284 = vmatprep.subr.mxu0 0.0
  %2285 = vmatpush1.msra.mxu0 0.0
  %2286 = vmatprep.subr.mxu0 0.0
  %2287 = vmatpush1.msra.mxu0 0.0
  %2288 = vmatprep.subr.mxu0 0.0
  %2289 = vmatpush1.msra.mxu0 0.0
  %2290 = vmatprep.mubr.f32.mxu0 0.0
  %2291 = vmatmul.mubr.f32.gmra.mrb[0].mxu0 %v2224
  %v2292 = vpop.f32.mrb[0].mxu0
  %v2293 = vadd.f32 0.0, %v2292
  %v2294 = vpop.f32.mrb[0].mxu0
  %2295 = vdwg.mxu0
  %v2296 = vadd.f32 %v2223, %v2293
  %v2297 = vxor.u32 %v2296, 2147483648
  %v2298 = vmul.f32 %v2297, 1.442695
  %v2299 = vpow.pop %v2298
  %v2300 = vadd.f32 %v2299, 1.0
  %v2301 = vrcp.pop %v2300
  %v2302 = vmul.f32 1.0, %v2301
  %v2303 = vtanh.pop %v2296
  %v2304 = vmul.f32 %v2302, %v2103
  %2306 = vrot.lane.b32.xlu0 %v2303, 32
  %v2307 = vpop.permute.xlu0 %2306
  %v2309 = vmul.f32 %v2302, %v2307
  %2311 = vrot.lane.b32.xlu0 %v2309, 32
  %v2312 = vpop.permute.xlu0 %2311
  %v2314 = vadd.f32 %v2304, %v2312
  %v2315 = vtanh.pop %v2314
  %2317 = vrot.lane.b32.xlu0 %v2315, 32
  %v2318 = vpop.permute.xlu0 %2317
  %v2320 = vmul.f32 %v2302, %v2318
  %s2321 = sadd.s32 %s78, 22
  %p2322 = scmp.lt.s32.totalorder %s2321, 8
  %s2323 = scalar_select %p2322, 1, 0
  %v2324 = vstv %s2323
  %vm2325 = vcmp.eq.s32.totalorder %v2324, 1
  %v2326 = vsel %vm2325, %v2320, %v2102
  %v2327 = vsel %vm2325, %v2314, %v2103
  %2329 = vrot.lane.b32.xlu0 %v2326, 64
  %v2330 = vpop.permute.xlu0 %2329
  %s2332 = scalar_lea.vmem %s51, 44
  %2333 = vst.msk [vmem:[%s2332] sm:$0x3] %vm196, %v2330
  %s2334 = scalar_lea.vmem %s0, 20
  %v2335 = vld [vmem:[%s2334] sm:$0x3]
  %v2336 = vsel %vm80, %v2218, 0
  %2338 = vmatprep.subr.mxu0 0.0
  %2339 = vmatpush1.msra.mxu0 %v63
  %2340 = vmatprep.subr.mxu0 0.0
  %2341 = vmatpush1.msra.mxu0 %v64
  %2342 = vmatprep.subr.mxu0 0.0
  %2343 = vmatpush1.msra.mxu0 %v65
  %2344 = vmatprep.subr.mxu0 0.0
  %2345 = vmatpush1.msra.mxu0 %v66
  %2346 = vmatprep.subr.mxu0 0.0
  %2347 = vmatpush1.msra.mxu0 0.0
  %2348 = vmatprep.subr.mxu0 0.0
  %2349 = vmatpush1.msra.mxu0 0.0
  %2350 = vmatprep.subr.mxu0 0.0
  %2351 = vmatpush1.msra.mxu0 0.0
  %2352 = vmatprep.subr.mxu0 0.0
  %2353 = vmatpush1.msra.mxu0 0.0
  %2354 = vmatprep.subr.mxu0 0.0
  %2355 = vmatpush1.msra.mxu0 0.0
  %2356 = vmatprep.subr.mxu0 0.0
  %2357 = vmatpush1.msra.mxu0 0.0
  %2358 = vmatprep.subr.mxu0 0.0
  %2359 = vmatpush1.msra.mxu0 0.0
  %2360 = vmatprep.subr.mxu0 0.0
  %2361 = vmatpush1.msra.mxu0 0.0
  %2362 = vmatprep.subr.mxu0 0.0
  %2363 = vmatpush1.msra.mxu0 0.0
  %2364 = vmatprep.subr.mxu0 0.0
  %2365 = vmatpush1.msra.mxu0 0.0
  %2366 = vmatprep.subr.mxu0 0.0
  %2367 = vmatpush1.msra.mxu0 0.0
  %2368 = vmatprep.subr.mxu0 0.0
  %2369 = vmatpush1.msra.mxu0 0.0
  %2370 = vmatprep.subr.mxu0 0.0
  %2371 = vmatpush1.msra.mxu0 0.0
  %2372 = vmatprep.subr.mxu0 0.0
  %2373 = vmatpush1.msra.mxu0 0.0
  %2374 = vmatprep.subr.mxu0 0.0
  %2375 = vmatpush1.msra.mxu0 0.0
  %2376 = vmatprep.subr.mxu0 0.0
  %2377 = vmatpush1.msra.mxu0 0.0
  %2378 = vmatprep.subr.mxu0 0.0
  %2379 = vmatpush1.msra.mxu0 0.0
  %2380 = vmatprep.subr.mxu0 0.0
  %2381 = vmatpush1.msra.mxu0 0.0
  %2382 = vmatprep.subr.mxu0 0.0
  %2383 = vmatpush1.msra.mxu0 0.0
  %2384 = vmatprep.subr.mxu0 0.0
  %2385 = vmatpush1.msra.mxu0 0.0
  %2386 = vmatprep.subr.mxu0 0.0
  %2387 = vmatpush1.msra.mxu0 0.0
  %2388 = vmatprep.subr.mxu0 0.0
  %2389 = vmatpush1.msra.mxu0 0.0
  %2390 = vmatprep.subr.mxu0 0.0
  %2391 = vmatpush1.msra.mxu0 0.0
  %2392 = vmatprep.subr.mxu0 0.0
  %2393 = vmatpush1.msra.mxu0 0.0
  %2394 = vmatprep.subr.mxu0 0.0
  %2395 = vmatpush1.msra.mxu0 0.0
  %2396 = vmatprep.subr.mxu0 0.0
  %2397 = vmatpush1.msra.mxu0 0.0
  %2398 = vmatprep.subr.mxu0 0.0
  %2399 = vmatpush1.msra.mxu0 0.0
  %2400 = vmatprep.subr.mxu0 0.0
  %2401 = vmatpush1.msra.mxu0 0.0
  %2402 = vmatprep.mubr.f32.mxu0 0.0
  %2403 = vmatmul.mubr.f32.gmra.mrb[0].mxu0 %v2336
  %v2404 = vpop.f32.mrb[0].mxu0
  %v2405 = vadd.f32 0.0, %v2404
  %v2406 = vpop.f32.mrb[0].mxu0
  %2407 = vdwg.mxu0
  %v2408 = vadd.f32 %v2335, %v2405
  %v2409 = vxor.u32 %v2408, 2147483648
  %v2410 = vmul.f32 %v2409, 1.442695
  %v2411 = vpow.pop %v2410
  %v2412 = vadd.f32 %v2411, 1.0
  %v2413 = vrcp.pop %v2412
  %v2414 = vmul.f32 1.0, %v2413
  %v2415 = vtanh.pop %v2408
  %v2416 = vmul.f32 %v2414, %v2215
  %2418 = vrot.lane.b32.xlu0 %v2415, 32
  %v2419 = vpop.permute.xlu0 %2418
  %v2421 = vmul.f32 %v2414, %v2419
  %2423 = vrot.lane.b32.xlu0 %v2421, 32
  %v2424 = vpop.permute.xlu0 %2423
  %v2426 = vadd.f32 %v2416, %v2424
  %v2427 = vtanh.pop %v2426
  %2429 = vrot.lane.b32.xlu0 %v2427, 32
  %v2430 = vpop.permute.xlu0 %2429
  %v2432 = vmul.f32 %v2414, %v2430
  %s2433 = sadd.s32 %s76, 10
  %p2434 = scmp.lt.s32.totalorder %s2433, 8
  %s2435 = scalar_select %p2434, 1, 0
  %v2436 = vstv %s2435
  %vm2437 = vcmp.eq.s32.totalorder %v2436, 1
  %v2438 = vsel %vm2437, %v2432, %v2214
  %v2439 = vsel %vm2437, %v2426, %v2215
  %2441 = vrot.lane.b32.xlu0 %v2438, 64
  %v2442 = vpop.permute.xlu0 %2441
  %s2444 = scalar_lea.vmem %s3, 20
  %2445 = vst.msk [vmem:[%s2444] sm:$0x3] %vm196, %v2442
  %s2446 = scalar_lea.vmem %s43, 42
  %v2447 = vld [vmem:[%s2446] sm:$0x3]
  %v2448 = vsel %vm80, %v2330, 0
  %2450 = vmatprep.subr.mxu0 0.0
  %2451 = vmatpush1.msra.mxu0 %v68
  %2452 = vmatprep.subr.mxu0 0.0
  %2453 = vmatpush1.msra.mxu0 %v69
  %2454 = vmatprep.subr.mxu0 0.0
  %2455 = vmatpush1.msra.mxu0 %v70
  %2456 = vmatprep.subr.mxu0 0.0
  %2457 = vmatpush1.msra.mxu0 %v71
  %2458 = vmatprep.subr.mxu0 0.0
  %2459 = vmatpush1.msra.mxu0 0.0
  %2460 = vmatprep.subr.mxu0 0.0
  %2461 = vmatpush1.msra.mxu0 0.0
  %2462 = vmatprep.subr.mxu0 0.0
  %2463 = vmatpush1.msra.mxu0 0.0
  %2464 = vmatprep.subr.mxu0 0.0
  %2465 = vmatpush1.msra.mxu0 0.0
  %2466 = vmatprep.subr.mxu0 0.0
  %2467 = vmatpush1.msra.mxu0 0.0
  %2468 = vmatprep.subr.mxu0 0.0
  %2469 = vmatpush1.msra.mxu0 0.0
  %2470 = vmatprep.subr.mxu0 0.0
  %2471 = vmatpush1.msra.mxu0 0.0
  %2472 = vmatprep.subr.mxu0 0.0
  %2473 = vmatpush1.msra.mxu0 0.0
  %2474 = vmatprep.subr.mxu0 0.0
  %2475 = vmatpush1.msra.mxu0 0.0
  %2476 = vmatprep.subr.mxu0 0.0
  %2477 = vmatpush1.msra.mxu0 0.0
  %2478 = vmatprep.subr.mxu0 0.0
  %2479 = vmatpush1.msra.mxu0 0.0
  %2480 = vmatprep.subr.mxu0 0.0
  %2481 = vmatpush1.msra.mxu0 0.0
  %2482 = vmatprep.subr.mxu0 0.0
  %2483 = vmatpush1.msra.mxu0 0.0
  %2484 = vmatprep.subr.mxu0 0.0
  %2485 = vmatpush1.msra.mxu0 0.0
  %2486 = vmatprep.subr.mxu0 0.0
  %2487 = vmatpush1.msra.mxu0 0.0
  %2488 = vmatprep.subr.mxu0 0.0
  %2489 = vmatpush1.msra.mxu0 0.0
  %2490 = vmatprep.subr.mxu0 0.0
  %2491 = vmatpush1.msra.mxu0 0.0
  %2492 = vmatprep.subr.mxu0 0.0
  %2493 = vmatpush1.msra.mxu0 0.0
  %2494 = vmatprep.subr.mxu0 0.0
  %2495 = vmatpush1.msra.mxu0 0.0
  %2496 = vmatprep.subr.mxu0 0.0
  %2497 = vmatpush1.msra.mxu0 0.0
  %2498 = vmatprep.subr.mxu0 0.0
  %2499 = vmatpush1.msra.mxu0 0.0
  %2500 = vmatprep.subr.mxu0 0.0
  %2501 = vmatpush1.msra.mxu0 0.0
  %2502 = vmatprep.subr.mxu0 0.0
  %2503 = vmatpush1.msra.mxu0 0.0
  %2504 = vmatprep.subr.mxu0 0.0
  %2505 = vmatpush1.msra.mxu0 0.0
  %2506 = vmatprep.subr.mxu0 0.0
  %2507 = vmatpush1.msra.mxu0 0.0
  %2508 = vmatprep.subr.mxu0 0.0
  %2509 = vmatpush1.msra.mxu0 0.0
  %2510 = vmatprep.subr.mxu0 0.0
  %2511 = vmatpush1.msra.mxu0 0.0
  %2512 = vmatprep.subr.mxu0 0.0
  %2513 = vmatpush1.msra.mxu0 0.0
  %2514 = vmatprep.mubr.f32.mxu0 0.0
  %2515 = vmatmul.mubr.f32.gmra.mrb[0].mxu0 %v2448
  %v2516 = vpop.f32.mrb[0].mxu0
  %v2517 = vadd.f32 0.0, %v2516
  %v2518 = vpop.f32.mrb[0].mxu0
  %2519 = vdwg.mxu0
  %v2520 = vadd.f32 %v2447, %v2517
  %v2521 = vxor.u32 %v2520, 2147483648
  %v2522 = vmul.f32 %v2521, 1.442695
  %v2523 = vpow.pop %v2522
  %v2524 = vadd.f32 %v2523, 1.0
  %v2525 = vrcp.pop %v2524
  %v2526 = vmul.f32 1.0, %v2525
  %v2527 = vtanh.pop %v2520
  %v2528 = vmul.f32 %v2526, %v2327
  %2530 = vrot.lane.b32.xlu0 %v2527, 32
  %v2531 = vpop.permute.xlu0 %2530
  %v2533 = vmul.f32 %v2526, %v2531
  %2535 = vrot.lane.b32.xlu0 %v2533, 32
  %v2536 = vpop.permute.xlu0 %2535
  %v2538 = vadd.f32 %v2528, %v2536
  %v2539 = vtanh.pop %v2538
  %2541 = vrot.lane.b32.xlu0 %v2539, 32
  %v2542 = vpop.permute.xlu0 %2541
  %v2544 = vmul.f32 %v2526, %v2542
  %s2545 = sadd.s32 %s78, 21
  %p2546 = scmp.lt.s32.totalorder %s2545, 8
  %s2547 = scalar_select %p2546, 1, 0
  %v2548 = vstv %s2547
  %vm2549 = vcmp.eq.s32.totalorder %v2548, 1
  %v2550 = vsel %vm2549, %v2544, %v2326
  %v2551 = vsel %vm2549, %v2538, %v2327
  %2553 = vrot.lane.b32.xlu0 %v2550, 64
  %v2554 = vpop.permute.xlu0 %2553
  %s2556 = scalar_lea.vmem %s51, 42
  %2557 = vst.msk [vmem:[%s2556] sm:$0x3] %vm196, %v2554
  %s2558 = scalar_lea.vmem %s0, 22
  %v2559 = vld [vmem:[%s2558] sm:$0x3]
  %v2560 = vsel %vm80, %v2442, 0
  %2562 = vmatprep.subr.mxu0 0.0
  %2563 = vmatpush1.msra.mxu0 %v63
  %2564 = vmatprep.subr.mxu0 0.0
  %2565 = vmatpush1.msra.mxu0 %v64
  %2566 = vmatprep.subr.mxu0 0.0
  %2567 = vmatpush1.msra.mxu0 %v65
  %2568 = vmatprep.subr.mxu0 0.0
  %2569 = vmatpush1.msra.mxu0 %v66
  %2570 = vmatprep.subr.mxu0 0.0
  %2571 = vmatpush1.msra.mxu0 0.0
  %2572 = vmatprep.subr.mxu0 0.0
  %2573 = vmatpush1.msra.mxu0 0.0
  %2574 = vmatprep.subr.mxu0 0.0
  %2575 = vmatpush1.msra.mxu0 0.0
  %2576 = vmatprep.subr.mxu0 0.0
  %2577 = vmatpush1.msra.mxu0 0.0
  %2578 = vmatprep.subr.mxu0 0.0
  %2579 = vmatpush1.msra.mxu0 0.0
  %2580 = vmatprep.subr.mxu0 0.0
  %2581 = vmatpush1.msra.mxu0 0.0
  %2582 = vmatprep.subr.mxu0 0.0
  %2583 = vmatpush1.msra.mxu0 0.0
  %2584 = vmatprep.subr.mxu0 0.0
  %2585 = vmatpush1.msra.mxu0 0.0
  %2586 = vmatprep.subr.mxu0 0.0
  %2587 = vmatpush1.msra.mxu0 0.0
  %2588 = vmatprep.subr.mxu0 0.0
  %2589 = vmatpush1.msra.mxu0 0.0
  %2590 = vmatprep.subr.mxu0 0.0
  %2591 = vmatpush1.msra.mxu0 0.0
  %2592 = vmatprep.subr.mxu0 0.0
  %2593 = vmatpush1.msra.mxu0 0.0
  %2594 = vmatprep.subr.mxu0 0.0
  %2595 = vmatpush1.msra.mxu0 0.0
  %2596 = vmatprep.subr.mxu0 0.0
  %2597 = vmatpush1.msra.mxu0 0.0
  %2598 = vmatprep.subr.mxu0 0.0
  %2599 = vmatpush1.msra.mxu0 0.0
  %2600 = vmatprep.subr.mxu0 0.0
  %2601 = vmatpush1.msra.mxu0 0.0
  %2602 = vmatprep.subr.mxu0 0.0
  %2603 = vmatpush1.msra.mxu0 0.0
  %2604 = vmatprep.subr.mxu0 0.0
  %2605 = vmatpush1.msra.mxu0 0.0
  %2606 = vmatprep.subr.mxu0 0.0
  %2607 = vmatpush1.msra.mxu0 0.0
  %2608 = vmatprep.subr.mxu0 0.0
  %2609 = vmatpush1.msra.mxu0 0.0
  %2610 = vmatprep.subr.mxu0 0.0
  %2611 = vmatpush1.msra.mxu0 0.0
  %2612 = vmatprep.subr.mxu0 0.0
  %2613 = vmatpush1.msra.mxu0 0.0
  %2614 = vmatprep.subr.mxu0 0.0
  %2615 = vmatpush1.msra.mxu0 0.0
  %2616 = vmatprep.subr.mxu0 0.0
  %2617 = vmatpush1.msra.mxu0 0.0
  %2618 = vmatprep.subr.mxu0 0.0
  %2619 = vmatpush1.msra.mxu0 0.0
  %2620 = vmatprep.subr.mxu0 0.0
  %2621 = vmatpush1.msra.mxu0 0.0
  %2622 = vmatprep.subr.mxu0 0.0
  %2623 = vmatpush1.msra.mxu0 0.0
  %2624 = vmatprep.subr.mxu0 0.0
  %2625 = vmatpush1.msra.mxu0 0.0
  %2626 = vmatprep.mubr.f32.mxu0 0.0
  %2627 = vmatmul.mubr.f32.gmra.mrb[0].mxu0 %v2560
  %v2628 = vpop.f32.mrb[0].mxu0
  %v2629 = vadd.f32 0.0, %v2628
  %v2630 = vpop.f32.mrb[0].mxu0
  %2631 = vdwg.mxu0
  %v2632 = vadd.f32 %v2559, %v2629
  %v2633 = vxor.u32 %v2632, 2147483648
  %v2634 = vmul.f32 %v2633, 1.442695
  %v2635 = vpow.pop %v2634
  %v2636 = vadd.f32 %v2635, 1.0
  %v2637 = vrcp.pop %v2636
  %v2638 = vmul.f32 1.0, %v2637
  %v2639 = vtanh.pop %v2632
  %v2640 = vmul.f32 %v2638, %v2439
  %2642 = vrot.lane.b32.xlu0 %v2639, 32
  %v2643 = vpop.permute.xlu0 %2642
  %v2645 = vmul.f32 %v2638, %v2643
  %2647 = vrot.lane.b32.xlu0 %v2645, 32
  %v2648 = vpop.permute.xlu0 %2647
  %v2650 = vadd.f32 %v2640, %v2648
  %v2651 = vtanh.pop %v2650
  %2653 = vrot.lane.b32.xlu0 %v2651, 32
  %v2654 = vpop.permute.xlu0 %2653
  %v2656 = vmul.f32 %v2638, %v2654
  %s2657 = sadd.s32 %s76, 11
  %p2658 = scmp.lt.s32.totalorder %s2657, 8
  %s2659 = scalar_select %p2658, 1, 0
  %v2660 = vstv %s2659
  %vm2661 = vcmp.eq.s32.totalorder %v2660, 1
  %v2662 = vsel %vm2661, %v2656, %v2438
  %v2663 = vsel %vm2661, %v2650, %v2439
  %2665 = vrot.lane.b32.xlu0 %v2662, 64
  %v2666 = vpop.permute.xlu0 %2665
  %s2668 = scalar_lea.vmem %s3, 22
  %2669 = vst.msk [vmem:[%s2668] sm:$0x3] %vm196, %v2666
  %s2670 = scalar_lea.vmem %s43, 40
  %v2671 = vld [vmem:[%s2670] sm:$0x3]
  %v2672 = vsel %vm80, %v2554, 0
  %2674 = vmatprep.subr.mxu0 0.0
  %2675 = vmatpush1.msra.mxu0 %v68
  %2676 = vmatprep.subr.mxu0 0.0
  %2677 = vmatpush1.msra.mxu0 %v69
  %2678 = vmatprep.subr.mxu0 0.0
  %2679 = vmatpush1.msra.mxu0 %v70
  %2680 = vmatprep.subr.mxu0 0.0
  %2681 = vmatpush1.msra.mxu0 %v71
  %2682 = vmatprep.subr.mxu0 0.0
  %2683 = vmatpush1.msra.mxu0 0.0
  %2684 = vmatprep.subr.mxu0 0.0
  %2685 = vmatpush1.msra.mxu0 0.0
  %2686 = vmatprep.subr.mxu0 0.0
  %2687 = vmatpush1.msra.mxu0 0.0
  %2688 = vmatprep.subr.mxu0 0.0
  %2689 = vmatpush1.msra.mxu0 0.0
  %2690 = vmatprep.subr.mxu0 0.0
  %2691 = vmatpush1.msra.mxu0 0.0
  %2692 = vmatprep.subr.mxu0 0.0
  %2693 = vmatpush1.msra.mxu0 0.0
  %2694 = vmatprep.subr.mxu0 0.0
  %2695 = vmatpush1.msra.mxu0 0.0
  %2696 = vmatprep.subr.mxu0 0.0
  %2697 = vmatpush1.msra.mxu0 0.0
  %2698 = vmatprep.subr.mxu0 0.0
  %2699 = vmatpush1.msra.mxu0 0.0
  %2700 = vmatprep.subr.mxu0 0.0
  %2701 = vmatpush1.msra.mxu0 0.0
  %2702 = vmatprep.subr.mxu0 0.0
  %2703 = vmatpush1.msra.mxu0 0.0
  %2704 = vmatprep.subr.mxu0 0.0
  %2705 = vmatpush1.msra.mxu0 0.0
  %2706 = vmatprep.subr.mxu0 0.0
  %2707 = vmatpush1.msra.mxu0 0.0
  %2708 = vmatprep.subr.mxu0 0.0
  %2709 = vmatpush1.msra.mxu0 0.0
  %2710 = vmatprep.subr.mxu0 0.0
  %2711 = vmatpush1.msra.mxu0 0.0
  %2712 = vmatprep.subr.mxu0 0.0
  %2713 = vmatpush1.msra.mxu0 0.0
  %2714 = vmatprep.subr.mxu0 0.0
  %2715 = vmatpush1.msra.mxu0 0.0
  %2716 = vmatprep.subr.mxu0 0.0
  %2717 = vmatpush1.msra.mxu0 0.0
  %2718 = vmatprep.subr.mxu0 0.0
  %2719 = vmatpush1.msra.mxu0 0.0
  %2720 = vmatprep.subr.mxu0 0.0
  %2721 = vmatpush1.msra.mxu0 0.0
  %2722 = vmatprep.subr.mxu0 0.0
  %2723 = vmatpush1.msra.mxu0 0.0
  %2724 = vmatprep.subr.mxu0 0.0
  %2725 = vmatpush1.msra.mxu0 0.0
  %2726 = vmatprep.subr.mxu0 0.0
  %2727 = vmatpush1.msra.mxu0 0.0
  %2728 = vmatprep.subr.mxu0 0.0
  %2729 = vmatpush1.msra.mxu0 0.0
  %2730 = vmatprep.subr.mxu0 0.0
  %2731 = vmatpush1.msra.mxu0 0.0
  %2732 = vmatprep.subr.mxu0 0.0
  %2733 = vmatpush1.msra.mxu0 0.0
  %2734 = vmatprep.subr.mxu0 0.0
  %2735 = vmatpush1.msra.mxu0 0.0
  %2736 = vmatprep.subr.mxu0 0.0
  %2737 = vmatpush1.msra.mxu0 0.0
  %2738 = vmatprep.mubr.f32.mxu0 0.0
  %2739 = vmatmul.mubr.f32.gmra.mrb[0].mxu0 %v2672
  %v2740 = vpop.f32.mrb[0].mxu0
  %v2741 = vadd.f32 0.0, %v2740
  %v2742 = vpop.f32.mrb[0].mxu0
  %2743 = vdwg.mxu0
  %v2744 = vadd.f32 %v2671, %v2741
  %v2745 = vxor.u32 %v2744, 2147483648
  %v2746 = vmul.f32 %v2745, 1.442695
  %v2747 = vpow.pop %v2746
  %v2748 = vadd.f32 %v2747, 1.0
  %v2749 = vrcp.pop %v2748
  %v2750 = vmul.f32 1.0, %v2749
  %v2751 = vtanh.pop %v2744
  %v2752 = vmul.f32 %v2750, %v2551
  %2754 = vrot.lane.b32.xlu0 %v2751, 32
  %v2755 = vpop.permute.xlu0 %2754
  %v2757 = vmul.f32 %v2750, %v2755
  %2759 = vrot.lane.b32.xlu0 %v2757, 32
  %v2760 = vpop.permute.xlu0 %2759
  %v2762 = vadd.f32 %v2752, %v2760
  %v2763 = vtanh.pop %v2762
  %2765 = vrot.lane.b32.xlu0 %v2763, 32
  %v2766 = vpop.permute.xlu0 %2765
  %v2768 = vmul.f32 %v2750, %v2766
  %s2769 = sadd.s32 %s78, 20
  %p2770 = scmp.lt.s32.totalorder %s2769, 8
  %s2771 = scalar_select %p2770, 1, 0
  %v2772 = vstv %s2771
  %vm2773 = vcmp.eq.s32.totalorder %v2772, 1
  %v2774 = vsel %vm2773, %v2768, %v2550
  %v2775 = vsel %vm2773, %v2762, %v2551
  %2777 = vrot.lane.b32.xlu0 %v2774, 64
  %v2778 = vpop.permute.xlu0 %2777
  %s2780 = scalar_lea.vmem %s51, 40
  %2781 = vst.msk [vmem:[%s2780] sm:$0x3] %vm196, %v2778
  %s2782 = scalar_lea.vmem %s0, 24
  %v2783 = vld [vmem:[%s2782] sm:$0x3]
  %v2784 = vsel %vm80, %v2666, 0
  %2786 = vmatprep.subr.mxu0 0.0
  %2787 = vmatpush1.msra.mxu0 %v63
  %2788 = vmatprep.subr.mxu0 0.0
  %2789 = vmatpush1.msra.mxu0 %v64
  %2790 = vmatprep.subr.mxu0 0.0
  %2791 = vmatpush1.msra.mxu0 %v65
  %2792 = vmatprep.subr.mxu0 0.0
  %2793 = vmatpush1.msra.mxu0 %v66
  %2794 = vmatprep.subr.mxu0 0.0
  %2795 = vmatpush1.msra.mxu0 0.0
  %2796 = vmatprep.subr.mxu0 0.0
  %2797 = vmatpush1.msra.mxu0 0.0
  %2798 = vmatprep.subr.mxu0 0.0
  %2799 = vmatpush1.msra.mxu0 0.0
  %2800 = vmatprep.subr.mxu0 0.0
  %2801 = vmatpush1.msra.mxu0 0.0
  %2802 = vmatprep.subr.mxu0 0.0
  %2803 = vmatpush1.msra.mxu0 0.0
  %2804 = vmatprep.subr.mxu0 0.0
  %2805 = vmatpush1.msra.mxu0 0.0
  %2806 = vmatprep.subr.mxu0 0.0
  %2807 = vmatpush1.msra.mxu0 0.0
  %2808 = vmatprep.subr.mxu0 0.0
  %2809 = vmatpush1.msra.mxu0 0.0
  %2810 = vmatprep.subr.mxu0 0.0
  %2811 = vmatpush1.msra.mxu0 0.0
  %2812 = vmatprep.subr.mxu0 0.0
  %2813 = vmatpush1.msra.mxu0 0.0
  %2814 = vmatprep.subr.mxu0 0.0
  %2815 = vmatpush1.msra.mxu0 0.0
  %2816 = vmatprep.subr.mxu0 0.0
  %2817 = vmatpush1.msra.mxu0 0.0
  %2818 = vmatprep.subr.mxu0 0.0
  %2819 = vmatpush1.msra.mxu0 0.0
  %2820 = vmatprep.subr.mxu0 0.0
  %2821 = vmatpush1.msra.mxu0 0.0
  %2822 = vmatprep.subr.mxu0 0.0
  %2823 = vmatpush1.msra.mxu0 0.0
  %2824 = vmatprep.subr.mxu0 0.0
  %2825 = vmatpush1.msra.mxu0 0.0
  %2826 = vmatprep.subr.mxu0 0.0
  %2827 = vmatpush1.msra.mxu0 0.0
  %2828 = vmatprep.subr.mxu0 0.0
  %2829 = vmatpush1.msra.mxu0 0.0
  %2830 = vmatprep.subr.mxu0 0.0
  %2831 = vmatpush1.msra.mxu0 0.0
  %2832 = vmatprep.subr.mxu0 0.0
  %2833 = vmatpush1.msra.mxu0 0.0
  %2834 = vmatprep.subr.mxu0 0.0
  %2835 = vmatpush1.msra.mxu0 0.0
  %2836 = vmatprep.subr.mxu0 0.0
  %2837 = vmatpush1.msra.mxu0 0.0
  %2838 = vmatprep.subr.mxu0 0.0
  %2839 = vmatpush1.msra.mxu0 0.0
  %2840 = vmatprep.subr.mxu0 0.0
  %2841 = vmatpush1.msra.mxu0 0.0
  %2842 = vmatprep.subr.mxu0 0.0
  %2843 = vmatpush1.msra.mxu0 0.0
  %2844 = vmatprep.subr.mxu0 0.0
  %2845 = vmatpush1.msra.mxu0 0.0
  %2846 = vmatprep.subr.mxu0 0.0
  %2847 = vmatpush1.msra.mxu0 0.0
  %2848 = vmatprep.subr.mxu0 0.0
  %2849 = vmatpush1.msra.mxu0 0.0
  %2850 = vmatprep.mubr.f32.mxu0 0.0
  %2851 = vmatmul.mubr.f32.gmra.mrb[0].mxu0 %v2784
  %v2852 = vpop.f32.mrb[0].mxu0
  %v2853 = vadd.f32 0.0, %v2852
  %v2854 = vpop.f32.mrb[0].mxu0
  %2855 = vdwg.mxu0
  %v2856 = vadd.f32 %v2783, %v2853
  %v2857 = vxor.u32 %v2856, 2147483648
  %v2858 = vmul.f32 %v2857, 1.442695
  %v2859 = vpow.pop %v2858
  %v2860 = vadd.f32 %v2859, 1.0
  %v2861 = vrcp.pop %v2860
  %v2862 = vmul.f32 1.0, %v2861
  %v2863 = vtanh.pop %v2856
  %v2864 = vmul.f32 %v2862, %v2663
  %2866 = vrot.lane.b32.xlu0 %v2863, 32
  %v2867 = vpop.permute.xlu0 %2866
  %v2869 = vmul.f32 %v2862, %v2867
  %2871 = vrot.lane.b32.xlu0 %v2869, 32
  %v2872 = vpop.permute.xlu0 %2871
  %v2874 = vadd.f32 %v2864, %v2872
  %v2875 = vtanh.pop %v2874
  %2877 = vrot.lane.b32.xlu0 %v2875, 32
  %v2878 = vpop.permute.xlu0 %2877
  %v2880 = vmul.f32 %v2862, %v2878
  %s2881 = sadd.s32 %s76, 12
  %p2882 = scmp.lt.s32.totalorder %s2881, 8
  %s2883 = scalar_select %p2882, 1, 0
  %v2884 = vstv %s2883
  %vm2885 = vcmp.eq.s32.totalorder %v2884, 1
  %v2886 = vsel %vm2885, %v2880, %v2662
  %v2887 = vsel %vm2885, %v2874, %v2663
  %2889 = vrot.lane.b32.xlu0 %v2886, 64
  %v2890 = vpop.permute.xlu0 %2889
  %s2892 = scalar_lea.vmem %s3, 24
  %2893 = vst.msk [vmem:[%s2892] sm:$0x3] %vm196, %v2890
  %s2894 = scalar_lea.vmem %s43, 38
  %v2895 = vld [vmem:[%s2894] sm:$0x3]
  %v2896 = vsel %vm80, %v2778, 0
  %2898 = vmatprep.subr.mxu0 0.0
  %2899 = vmatpush1.msra.mxu0 %v68
  %2900 = vmatprep.subr.mxu0 0.0
  %2901 = vmatpush1.msra.mxu0 %v69
  %2902 = vmatprep.subr.mxu0 0.0
  %2903 = vmatpush1.msra.mxu0 %v70
  %2904 = vmatprep.subr.mxu0 0.0
  %2905 = vmatpush1.msra.mxu0 %v71
  %2906 = vmatprep.subr.mxu0 0.0
  %2907 = vmatpush1.msra.mxu0 0.0
  %2908 = vmatprep.subr.mxu0 0.0
  %2909 = vmatpush1.msra.mxu0 0.0
  %2910 = vmatprep.subr.mxu0 0.0
  %2911 = vmatpush1.msra.mxu0 0.0
  %2912 = vmatprep.subr.mxu0 0.0
  %2913 = vmatpush1.msra.mxu0 0.0
  %2914 = vmatprep.subr.mxu0 0.0
  %2915 = vmatpush1.msra.mxu0 0.0
  %2916 = vmatprep.subr.mxu0 0.0
  %2917 = vmatpush1.msra.mxu0 0.0
  %2918 = vmatprep.subr.mxu0 0.0
  %2919 = vmatpush1.msra.mxu0 0.0
  %2920 = vmatprep.subr.mxu0 0.0
  %2921 = vmatpush1.msra.mxu0 0.0
  %2922 = vmatprep.subr.mxu0 0.0
  %2923 = vmatpush1.msra.mxu0 0.0
  %2924 = vmatprep.subr.mxu0 0.0
  %2925 = vmatpush1.msra.mxu0 0.0
  %2926 = vmatprep.subr.mxu0 0.0
  %2927 = vmatpush1.msra.mxu0 0.0
  %2928 = vmatprep.subr.mxu0 0.0
  %2929 = vmatpush1.msra.mxu0 0.0
  %2930 = vmatprep.subr.mxu0 0.0
  %2931 = vmatpush1.msra.mxu0 0.0
  %2932 = vmatprep.subr.mxu0 0.0
  %2933 = vmatpush1.msra.mxu0 0.0
  %2934 = vmatprep.subr.mxu0 0.0
  %2935 = vmatpush1.msra.mxu0 0.0
  %2936 = vmatprep.subr.mxu0 0.0
  %2937 = vmatpush1.msra.mxu0 0.0
  %2938 = vmatprep.subr.mxu0 0.0
  %2939 = vmatpush1.msra.mxu0 0.0
  %2940 = vmatprep.subr.mxu0 0.0
  %2941 = vmatpush1.msra.mxu0 0.0
  %2942 = vmatprep.subr.mxu0 0.0
  %2943 = vmatpush1.msra.mxu0 0.0
  %2944 = vmatprep.subr.mxu0 0.0
  %2945 = vmatpush1.msra.mxu0 0.0
  %2946 = vmatprep.subr.mxu0 0.0
  %2947 = vmatpush1.msra.mxu0 0.0
  %2948 = vmatprep.subr.mxu0 0.0
  %2949 = vmatpush1.msra.mxu0 0.0
  %2950 = vmatprep.subr.mxu0 0.0
  %2951 = vmatpush1.msra.mxu0 0.0
  %2952 = vmatprep.subr.mxu0 0.0
  %2953 = vmatpush1.msra.mxu0 0.0
  %2954 = vmatprep.subr.mxu0 0.0
  %2955 = vmatpush1.msra.mxu0 0.0
  %2956 = vmatprep.subr.mxu0 0.0
  %2957 = vmatpush1.msra.mxu0 0.0
  %2958 = vmatprep.subr.mxu0 0.0
  %2959 = vmatpush1.msra.mxu0 0.0
  %2960 = vmatprep.subr.mxu0 0.0
  %2961 = vmatpush1.msra.mxu0 0.0
  %2962 = vmatprep.mubr.f32.mxu0 0.0
  %2963 = vmatmul.mubr.f32.gmra.mrb[0].mxu0 %v2896
  %v2964 = vpop.f32.mrb[0].mxu0
  %v2965 = vadd.f32 0.0, %v2964
  %v2966 = vpop.f32.mrb[0].mxu0
  %2967 = vdwg.mxu0
  %v2968 = vadd.f32 %v2895, %v2965
  %v2969 = vxor.u32 %v2968, 2147483648
  %v2970 = vmul.f32 %v2969, 1.442695
  %v2971 = vpow.pop %v2970
  %v2972 = vadd.f32 %v2971, 1.0
  %v2973 = vrcp.pop %v2972
  %v2974 = vmul.f32 1.0, %v2973
  %v2975 = vtanh.pop %v2968
  %v2976 = vmul.f32 %v2974, %v2775
  %2978 = vrot.lane.b32.xlu0 %v2975, 32
  %v2979 = vpop.permute.xlu0 %2978
  %v2981 = vmul.f32 %v2974, %v2979
  %2983 = vrot.lane.b32.xlu0 %v2981, 32
  %v2984 = vpop.permute.xlu0 %2983
  %v2986 = vadd.f32 %v2976, %v2984
  %v2987 = vtanh.pop %v2986
  %2989 = vrot.lane.b32.xlu0 %v2987, 32
  %v2990 = vpop.permute.xlu0 %2989
  %v2992 = vmul.f32 %v2974, %v2990
  %s2993 = sadd.s32 %s78, 19
  %p2994 = scmp.lt.s32.totalorder %s2993, 8
  %s2995 = scalar_select %p2994, 1, 0
  %v2996 = vstv %s2995
  %vm2997 = vcmp.eq.s32.totalorder %v2996, 1
  %v2998 = vsel %vm2997, %v2992, %v2774
  %v2999 = vsel %vm2997, %v2986, %v2775
  %3001 = vrot.lane.b32.xlu0 %v2998, 64
  %v3002 = vpop.permute.xlu0 %3001
  %s3004 = scalar_lea.vmem %s51, 38
  %3005 = vst.msk [vmem:[%s3004] sm:$0x3] %vm196, %v3002
  %s3006 = scalar_lea.vmem %s0, 26
  %v3007 = vld [vmem:[%s3006] sm:$0x3]
  %v3008 = vsel %vm80, %v2890, 0
  %3010 = vmatprep.subr.mxu0 0.0
  %3011 = vmatpush1.msra.mxu0 %v63
  %3012 = vmatprep.subr.mxu0 0.0
  %3013 = vmatpush1.msra.mxu0 %v64
  %3014 = vmatprep.subr.mxu0 0.0
  %3015 = vmatpush1.msra.mxu0 %v65
  %3016 = vmatprep.subr.mxu0 0.0
  %3017 = vmatpush1.msra.mxu0 %v66
  %3018 = vmatprep.subr.mxu0 0.0
  %3019 = vmatpush1.msra.mxu0 0.0
  %3020 = vmatprep.subr.mxu0 0.0
  %3021 = vmatpush1.msra.mxu0 0.0
  %3022 = vmatprep.subr.mxu0 0.0
  %3023 = vmatpush1.msra.mxu0 0.0
  %3024 = vmatprep.subr.mxu0 0.0
  %3025 = vmatpush1.msra.mxu0 0.0
  %3026 = vmatprep.subr.mxu0 0.0
  %3027 = vmatpush1.msra.mxu0 0.0
  %3028 = vmatprep.subr.mxu0 0.0
  %3029 = vmatpush1.msra.mxu0 0.0
  %3030 = vmatprep.subr.mxu0 0.0
  %3031 = vmatpush1.msra.mxu0 0.0
  %3032 = vmatprep.subr.mxu0 0.0
  %3033 = vmatpush1.msra.mxu0 0.0
  %3034 = vmatprep.subr.mxu0 0.0
  %3035 = vmatpush1.msra.mxu0 0.0
  %3036 = vmatprep.subr.mxu0 0.0
  %3037 = vmatpush1.msra.mxu0 0.0
  %3038 = vmatprep.subr.mxu0 0.0
  %3039 = vmatpush1.msra.mxu0 0.0
  %3040 = vmatprep.subr.mxu0 0.0
  %3041 = vmatpush1.msra.mxu0 0.0
  %3042 = vmatprep.subr.mxu0 0.0
  %3043 = vmatpush1.msra.mxu0 0.0
  %3044 = vmatprep.subr.mxu0 0.0
  %3045 = vmatpush1.msra.mxu0 0.0
  %3046 = vmatprep.subr.mxu0 0.0
  %3047 = vmatpush1.msra.mxu0 0.0
  %3048 = vmatprep.subr.mxu0 0.0
  %3049 = vmatpush1.msra.mxu0 0.0
  %3050 = vmatprep.subr.mxu0 0.0
  %3051 = vmatpush1.msra.mxu0 0.0
  %3052 = vmatprep.subr.mxu0 0.0
  %3053 = vmatpush1.msra.mxu0 0.0
  %3054 = vmatprep.subr.mxu0 0.0
  %3055 = vmatpush1.msra.mxu0 0.0
  %3056 = vmatprep.subr.mxu0 0.0
  %3057 = vmatpush1.msra.mxu0 0.0
  %3058 = vmatprep.subr.mxu0 0.0
  %3059 = vmatpush1.msra.mxu0 0.0
  %3060 = vmatprep.subr.mxu0 0.0
  %3061 = vmatpush1.msra.mxu0 0.0
  %3062 = vmatprep.subr.mxu0 0.0
  %3063 = vmatpush1.msra.mxu0 0.0
  %3064 = vmatprep.subr.mxu0 0.0
  %3065 = vmatpush1.msra.mxu0 0.0
  %3066 = vmatprep.subr.mxu0 0.0
  %3067 = vmatpush1.msra.mxu0 0.0
  %3068 = vmatprep.subr.mxu0 0.0
  %3069 = vmatpush1.msra.mxu0 0.0
  %3070 = vmatprep.subr.mxu0 0.0
  %3071 = vmatpush1.msra.mxu0 0.0
  %3072 = vmatprep.subr.mxu0 0.0
  %3073 = vmatpush1.msra.mxu0 0.0
  %3074 = vmatprep.mubr.f32.mxu0 0.0
  %3075 = vmatmul.mubr.f32.gmra.mrb[0].mxu0 %v3008
  %v3076 = vpop.f32.mrb[0].mxu0
  %v3077 = vadd.f32 0.0, %v3076
  %v3078 = vpop.f32.mrb[0].mxu0
  %3079 = vdwg.mxu0
  %v3080 = vadd.f32 %v3007, %v3077
  %v3081 = vxor.u32 %v3080, 2147483648
  %v3082 = vmul.f32 %v3081, 1.442695
  %v3083 = vpow.pop %v3082
  %v3084 = vadd.f32 %v3083, 1.0
  %v3085 = vrcp.pop %v3084
  %v3086 = vmul.f32 1.0, %v3085
  %v3087 = vtanh.pop %v3080
  %v3088 = vmul.f32 %v3086, %v2887
  %3090 = vrot.lane.b32.xlu0 %v3087, 32
  %v3091 = vpop.permute.xlu0 %3090
  %v3093 = vmul.f32 %v3086, %v3091
  %3095 = vrot.lane.b32.xlu0 %v3093, 32
  %v3096 = vpop.permute.xlu0 %3095
  %v3098 = vadd.f32 %v3088, %v3096
  %v3099 = vtanh.pop %v3098
  %3101 = vrot.lane.b32.xlu0 %v3099, 32
  %v3102 = vpop.permute.xlu0 %3101
  %v3104 = vmul.f32 %v3086, %v3102
  %s3105 = sadd.s32 %s76, 13
  %p3106 = scmp.lt.s32.totalorder %s3105, 8
  %s3107 = scalar_select %p3106, 1, 0
  %v3108 = vstv %s3107
  %vm3109 = vcmp.eq.s32.totalorder %v3108, 1
  %v3110 = vsel %vm3109, %v3104, %v2886
  %v3111 = vsel %vm3109, %v3098, %v2887
  %3113 = vrot.lane.b32.xlu0 %v3110, 64
  %v3114 = vpop.permute.xlu0 %3113
  %s3116 = scalar_lea.vmem %s3, 26
  %3117 = vst.msk [vmem:[%s3116] sm:$0x3] %vm196, %v3114
  %s3118 = scalar_lea.vmem %s43, 36
  %v3119 = vld [vmem:[%s3118] sm:$0x3]
  %v3120 = vsel %vm80, %v3002, 0
  %3122 = vmatprep.subr.mxu0 0.0
  %3123 = vmatpush1.msra.mxu0 %v68
  %3124 = vmatprep.subr.mxu0 0.0
  %3125 = vmatpush1.msra.mxu0 %v69
  %3126 = vmatprep.subr.mxu0 0.0
  %3127 = vmatpush1.msra.mxu0 %v70
  %3128 = vmatprep.subr.mxu0 0.0
  %3129 = vmatpush1.msra.mxu0 %v71
  %3130 = vmatprep.subr.mxu0 0.0
  %3131 = vmatpush1.msra.mxu0 0.0
  %3132 = vmatprep.subr.mxu0 0.0
  %3133 = vmatpush1.msra.mxu0 0.0
  %3134 = vmatprep.subr.mxu0 0.0
  %3135 = vmatpush1.msra.mxu0 0.0
  %3136 = vmatprep.subr.mxu0 0.0
  %3137 = vmatpush1.msra.mxu0 0.0
  %3138 = vmatprep.subr.mxu0 0.0
  %3139 = vmatpush1.msra.mxu0 0.0
  %3140 = vmatprep.subr.mxu0 0.0
  %3141 = vmatpush1.msra.mxu0 0.0
  %3142 = vmatprep.subr.mxu0 0.0
  %3143 = vmatpush1.msra.mxu0 0.0
  %3144 = vmatprep.subr.mxu0 0.0
  %3145 = vmatpush1.msra.mxu0 0.0
  %3146 = vmatprep.subr.mxu0 0.0
  %3147 = vmatpush1.msra.mxu0 0.0
  %3148 = vmatprep.subr.mxu0 0.0
  %3149 = vmatpush1.msra.mxu0 0.0
  %3150 = vmatprep.subr.mxu0 0.0
  %3151 = vmatpush1.msra.mxu0 0.0
  %3152 = vmatprep.subr.mxu0 0.0
  %3153 = vmatpush1.msra.mxu0 0.0
  %3154 = vmatprep.subr.mxu0 0.0
  %3155 = vmatpush1.msra.mxu0 0.0
  %3156 = vmatprep.subr.mxu0 0.0
  %3157 = vmatpush1.msra.mxu0 0.0
  %3158 = vmatprep.subr.mxu0 0.0
  %3159 = vmatpush1.msra.mxu0 0.0
  %3160 = vmatprep.subr.mxu0 0.0
  %3161 = vmatpush1.msra.mxu0 0.0
  %3162 = vmatprep.subr.mxu0 0.0
  %3163 = vmatpush1.msra.mxu0 0.0
  %3164 = vmatprep.subr.mxu0 0.0
  %3165 = vmatpush1.msra.mxu0 0.0
  %3166 = vmatprep.subr.mxu0 0.0
  %3167 = vmatpush1.msra.mxu0 0.0
  %3168 = vmatprep.subr.mxu0 0.0
  %3169 = vmatpush1.msra.mxu0 0.0
  %3170 = vmatprep.subr.mxu0 0.0
  %3171 = vmatpush1.msra.mxu0 0.0
  %3172 = vmatprep.subr.mxu0 0.0
  %3173 = vmatpush1.msra.mxu0 0.0
  %3174 = vmatprep.subr.mxu0 0.0
  %3175 = vmatpush1.msra.mxu0 0.0
  %3176 = vmatprep.subr.mxu0 0.0
  %3177 = vmatpush1.msra.mxu0 0.0
  %3178 = vmatprep.subr.mxu0 0.0
  %3179 = vmatpush1.msra.mxu0 0.0
  %3180 = vmatprep.subr.mxu0 0.0
  %3181 = vmatpush1.msra.mxu0 0.0
  %3182 = vmatprep.subr.mxu0 0.0
  %3183 = vmatpush1.msra.mxu0 0.0
  %3184 = vmatprep.subr.mxu0 0.0
  %3185 = vmatpush1.msra.mxu0 0.0
  %3186 = vmatprep.mubr.f32.mxu0 0.0
  %3187 = vmatmul.mubr.f32.gmra.mrb[0].mxu0 %v3120
  %v3188 = vpop.f32.mrb[0].mxu0
  %v3189 = vadd.f32 0.0, %v3188
  %v3190 = vpop.f32.mrb[0].mxu0
  %3191 = vdwg.mxu0
  %v3192 = vadd.f32 %v3119, %v3189
  %v3193 = vxor.u32 %v3192, 2147483648
  %v3194 = vmul.f32 %v3193, 1.442695
  %v3195 = vpow.pop %v3194
  %v3196 = vadd.f32 %v3195, 1.0
  %v3197 = vrcp.pop %v3196
  %v3198 = vmul.f32 1.0, %v3197
  %v3199 = vtanh.pop %v3192
  %v3200 = vmul.f32 %v3198, %v2999
  %3202 = vrot.lane.b32.xlu0 %v3199, 32
  %v3203 = vpop.permute.xlu0 %3202
  %v3205 = vmul.f32 %v3198, %v3203
  %3207 = vrot.lane.b32.xlu0 %v3205, 32
  %v3208 = vpop.permute.xlu0 %3207
  %v3210 = vadd.f32 %v3200, %v3208
  %v3211 = vtanh.pop %v3210
  %3213 = vrot.lane.b32.xlu0 %v3211, 32
  %v3214 = vpop.permute.xlu0 %3213
  %v3216 = vmul.f32 %v3198, %v3214
  %s3217 = sadd.s32 %s78, 18
  %p3218 = scmp.lt.s32.totalorder %s3217, 8
  %s3219 = scalar_select %p3218, 1, 0
  %v3220 = vstv %s3219
  %vm3221 = vcmp.eq.s32.totalorder %v3220, 1
  %v3222 = vsel %vm3221, %v3216, %v2998
  %v3223 = vsel %vm3221, %v3210, %v2999
  %3225 = vrot.lane.b32.xlu0 %v3222, 64
  %v3226 = vpop.permute.xlu0 %3225
  %s3228 = scalar_lea.vmem %s51, 36
  %3229 = vst.msk [vmem:[%s3228] sm:$0x3] %vm196, %v3226
  %s3230 = scalar_lea.vmem %s0, 28
  %v3231 = vld [vmem:[%s3230] sm:$0x3]
  %v3232 = vsel %vm80, %v3114, 0
  %3234 = vmatprep.subr.mxu0 0.0
  %3235 = vmatpush1.msra.mxu0 %v63
  %3236 = vmatprep.subr.mxu0 0.0
  %3237 = vmatpush1.msra.mxu0 %v64
  %3238 = vmatprep.subr.mxu0 0.0
  %3239 = vmatpush1.msra.mxu0 %v65
  %3240 = vmatprep.subr.mxu0 0.0
  %3241 = vmatpush1.msra.mxu0 %v66
  %3242 = vmatprep.subr.mxu0 0.0
  %3243 = vmatpush1.msra.mxu0 0.0
  %3244 = vmatprep.subr.mxu0 0.0
  %3245 = vmatpush1.msra.mxu0 0.0
  %3246 = vmatprep.subr.mxu0 0.0
  %3247 = vmatpush1.msra.mxu0 0.0
  %3248 = vmatprep.subr.mxu0 0.0
  %3249 = vmatpush1.msra.mxu0 0.0
  %3250 = vmatprep.subr.mxu0 0.0
  %3251 = vmatpush1.msra.mxu0 0.0
  %3252 = vmatprep.subr.mxu0 0.0
  %3253 = vmatpush1.msra.mxu0 0.0
  %3254 = vmatprep.subr.mxu0 0.0
  %3255 = vmatpush1.msra.mxu0 0.0
  %3256 = vmatprep.subr.mxu0 0.0
  %3257 = vmatpush1.msra.mxu0 0.0
  %3258 = vmatprep.subr.mxu0 0.0
  %3259 = vmatpush1.msra.mxu0 0.0
  %3260 = vmatprep.subr.mxu0 0.0
  %3261 = vmatpush1.msra.mxu0 0.0
  %3262 = vmatprep.subr.mxu0 0.0
  %3263 = vmatpush1.msra.mxu0 0.0
  %3264 = vmatprep.subr.mxu0 0.0
  %3265 = vmatpush1.msra.mxu0 0.0
  %3266 = vmatprep.subr.mxu0 0.0
  %3267 = vmatpush1.msra.mxu0 0.0
  %3268 = vmatprep.subr.mxu0 0.0
  %3269 = vmatpush1.msra.mxu0 0.0
  %3270 = vmatprep.subr.mxu0 0.0
  %3271 = vmatpush1.msra.mxu0 0.0
  %3272 = vmatprep.subr.mxu0 0.0
  %3273 = vmatpush1.msra.mxu0 0.0
  %3274 = vmatprep.subr.mxu0 0.0
  %3275 = vmatpush1.msra.mxu0 0.0
  %3276 = vmatprep.subr.mxu0 0.0
  %3277 = vmatpush1.msra.mxu0 0.0
  %3278 = vmatprep.subr.mxu0 0.0
  %3279 = vmatpush1.msra.mxu0 0.0
  %3280 = vmatprep.subr.mxu0 0.0
  %3281 = vmatpush1.msra.mxu0 0.0
  %3282 = vmatprep.subr.mxu0 0.0
  %3283 = vmatpush1.msra.mxu0 0.0
  %3284 = vmatprep.subr.mxu0 0.0
  %3285 = vmatpush1.msra.mxu0 0.0
  %3286 = vmatprep.subr.mxu0 0.0
  %3287 = vmatpush1.msra.mxu0 0.0
  %3288 = vmatprep.subr.mxu0 0.0
  %3289 = vmatpush1.msra.mxu0 0.0
  %3290 = vmatprep.subr.mxu0 0.0
  %3291 = vmatpush1.msra.mxu0 0.0
  %3292 = vmatprep.subr.mxu0 0.0
  %3293 = vmatpush1.msra.mxu0 0.0
  %3294 = vmatprep.subr.mxu0 0.0
  %3295 = vmatpush1.msra.mxu0 0.0
  %3296 = vmatprep.subr.mxu0 0.0
  %3297 = vmatpush1.msra.mxu0 0.0
  %3298 = vmatprep.mubr.f32.mxu0 0.0
  %3299 = vmatmul.mubr.f32.gmra.mrb[0].mxu0 %v3232
  %v3300 = vpop.f32.mrb[0].mxu0
  %v3301 = vadd.f32 0.0, %v3300
  %v3302 = vpop.f32.mrb[0].mxu0
  %3303 = vdwg.mxu0
  %v3304 = vadd.f32 %v3231, %v3301
  %v3305 = vxor.u32 %v3304, 2147483648
  %v3306 = vmul.f32 %v3305, 1.442695
  %v3307 = vpow.pop %v3306
  %v3308 = vadd.f32 %v3307, 1.0
  %v3309 = vrcp.pop %v3308
  %v3310 = vmul.f32 1.0, %v3309
  %v3311 = vtanh.pop %v3304
  %v3312 = vmul.f32 %v3310, %v3111
  %3314 = vrot.lane.b32.xlu0 %v3311, 32
  %v3315 = vpop.permute.xlu0 %3314
  %v3317 = vmul.f32 %v3310, %v3315
  %3319 = vrot.lane.b32.xlu0 %v3317, 32
  %v3320 = vpop.permute.xlu0 %3319
  %v3322 = vadd.f32 %v3312, %v3320
  %v3323 = vtanh.pop %v3322
  %3325 = vrot.lane.b32.xlu0 %v3323, 32
  %v3326 = vpop.permute.xlu0 %3325
  %v3328 = vmul.f32 %v3310, %v3326
  %s3329 = sadd.s32 %s76, 14
  %p3330 = scmp.lt.s32.totalorder %s3329, 8
  %s3331 = scalar_select %p3330, 1, 0
  %v3332 = vstv %s3331
  %vm3333 = vcmp.eq.s32.totalorder %v3332, 1
  %v3334 = vsel %vm3333, %v3328, %v3110
  %v3335 = vsel %vm3333, %v3322, %v3111
  %3337 = vrot.lane.b32.xlu0 %v3334, 64
  %v3338 = vpop.permute.xlu0 %3337
  %s3340 = scalar_lea.vmem %s3, 28
  %3341 = vst.msk [vmem:[%s3340] sm:$0x3] %vm196, %v3338
  %s3342 = scalar_lea.vmem %s43, 34
  %v3343 = vld [vmem:[%s3342] sm:$0x3]
  %v3344 = vsel %vm80, %v3226, 0
  %3346 = vmatprep.subr.mxu0 0.0
  %3347 = vmatpush1.msra.mxu0 %v68
  %3348 = vmatprep.subr.mxu0 0.0
  %3349 = vmatpush1.msra.mxu0 %v69
  %3350 = vmatprep.subr.mxu0 0.0
  %3351 = vmatpush1.msra.mxu0 %v70
  %3352 = vmatprep.subr.mxu0 0.0
  %3353 = vmatpush1.msra.mxu0 %v71
  %3354 = vmatprep.subr.mxu0 0.0
  %3355 = vmatpush1.msra.mxu0 0.0
  %3356 = vmatprep.subr.mxu0 0.0
  %3357 = vmatpush1.msra.mxu0 0.0
  %3358 = vmatprep.subr.mxu0 0.0
  %3359 = vmatpush1.msra.mxu0 0.0
  %3360 = vmatprep.subr.mxu0 0.0
  %3361 = vmatpush1.msra.mxu0 0.0
  %3362 = vmatprep.subr.mxu0 0.0
  %3363 = vmatpush1.msra.mxu0 0.0
  %3364 = vmatprep.subr.mxu0 0.0
  %3365 = vmatpush1.msra.mxu0 0.0
  %3366 = vmatprep.subr.mxu0 0.0
  %3367 = vmatpush1.msra.mxu0 0.0
  %3368 = vmatprep.subr.mxu0 0.0
  %3369 = vmatpush1.msra.mxu0 0.0
  %3370 = vmatprep.subr.mxu0 0.0
  %3371 = vmatpush1.msra.mxu0 0.0
  %3372 = vmatprep.subr.mxu0 0.0
  %3373 = vmatpush1.msra.mxu0 0.0
  %3374 = vmatprep.subr.mxu0 0.0
  %3375 = vmatpush1.msra.mxu0 0.0
  %3376 = vmatprep.subr.mxu0 0.0
  %3377 = vmatpush1.msra.mxu0 0.0
  %3378 = vmatprep.subr.mxu0 0.0
  %3379 = vmatpush1.msra.mxu0 0.0
  %3380 = vmatprep.subr.mxu0 0.0
  %3381 = vmatpush1.msra.mxu0 0.0
  %3382 = vmatprep.subr.mxu0 0.0
  %3383 = vmatpush1.msra.mxu0 0.0
  %3384 = vmatprep.subr.mxu0 0.0
  %3385 = vmatpush1.msra.mxu0 0.0
  %3386 = vmatprep.subr.mxu0 0.0
  %3387 = vmatpush1.msra.mxu0 0.0
  %3388 = vmatprep.subr.mxu0 0.0
  %3389 = vmatpush1.msra.mxu0 0.0
  %3390 = vmatprep.subr.mxu0 0.0
  %3391 = vmatpush1.msra.mxu0 0.0
  %3392 = vmatprep.subr.mxu0 0.0
  %3393 = vmatpush1.msra.mxu0 0.0
  %3394 = vmatprep.subr.mxu0 0.0
  %3395 = vmatpush1.msra.mxu0 0.0
  %3396 = vmatprep.subr.mxu0 0.0
  %3397 = vmatpush1.msra.mxu0 0.0
  %3398 = vmatprep.subr.mxu0 0.0
  %3399 = vmatpush1.msra.mxu0 0.0
  %3400 = vmatprep.subr.mxu0 0.0
  %3401 = vmatpush1.msra.mxu0 0.0
  %3402 = vmatprep.subr.mxu0 0.0
  %3403 = vmatpush1.msra.mxu0 0.0
  %3404 = vmatprep.subr.mxu0 0.0
  %3405 = vmatpush1.msra.mxu0 0.0
  %3406 = vmatprep.subr.mxu0 0.0
  %3407 = vmatpush1.msra.mxu0 0.0
  %3408 = vmatprep.subr.mxu0 0.0
  %3409 = vmatpush1.msra.mxu0 0.0
  %3410 = vmatprep.mubr.f32.mxu0 0.0
  %3411 = vmatmul.mubr.f32.gmra.mrb[0].mxu0 %v3344
  %v3412 = vpop.f32.mrb[0].mxu0
  %v3413 = vadd.f32 0.0, %v3412
  %v3414 = vpop.f32.mrb[0].mxu0
  %3415 = vdwg.mxu0
  %v3416 = vadd.f32 %v3343, %v3413
  %v3417 = vxor.u32 %v3416, 2147483648
  %v3418 = vmul.f32 %v3417, 1.442695
  %v3419 = vpow.pop %v3418
  %v3420 = vadd.f32 %v3419, 1.0
  %v3421 = vrcp.pop %v3420
  %v3422 = vmul.f32 1.0, %v3421
  %v3423 = vtanh.pop %v3416
  %v3424 = vmul.f32 %v3422, %v3223
  %3426 = vrot.lane.b32.xlu0 %v3423, 32
  %v3427 = vpop.permute.xlu0 %3426
  %v3429 = vmul.f32 %v3422, %v3427
  %3431 = vrot.lane.b32.xlu0 %v3429, 32
  %v3432 = vpop.permute.xlu0 %3431
  %v3434 = vadd.f32 %v3424, %v3432
  %v3435 = vtanh.pop %v3434
  %3437 = vrot.lane.b32.xlu0 %v3435, 32
  %v3438 = vpop.permute.xlu0 %3437
  %v3440 = vmul.f32 %v3422, %v3438
  %s3441 = sadd.s32 %s78, 17
  %p3442 = scmp.lt.s32.totalorder %s3441, 8
  %s3443 = scalar_select %p3442, 1, 0
  %v3444 = vstv %s3443
  %vm3445 = vcmp.eq.s32.totalorder %v3444, 1
  %v3446 = vsel %vm3445, %v3440, %v3222
  %v3447 = vsel %vm3445, %v3434, %v3223
  %3449 = vrot.lane.b32.xlu0 %v3446, 64
  %v3450 = vpop.permute.xlu0 %3449
  %s3452 = scalar_lea.vmem %s51, 34
  %3453 = vst.msk [vmem:[%s3452] sm:$0x3] %vm196, %v3450
  %s3454 = scalar_lea.vmem %s0, 30
  %v3455 = vld [vmem:[%s3454] sm:$0x3]
  %v3456 = vsel %vm80, %v3338, 0
  %3458 = vmatprep.subr.mxu0 0.0
  %3459 = vmatpush1.msra.mxu0 %v63
  %3460 = vmatprep.subr.mxu0 0.0
  %3461 = vmatpush1.msra.mxu0 %v64
  %3462 = vmatprep.subr.mxu0 0.0
  %3463 = vmatpush1.msra.mxu0 %v65
  %3464 = vmatprep.subr.mxu0 0.0
  %3465 = vmatpush1.msra.mxu0 %v66
  %3466 = vmatprep.subr.mxu0 0.0
  %3467 = vmatpush1.msra.mxu0 0.0
  %3468 = vmatprep.subr.mxu0 0.0
  %3469 = vmatpush1.msra.mxu0 0.0
  %3470 = vmatprep.subr.mxu0 0.0
  %3471 = vmatpush1.msra.mxu0 0.0
  %3472 = vmatprep.subr.mxu0 0.0
  %3473 = vmatpush1.msra.mxu0 0.0
  %3474 = vmatprep.subr.mxu0 0.0
  %3475 = vmatpush1.msra.mxu0 0.0
  %3476 = vmatprep.subr.mxu0 0.0
  %3477 = vmatpush1.msra.mxu0 0.0
  %3478 = vmatprep.subr.mxu0 0.0
  %3479 = vmatpush1.msra.mxu0 0.0
  %3480 = vmatprep.subr.mxu0 0.0
  %3481 = vmatpush1.msra.mxu0 0.0
  %3482 = vmatprep.subr.mxu0 0.0
  %3483 = vmatpush1.msra.mxu0 0.0
  %3484 = vmatprep.subr.mxu0 0.0
  %3485 = vmatpush1.msra.mxu0 0.0
  %3486 = vmatprep.subr.mxu0 0.0
  %3487 = vmatpush1.msra.mxu0 0.0
  %3488 = vmatprep.subr.mxu0 0.0
  %3489 = vmatpush1.msra.mxu0 0.0
  %3490 = vmatprep.subr.mxu0 0.0
  %3491 = vmatpush1.msra.mxu0 0.0
  %3492 = vmatprep.subr.mxu0 0.0
  %3493 = vmatpush1.msra.mxu0 0.0
  %3494 = vmatprep.subr.mxu0 0.0
  %3495 = vmatpush1.msra.mxu0 0.0
  %3496 = vmatprep.subr.mxu0 0.0
  %3497 = vmatpush1.msra.mxu0 0.0
  %3498 = vmatprep.subr.mxu0 0.0
  %3499 = vmatpush1.msra.mxu0 0.0
  %3500 = vmatprep.subr.mxu0 0.0
  %3501 = vmatpush1.msra.mxu0 0.0
  %3502 = vmatprep.subr.mxu0 0.0
  %3503 = vmatpush1.msra.mxu0 0.0
  %3504 = vmatprep.subr.mxu0 0.0
  %3505 = vmatpush1.msra.mxu0 0.0
  %3506 = vmatprep.subr.mxu0 0.0
  %3507 = vmatpush1.msra.mxu0 0.0
  %3508 = vmatprep.subr.mxu0 0.0
  %3509 = vmatpush1.msra.mxu0 0.0
  %3510 = vmatprep.subr.mxu0 0.0
  %3511 = vmatpush1.msra.mxu0 0.0
  %3512 = vmatprep.subr.mxu0 0.0
  %3513 = vmatpush1.msra.mxu0 0.0
  %3514 = vmatprep.subr.mxu0 0.0
  %3515 = vmatpush1.msra.mxu0 0.0
  %3516 = vmatprep.subr.mxu0 0.0
  %3517 = vmatpush1.msra.mxu0 0.0
  %3518 = vmatprep.subr.mxu0 0.0
  %3519 = vmatpush1.msra.mxu0 0.0
  %3520 = vmatprep.subr.mxu0 0.0
  %3521 = vmatpush1.msra.mxu0 0.0
  %3522 = vmatprep.mubr.f32.mxu0 0.0
  %3523 = vmatmul.mubr.f32.gmra.mrb[0].mxu0 %v3456
  %v3524 = vpop.f32.mrb[0].mxu0
  %v3525 = vadd.f32 0.0, %v3524
  %v3526 = vpop.f32.mrb[0].mxu0
  %3527 = vdwg.mxu0
  %v3528 = vadd.f32 %v3455, %v3525
  %v3529 = vxor.u32 %v3528, 2147483648
  %v3530 = vmul.f32 %v3529, 1.442695
  %v3531 = vpow.pop %v3530
  %v3532 = vadd.f32 %v3531, 1.0
  %v3533 = vrcp.pop %v3532
  %v3534 = vmul.f32 1.0, %v3533
  %v3535 = vtanh.pop %v3528
  %v3536 = vmul.f32 %v3534, %v3335
  %3538 = vrot.lane.b32.xlu0 %v3535, 32
  %v3539 = vpop.permute.xlu0 %3538
  %v3541 = vmul.f32 %v3534, %v3539
  %3543 = vrot.lane.b32.xlu0 %v3541, 32
  %v3544 = vpop.permute.xlu0 %3543
  %v3546 = vadd.f32 %v3536, %v3544
  %v3547 = vtanh.pop %v3546
  %3549 = vrot.lane.b32.xlu0 %v3547, 32
  %v3550 = vpop.permute.xlu0 %3549
  %v3552 = vmul.f32 %v3534, %v3550
  %s3553 = sadd.s32 %s76, 15
  %p3554 = scmp.lt.s32.totalorder %s3553, 8
  %s3555 = scalar_select %p3554, 1, 0
  %v3556 = vstv %s3555
  %vm3557 = vcmp.eq.s32.totalorder %v3556, 1
  %v3558 = vsel %vm3557, %v3552, %v3334
  %v3559 = vsel %vm3557, %v3546, %v3335
  %3561 = vrot.lane.b32.xlu0 %v3558, 64
  %v3562 = vpop.permute.xlu0 %3561
  %s3564 = scalar_lea.vmem %s3, 30
  %3565 = vst.msk [vmem:[%s3564] sm:$0x3] %vm196, %v3562
  %s3566 = scalar_lea.vmem %s43, 32
  %v3567 = vld [vmem:[%s3566] sm:$0x3]
  %v3568 = vsel %vm80, %v3450, 0
  %3570 = vmatprep.subr.mxu0 0.0
  %3571 = vmatpush1.msra.mxu0 %v68
  %3572 = vmatprep.subr.mxu0 0.0
  %3573 = vmatpush1.msra.mxu0 %v69
  %3574 = vmatprep.subr.mxu0 0.0
  %3575 = vmatpush1.msra.mxu0 %v70
  %3576 = vmatprep.subr.mxu0 0.0
  %3577 = vmatpush1.msra.mxu0 %v71
  %3578 = vmatprep.subr.mxu0 0.0
  %3579 = vmatpush1.msra.mxu0 0.0
  %3580 = vmatprep.subr.mxu0 0.0
  %3581 = vmatpush1.msra.mxu0 0.0
  %3582 = vmatprep.subr.mxu0 0.0
  %3583 = vmatpush1.msra.mxu0 0.0
  %3584 = vmatprep.subr.mxu0 0.0
  %3585 = vmatpush1.msra.mxu0 0.0
  %3586 = vmatprep.subr.mxu0 0.0
  %3587 = vmatpush1.msra.mxu0 0.0
  %3588 = vmatprep.subr.mxu0 0.0
  %3589 = vmatpush1.msra.mxu0 0.0
  %3590 = vmatprep.subr.mxu0 0.0
  %3591 = vmatpush1.msra.mxu0 0.0
  %3592 = vmatprep.subr.mxu0 0.0
  %3593 = vmatpush1.msra.mxu0 0.0
  %3594 = vmatprep.subr.mxu0 0.0
  %3595 = vmatpush1.msra.mxu0 0.0
  %3596 = vmatprep.subr.mxu0 0.0
  %3597 = vmatpush1.msra.mxu0 0.0
  %3598 = vmatprep.subr.mxu0 0.0
  %3599 = vmatpush1.msra.mxu0 0.0
  %3600 = vmatprep.subr.mxu0 0.0
  %3601 = vmatpush1.msra.mxu0 0.0
  %3602 = vmatprep.subr.mxu0 0.0
  %3603 = vmatpush1.msra.mxu0 0.0
  %3604 = vmatprep.subr.mxu0 0.0
  %3605 = vmatpush1.msra.mxu0 0.0
  %3606 = vmatprep.subr.mxu0 0.0
  %3607 = vmatpush1.msra.mxu0 0.0
  %3608 = vmatprep.subr.mxu0 0.0
  %3609 = vmatpush1.msra.mxu0 0.0
  %3610 = vmatprep.subr.mxu0 0.0
  %3611 = vmatpush1.msra.mxu0 0.0
  %3612 = vmatprep.subr.mxu0 0.0
  %3613 = vmatpush1.msra.mxu0 0.0
  %3614 = vmatprep.subr.mxu0 0.0
  %3615 = vmatpush1.msra.mxu0 0.0
  %3616 = vmatprep.subr.mxu0 0.0
  %3617 = vmatpush1.msra.mxu0 0.0
  %3618 = vmatprep.subr.mxu0 0.0
  %3619 = vmatpush1.msra.mxu0 0.0
  %3620 = vmatprep.subr.mxu0 0.0
  %3621 = vmatpush1.msra.mxu0 0.0
  %3622 = vmatprep.subr.mxu0 0.0
  %3623 = vmatpush1.msra.mxu0 0.0
  %3624 = vmatprep.subr.mxu0 0.0
  %3625 = vmatpush1.msra.mxu0 0.0
  %3626 = vmatprep.subr.mxu0 0.0
  %3627 = vmatpush1.msra.mxu0 0.0
  %3628 = vmatprep.subr.mxu0 0.0
  %3629 = vmatpush1.msra.mxu0 0.0
  %3630 = vmatprep.subr.mxu0 0.0
  %3631 = vmatpush1.msra.mxu0 0.0
  %3632 = vmatprep.subr.mxu0 0.0
  %3633 = vmatpush1.msra.mxu0 0.0
  %3634 = vmatprep.mubr.f32.mxu0 0.0
  %3635 = vmatmul.mubr.f32.gmra.mrb[0].mxu0 %v3568
  %v3636 = vpop.f32.mrb[0].mxu0
  %v3637 = vadd.f32 0.0, %v3636
  %v3638 = vpop.f32.mrb[0].mxu0
  %3639 = vdwg.mxu0
  %v3640 = vadd.f32 %v3567, %v3637
  %v3641 = vxor.u32 %v3640, 2147483648
  %v3642 = vmul.f32 %v3641, 1.442695
  %v3643 = vpow.pop %v3642
  %v3644 = vadd.f32 %v3643, 1.0
  %v3645 = vrcp.pop %v3644
  %v3646 = vmul.f32 1.0, %v3645
  %v3647 = vtanh.pop %v3640
  %v3648 = vmul.f32 %v3646, %v3447
  %3650 = vrot.lane.b32.xlu0 %v3647, 32
  %v3651 = vpop.permute.xlu0 %3650
  %v3653 = vmul.f32 %v3646, %v3651
  %3655 = vrot.lane.b32.xlu0 %v3653, 32
  %v3656 = vpop.permute.xlu0 %3655
  %v3658 = vadd.f32 %v3648, %v3656
  %v3659 = vtanh.pop %v3658
  %3661 = vrot.lane.b32.xlu0 %v3659, 32
  %v3662 = vpop.permute.xlu0 %3661
  %v3664 = vmul.f32 %v3646, %v3662
  %s3665 = sadd.s32 %s78, 16
  %p3666 = scmp.lt.s32.totalorder %s3665, 8
  %s3667 = scalar_select %p3666, 1, 0
  %v3668 = vstv %s3667
  %vm3669 = vcmp.eq.s32.totalorder %v3668, 1
  %v3670 = vsel %vm3669, %v3664, %v3446
  %v3671 = vsel %vm3669, %v3658, %v3447
  %3673 = vrot.lane.b32.xlu0 %v3670, 64
  %v3674 = vpop.permute.xlu0 %3673
  %s3676 = scalar_lea.vmem %s51, 32
  %3677 = vst.msk [vmem:[%s3676] sm:$0x3] %vm196, %v3674
  %s3678 = scalar_lea.vmem %s0, 32
  %v3679 = vld [vmem:[%s3678] sm:$0x3]
  %v3680 = vsel %vm80, %v3562, 0
  %3682 = vmatprep.subr.mxu0 0.0
  %3683 = vmatpush1.msra.mxu0 %v63
  %3684 = vmatprep.subr.mxu0 0.0
  %3685 = vmatpush1.msra.mxu0 %v64
  %3686 = vmatprep.subr.mxu0 0.0
  %3687 = vmatpush1.msra.mxu0 %v65
  %3688 = vmatprep.subr.mxu0 0.0
  %3689 = vmatpush1.msra.mxu0 %v66
  %3690 = vmatprep.subr.mxu0 0.0
  %3691 = vmatpush1.msra.mxu0 0.0
  %3692 = vmatprep.subr.mxu0 0.0
  %3693 = vmatpush1.msra.mxu0 0.0
  %3694 = vmatprep.subr.mxu0 0.0
  %3695 = vmatpush1.msra.mxu0 0.0
  %3696 = vmatprep.subr.mxu0 0.0
  %3697 = vmatpush1.msra.mxu0 0.0
  %3698 = vmatprep.subr.mxu0 0.0
  %3699 = vmatpush1.msra.mxu0 0.0
  %3700 = vmatprep.subr.mxu0 0.0
  %3701 = vmatpush1.msra.mxu0 0.0
  %3702 = vmatprep.subr.mxu0 0.0
  %3703 = vmatpush1.msra.mxu0 0.0
  %3704 = vmatprep.subr.mxu0 0.0
  %3705 = vmatpush1.msra.mxu0 0.0
  %3706 = vmatprep.subr.mxu0 0.0
  %3707 = vmatpush1.msra.mxu0 0.0
  %3708 = vmatprep.subr.mxu0 0.0
  %3709 = vmatpush1.msra.mxu0 0.0
  %3710 = vmatprep.subr.mxu0 0.0
  %3711 = vmatpush1.msra.mxu0 0.0
  %3712 = vmatprep.subr.mxu0 0.0
  %3713 = vmatpush1.msra.mxu0 0.0
  %3714 = vmatprep.subr.mxu0 0.0
  %3715 = vmatpush1.msra.mxu0 0.0
  %3716 = vmatprep.subr.mxu0 0.0
  %3717 = vmatpush1.msra.mxu0 0.0
  %3718 = vmatprep.subr.mxu0 0.0
  %3719 = vmatpush1.msra.mxu0 0.0
  %3720 = vmatprep.subr.mxu0 0.0
  %3721 = vmatpush1.msra.mxu0 0.0
  %3722 = vmatprep.subr.mxu0 0.0
  %3723 = vmatpush1.msra.mxu0 0.0
  %3724 = vmatprep.subr.mxu0 0.0
  %3725 = vmatpush1.msra.mxu0 0.0
  %3726 = vmatprep.subr.mxu0 0.0
  %3727 = vmatpush1.msra.mxu0 0.0
  %3728 = vmatprep.subr.mxu0 0.0
  %3729 = vmatpush1.msra.mxu0 0.0
  %3730 = vmatprep.subr.mxu0 0.0
  %3731 = vmatpush1.msra.mxu0 0.0
  %3732 = vmatprep.subr.mxu0 0.0
  %3733 = vmatpush1.msra.mxu0 0.0
  %3734 = vmatprep.subr.mxu0 0.0
  %3735 = vmatpush1.msra.mxu0 0.0
  %3736 = vmatprep.subr.mxu0 0.0
  %3737 = vmatpush1.msra.mxu0 0.0
  %3738 = vmatprep.subr.mxu0 0.0
  %3739 = vmatpush1.msra.mxu0 0.0
  %3740 = vmatprep.subr.mxu0 0.0
  %3741 = vmatpush1.msra.mxu0 0.0
  %3742 = vmatprep.subr.mxu0 0.0
  %3743 = vmatpush1.msra.mxu0 0.0
  %3744 = vmatprep.subr.mxu0 0.0
  %3745 = vmatpush1.msra.mxu0 0.0
  %3746 = vmatprep.mubr.f32.mxu0 0.0
  %3747 = vmatmul.mubr.f32.gmra.mrb[0].mxu0 %v3680
  %v3748 = vpop.f32.mrb[0].mxu0
  %v3749 = vadd.f32 0.0, %v3748
  %v3750 = vpop.f32.mrb[0].mxu0
  %3751 = vdwg.mxu0
  %v3752 = vadd.f32 %v3679, %v3749
  %v3753 = vxor.u32 %v3752, 2147483648
  %v3754 = vmul.f32 %v3753, 1.442695
  %v3755 = vpow.pop %v3754
  %v3756 = vadd.f32 %v3755, 1.0
  %v3757 = vrcp.pop %v3756
  %v3758 = vmul.f32 1.0, %v3757
  %v3759 = vtanh.pop %v3752
  %v3760 = vmul.f32 %v3758, %v3559
  %3762 = vrot.lane.b32.xlu0 %v3759, 32
  %v3763 = vpop.permute.xlu0 %3762
  %v3765 = vmul.f32 %v3758, %v3763
  %3767 = vrot.lane.b32.xlu0 %v3765, 32
  %v3768 = vpop.permute.xlu0 %3767
  %v3770 = vadd.f32 %v3760, %v3768
  %v3771 = vtanh.pop %v3770
  %3773 = vrot.lane.b32.xlu0 %v3771, 32
  %v3774 = vpop.permute.xlu0 %3773
  %v3776 = vmul.f32 %v3758, %v3774
  %s3777 = sadd.s32 %s76, 16
  %p3778 = scmp.lt.s32.totalorder %s3777, 8
  %s3779 = scalar_select %p3778, 1, 0
  %v3780 = vstv %s3779
  %vm3781 = vcmp.eq.s32.totalorder %v3780, 1
  %v3782 = vsel %vm3781, %v3776, %v3558
  %v3783 = vsel %vm3781, %v3770, %v3559
  %3785 = vrot.lane.b32.xlu0 %v3782, 64
  %v3786 = vpop.permute.xlu0 %3785
  %s3788 = scalar_lea.vmem %s3, 32
  %3789 = vst.msk [vmem:[%s3788] sm:$0x3] %vm196, %v3786
  %s3790 = scalar_lea.vmem %s43, 30
  %v3791 = vld [vmem:[%s3790] sm:$0x3]
  %v3792 = vsel %vm80, %v3674, 0
  %3794 = vmatprep.subr.mxu0 0.0
  %3795 = vmatpush1.msra.mxu0 %v68
  %3796 = vmatprep.subr.mxu0 0.0
  %3797 = vmatpush1.msra.mxu0 %v69
  %3798 = vmatprep.subr.mxu0 0.0
  %3799 = vmatpush1.msra.mxu0 %v70
  %3800 = vmatprep.subr.mxu0 0.0
  %3801 = vmatpush1.msra.mxu0 %v71
  %3802 = vmatprep.subr.mxu0 0.0
  %3803 = vmatpush1.msra.mxu0 0.0
  %3804 = vmatprep.subr.mxu0 0.0
  %3805 = vmatpush1.msra.mxu0 0.0
  %3806 = vmatprep.subr.mxu0 0.0
  %3807 = vmatpush1.msra.mxu0 0.0
  %3808 = vmatprep.subr.mxu0 0.0
  %3809 = vmatpush1.msra.mxu0 0.0
  %3810 = vmatprep.subr.mxu0 0.0
  %3811 = vmatpush1.msra.mxu0 0.0
  %3812 = vmatprep.subr.mxu0 0.0
  %3813 = vmatpush1.msra.mxu0 0.0
  %3814 = vmatprep.subr.mxu0 0.0
  %3815 = vmatpush1.msra.mxu0 0.0
  %3816 = vmatprep.subr.mxu0 0.0
  %3817 = vmatpush1.msra.mxu0 0.0
  %3818 = vmatprep.subr.mxu0 0.0
  %3819 = vmatpush1.msra.mxu0 0.0
  %3820 = vmatprep.subr.mxu0 0.0
  %3821 = vmatpush1.msra.mxu0 0.0
  %3822 = vmatprep.subr.mxu0 0.0
  %3823 = vmatpush1.msra.mxu0 0.0
  %3824 = vmatprep.subr.mxu0 0.0
  %3825 = vmatpush1.msra.mxu0 0.0
  %3826 = vmatprep.subr.mxu0 0.0
  %3827 = vmatpush1.msra.mxu0 0.0
  %3828 = vmatprep.subr.mxu0 0.0
  %3829 = vmatpush1.msra.mxu0 0.0
  %3830 = vmatprep.subr.mxu0 0.0
  %3831 = vmatpush1.msra.mxu0 0.0
  %3832 = vmatprep.subr.mxu0 0.0
  %3833 = vmatpush1.msra.mxu0 0.0
  %3834 = vmatprep.subr.mxu0 0.0
  %3835 = vmatpush1.msra.mxu0 0.0
  %3836 = vmatprep.subr.mxu0 0.0
  %3837 = vmatpush1.msra.mxu0 0.0
  %3838 = vmatprep.subr.mxu0 0.0
  %3839 = vmatpush1.msra.mxu0 0.0
  %3840 = vmatprep.subr.mxu0 0.0
  %3841 = vmatpush1.msra.mxu0 0.0
  %3842 = vmatprep.subr.mxu0 0.0
  %3843 = vmatpush1.msra.mxu0 0.0
  %3844 = vmatprep.subr.mxu0 0.0
  %3845 = vmatpush1.msra.mxu0 0.0
  %3846 = vmatprep.subr.mxu0 0.0
  %3847 = vmatpush1.msra.mxu0 0.0
  %3848 = vmatprep.subr.mxu0 0.0
  %3849 = vmatpush1.msra.mxu0 0.0
  %3850 = vmatprep.subr.mxu0 0.0
  %3851 = vmatpush1.msra.mxu0 0.0
  %3852 = vmatprep.subr.mxu0 0.0
  %3853 = vmatpush1.msra.mxu0 0.0
  %3854 = vmatprep.subr.mxu0 0.0
  %3855 = vmatpush1.msra.mxu0 0.0
  %3856 = vmatprep.subr.mxu0 0.0
  %3857 = vmatpush1.msra.mxu0 0.0
  %3858 = vmatprep.mubr.f32.mxu0 0.0
  %3859 = vmatmul.mubr.f32.gmra.mrb[0].mxu0 %v3792
  %v3860 = vpop.f32.mrb[0].mxu0
  %v3861 = vadd.f32 0.0, %v3860
  %v3862 = vpop.f32.mrb[0].mxu0
  %3863 = vdwg.mxu0
  %v3864 = vadd.f32 %v3791, %v3861
  %v3865 = vxor.u32 %v3864, 2147483648
  %v3866 = vmul.f32 %v3865, 1.442695
  %v3867 = vpow.pop %v3866
  %v3868 = vadd.f32 %v3867, 1.0
  %v3869 = vrcp.pop %v3868
  %v3870 = vmul.f32 1.0, %v3869
  %v3871 = vtanh.pop %v3864
  %v3872 = vmul.f32 %v3870, %v3671
  %3874 = vrot.lane.b32.xlu0 %v3871, 32
  %v3875 = vpop.permute.xlu0 %3874
  %v3877 = vmul.f32 %v3870, %v3875
  %3879 = vrot.lane.b32.xlu0 %v3877, 32
  %v3880 = vpop.permute.xlu0 %3879
  %v3882 = vadd.f32 %v3872, %v3880
  %v3883 = vtanh.pop %v3882
  %3885 = vrot.lane.b32.xlu0 %v3883, 32
  %v3886 = vpop.permute.xlu0 %3885
  %v3888 = vmul.f32 %v3870, %v3886
  %s3889 = sadd.s32 %s78, 15
  %p3890 = scmp.lt.s32.totalorder %s3889, 8
  %s3891 = scalar_select %p3890, 1, 0
  %v3892 = vstv %s3891
  %vm3893 = vcmp.eq.s32.totalorder %v3892, 1
  %v3894 = vsel %vm3893, %v3888, %v3670
  %v3895 = vsel %vm3893, %v3882, %v3671
  %3897 = vrot.lane.b32.xlu0 %v3894, 64
  %v3898 = vpop.permute.xlu0 %3897
  %s3900 = scalar_lea.vmem %s51, 30
  %3901 = vst.msk [vmem:[%s3900] sm:$0x3] %vm196, %v3898
  %s3902 = scalar_lea.vmem %s0, 34
  %v3903 = vld [vmem:[%s3902] sm:$0x3]
  %v3904 = vsel %vm80, %v3786, 0
  %3906 = vmatprep.subr.mxu0 0.0
  %3907 = vmatpush1.msra.mxu0 %v63
  %3908 = vmatprep.subr.mxu0 0.0
  %3909 = vmatpush1.msra.mxu0 %v64
  %3910 = vmatprep.subr.mxu0 0.0
  %3911 = vmatpush1.msra.mxu0 %v65
  %3912 = vmatprep.subr.mxu0 0.0
  %3913 = vmatpush1.msra.mxu0 %v66
  %3914 = vmatprep.subr.mxu0 0.0
  %3915 = vmatpush1.msra.mxu0 0.0
  %3916 = vmatprep.subr.mxu0 0.0
  %3917 = vmatpush1.msra.mxu0 0.0
  %3918 = vmatprep.subr.mxu0 0.0
  %3919 = vmatpush1.msra.mxu0 0.0
  %3920 = vmatprep.subr.mxu0 0.0
  %3921 = vmatpush1.msra.mxu0 0.0
  %3922 = vmatprep.subr.mxu0 0.0
  %3923 = vmatpush1.msra.mxu0 0.0
  %3924 = vmatprep.subr.mxu0 0.0
  %3925 = vmatpush1.msra.mxu0 0.0
  %3926 = vmatprep.subr.mxu0 0.0
  %3927 = vmatpush1.msra.mxu0 0.0
  %3928 = vmatprep.subr.mxu0 0.0
  %3929 = vmatpush1.msra.mxu0 0.0
  %3930 = vmatprep.subr.mxu0 0.0
  %3931 = vmatpush1.msra.mxu0 0.0
  %3932 = vmatprep.subr.mxu0 0.0
  %3933 = vmatpush1.msra.mxu0 0.0
  %3934 = vmatprep.subr.mxu0 0.0
  %3935 = vmatpush1.msra.mxu0 0.0
  %3936 = vmatprep.subr.mxu0 0.0
  %3937 = vmatpush1.msra.mxu0 0.0
  %3938 = vmatprep.subr.mxu0 0.0
  %3939 = vmatpush1.msra.mxu0 0.0
  %3940 = vmatprep.subr.mxu0 0.0
  %3941 = vmatpush1.msra.mxu0 0.0
  %3942 = vmatprep.subr.mxu0 0.0
  %3943 = vmatpush1.msra.mxu0 0.0
  %3944 = vmatprep.subr.mxu0 0.0
  %3945 = vmatpush1.msra.mxu0 0.0
  %3946 = vmatprep.subr.mxu0 0.0
  %3947 = vmatpush1.msra.mxu0 0.0
  %3948 = vmatprep.subr.mxu0 0.0
  %3949 = vmatpush1.msra.mxu0 0.0
  %3950 = vmatprep.subr.mxu0 0.0
  %3951 = vmatpush1.msra.mxu0 0.0
  %3952 = vmatprep.subr.mxu0 0.0
  %3953 = vmatpush1.msra.mxu0 0.0
  %3954 = vmatprep.subr.mxu0 0.0
  %3955 = vmatpush1.msra.mxu0 0.0
  %3956 = vmatprep.subr.mxu0 0.0
  %3957 = vmatpush1.msra.mxu0 0.0
  %3958 = vmatprep.subr.mxu0 0.0
  %3959 = vmatpush1.msra.mxu0 0.0
  %3960 = vmatprep.subr.mxu0 0.0
  %3961 = vmatpush1.msra.mxu0 0.0
  %3962 = vmatprep.subr.mxu0 0.0
  %3963 = vmatpush1.msra.mxu0 0.0
  %3964 = vmatprep.subr.mxu0 0.0
  %3965 = vmatpush1.msra.mxu0 0.0
  %3966 = vmatprep.subr.mxu0 0.0
  %3967 = vmatpush1.msra.mxu0 0.0
  %3968 = vmatprep.subr.mxu0 0.0
  %3969 = vmatpush1.msra.mxu0 0.0
  %3970 = vmatprep.mubr.f32.mxu0 0.0
  %3971 = vmatmul.mubr.f32.gmra.mrb[0].mxu0 %v3904
  %v3972 = vpop.f32.mrb[0].mxu0
  %v3973 = vadd.f32 0.0, %v3972
  %v3974 = vpop.f32.mrb[0].mxu0
  %3975 = vdwg.mxu0
  %v3976 = vadd.f32 %v3903, %v3973
  %v3977 = vxor.u32 %v3976, 2147483648
  %v3978 = vmul.f32 %v3977, 1.442695
  %v3979 = vpow.pop %v3978
  %v3980 = vadd.f32 %v3979, 1.0
  %v3981 = vrcp.pop %v3980
  %v3982 = vmul.f32 1.0, %v3981
  %v3983 = vtanh.pop %v3976
  %v3984 = vmul.f32 %v3982, %v3783
  %3986 = vrot.lane.b32.xlu0 %v3983, 32
  %v3987 = vpop.permute.xlu0 %3986
  %v3989 = vmul.f32 %v3982, %v3987
  %3991 = vrot.lane.b32.xlu0 %v3989, 32
  %v3992 = vpop.permute.xlu0 %3991
  %v3994 = vadd.f32 %v3984, %v3992
  %v3995 = vtanh.pop %v3994
  %3997 = vrot.lane.b32.xlu0 %v3995, 32
  %v3998 = vpop.permute.xlu0 %3997
  %v4000 = vmul.f32 %v3982, %v3998
  %s4001 = sadd.s32 %s76, 17
  %p4002 = scmp.lt.s32.totalorder %s4001, 8
  %s4003 = scalar_select %p4002, 1, 0
  %v4004 = vstv %s4003
  %vm4005 = vcmp.eq.s32.totalorder %v4004, 1
  %v4006 = vsel %vm4005, %v4000, %v3782
  %v4007 = vsel %vm4005, %v3994, %v3783
  %4009 = vrot.lane.b32.xlu0 %v4006, 64
  %v4010 = vpop.permute.xlu0 %4009
  %s4012 = scalar_lea.vmem %s3, 34
  %4013 = vst.msk [vmem:[%s4012] sm:$0x3] %vm196, %v4010
  %s4014 = scalar_lea.vmem %s43, 28
  %v4015 = vld [vmem:[%s4014] sm:$0x3]
  %v4016 = vsel %vm80, %v3898, 0
  %4018 = vmatprep.subr.mxu0 0.0
  %4019 = vmatpush1.msra.mxu0 %v68
  %4020 = vmatprep.subr.mxu0 0.0
  %4021 = vmatpush1.msra.mxu0 %v69
  %4022 = vmatprep.subr.mxu0 0.0
  %4023 = vmatpush1.msra.mxu0 %v70
  %4024 = vmatprep.subr.mxu0 0.0
  %4025 = vmatpush1.msra.mxu0 %v71
  %4026 = vmatprep.subr.mxu0 0.0
  %4027 = vmatpush1.msra.mxu0 0.0
  %4028 = vmatprep.subr.mxu0 0.0
  %4029 = vmatpush1.msra.mxu0 0.0
  %4030 = vmatprep.subr.mxu0 0.0
  %4031 = vmatpush1.msra.mxu0 0.0
  %4032 = vmatprep.subr.mxu0 0.0
  %4033 = vmatpush1.msra.mxu0 0.0
  %4034 = vmatprep.subr.mxu0 0.0
  %4035 = vmatpush1.msra.mxu0 0.0
  %4036 = vmatprep.subr.mxu0 0.0
  %4037 = vmatpush1.msra.mxu0 0.0
  %4038 = vmatprep.subr.mxu0 0.0
  %4039 = vmatpush1.msra.mxu0 0.0
  %4040 = vmatprep.subr.mxu0 0.0
  %4041 = vmatpush1.msra.mxu0 0.0
  %4042 = vmatprep.subr.mxu0 0.0
  %4043 = vmatpush1.msra.mxu0 0.0
  %4044 = vmatprep.subr.mxu0 0.0
  %4045 = vmatpush1.msra.mxu0 0.0
  %4046 = vmatprep.subr.mxu0 0.0
  %4047 = vmatpush1.msra.mxu0 0.0
  %4048 = vmatprep.subr.mxu0 0.0
  %4049 = vmatpush1.msra.mxu0 0.0
  %4050 = vmatprep.subr.mxu0 0.0
  %4051 = vmatpush1.msra.mxu0 0.0
  %4052 = vmatprep.subr.mxu0 0.0
  %4053 = vmatpush1.msra.mxu0 0.0
  %4054 = vmatprep.subr.mxu0 0.0
  %4055 = vmatpush1.msra.mxu0 0.0
  %4056 = vmatprep.subr.mxu0 0.0
  %4057 = vmatpush1.msra.mxu0 0.0
  %4058 = vmatprep.subr.mxu0 0.0
  %4059 = vmatpush1.msra.mxu0 0.0
  %4060 = vmatprep.subr.mxu0 0.0
  %4061 = vmatpush1.msra.mxu0 0.0
  %4062 = vmatprep.subr.mxu0 0.0
  %4063 = vmatpush1.msra.mxu0 0.0
  %4064 = vmatprep.subr.mxu0 0.0
  %4065 = vmatpush1.msra.mxu0 0.0
  %4066 = vmatprep.subr.mxu0 0.0
  %4067 = vmatpush1.msra.mxu0 0.0
  %4068 = vmatprep.subr.mxu0 0.0
  %4069 = vmatpush1.msra.mxu0 0.0
  %4070 = vmatprep.subr.mxu0 0.0
  %4071 = vmatpush1.msra.mxu0 0.0
  %4072 = vmatprep.subr.mxu0 0.0
  %4073 = vmatpush1.msra.mxu0 0.0
  %4074 = vmatprep.subr.mxu0 0.0
  %4075 = vmatpush1.msra.mxu0 0.0
  %4076 = vmatprep.subr.mxu0 0.0
  %4077 = vmatpush1.msra.mxu0 0.0
  %4078 = vmatprep.subr.mxu0 0.0
  %4079 = vmatpush1.msra.mxu0 0.0
  %4080 = vmatprep.subr.mxu0 0.0
  %4081 = vmatpush1.msra.mxu0 0.0
  %4082 = vmatprep.mubr.f32.mxu0 0.0
  %4083 = vmatmul.mubr.f32.gmra.mrb[0].mxu0 %v4016
  %v4084 = vpop.f32.mrb[0].mxu0
  %v4085 = vadd.f32 0.0, %v4084
  %v4086 = vpop.f32.mrb[0].mxu0
  %4087 = vdwg.mxu0
  %v4088 = vadd.f32 %v4015, %v4085
  %v4089 = vxor.u32 %v4088, 2147483648
  %v4090 = vmul.f32 %v4089, 1.442695
  %v4091 = vpow.pop %v4090
  %v4092 = vadd.f32 %v4091, 1.0
  %v4093 = vrcp.pop %v4092
  %v4094 = vmul.f32 1.0, %v4093
  %v4095 = vtanh.pop %v4088
  %v4096 = vmul.f32 %v4094, %v3895
  %4098 = vrot.lane.b32.xlu0 %v4095, 32
  %v4099 = vpop.permute.xlu0 %4098
  %v4101 = vmul.f32 %v4094, %v4099
  %4103 = vrot.lane.b32.xlu0 %v4101, 32
  %v4104 = vpop.permute.xlu0 %4103
  %v4106 = vadd.f32 %v4096, %v4104
  %v4107 = vtanh.pop %v4106
  %4109 = vrot.lane.b32.xlu0 %v4107, 32
  %v4110 = vpop.permute.xlu0 %4109
  %v4112 = vmul.f32 %v4094, %v4110
  %s4113 = sadd.s32 %s78, 14
  %p4114 = scmp.lt.s32.totalorder %s4113, 8
  %s4115 = scalar_select %p4114, 1, 0
  %v4116 = vstv %s4115
  %vm4117 = vcmp.eq.s32.totalorder %v4116, 1
  %v4118 = vsel %vm4117, %v4112, %v3894
  %v4119 = vsel %vm4117, %v4106, %v3895
  %4121 = vrot.lane.b32.xlu0 %v4118, 64
  %v4122 = vpop.permute.xlu0 %4121
  %s4124 = scalar_lea.vmem %s51, 28
  %4125 = vst.msk [vmem:[%s4124] sm:$0x3] %vm196, %v4122
  %s4126 = scalar_lea.vmem %s0, 36
  %v4127 = vld [vmem:[%s4126] sm:$0x3]
  %v4128 = vsel %vm80, %v4010, 0
  %4130 = vmatprep.subr.mxu0 0.0
  %4131 = vmatpush1.msra.mxu0 %v63
  %4132 = vmatprep.subr.mxu0 0.0
  %4133 = vmatpush1.msra.mxu0 %v64
  %4134 = vmatprep.subr.mxu0 0.0
  %4135 = vmatpush1.msra.mxu0 %v65
  %4136 = vmatprep.subr.mxu0 0.0
  %4137 = vmatpush1.msra.mxu0 %v66
  %4138 = vmatprep.subr.mxu0 0.0
  %4139 = vmatpush1.msra.mxu0 0.0
  %4140 = vmatprep.subr.mxu0 0.0
  %4141 = vmatpush1.msra.mxu0 0.0
  %4142 = vmatprep.subr.mxu0 0.0
  %4143 = vmatpush1.msra.mxu0 0.0
  %4144 = vmatprep.subr.mxu0 0.0
  %4145 = vmatpush1.msra.mxu0 0.0
  %4146 = vmatprep.subr.mxu0 0.0
  %4147 = vmatpush1.msra.mxu0 0.0
  %4148 = vmatprep.subr.mxu0 0.0
  %4149 = vmatpush1.msra.mxu0 0.0
  %4150 = vmatprep.subr.mxu0 0.0
  %4151 = vmatpush1.msra.mxu0 0.0
  %4152 = vmatprep.subr.mxu0 0.0
  %4153 = vmatpush1.msra.mxu0 0.0
  %4154 = vmatprep.subr.mxu0 0.0
  %4155 = vmatpush1.msra.mxu0 0.0
  %4156 = vmatprep.subr.mxu0 0.0
  %4157 = vmatpush1.msra.mxu0 0.0
  %4158 = vmatprep.subr.mxu0 0.0
  %4159 = vmatpush1.msra.mxu0 0.0
  %4160 = vmatprep.subr.mxu0 0.0
  %4161 = vmatpush1.msra.mxu0 0.0
  %4162 = vmatprep.subr.mxu0 0.0
  %4163 = vmatpush1.msra.mxu0 0.0
  %4164 = vmatprep.subr.mxu0 0.0
  %4165 = vmatpush1.msra.mxu0 0.0
  %4166 = vmatprep.subr.mxu0 0.0
  %4167 = vmatpush1.msra.mxu0 0.0
  %4168 = vmatprep.subr.mxu0 0.0
  %4169 = vmatpush1.msra.mxu0 0.0
  %4170 = vmatprep.subr.mxu0 0.0
  %4171 = vmatpush1.msra.mxu0 0.0
  %4172 = vmatprep.subr.mxu0 0.0
  %4173 = vmatpush1.msra.mxu0 0.0
  %4174 = vmatprep.subr.mxu0 0.0
  %4175 = vmatpush1.msra.mxu0 0.0
  %4176 = vmatprep.subr.mxu0 0.0
  %4177 = vmatpush1.msra.mxu0 0.0
  %4178 = vmatprep.subr.mxu0 0.0
  %4179 = vmatpush1.msra.mxu0 0.0
  %4180 = vmatprep.subr.mxu0 0.0
  %4181 = vmatpush1.msra.mxu0 0.0
  %4182 = vmatprep.subr.mxu0 0.0
  %4183 = vmatpush1.msra.mxu0 0.0
  %4184 = vmatprep.subr.mxu0 0.0
  %4185 = vmatpush1.msra.mxu0 0.0
  %4186 = vmatprep.subr.mxu0 0.0
  %4187 = vmatpush1.msra.mxu0 0.0
  %4188 = vmatprep.subr.mxu0 0.0
  %4189 = vmatpush1.msra.mxu0 0.0
  %4190 = vmatprep.subr.mxu0 0.0
  %4191 = vmatpush1.msra.mxu0 0.0
  %4192 = vmatprep.subr.mxu0 0.0
  %4193 = vmatpush1.msra.mxu0 0.0
  %4194 = vmatprep.mubr.f32.mxu0 0.0
  %4195 = vmatmul.mubr.f32.gmra.mrb[0].mxu0 %v4128
  %v4196 = vpop.f32.mrb[0].mxu0
  %v4197 = vadd.f32 0.0, %v4196
  %v4198 = vpop.f32.mrb[0].mxu0
  %4199 = vdwg.mxu0
  %v4200 = vadd.f32 %v4127, %v4197
  %v4201 = vxor.u32 %v4200, 2147483648
  %v4202 = vmul.f32 %v4201, 1.442695
  %v4203 = vpow.pop %v4202
  %v4204 = vadd.f32 %v4203, 1.0
  %v4205 = vrcp.pop %v4204
  %v4206 = vmul.f32 1.0, %v4205
  %v4207 = vtanh.pop %v4200
  %v4208 = vmul.f32 %v4206, %v4007
  %4210 = vrot.lane.b32.xlu0 %v4207, 32
  %v4211 = vpop.permute.xlu0 %4210
  %v4213 = vmul.f32 %v4206, %v4211
  %4215 = vrot.lane.b32.xlu0 %v4213, 32
  %v4216 = vpop.permute.xlu0 %4215
  %v4218 = vadd.f32 %v4208, %v4216
  %v4219 = vtanh.pop %v4218
  %4221 = vrot.lane.b32.xlu0 %v4219, 32
  %v4222 = vpop.permute.xlu0 %4221
  %v4224 = vmul.f32 %v4206, %v4222
  %s4225 = sadd.s32 %s76, 18
  %p4226 = scmp.lt.s32.totalorder %s4225, 8
  %s4227 = scalar_select %p4226, 1, 0
  %v4228 = vstv %s4227
  %vm4229 = vcmp.eq.s32.totalorder %v4228, 1
  %v4230 = vsel %vm4229, %v4224, %v4006
  %v4231 = vsel %vm4229, %v4218, %v4007
  %4233 = vrot.lane.b32.xlu0 %v4230, 64
  %v4234 = vpop.permute.xlu0 %4233
  %s4236 = scalar_lea.vmem %s3, 36
  %4237 = vst.msk [vmem:[%s4236] sm:$0x3] %vm196, %v4234
  %s4238 = scalar_lea.vmem %s43, 26
  %v4239 = vld [vmem:[%s4238] sm:$0x3]
  %v4240 = vsel %vm80, %v4122, 0
  %4242 = vmatprep.subr.mxu0 0.0
  %4243 = vmatpush1.msra.mxu0 %v68
  %4244 = vmatprep.subr.mxu0 0.0
  %4245 = vmatpush1.msra.mxu0 %v69
  %4246 = vmatprep.subr.mxu0 0.0
  %4247 = vmatpush1.msra.mxu0 %v70
  %4248 = vmatprep.subr.mxu0 0.0
  %4249 = vmatpush1.msra.mxu0 %v71
  %4250 = vmatprep.subr.mxu0 0.0
  %4251 = vmatpush1.msra.mxu0 0.0
  %4252 = vmatprep.subr.mxu0 0.0
  %4253 = vmatpush1.msra.mxu0 0.0
  %4254 = vmatprep.subr.mxu0 0.0
  %4255 = vmatpush1.msra.mxu0 0.0
  %4256 = vmatprep.subr.mxu0 0.0
  %4257 = vmatpush1.msra.mxu0 0.0
  %4258 = vmatprep.subr.mxu0 0.0
  %4259 = vmatpush1.msra.mxu0 0.0
  %4260 = vmatprep.subr.mxu0 0.0
  %4261 = vmatpush1.msra.mxu0 0.0
  %4262 = vmatprep.subr.mxu0 0.0
  %4263 = vmatpush1.msra.mxu0 0.0
  %4264 = vmatprep.subr.mxu0 0.0
  %4265 = vmatpush1.msra.mxu0 0.0
  %4266 = vmatprep.subr.mxu0 0.0
  %4267 = vmatpush1.msra.mxu0 0.0
  %4268 = vmatprep.subr.mxu0 0.0
  %4269 = vmatpush1.msra.mxu0 0.0
  %4270 = vmatprep.subr.mxu0 0.0
  %4271 = vmatpush1.msra.mxu0 0.0
  %4272 = vmatprep.subr.mxu0 0.0
  %4273 = vmatpush1.msra.mxu0 0.0
  %4274 = vmatprep.subr.mxu0 0.0
  %4275 = vmatpush1.msra.mxu0 0.0
  %4276 = vmatprep.subr.mxu0 0.0
  %4277 = vmatpush1.msra.mxu0 0.0
  %4278 = vmatprep.subr.mxu0 0.0
  %4279 = vmatpush1.msra.mxu0 0.0
  %4280 = vmatprep.subr.mxu0 0.0
  %4281 = vmatpush1.msra.mxu0 0.0
  %4282 = vmatprep.subr.mxu0 0.0
  %4283 = vmatpush1.msra.mxu0 0.0
  %4284 = vmatprep.subr.mxu0 0.0
  %4285 = vmatpush1.msra.mxu0 0.0
  %4286 = vmatprep.subr.mxu0 0.0
  %4287 = vmatpush1.msra.mxu0 0.0
  %4288 = vmatprep.subr.mxu0 0.0
  %4289 = vmatpush1.msra.mxu0 0.0
  %4290 = vmatprep.subr.mxu0 0.0
  %4291 = vmatpush1.msra.mxu0 0.0
  %4292 = vmatprep.subr.mxu0 0.0
  %4293 = vmatpush1.msra.mxu0 0.0
  %4294 = vmatprep.subr.mxu0 0.0
  %4295 = vmatpush1.msra.mxu0 0.0
  %4296 = vmatprep.subr.mxu0 0.0
  %4297 = vmatpush1.msra.mxu0 0.0
  %4298 = vmatprep.subr.mxu0 0.0
  %4299 = vmatpush1.msra.mxu0 0.0
  %4300 = vmatprep.subr.mxu0 0.0
  %4301 = vmatpush1.msra.mxu0 0.0
  %4302 = vmatprep.subr.mxu0 0.0
  %4303 = vmatpush1.msra.mxu0 0.0
  %4304 = vmatprep.subr.mxu0 0.0
  %4305 = vmatpush1.msra.mxu0 0.0
  %4306 = vmatprep.mubr.f32.mxu0 0.0
  %4307 = vmatmul.mubr.f32.gmra.mrb[0].mxu0 %v4240
  %v4308 = vpop.f32.mrb[0].mxu0
  %v4309 = vadd.f32 0.0, %v4308
  %v4310 = vpop.f32.mrb[0].mxu0
  %4311 = vdwg.mxu0
  %v4312 = vadd.f32 %v4239, %v4309
  %v4313 = vxor.u32 %v4312, 2147483648
  %v4314 = vmul.f32 %v4313, 1.442695
  %v4315 = vpow.pop %v4314
  %v4316 = vadd.f32 %v4315, 1.0
  %v4317 = vrcp.pop %v4316
  %v4318 = vmul.f32 1.0, %v4317
  %v4319 = vtanh.pop %v4312
  %v4320 = vmul.f32 %v4318, %v4119
  %4322 = vrot.lane.b32.xlu0 %v4319, 32
  %v4323 = vpop.permute.xlu0 %4322
  %v4325 = vmul.f32 %v4318, %v4323
  %4327 = vrot.lane.b32.xlu0 %v4325, 32
  %v4328 = vpop.permute.xlu0 %4327
  %v4330 = vadd.f32 %v4320, %v4328
  %v4331 = vtanh.pop %v4330
  %4333 = vrot.lane.b32.xlu0 %v4331, 32
  %v4334 = vpop.permute.xlu0 %4333
  %v4336 = vmul.f32 %v4318, %v4334
  %s4337 = sadd.s32 %s78, 13
  %p4338 = scmp.lt.s32.totalorder %s4337, 8
  %s4339 = scalar_select %p4338, 1, 0
  %v4340 = vstv %s4339
  %vm4341 = vcmp.eq.s32.totalorder %v4340, 1
  %v4342 = vsel %vm4341, %v4336, %v4118
  %v4343 = vsel %vm4341, %v4330, %v4119
  %4345 = vrot.lane.b32.xlu0 %v4342, 64
  %v4346 = vpop.permute.xlu0 %4345
  %s4348 = scalar_lea.vmem %s51, 26
  %4349 = vst.msk [vmem:[%s4348] sm:$0x3] %vm196, %v4346
  %s4350 = scalar_lea.vmem %s0, 38
  %v4351 = vld [vmem:[%s4350] sm:$0x3]
  %v4352 = vsel %vm80, %v4234, 0
  %4354 = vmatprep.subr.mxu0 0.0
  %4355 = vmatpush1.msra.mxu0 %v63
  %4356 = vmatprep.subr.mxu0 0.0
  %4357 = vmatpush1.msra.mxu0 %v64
  %4358 = vmatprep.subr.mxu0 0.0
  %4359 = vmatpush1.msra.mxu0 %v65
  %4360 = vmatprep.subr.mxu0 0.0
  %4361 = vmatpush1.msra.mxu0 %v66
  %4362 = vmatprep.subr.mxu0 0.0
  %4363 = vmatpush1.msra.mxu0 0.0
  %4364 = vmatprep.subr.mxu0 0.0
  %4365 = vmatpush1.msra.mxu0 0.0
  %4366 = vmatprep.subr.mxu0 0.0
  %4367 = vmatpush1.msra.mxu0 0.0
  %4368 = vmatprep.subr.mxu0 0.0
  %4369 = vmatpush1.msra.mxu0 0.0
  %4370 = vmatprep.subr.mxu0 0.0
  %4371 = vmatpush1.msra.mxu0 0.0
  %4372 = vmatprep.subr.mxu0 0.0
  %4373 = vmatpush1.msra.mxu0 0.0
  %4374 = vmatprep.subr.mxu0 0.0
  %4375 = vmatpush1.msra.mxu0 0.0
  %4376 = vmatprep.subr.mxu0 0.0
  %4377 = vmatpush1.msra.mxu0 0.0
  %4378 = vmatprep.subr.mxu0 0.0
  %4379 = vmatpush1.msra.mxu0 0.0
  %4380 = vmatprep.subr.mxu0 0.0
  %4381 = vmatpush1.msra.mxu0 0.0
  %4382 = vmatprep.subr.mxu0 0.0
  %4383 = vmatpush1.msra.mxu0 0.0
  %4384 = vmatprep.subr.mxu0 0.0
  %4385 = vmatpush1.msra.mxu0 0.0
  %4386 = vmatprep.subr.mxu0 0.0
  %4387 = vmatpush1.msra.mxu0 0.0
  %4388 = vmatprep.subr.mxu0 0.0
  %4389 = vmatpush1.msra.mxu0 0.0
  %4390 = vmatprep.subr.mxu0 0.0
  %4391 = vmatpush1.msra.mxu0 0.0
  %4392 = vmatprep.subr.mxu0 0.0
  %4393 = vmatpush1.msra.mxu0 0.0
  %4394 = vmatprep.subr.mxu0 0.0
  %4395 = vmatpush1.msra.mxu0 0.0
  %4396 = vmatprep.subr.mxu0 0.0
  %4397 = vmatpush1.msra.mxu0 0.0
  %4398 = vmatprep.subr.mxu0 0.0
  %4399 = vmatpush1.msra.mxu0 0.0
  %4400 = vmatprep.subr.mxu0 0.0
  %4401 = vmatpush1.msra.mxu0 0.0
  %4402 = vmatprep.subr.mxu0 0.0
  %4403 = vmatpush1.msra.mxu0 0.0
  %4404 = vmatprep.subr.mxu0 0.0
  %4405 = vmatpush1.msra.mxu0 0.0
  %4406 = vmatprep.subr.mxu0 0.0
  %4407 = vmatpush1.msra.mxu0 0.0
  %4408 = vmatprep.subr.mxu0 0.0
  %4409 = vmatpush1.msra.mxu0 0.0
  %4410 = vmatprep.subr.mxu0 0.0
  %4411 = vmatpush1.msra.mxu0 0.0
  %4412 = vmatprep.subr.mxu0 0.0
  %4413 = vmatpush1.msra.mxu0 0.0
  %4414 = vmatprep.subr.mxu0 0.0
  %4415 = vmatpush1.msra.mxu0 0.0
  %4416 = vmatprep.subr.mxu0 0.0
  %4417 = vmatpush1.msra.mxu0 0.0
  %4418 = vmatprep.mubr.f32.mxu0 0.0
  %4419 = vmatmul.mubr.f32.gmra.mrb[0].mxu0 %v4352
  %v4420 = vpop.f32.mrb[0].mxu0
  %v4421 = vadd.f32 0.0, %v4420
  %v4422 = vpop.f32.mrb[0].mxu0
  %4423 = vdwg.mxu0
  %v4424 = vadd.f32 %v4351, %v4421
  %v4425 = vxor.u32 %v4424, 2147483648
  %v4426 = vmul.f32 %v4425, 1.442695
  %v4427 = vpow.pop %v4426
  %v4428 = vadd.f32 %v4427, 1.0
  %v4429 = vrcp.pop %v4428
  %v4430 = vmul.f32 1.0, %v4429
  %v4431 = vtanh.pop %v4424
  %v4432 = vmul.f32 %v4430, %v4231
  %4434 = vrot.lane.b32.xlu0 %v4431, 32
  %v4435 = vpop.permute.xlu0 %4434
  %v4437 = vmul.f32 %v4430, %v4435
  %4439 = vrot.lane.b32.xlu0 %v4437, 32
  %v4440 = vpop.permute.xlu0 %4439
  %v4442 = vadd.f32 %v4432, %v4440
  %v4443 = vtanh.pop %v4442
  %4445 = vrot.lane.b32.xlu0 %v4443, 32
  %v4446 = vpop.permute.xlu0 %4445
  %v4448 = vmul.f32 %v4430, %v4446
  %s4449 = sadd.s32 %s76, 19
  %p4450 = scmp.lt.s32.totalorder %s4449, 8
  %s4451 = scalar_select %p4450, 1, 0
  %v4452 = vstv %s4451
  %vm4453 = vcmp.eq.s32.totalorder %v4452, 1
  %v4454 = vsel %vm4453, %v4448, %v4230
  %v4455 = vsel %vm4453, %v4442, %v4231
  %4457 = vrot.lane.b32.xlu0 %v4454, 64
  %v4458 = vpop.permute.xlu0 %4457
  %s4460 = scalar_lea.vmem %s3, 38
  %4461 = vst.msk [vmem:[%s4460] sm:$0x3] %vm196, %v4458
  %s4462 = scalar_lea.vmem %s43, 24
  %v4463 = vld [vmem:[%s4462] sm:$0x3]
  %v4464 = vsel %vm80, %v4346, 0
  %4466 = vmatprep.subr.mxu0 0.0
  %4467 = vmatpush1.msra.mxu0 %v68
  %4468 = vmatprep.subr.mxu0 0.0
  %4469 = vmatpush1.msra.mxu0 %v69
  %4470 = vmatprep.subr.mxu0 0.0
  %4471 = vmatpush1.msra.mxu0 %v70
  %4472 = vmatprep.subr.mxu0 0.0
  %4473 = vmatpush1.msra.mxu0 %v71
  %4474 = vmatprep.subr.mxu0 0.0
  %4475 = vmatpush1.msra.mxu0 0.0
  %4476 = vmatprep.subr.mxu0 0.0
  %4477 = vmatpush1.msra.mxu0 0.0
  %4478 = vmatprep.subr.mxu0 0.0
  %4479 = vmatpush1.msra.mxu0 0.0
  %4480 = vmatprep.subr.mxu0 0.0
  %4481 = vmatpush1.msra.mxu0 0.0
  %4482 = vmatprep.subr.mxu0 0.0
  %4483 = vmatpush1.msra.mxu0 0.0
  %4484 = vmatprep.subr.mxu0 0.0
  %4485 = vmatpush1.msra.mxu0 0.0
  %4486 = vmatprep.subr.mxu0 0.0
  %4487 = vmatpush1.msra.mxu0 0.0
  %4488 = vmatprep.subr.mxu0 0.0
  %4489 = vmatpush1.msra.mxu0 0.0
  %4490 = vmatprep.subr.mxu0 0.0
  %4491 = vmatpush1.msra.mxu0 0.0
  %4492 = vmatprep.subr.mxu0 0.0
  %4493 = vmatpush1.msra.mxu0 0.0
  %4494 = vmatprep.subr.mxu0 0.0
  %4495 = vmatpush1.msra.mxu0 0.0
  %4496 = vmatprep.subr.mxu0 0.0
  %4497 = vmatpush1.msra.mxu0 0.0
  %4498 = vmatprep.subr.mxu0 0.0
  %4499 = vmatpush1.msra.mxu0 0.0
  %4500 = vmatprep.subr.mxu0 0.0
  %4501 = vmatpush1.msra.mxu0 0.0
  %4502 = vmatprep.subr.mxu0 0.0
  %4503 = vmatpush1.msra.mxu0 0.0
  %4504 = vmatprep.subr.mxu0 0.0
  %4505 = vmatpush1.msra.mxu0 0.0
  %4506 = vmatprep.subr.mxu0 0.0
  %4507 = vmatpush1.msra.mxu0 0.0
  %4508 = vmatprep.subr.mxu0 0.0
  %4509 = vmatpush1.msra.mxu0 0.0
  %4510 = vmatprep.subr.mxu0 0.0
  %4511 = vmatpush1.msra.mxu0 0.0
  %4512 = vmatprep.subr.mxu0 0.0
  %4513 = vmatpush1.msra.mxu0 0.0
  %4514 = vmatprep.subr.mxu0 0.0
  %4515 = vmatpush1.msra.mxu0 0.0
  %4516 = vmatprep.subr.mxu0 0.0
  %4517 = vmatpush1.msra.mxu0 0.0
  %4518 = vmatprep.subr.mxu0 0.0
  %4519 = vmatpush1.msra.mxu0 0.0
  %4520 = vmatprep.subr.mxu0 0.0
  %4521 = vmatpush1.msra.mxu0 0.0
  %4522 = vmatprep.subr.mxu0 0.0
  %4523 = vmatpush1.msra.mxu0 0.0
  %4524 = vmatprep.subr.mxu0 0.0
  %4525 = vmatpush1.msra.mxu0 0.0
  %4526 = vmatprep.subr.mxu0 0.0
  %4527 = vmatpush1.msra.mxu0 0.0
  %4528 = vmatprep.subr.mxu0 0.0
  %4529 = vmatpush1.msra.mxu0 0.0
  %4530 = vmatprep.mubr.f32.mxu0 0.0
  %4531 = vmatmul.mubr.f32.gmra.mrb[0].mxu0 %v4464
  %v4532 = vpop.f32.mrb[0].mxu0
  %v4533 = vadd.f32 0.0, %v4532
  %v4534 = vpop.f32.mrb[0].mxu0
  %4535 = vdwg.mxu0
  %v4536 = vadd.f32 %v4463, %v4533
  %v4537 = vxor.u32 %v4536, 2147483648
  %v4538 = vmul.f32 %v4537, 1.442695
  %v4539 = vpow.pop %v4538
  %v4540 = vadd.f32 %v4539, 1.0
  %v4541 = vrcp.pop %v4540
  %v4542 = vmul.f32 1.0, %v4541
  %v4543 = vtanh.pop %v4536
  %v4544 = vmul.f32 %v4542, %v4343
  %4546 = vrot.lane.b32.xlu0 %v4543, 32
  %v4547 = vpop.permute.xlu0 %4546
  %v4549 = vmul.f32 %v4542, %v4547
  %4551 = vrot.lane.b32.xlu0 %v4549, 32
  %v4552 = vpop.permute.xlu0 %4551
  %v4554 = vadd.f32 %v4544, %v4552
  %v4555 = vtanh.pop %v4554
  %4557 = vrot.lane.b32.xlu0 %v4555, 32
  %v4558 = vpop.permute.xlu0 %4557
  %v4560 = vmul.f32 %v4542, %v4558
  %s4561 = sadd.s32 %s78, 12
  %p4562 = scmp.lt.s32.totalorder %s4561, 8
  %s4563 = scalar_select %p4562, 1, 0
  %v4564 = vstv %s4563
  %vm4565 = vcmp.eq.s32.totalorder %v4564, 1
  %v4566 = vsel %vm4565, %v4560, %v4342
  %v4567 = vsel %vm4565, %v4554, %v4343
  %4569 = vrot.lane.b32.xlu0 %v4566, 64
  %v4570 = vpop.permute.xlu0 %4569
  %s4572 = scalar_lea.vmem %s51, 24
  %4573 = vst.msk [vmem:[%s4572] sm:$0x3] %vm196, %v4570
  %s4574 = scalar_lea.vmem %s0, 40
  %v4575 = vld [vmem:[%s4574] sm:$0x3]
  %v4576 = vsel %vm80, %v4458, 0
  %4578 = vmatprep.subr.mxu0 0.0
  %4579 = vmatpush1.msra.mxu0 %v63
  %4580 = vmatprep.subr.mxu0 0.0
  %4581 = vmatpush1.msra.mxu0 %v64
  %4582 = vmatprep.subr.mxu0 0.0
  %4583 = vmatpush1.msra.mxu0 %v65
  %4584 = vmatprep.subr.mxu0 0.0
  %4585 = vmatpush1.msra.mxu0 %v66
  %4586 = vmatprep.subr.mxu0 0.0
  %4587 = vmatpush1.msra.mxu0 0.0
  %4588 = vmatprep.subr.mxu0 0.0
  %4589 = vmatpush1.msra.mxu0 0.0
  %4590 = vmatprep.subr.mxu0 0.0
  %4591 = vmatpush1.msra.mxu0 0.0
  %4592 = vmatprep.subr.mxu0 0.0
  %4593 = vmatpush1.msra.mxu0 0.0
  %4594 = vmatprep.subr.mxu0 0.0
  %4595 = vmatpush1.msra.mxu0 0.0
  %4596 = vmatprep.subr.mxu0 0.0
  %4597 = vmatpush1.msra.mxu0 0.0
  %4598 = vmatprep.subr.mxu0 0.0
  %4599 = vmatpush1.msra.mxu0 0.0
  %4600 = vmatprep.subr.mxu0 0.0
  %4601 = vmatpush1.msra.mxu0 0.0
  %4602 = vmatprep.subr.mxu0 0.0
  %4603 = vmatpush1.msra.mxu0 0.0
  %4604 = vmatprep.subr.mxu0 0.0
  %4605 = vmatpush1.msra.mxu0 0.0
  %4606 = vmatprep.subr.mxu0 0.0
  %4607 = vmatpush1.msra.mxu0 0.0
  %4608 = vmatprep.subr.mxu0 0.0
  %4609 = vmatpush1.msra.mxu0 0.0
  %4610 = vmatprep.subr.mxu0 0.0
  %4611 = vmatpush1.msra.mxu0 0.0
  %4612 = vmatprep.subr.mxu0 0.0
  %4613 = vmatpush1.msra.mxu0 0.0
  %4614 = vmatprep.subr.mxu0 0.0
  %4615 = vmatpush1.msra.mxu0 0.0
  %4616 = vmatprep.subr.mxu0 0.0
  %4617 = vmatpush1.msra.mxu0 0.0
  %4618 = vmatprep.subr.mxu0 0.0
  %4619 = vmatpush1.msra.mxu0 0.0
  %4620 = vmatprep.subr.mxu0 0.0
  %4621 = vmatpush1.msra.mxu0 0.0
  %4622 = vmatprep.subr.mxu0 0.0
  %4623 = vmatpush1.msra.mxu0 0.0
  %4624 = vmatprep.subr.mxu0 0.0
  %4625 = vmatpush1.msra.mxu0 0.0
  %4626 = vmatprep.subr.mxu0 0.0
  %4627 = vmatpush1.msra.mxu0 0.0
  %4628 = vmatprep.subr.mxu0 0.0
  %4629 = vmatpush1.msra.mxu0 0.0
  %4630 = vmatprep.subr.mxu0 0.0
  %4631 = vmatpush1.msra.mxu0 0.0
  %4632 = vmatprep.subr.mxu0 0.0
  %4633 = vmatpush1.msra.mxu0 0.0
  %4634 = vmatprep.subr.mxu0 0.0
  %4635 = vmatpush1.msra.mxu0 0.0
  %4636 = vmatprep.subr.mxu0 0.0
  %4637 = vmatpush1.msra.mxu0 0.0
  %4638 = vmatprep.subr.mxu0 0.0
  %4639 = vmatpush1.msra.mxu0 0.0
  %4640 = vmatprep.subr.mxu0 0.0
  %4641 = vmatpush1.msra.mxu0 0.0
  %4642 = vmatprep.mubr.f32.mxu0 0.0
  %4643 = vmatmul.mubr.f32.gmra.mrb[0].mxu0 %v4576
  %v4644 = vpop.f32.mrb[0].mxu0
  %v4645 = vadd.f32 0.0, %v4644
  %v4646 = vpop.f32.mrb[0].mxu0
  %4647 = vdwg.mxu0
  %v4648 = vadd.f32 %v4575, %v4645
  %v4649 = vxor.u32 %v4648, 2147483648
  %v4650 = vmul.f32 %v4649, 1.442695
  %v4651 = vpow.pop %v4650
  %v4652 = vadd.f32 %v4651, 1.0
  %v4653 = vrcp.pop %v4652
  %v4654 = vmul.f32 1.0, %v4653
  %v4655 = vtanh.pop %v4648
  %v4656 = vmul.f32 %v4654, %v4455
  %4658 = vrot.lane.b32.xlu0 %v4655, 32
  %v4659 = vpop.permute.xlu0 %4658
  %v4661 = vmul.f32 %v4654, %v4659
  %4663 = vrot.lane.b32.xlu0 %v4661, 32
  %v4664 = vpop.permute.xlu0 %4663
  %v4666 = vadd.f32 %v4656, %v4664
  %v4667 = vtanh.pop %v4666
  %4669 = vrot.lane.b32.xlu0 %v4667, 32
  %v4670 = vpop.permute.xlu0 %4669
  %v4672 = vmul.f32 %v4654, %v4670
  %s4673 = sadd.s32 %s76, 20
  %p4674 = scmp.lt.s32.totalorder %s4673, 8
  %s4675 = scalar_select %p4674, 1, 0
  %v4676 = vstv %s4675
  %vm4677 = vcmp.eq.s32.totalorder %v4676, 1
  %v4678 = vsel %vm4677, %v4672, %v4454
  %v4679 = vsel %vm4677, %v4666, %v4455
  %4681 = vrot.lane.b32.xlu0 %v4678, 64
  %v4682 = vpop.permute.xlu0 %4681
  %s4684 = scalar_lea.vmem %s3, 40
  %4685 = vst.msk [vmem:[%s4684] sm:$0x3] %vm196, %v4682
  %s4686 = scalar_lea.vmem %s43, 22
  %v4687 = vld [vmem:[%s4686] sm:$0x3]
  %v4688 = vsel %vm80, %v4570, 0
  %4690 = vmatprep.subr.mxu0 0.0
  %4691 = vmatpush1.msra.mxu0 %v68
  %4692 = vmatprep.subr.mxu0 0.0
  %4693 = vmatpush1.msra.mxu0 %v69
  %4694 = vmatprep.subr.mxu0 0.0
  %4695 = vmatpush1.msra.mxu0 %v70
  %4696 = vmatprep.subr.mxu0 0.0
  %4697 = vmatpush1.msra.mxu0 %v71
  %4698 = vmatprep.subr.mxu0 0.0
  %4699 = vmatpush1.msra.mxu0 0.0
  %4700 = vmatprep.subr.mxu0 0.0
  %4701 = vmatpush1.msra.mxu0 0.0
  %4702 = vmatprep.subr.mxu0 0.0
  %4703 = vmatpush1.msra.mxu0 0.0
  %4704 = vmatprep.subr.mxu0 0.0
  %4705 = vmatpush1.msra.mxu0 0.0
  %4706 = vmatprep.subr.mxu0 0.0
  %4707 = vmatpush1.msra.mxu0 0.0
  %4708 = vmatprep.subr.mxu0 0.0
  %4709 = vmatpush1.msra.mxu0 0.0
  %4710 = vmatprep.subr.mxu0 0.0
  %4711 = vmatpush1.msra.mxu0 0.0
  %4712 = vmatprep.subr.mxu0 0.0
  %4713 = vmatpush1.msra.mxu0 0.0
  %4714 = vmatprep.subr.mxu0 0.0
  %4715 = vmatpush1.msra.mxu0 0.0
  %4716 = vmatprep.subr.mxu0 0.0
  %4717 = vmatpush1.msra.mxu0 0.0
  %4718 = vmatprep.subr.mxu0 0.0
  %4719 = vmatpush1.msra.mxu0 0.0
  %4720 = vmatprep.subr.mxu0 0.0
  %4721 = vmatpush1.msra.mxu0 0.0
  %4722 = vmatprep.subr.mxu0 0.0
  %4723 = vmatpush1.msra.mxu0 0.0
  %4724 = vmatprep.subr.mxu0 0.0
  %4725 = vmatpush1.msra.mxu0 0.0
  %4726 = vmatprep.subr.mxu0 0.0
  %4727 = vmatpush1.msra.mxu0 0.0
  %4728 = vmatprep.subr.mxu0 0.0
  %4729 = vmatpush1.msra.mxu0 0.0
  %4730 = vmatprep.subr.mxu0 0.0
  %4731 = vmatpush1.msra.mxu0 0.0
  %4732 = vmatprep.subr.mxu0 0.0
  %4733 = vmatpush1.msra.mxu0 0.0
  %4734 = vmatprep.subr.mxu0 0.0
  %4735 = vmatpush1.msra.mxu0 0.0
  %4736 = vmatprep.subr.mxu0 0.0
  %4737 = vmatpush1.msra.mxu0 0.0
  %4738 = vmatprep.subr.mxu0 0.0
  %4739 = vmatpush1.msra.mxu0 0.0
  %4740 = vmatprep.subr.mxu0 0.0
  %4741 = vmatpush1.msra.mxu0 0.0
  %4742 = vmatprep.subr.mxu0 0.0
  %4743 = vmatpush1.msra.mxu0 0.0
  %4744 = vmatprep.subr.mxu0 0.0
  %4745 = vmatpush1.msra.mxu0 0.0
  %4746 = vmatprep.subr.mxu0 0.0
  %4747 = vmatpush1.msra.mxu0 0.0
  %4748 = vmatprep.subr.mxu0 0.0
  %4749 = vmatpush1.msra.mxu0 0.0
  %4750 = vmatprep.subr.mxu0 0.0
  %4751 = vmatpush1.msra.mxu0 0.0
  %4752 = vmatprep.subr.mxu0 0.0
  %4753 = vmatpush1.msra.mxu0 0.0
  %4754 = vmatprep.mubr.f32.mxu0 0.0
  %4755 = vmatmul.mubr.f32.gmra.mrb[0].mxu0 %v4688
  %v4756 = vpop.f32.mrb[0].mxu0
  %v4757 = vadd.f32 0.0, %v4756
  %v4758 = vpop.f32.mrb[0].mxu0
  %4759 = vdwg.mxu0
  %v4760 = vadd.f32 %v4687, %v4757
  %v4761 = vxor.u32 %v4760, 2147483648
  %v4762 = vmul.f32 %v4761, 1.442695
  %v4763 = vpow.pop %v4762
  %v4764 = vadd.f32 %v4763, 1.0
  %v4765 = vrcp.pop %v4764
  %v4766 = vmul.f32 1.0, %v4765
  %v4767 = vtanh.pop %v4760
  %v4768 = vmul.f32 %v4766, %v4567
  %4770 = vrot.lane.b32.xlu0 %v4767, 32
  %v4771 = vpop.permute.xlu0 %4770
  %v4773 = vmul.f32 %v4766, %v4771
  %4775 = vrot.lane.b32.xlu0 %v4773, 32
  %v4776 = vpop.permute.xlu0 %4775
  %v4778 = vadd.f32 %v4768, %v4776
  %v4779 = vtanh.pop %v4778
  %4781 = vrot.lane.b32.xlu0 %v4779, 32
  %v4782 = vpop.permute.xlu0 %4781
  %v4784 = vmul.f32 %v4766, %v4782
  %s4785 = sadd.s32 %s78, 11
  %p4786 = scmp.lt.s32.totalorder %s4785, 8
  %s4787 = scalar_select %p4786, 1, 0
  %v4788 = vstv %s4787
  %vm4789 = vcmp.eq.s32.totalorder %v4788, 1
  %v4790 = vsel %vm4789, %v4784, %v4566
  %v4791 = vsel %vm4789, %v4778, %v4567
  %4793 = vrot.lane.b32.xlu0 %v4790, 64
  %v4794 = vpop.permute.xlu0 %4793
  %s4796 = scalar_lea.vmem %s51, 22
  %4797 = vst.msk [vmem:[%s4796] sm:$0x3] %vm196, %v4794
  %s4798 = scalar_lea.vmem %s0, 42
  %v4799 = vld [vmem:[%s4798] sm:$0x3]
  %v4800 = vsel %vm80, %v4682, 0
  %4802 = vmatprep.subr.mxu0 0.0
  %4803 = vmatpush1.msra.mxu0 %v63
  %4804 = vmatprep.subr.mxu0 0.0
  %4805 = vmatpush1.msra.mxu0 %v64
  %4806 = vmatprep.subr.mxu0 0.0
  %4807 = vmatpush1.msra.mxu0 %v65
  %4808 = vmatprep.subr.mxu0 0.0
  %4809 = vmatpush1.msra.mxu0 %v66
  %4810 = vmatprep.subr.mxu0 0.0
  %4811 = vmatpush1.msra.mxu0 0.0
  %4812 = vmatprep.subr.mxu0 0.0
  %4813 = vmatpush1.msra.mxu0 0.0
  %4814 = vmatprep.subr.mxu0 0.0
  %4815 = vmatpush1.msra.mxu0 0.0
  %4816 = vmatprep.subr.mxu0 0.0
  %4817 = vmatpush1.msra.mxu0 0.0
  %4818 = vmatprep.subr.mxu0 0.0
  %4819 = vmatpush1.msra.mxu0 0.0
  %4820 = vmatprep.subr.mxu0 0.0
  %4821 = vmatpush1.msra.mxu0 0.0
  %4822 = vmatprep.subr.mxu0 0.0
  %4823 = vmatpush1.msra.mxu0 0.0
  %4824 = vmatprep.subr.mxu0 0.0
  %4825 = vmatpush1.msra.mxu0 0.0
  %4826 = vmatprep.subr.mxu0 0.0
  %4827 = vmatpush1.msra.mxu0 0.0
  %4828 = vmatprep.subr.mxu0 0.0
  %4829 = vmatpush1.msra.mxu0 0.0
  %4830 = vmatprep.subr.mxu0 0.0
  %4831 = vmatpush1.msra.mxu0 0.0
  %4832 = vmatprep.subr.mxu0 0.0
  %4833 = vmatpush1.msra.mxu0 0.0
  %4834 = vmatprep.subr.mxu0 0.0
  %4835 = vmatpush1.msra.mxu0 0.0
  %4836 = vmatprep.subr.mxu0 0.0
  %4837 = vmatpush1.msra.mxu0 0.0
  %4838 = vmatprep.subr.mxu0 0.0
  %4839 = vmatpush1.msra.mxu0 0.0
  %4840 = vmatprep.subr.mxu0 0.0
  %4841 = vmatpush1.msra.mxu0 0.0
  %4842 = vmatprep.subr.mxu0 0.0
  %4843 = vmatpush1.msra.mxu0 0.0
  %4844 = vmatprep.subr.mxu0 0.0
  %4845 = vmatpush1.msra.mxu0 0.0
  %4846 = vmatprep.subr.mxu0 0.0
  %4847 = vmatpush1.msra.mxu0 0.0
  %4848 = vmatprep.subr.mxu0 0.0
  %4849 = vmatpush1.msra.mxu0 0.0
  %4850 = vmatprep.subr.mxu0 0.0
  %4851 = vmatpush1.msra.mxu0 0.0
  %4852 = vmatprep.subr.mxu0 0.0
  %4853 = vmatpush1.msra.mxu0 0.0
  %4854 = vmatprep.subr.mxu0 0.0
  %4855 = vmatpush1.msra.mxu0 0.0
  %4856 = vmatprep.subr.mxu0 0.0
  %4857 = vmatpush1.msra.mxu0 0.0
  %4858 = vmatprep.subr.mxu0 0.0
  %4859 = vmatpush1.msra.mxu0 0.0
  %4860 = vmatprep.subr.mxu0 0.0
  %4861 = vmatpush1.msra.mxu0 0.0
  %4862 = vmatprep.subr.mxu0 0.0
  %4863 = vmatpush1.msra.mxu0 0.0
  %4864 = vmatprep.subr.mxu0 0.0
  %4865 = vmatpush1.msra.mxu0 0.0
  %4866 = vmatprep.mubr.f32.mxu0 0.0
  %4867 = vmatmul.mubr.f32.gmra.mrb[0].mxu0 %v4800
  %v4868 = vpop.f32.mrb[0].mxu0
  %v4869 = vadd.f32 0.0, %v4868
  %v4870 = vpop.f32.mrb[0].mxu0
  %4871 = vdwg.mxu0
  %v4872 = vadd.f32 %v4799, %v4869
  %v4873 = vxor.u32 %v4872, 2147483648
  %v4874 = vmul.f32 %v4873, 1.442695
  %v4875 = vpow.pop %v4874
  %v4876 = vadd.f32 %v4875, 1.0
  %v4877 = vrcp.pop %v4876
  %v4878 = vmul.f32 1.0, %v4877
  %v4879 = vtanh.pop %v4872
  %v4880 = vmul.f32 %v4878, %v4679
  %4882 = vrot.lane.b32.xlu0 %v4879, 32
  %v4883 = vpop.permute.xlu0 %4882
  %v4885 = vmul.f32 %v4878, %v4883
  %4887 = vrot.lane.b32.xlu0 %v4885, 32
  %v4888 = vpop.permute.xlu0 %4887
  %v4890 = vadd.f32 %v4880, %v4888
  %v4891 = vtanh.pop %v4890
  %4893 = vrot.lane.b32.xlu0 %v4891, 32
  %v4894 = vpop.permute.xlu0 %4893
  %v4896 = vmul.f32 %v4878, %v4894
  %s4897 = sadd.s32 %s76, 21
  %p4898 = scmp.lt.s32.totalorder %s4897, 8
  %s4899 = scalar_select %p4898, 1, 0
  %v4900 = vstv %s4899
  %vm4901 = vcmp.eq.s32.totalorder %v4900, 1
  %v4902 = vsel %vm4901, %v4896, %v4678
  %v4903 = vsel %vm4901, %v4890, %v4679
  %4905 = vrot.lane.b32.xlu0 %v4902, 64
  %v4906 = vpop.permute.xlu0 %4905
  %s4908 = scalar_lea.vmem %s3, 42
  %4909 = vst.msk [vmem:[%s4908] sm:$0x3] %vm196, %v4906
  %s4910 = scalar_lea.vmem %s43, 20
  %v4911 = vld [vmem:[%s4910] sm:$0x3]
  %v4912 = vsel %vm80, %v4794, 0
  %4914 = vmatprep.subr.mxu0 0.0
  %4915 = vmatpush1.msra.mxu0 %v68
  %4916 = vmatprep.subr.mxu0 0.0
  %4917 = vmatpush1.msra.mxu0 %v69
  %4918 = vmatprep.subr.mxu0 0.0
  %4919 = vmatpush1.msra.mxu0 %v70
  %4920 = vmatprep.subr.mxu0 0.0
  %4921 = vmatpush1.msra.mxu0 %v71
  %4922 = vmatprep.subr.mxu0 0.0
  %4923 = vmatpush1.msra.mxu0 0.0
  %4924 = vmatprep.subr.mxu0 0.0
  %4925 = vmatpush1.msra.mxu0 0.0
  %4926 = vmatprep.subr.mxu0 0.0
  %4927 = vmatpush1.msra.mxu0 0.0
  %4928 = vmatprep.subr.mxu0 0.0
  %4929 = vmatpush1.msra.mxu0 0.0
  %4930 = vmatprep.subr.mxu0 0.0
  %4931 = vmatpush1.msra.mxu0 0.0
  %4932 = vmatprep.subr.mxu0 0.0
  %4933 = vmatpush1.msra.mxu0 0.0
  %4934 = vmatprep.subr.mxu0 0.0
  %4935 = vmatpush1.msra.mxu0 0.0
  %4936 = vmatprep.subr.mxu0 0.0
  %4937 = vmatpush1.msra.mxu0 0.0
  %4938 = vmatprep.subr.mxu0 0.0
  %4939 = vmatpush1.msra.mxu0 0.0
  %4940 = vmatprep.subr.mxu0 0.0
  %4941 = vmatpush1.msra.mxu0 0.0
  %4942 = vmatprep.subr.mxu0 0.0
  %4943 = vmatpush1.msra.mxu0 0.0
  %4944 = vmatprep.subr.mxu0 0.0
  %4945 = vmatpush1.msra.mxu0 0.0
  %4946 = vmatprep.subr.mxu0 0.0
  %4947 = vmatpush1.msra.mxu0 0.0
  %4948 = vmatprep.subr.mxu0 0.0
  %4949 = vmatpush1.msra.mxu0 0.0
  %4950 = vmatprep.subr.mxu0 0.0
  %4951 = vmatpush1.msra.mxu0 0.0
  %4952 = vmatprep.subr.mxu0 0.0
  %4953 = vmatpush1.msra.mxu0 0.0
  %4954 = vmatprep.subr.mxu0 0.0
  %4955 = vmatpush1.msra.mxu0 0.0
  %4956 = vmatprep.subr.mxu0 0.0
  %4957 = vmatpush1.msra.mxu0 0.0
  %4958 = vmatprep.subr.mxu0 0.0
  %4959 = vmatpush1.msra.mxu0 0.0
  %4960 = vmatprep.subr.mxu0 0.0
  %4961 = vmatpush1.msra.mxu0 0.0
  %4962 = vmatprep.subr.mxu0 0.0
  %4963 = vmatpush1.msra.mxu0 0.0
  %4964 = vmatprep.subr.mxu0 0.0
  %4965 = vmatpush1.msra.mxu0 0.0
  %4966 = vmatprep.subr.mxu0 0.0
  %4967 = vmatpush1.msra.mxu0 0.0
  %4968 = vmatprep.subr.mxu0 0.0
  %4969 = vmatpush1.msra.mxu0 0.0
  %4970 = vmatprep.subr.mxu0 0.0
  %4971 = vmatpush1.msra.mxu0 0.0
  %4972 = vmatprep.subr.mxu0 0.0
  %4973 = vmatpush1.msra.mxu0 0.0
  %4974 = vmatprep.subr.mxu0 0.0
  %4975 = vmatpush1.msra.mxu0 0.0
  %4976 = vmatprep.subr.mxu0 0.0
  %4977 = vmatpush1.msra.mxu0 0.0
  %4978 = vmatprep.mubr.f32.mxu0 0.0
  %4979 = vmatmul.mubr.f32.gmra.mrb[0].mxu0 %v4912
  %v4980 = vpop.f32.mrb[0].mxu0
  %v4981 = vadd.f32 0.0, %v4980
  %v4982 = vpop.f32.mrb[0].mxu0
  %4983 = vdwg.mxu0
  %v4984 = vadd.f32 %v4911, %v4981
  %v4985 = vxor.u32 %v4984, 2147483648
  %v4986 = vmul.f32 %v4985, 1.442695
  %v4987 = vpow.pop %v4986
  %v4988 = vadd.f32 %v4987, 1.0
  %v4989 = vrcp.pop %v4988
  %v4990 = vmul.f32 1.0, %v4989
  %v4991 = vtanh.pop %v4984
  %v4992 = vmul.f32 %v4990, %v4791
  %4994 = vrot.lane.b32.xlu0 %v4991, 32
  %v4995 = vpop.permute.xlu0 %4994
  %v4997 = vmul.f32 %v4990, %v4995
  %4999 = vrot.lane.b32.xlu0 %v4997, 32
  %v5000 = vpop.permute.xlu0 %4999
  %v5002 = vadd.f32 %v4992, %v5000
  %v5003 = vtanh.pop %v5002
  %5005 = vrot.lane.b32.xlu0 %v5003, 32
  %v5006 = vpop.permute.xlu0 %5005
  %v5008 = vmul.f32 %v4990, %v5006
  %s5009 = sadd.s32 %s78, 10
  %p5010 = scmp.lt.s32.totalorder %s5009, 8
  %s5011 = scalar_select %p5010, 1, 0
  %v5012 = vstv %s5011
  %vm5013 = vcmp.eq.s32.totalorder %v5012, 1
  %v5014 = vsel %vm5013, %v5008, %v4790
  %v5015 = vsel %vm5013, %v5002, %v4791
  %5017 = vrot.lane.b32.xlu0 %v5014, 64
  %v5018 = vpop.permute.xlu0 %5017
  %s5020 = scalar_lea.vmem %s51, 20
  %5021 = vst.msk [vmem:[%s5020] sm:$0x3] %vm196, %v5018
  %s5022 = scalar_lea.vmem %s0, 44
  %v5023 = vld [vmem:[%s5022] sm:$0x3]
  %v5024 = vsel %vm80, %v4906, 0
  %5026 = vmatprep.subr.mxu0 0.0
  %5027 = vmatpush1.msra.mxu0 %v63
  %5028 = vmatprep.subr.mxu0 0.0
  %5029 = vmatpush1.msra.mxu0 %v64
  %5030 = vmatprep.subr.mxu0 0.0
  %5031 = vmatpush1.msra.mxu0 %v65
  %5032 = vmatprep.subr.mxu0 0.0
  %5033 = vmatpush1.msra.mxu0 %v66
  %5034 = vmatprep.subr.mxu0 0.0
  %5035 = vmatpush1.msra.mxu0 0.0
  %5036 = vmatprep.subr.mxu0 0.0
  %5037 = vmatpush1.msra.mxu0 0.0
  %5038 = vmatprep.subr.mxu0 0.0
  %5039 = vmatpush1.msra.mxu0 0.0
  %5040 = vmatprep.subr.mxu0 0.0
  %5041 = vmatpush1.msra.mxu0 0.0
  %5042 = vmatprep.subr.mxu0 0.0
  %5043 = vmatpush1.msra.mxu0 0.0
  %5044 = vmatprep.subr.mxu0 0.0
  %5045 = vmatpush1.msra.mxu0 0.0
  %5046 = vmatprep.subr.mxu0 0.0
  %5047 = vmatpush1.msra.mxu0 0.0
  %5048 = vmatprep.subr.mxu0 0.0
  %5049 = vmatpush1.msra.mxu0 0.0
  %5050 = vmatprep.subr.mxu0 0.0
  %5051 = vmatpush1.msra.mxu0 0.0
  %5052 = vmatprep.subr.mxu0 0.0
  %5053 = vmatpush1.msra.mxu0 0.0
  %5054 = vmatprep.subr.mxu0 0.0
  %5055 = vmatpush1.msra.mxu0 0.0
  %5056 = vmatprep.subr.mxu0 0.0
  %5057 = vmatpush1.msra.mxu0 0.0
  %5058 = vmatprep.subr.mxu0 0.0
  %5059 = vmatpush1.msra.mxu0 0.0
  %5060 = vmatprep.subr.mxu0 0.0
  %5061 = vmatpush1.msra.mxu0 0.0
  %5062 = vmatprep.subr.mxu0 0.0
  %5063 = vmatpush1.msra.mxu0 0.0
  %5064 = vmatprep.subr.mxu0 0.0
  %5065 = vmatpush1.msra.mxu0 0.0
  %5066 = vmatprep.subr.mxu0 0.0
  %5067 = vmatpush1.msra.mxu0 0.0
  %5068 = vmatprep.subr.mxu0 0.0
  %5069 = vmatpush1.msra.mxu0 0.0
  %5070 = vmatprep.subr.mxu0 0.0
  %5071 = vmatpush1.msra.mxu0 0.0
  %5072 = vmatprep.subr.mxu0 0.0
  %5073 = vmatpush1.msra.mxu0 0.0
  %5074 = vmatprep.subr.mxu0 0.0
  %5075 = vmatpush1.msra.mxu0 0.0
  %5076 = vmatprep.subr.mxu0 0.0
  %5077 = vmatpush1.msra.mxu0 0.0
  %5078 = vmatprep.subr.mxu0 0.0
  %5079 = vmatpush1.msra.mxu0 0.0
  %5080 = vmatprep.subr.mxu0 0.0
  %5081 = vmatpush1.msra.mxu0 0.0
  %5082 = vmatprep.subr.mxu0 0.0
  %5083 = vmatpush1.msra.mxu0 0.0
  %5084 = vmatprep.subr.mxu0 0.0
  %5085 = vmatpush1.msra.mxu0 0.0
  %5086 = vmatprep.subr.mxu0 0.0
  %5087 = vmatpush1.msra.mxu0 0.0
  %5088 = vmatprep.subr.mxu0 0.0
  %5089 = vmatpush1.msra.mxu0 0.0
  %5090 = vmatprep.mubr.f32.mxu0 0.0
  %5091 = vmatmul.mubr.f32.gmra.mrb[0].mxu0 %v5024
  %v5092 = vpop.f32.mrb[0].mxu0
  %v5093 = vadd.f32 0.0, %v5092
  %v5094 = vpop.f32.mrb[0].mxu0
  %5095 = vdwg.mxu0
  %v5096 = vadd.f32 %v5023, %v5093
  %v5097 = vxor.u32 %v5096, 2147483648
  %v5098 = vmul.f32 %v5097, 1.442695
  %v5099 = vpow.pop %v5098
  %v5100 = vadd.f32 %v5099, 1.0
  %v5101 = vrcp.pop %v5100
  %v5102 = vmul.f32 1.0, %v5101
  %v5103 = vtanh.pop %v5096
  %v5104 = vmul.f32 %v5102, %v4903
  %5106 = vrot.lane.b32.xlu0 %v5103, 32
  %v5107 = vpop.permute.xlu0 %5106
  %v5109 = vmul.f32 %v5102, %v5107
  %5111 = vrot.lane.b32.xlu0 %v5109, 32
  %v5112 = vpop.permute.xlu0 %5111
  %v5114 = vadd.f32 %v5104, %v5112
  %v5115 = vtanh.pop %v5114
  %5117 = vrot.lane.b32.xlu0 %v5115, 32
  %v5118 = vpop.permute.xlu0 %5117
  %v5120 = vmul.f32 %v5102, %v5118
  %s5121 = sadd.s32 %s76, 22
  %p5122 = scmp.lt.s32.totalorder %s5121, 8
  %s5123 = scalar_select %p5122, 1, 0
  %v5124 = vstv %s5123
  %vm5125 = vcmp.eq.s32.totalorder %v5124, 1
  %v5126 = vsel %vm5125, %v5120, %v4902
  %v5127 = vsel %vm5125, %v5114, %v4903
  %5129 = vrot.lane.b32.xlu0 %v5126, 64
  %v5130 = vpop.permute.xlu0 %5129
  %s5132 = scalar_lea.vmem %s3, 44
  %5133 = vst.msk [vmem:[%s5132] sm:$0x3] %vm196, %v5130
  %s5134 = scalar_lea.vmem %s43, 18
  %v5135 = vld [vmem:[%s5134] sm:$0x3]
  %v5136 = vsel %vm80, %v5018, 0
  %5138 = vmatprep.subr.mxu0 0.0
  %5139 = vmatpush1.msra.mxu0 %v68
  %5140 = vmatprep.subr.mxu0 0.0
  %5141 = vmatpush1.msra.mxu0 %v69
  %5142 = vmatprep.subr.mxu0 0.0
  %5143 = vmatpush1.msra.mxu0 %v70
  %5144 = vmatprep.subr.mxu0 0.0
  %5145 = vmatpush1.msra.mxu0 %v71
  %5146 = vmatprep.subr.mxu0 0.0
  %5147 = vmatpush1.msra.mxu0 0.0
  %5148 = vmatprep.subr.mxu0 0.0
  %5149 = vmatpush1.msra.mxu0 0.0
  %5150 = vmatprep.subr.mxu0 0.0
  %5151 = vmatpush1.msra.mxu0 0.0
  %5152 = vmatprep.subr.mxu0 0.0
  %5153 = vmatpush1.msra.mxu0 0.0
  %5154 = vmatprep.subr.mxu0 0.0
  %5155 = vmatpush1.msra.mxu0 0.0
  %5156 = vmatprep.subr.mxu0 0.0
  %5157 = vmatpush1.msra.mxu0 0.0
  %5158 = vmatprep.subr.mxu0 0.0
  %5159 = vmatpush1.msra.mxu0 0.0
  %5160 = vmatprep.subr.mxu0 0.0
  %5161 = vmatpush1.msra.mxu0 0.0
  %5162 = vmatprep.subr.mxu0 0.0
  %5163 = vmatpush1.msra.mxu0 0.0
  %5164 = vmatprep.subr.mxu0 0.0
  %5165 = vmatpush1.msra.mxu0 0.0
  %5166 = vmatprep.subr.mxu0 0.0
  %5167 = vmatpush1.msra.mxu0 0.0
  %5168 = vmatprep.subr.mxu0 0.0
  %5169 = vmatpush1.msra.mxu0 0.0
  %5170 = vmatprep.subr.mxu0 0.0
  %5171 = vmatpush1.msra.mxu0 0.0
  %5172 = vmatprep.subr.mxu0 0.0
  %5173 = vmatpush1.msra.mxu0 0.0
  %5174 = vmatprep.subr.mxu0 0.0
  %5175 = vmatpush1.msra.mxu0 0.0
  %5176 = vmatprep.subr.mxu0 0.0
  %5177 = vmatpush1.msra.mxu0 0.0
  %5178 = vmatprep.subr.mxu0 0.0
  %5179 = vmatpush1.msra.mxu0 0.0
  %5180 = vmatprep.subr.mxu0 0.0
  %5181 = vmatpush1.msra.mxu0 0.0
  %5182 = vmatprep.subr.mxu0 0.0
  %5183 = vmatpush1.msra.mxu0 0.0
  %5184 = vmatprep.subr.mxu0 0.0
  %5185 = vmatpush1.msra.mxu0 0.0
  %5186 = vmatprep.subr.mxu0 0.0
  %5187 = vmatpush1.msra.mxu0 0.0
  %5188 = vmatprep.subr.mxu0 0.0
  %5189 = vmatpush1.msra.mxu0 0.0
  %5190 = vmatprep.subr.mxu0 0.0
  %5191 = vmatpush1.msra.mxu0 0.0
  %5192 = vmatprep.subr.mxu0 0.0
  %5193 = vmatpush1.msra.mxu0 0.0
  %5194 = vmatprep.subr.mxu0 0.0
  %5195 = vmatpush1.msra.mxu0 0.0
  %5196 = vmatprep.subr.mxu0 0.0
  %5197 = vmatpush1.msra.mxu0 0.0
  %5198 = vmatprep.subr.mxu0 0.0
  %5199 = vmatpush1.msra.mxu0 0.0
  %5200 = vmatprep.subr.mxu0 0.0
  %5201 = vmatpush1.msra.mxu0 0.0
  %5202 = vmatprep.mubr.f32.mxu0 0.0
  %5203 = vmatmul.mubr.f32.gmra.mrb[0].mxu0 %v5136
  %v5204 = vpop.f32.mrb[0].mxu0
  %v5205 = vadd.f32 0.0, %v5204
  %v5206 = vpop.f32.mrb[0].mxu0
  %5207 = vdwg.mxu0
  %v5208 = vadd.f32 %v5135, %v5205
  %v5209 = vxor.u32 %v5208, 2147483648
  %v5210 = vmul.f32 %v5209, 1.442695
  %v5211 = vpow.pop %v5210
  %v5212 = vadd.f32 %v5211, 1.0
  %v5213 = vrcp.pop %v5212
  %v5214 = vmul.f32 1.0, %v5213
  %v5215 = vtanh.pop %v5208
  %v5216 = vmul.f32 %v5214, %v5015
  %5218 = vrot.lane.b32.xlu0 %v5215, 32
  %v5219 = vpop.permute.xlu0 %5218
  %v5221 = vmul.f32 %v5214, %v5219
  %5223 = vrot.lane.b32.xlu0 %v5221, 32
  %v5224 = vpop.permute.xlu0 %5223
  %v5226 = vadd.f32 %v5216, %v5224
  %v5227 = vtanh.pop %v5226
  %5229 = vrot.lane.b32.xlu0 %v5227, 32
  %v5230 = vpop.permute.xlu0 %5229
  %v5232 = vmul.f32 %v5214, %v5230
  %s5233 = sadd.s32 %s78, 9
  %p5234 = scmp.lt.s32.totalorder %s5233, 8
  %s5235 = scalar_select %p5234, 1, 0
  %v5236 = vstv %s5235
  %vm5237 = vcmp.eq.s32.totalorder %v5236, 1
  %v5238 = vsel %vm5237, %v5232, %v5014
  %v5239 = vsel %vm5237, %v5226, %v5015
  %5241 = vrot.lane.b32.xlu0 %v5238, 64
  %v5242 = vpop.permute.xlu0 %5241
  %s5244 = scalar_lea.vmem %s51, 18
  %5245 = vst.msk [vmem:[%s5244] sm:$0x3] %vm196, %v5242
  %s5246 = scalar_lea.vmem %s0, 46
  %v5247 = vld [vmem:[%s5246] sm:$0x3]
  %v5248 = vsel %vm80, %v5130, 0
  %5250 = vmatprep.subr.mxu0 0.0
  %5251 = vmatpush1.msra.mxu0 %v63
  %5252 = vmatprep.subr.mxu0 0.0
  %5253 = vmatpush1.msra.mxu0 %v64
  %5254 = vmatprep.subr.mxu0 0.0
  %5255 = vmatpush1.msra.mxu0 %v65
  %5256 = vmatprep.subr.mxu0 0.0
  %5257 = vmatpush1.msra.mxu0 %v66
  %5258 = vmatprep.subr.mxu0 0.0
  %5259 = vmatpush1.msra.mxu0 0.0
  %5260 = vmatprep.subr.mxu0 0.0
  %5261 = vmatpush1.msra.mxu0 0.0
  %5262 = vmatprep.subr.mxu0 0.0
  %5263 = vmatpush1.msra.mxu0 0.0
  %5264 = vmatprep.subr.mxu0 0.0
  %5265 = vmatpush1.msra.mxu0 0.0
  %5266 = vmatprep.subr.mxu0 0.0
  %5267 = vmatpush1.msra.mxu0 0.0
  %5268 = vmatprep.subr.mxu0 0.0
  %5269 = vmatpush1.msra.mxu0 0.0
  %5270 = vmatprep.subr.mxu0 0.0
  %5271 = vmatpush1.msra.mxu0 0.0
  %5272 = vmatprep.subr.mxu0 0.0
  %5273 = vmatpush1.msra.mxu0 0.0
  %5274 = vmatprep.subr.mxu0 0.0
  %5275 = vmatpush1.msra.mxu0 0.0
  %5276 = vmatprep.subr.mxu0 0.0
  %5277 = vmatpush1.msra.mxu0 0.0
  %5278 = vmatprep.subr.mxu0 0.0
  %5279 = vmatpush1.msra.mxu0 0.0
  %5280 = vmatprep.subr.mxu0 0.0
  %5281 = vmatpush1.msra.mxu0 0.0
  %5282 = vmatprep.subr.mxu0 0.0
  %5283 = vmatpush1.msra.mxu0 0.0
  %5284 = vmatprep.subr.mxu0 0.0
  %5285 = vmatpush1.msra.mxu0 0.0
  %5286 = vmatprep.subr.mxu0 0.0
  %5287 = vmatpush1.msra.mxu0 0.0
  %5288 = vmatprep.subr.mxu0 0.0
  %5289 = vmatpush1.msra.mxu0 0.0
  %5290 = vmatprep.subr.mxu0 0.0
  %5291 = vmatpush1.msra.mxu0 0.0
  %5292 = vmatprep.subr.mxu0 0.0
  %5293 = vmatpush1.msra.mxu0 0.0
  %5294 = vmatprep.subr.mxu0 0.0
  %5295 = vmatpush1.msra.mxu0 0.0
  %5296 = vmatprep.subr.mxu0 0.0
  %5297 = vmatpush1.msra.mxu0 0.0
  %5298 = vmatprep.subr.mxu0 0.0
  %5299 = vmatpush1.msra.mxu0 0.0
  %5300 = vmatprep.subr.mxu0 0.0
  %5301 = vmatpush1.msra.mxu0 0.0
  %5302 = vmatprep.subr.mxu0 0.0
  %5303 = vmatpush1.msra.mxu0 0.0
  %5304 = vmatprep.subr.mxu0 0.0
  %5305 = vmatpush1.msra.mxu0 0.0
  %5306 = vmatprep.subr.mxu0 0.0
  %5307 = vmatpush1.msra.mxu0 0.0
  %5308 = vmatprep.subr.mxu0 0.0
  %5309 = vmatpush1.msra.mxu0 0.0
  %5310 = vmatprep.subr.mxu0 0.0
  %5311 = vmatpush1.msra.mxu0 0.0
  %5312 = vmatprep.subr.mxu0 0.0
  %5313 = vmatpush1.msra.mxu0 0.0
  %5314 = vmatprep.mubr.f32.mxu0 0.0
  %5315 = vmatmul.mubr.f32.gmra.mrb[0].mxu0 %v5248
  %v5316 = vpop.f32.mrb[0].mxu0
  %v5317 = vadd.f32 0.0, %v5316
  %v5318 = vpop.f32.mrb[0].mxu0
  %5319 = vdwg.mxu0
  %v5320 = vadd.f32 %v5247, %v5317
  %v5321 = vxor.u32 %v5320, 2147483648
  %v5322 = vmul.f32 %v5321, 1.442695
  %v5323 = vpow.pop %v5322
  %v5324 = vadd.f32 %v5323, 1.0
  %v5325 = vrcp.pop %v5324
  %v5326 = vmul.f32 1.0, %v5325
  %v5327 = vtanh.pop %v5320
  %v5328 = vmul.f32 %v5326, %v5127
  %5330 = vrot.lane.b32.xlu0 %v5327, 32
  %v5331 = vpop.permute.xlu0 %5330
  %v5333 = vmul.f32 %v5326, %v5331
  %5335 = vrot.lane.b32.xlu0 %v5333, 32
  %v5336 = vpop.permute.xlu0 %5335
  %v5338 = vadd.f32 %v5328, %v5336
  %v5339 = vtanh.pop %v5338
  %5341 = vrot.lane.b32.xlu0 %v5339, 32
  %v5342 = vpop.permute.xlu0 %5341
  %v5344 = vmul.f32 %v5326, %v5342
  %s5345 = sadd.s32 %s76, 23
  %p5346 = scmp.lt.s32.totalorder %s5345, 8
  %s5347 = scalar_select %p5346, 1, 0
  %v5348 = vstv %s5347
  %vm5349 = vcmp.eq.s32.totalorder %v5348, 1
  %v5350 = vsel %vm5349, %v5344, %v5126
  %v5351 = vsel %vm5349, %v5338, %v5127
  %5353 = vrot.lane.b32.xlu0 %v5350, 64
  %v5354 = vpop.permute.xlu0 %5353
  %s5356 = scalar_lea.vmem %s3, 46
  %5357 = vst.msk [vmem:[%s5356] sm:$0x3] %vm196, %v5354
  %s5358 = scalar_lea.vmem %s43, 16
  %v5359 = vld [vmem:[%s5358] sm:$0x3]
  %v5360 = vsel %vm80, %v5242, 0
  %5362 = vmatprep.subr.mxu0 0.0
  %5363 = vmatpush1.msra.mxu0 %v68
  %5364 = vmatprep.subr.mxu0 0.0
  %5365 = vmatpush1.msra.mxu0 %v69
  %5366 = vmatprep.subr.mxu0 0.0
  %5367 = vmatpush1.msra.mxu0 %v70
  %5368 = vmatprep.subr.mxu0 0.0
  %5369 = vmatpush1.msra.mxu0 %v71
  %5370 = vmatprep.subr.mxu0 0.0
  %5371 = vmatpush1.msra.mxu0 0.0
  %5372 = vmatprep.subr.mxu0 0.0
  %5373 = vmatpush1.msra.mxu0 0.0
  %5374 = vmatprep.subr.mxu0 0.0
  %5375 = vmatpush1.msra.mxu0 0.0
  %5376 = vmatprep.subr.mxu0 0.0
  %5377 = vmatpush1.msra.mxu0 0.0
  %5378 = vmatprep.subr.mxu0 0.0
  %5379 = vmatpush1.msra.mxu0 0.0
  %5380 = vmatprep.subr.mxu0 0.0
  %5381 = vmatpush1.msra.mxu0 0.0
  %5382 = vmatprep.subr.mxu0 0.0
  %5383 = vmatpush1.msra.mxu0 0.0
  %5384 = vmatprep.subr.mxu0 0.0
  %5385 = vmatpush1.msra.mxu0 0.0
  %5386 = vmatprep.subr.mxu0 0.0
  %5387 = vmatpush1.msra.mxu0 0.0
  %5388 = vmatprep.subr.mxu0 0.0
  %5389 = vmatpush1.msra.mxu0 0.0
  %5390 = vmatprep.subr.mxu0 0.0
  %5391 = vmatpush1.msra.mxu0 0.0
  %5392 = vmatprep.subr.mxu0 0.0
  %5393 = vmatpush1.msra.mxu0 0.0
  %5394 = vmatprep.subr.mxu0 0.0
  %5395 = vmatpush1.msra.mxu0 0.0
  %5396 = vmatprep.subr.mxu0 0.0
  %5397 = vmatpush1.msra.mxu0 0.0
  %5398 = vmatprep.subr.mxu0 0.0
  %5399 = vmatpush1.msra.mxu0 0.0
  %5400 = vmatprep.subr.mxu0 0.0
  %5401 = vmatpush1.msra.mxu0 0.0
  %5402 = vmatprep.subr.mxu0 0.0
  %5403 = vmatpush1.msra.mxu0 0.0
  %5404 = vmatprep.subr.mxu0 0.0
  %5405 = vmatpush1.msra.mxu0 0.0
  %5406 = vmatprep.subr.mxu0 0.0
  %5407 = vmatpush1.msra.mxu0 0.0
  %5408 = vmatprep.subr.mxu0 0.0
  %5409 = vmatpush1.msra.mxu0 0.0
  %5410 = vmatprep.subr.mxu0 0.0
  %5411 = vmatpush1.msra.mxu0 0.0
  %5412 = vmatprep.subr.mxu0 0.0
  %5413 = vmatpush1.msra.mxu0 0.0
  %5414 = vmatprep.subr.mxu0 0.0
  %5415 = vmatpush1.msra.mxu0 0.0
  %5416 = vmatprep.subr.mxu0 0.0
  %5417 = vmatpush1.msra.mxu0 0.0
  %5418 = vmatprep.subr.mxu0 0.0
  %5419 = vmatpush1.msra.mxu0 0.0
  %5420 = vmatprep.subr.mxu0 0.0
  %5421 = vmatpush1.msra.mxu0 0.0
  %5422 = vmatprep.subr.mxu0 0.0
  %5423 = vmatpush1.msra.mxu0 0.0
  %5424 = vmatprep.subr.mxu0 0.0
  %5425 = vmatpush1.msra.mxu0 0.0
  %5426 = vmatprep.mubr.f32.mxu0 0.0
  %5427 = vmatmul.mubr.f32.gmra.mrb[0].mxu0 %v5360
  %v5428 = vpop.f32.mrb[0].mxu0
  %v5429 = vadd.f32 0.0, %v5428
  %v5430 = vpop.f32.mrb[0].mxu0
  %5431 = vdwg.mxu0
  %v5432 = vadd.f32 %v5359, %v5429
  %v5433 = vxor.u32 %v5432, 2147483648
  %v5434 = vmul.f32 %v5433, 1.442695
  %v5435 = vpow.pop %v5434
  %v5436 = vadd.f32 %v5435, 1.0
  %v5437 = vrcp.pop %v5436
  %v5438 = vmul.f32 1.0, %v5437
  %v5439 = vtanh.pop %v5432
  %v5440 = vmul.f32 %v5438, %v5239
  %5442 = vrot.lane.b32.xlu0 %v5439, 32
  %v5443 = vpop.permute.xlu0 %5442
  %v5445 = vmul.f32 %v5438, %v5443
  %5447 = vrot.lane.b32.xlu0 %v5445, 32
  %v5448 = vpop.permute.xlu0 %5447
  %v5450 = vadd.f32 %v5440, %v5448
  %v5451 = vtanh.pop %v5450
  %5453 = vrot.lane.b32.xlu0 %v5451, 32
  %v5454 = vpop.permute.xlu0 %5453
  %v5456 = vmul.f32 %v5438, %v5454
  %s5457 = sadd.s32 %s78, 8
  %p5458 = scmp.lt.s32.totalorder %s5457, 8
  %s5459 = scalar_select %p5458, 1, 0
  %v5460 = vstv %s5459
  %vm5461 = vcmp.eq.s32.totalorder %v5460, 1
  %v5462 = vsel %vm5461, %v5456, %v5238
  %v5463 = vsel %vm5461, %v5450, %v5239
  %5465 = vrot.lane.b32.xlu0 %v5462, 64
  %v5466 = vpop.permute.xlu0 %5465
  %s5468 = scalar_lea.vmem %s51, 16
  %5469 = vst.msk [vmem:[%s5468] sm:$0x3] %vm196, %v5466
  %s5470 = scalar_lea.vmem %s0, 48
  %v5471 = vld [vmem:[%s5470] sm:$0x3]
  %v5472 = vsel %vm80, %v5354, 0
  %5474 = vmatprep.subr.mxu0 0.0
  %5475 = vmatpush1.msra.mxu0 %v63
  %5476 = vmatprep.subr.mxu0 0.0
  %5477 = vmatpush1.msra.mxu0 %v64
  %5478 = vmatprep.subr.mxu0 0.0
  %5479 = vmatpush1.msra.mxu0 %v65
  %5480 = vmatprep.subr.mxu0 0.0
  %5481 = vmatpush1.msra.mxu0 %v66
  %5482 = vmatprep.subr.mxu0 0.0
  %5483 = vmatpush1.msra.mxu0 0.0
  %5484 = vmatprep.subr.mxu0 0.0
  %5485 = vmatpush1.msra.mxu0 0.0
  %5486 = vmatprep.subr.mxu0 0.0
  %5487 = vmatpush1.msra.mxu0 0.0
  %5488 = vmatprep.subr.mxu0 0.0
  %5489 = vmatpush1.msra.mxu0 0.0
  %5490 = vmatprep.subr.mxu0 0.0
  %5491 = vmatpush1.msra.mxu0 0.0
  %5492 = vmatprep.subr.mxu0 0.0
  %5493 = vmatpush1.msra.mxu0 0.0
  %5494 = vmatprep.subr.mxu0 0.0
  %5495 = vmatpush1.msra.mxu0 0.0
  %5496 = vmatprep.subr.mxu0 0.0
  %5497 = vmatpush1.msra.mxu0 0.0
  %5498 = vmatprep.subr.mxu0 0.0
  %5499 = vmatpush1.msra.mxu0 0.0
  %5500 = vmatprep.subr.mxu0 0.0
  %5501 = vmatpush1.msra.mxu0 0.0
  %5502 = vmatprep.subr.mxu0 0.0
  %5503 = vmatpush1.msra.mxu0 0.0
  %5504 = vmatprep.subr.mxu0 0.0
  %5505 = vmatpush1.msra.mxu0 0.0
  %5506 = vmatprep.subr.mxu0 0.0
  %5507 = vmatpush1.msra.mxu0 0.0
  %5508 = vmatprep.subr.mxu0 0.0
  %5509 = vmatpush1.msra.mxu0 0.0
  %5510 = vmatprep.subr.mxu0 0.0
  %5511 = vmatpush1.msra.mxu0 0.0
  %5512 = vmatprep.subr.mxu0 0.0
  %5513 = vmatpush1.msra.mxu0 0.0
  %5514 = vmatprep.subr.mxu0 0.0
  %5515 = vmatpush1.msra.mxu0 0.0
  %5516 = vmatprep.subr.mxu0 0.0
  %5517 = vmatpush1.msra.mxu0 0.0
  %5518 = vmatprep.subr.mxu0 0.0
  %5519 = vmatpush1.msra.mxu0 0.0
  %5520 = vmatprep.subr.mxu0 0.0
  %5521 = vmatpush1.msra.mxu0 0.0
  %5522 = vmatprep.subr.mxu0 0.0
  %5523 = vmatpush1.msra.mxu0 0.0
  %5524 = vmatprep.subr.mxu0 0.0
  %5525 = vmatpush1.msra.mxu0 0.0
  %5526 = vmatprep.subr.mxu0 0.0
  %5527 = vmatpush1.msra.mxu0 0.0
  %5528 = vmatprep.subr.mxu0 0.0
  %5529 = vmatpush1.msra.mxu0 0.0
  %5530 = vmatprep.subr.mxu0 0.0
  %5531 = vmatpush1.msra.mxu0 0.0
  %5532 = vmatprep.subr.mxu0 0.0
  %5533 = vmatpush1.msra.mxu0 0.0
  %5534 = vmatprep.subr.mxu0 0.0
  %5535 = vmatpush1.msra.mxu0 0.0
  %5536 = vmatprep.subr.mxu0 0.0
  %5537 = vmatpush1.msra.mxu0 0.0
  %5538 = vmatprep.mubr.f32.mxu0 0.0
  %5539 = vmatmul.mubr.f32.gmra.mrb[0].mxu0 %v5472
  %v5540 = vpop.f32.mrb[0].mxu0
  %v5541 = vadd.f32 0.0, %v5540
  %v5542 = vpop.f32.mrb[0].mxu0
  %5543 = vdwg.mxu0
  %v5544 = vadd.f32 %v5471, %v5541
  %v5545 = vxor.u32 %v5544, 2147483648
  %v5546 = vmul.f32 %v5545, 1.442695
  %v5547 = vpow.pop %v5546
  %v5548 = vadd.f32 %v5547, 1.0
  %v5549 = vrcp.pop %v5548
  %v5550 = vmul.f32 1.0, %v5549
  %v5551 = vtanh.pop %v5544
  %v5552 = vmul.f32 %v5550, %v5351
  %5554 = vrot.lane.b32.xlu0 %v5551, 32
  %v5555 = vpop.permute.xlu0 %5554
  %v5557 = vmul.f32 %v5550, %v5555
  %5559 = vrot.lane.b32.xlu0 %v5557, 32
  %v5560 = vpop.permute.xlu0 %5559
  %v5562 = vadd.f32 %v5552, %v5560
  %v5563 = vtanh.pop %v5562
  %5565 = vrot.lane.b32.xlu0 %v5563, 32
  %v5566 = vpop.permute.xlu0 %5565
  %v5568 = vmul.f32 %v5550, %v5566
  %s5569 = sadd.s32 %s76, 24
  %p5570 = scmp.lt.s32.totalorder %s5569, 8
  %s5571 = scalar_select %p5570, 1, 0
  %v5572 = vstv %s5571
  %vm5573 = vcmp.eq.s32.totalorder %v5572, 1
  %v5574 = vsel %vm5573, %v5568, %v5350
  %v5575 = vsel %vm5573, %v5562, %v5351
  %5577 = vrot.lane.b32.xlu0 %v5574, 64
  %v5578 = vpop.permute.xlu0 %5577
  %s5580 = scalar_lea.vmem %s3, 48
  %5581 = vst.msk [vmem:[%s5580] sm:$0x3] %vm196, %v5578
  %s5582 = scalar_lea.vmem %s43, 14
  %v5583 = vld [vmem:[%s5582] sm:$0x3]
  %v5584 = vsel %vm80, %v5466, 0
  %5586 = vmatprep.subr.mxu0 0.0
  %5587 = vmatpush1.msra.mxu0 %v68
  %5588 = vmatprep.subr.mxu0 0.0
  %5589 = vmatpush1.msra.mxu0 %v69
  %5590 = vmatprep.subr.mxu0 0.0
  %5591 = vmatpush1.msra.mxu0 %v70
  %5592 = vmatprep.subr.mxu0 0.0
  %5593 = vmatpush1.msra.mxu0 %v71
  %5594 = vmatprep.subr.mxu0 0.0
  %5595 = vmatpush1.msra.mxu0 0.0
  %5596 = vmatprep.subr.mxu0 0.0
  %5597 = vmatpush1.msra.mxu0 0.0
  %5598 = vmatprep.subr.mxu0 0.0
  %5599 = vmatpush1.msra.mxu0 0.0
  %5600 = vmatprep.subr.mxu0 0.0
  %5601 = vmatpush1.msra.mxu0 0.0
  %5602 = vmatprep.subr.mxu0 0.0
  %5603 = vmatpush1.msra.mxu0 0.0
  %5604 = vmatprep.subr.mxu0 0.0
  %5605 = vmatpush1.msra.mxu0 0.0
  %5606 = vmatprep.subr.mxu0 0.0
  %5607 = vmatpush1.msra.mxu0 0.0
  %5608 = vmatprep.subr.mxu0 0.0
  %5609 = vmatpush1.msra.mxu0 0.0
  %5610 = vmatprep.subr.mxu0 0.0
  %5611 = vmatpush1.msra.mxu0 0.0
  %5612 = vmatprep.subr.mxu0 0.0
  %5613 = vmatpush1.msra.mxu0 0.0
  %5614 = vmatprep.subr.mxu0 0.0
  %5615 = vmatpush1.msra.mxu0 0.0
  %5616 = vmatprep.subr.mxu0 0.0
  %5617 = vmatpush1.msra.mxu0 0.0
  %5618 = vmatprep.subr.mxu0 0.0
  %5619 = vmatpush1.msra.mxu0 0.0
  %5620 = vmatprep.subr.mxu0 0.0
  %5621 = vmatpush1.msra.mxu0 0.0
  %5622 = vmatprep.subr.mxu0 0.0
  %5623 = vmatpush1.msra.mxu0 0.0
  %5624 = vmatprep.subr.mxu0 0.0
  %5625 = vmatpush1.msra.mxu0 0.0
  %5626 = vmatprep.subr.mxu0 0.0
  %5627 = vmatpush1.msra.mxu0 0.0
  %5628 = vmatprep.subr.mxu0 0.0
  %5629 = vmatpush1.msra.mxu0 0.0
  %5630 = vmatprep.subr.mxu0 0.0
  %5631 = vmatpush1.msra.mxu0 0.0
  %5632 = vmatprep.subr.mxu0 0.0
  %5633 = vmatpush1.msra.mxu0 0.0
  %5634 = vmatprep.subr.mxu0 0.0
  %5635 = vmatpush1.msra.mxu0 0.0
  %5636 = vmatprep.subr.mxu0 0.0
  %5637 = vmatpush1.msra.mxu0 0.0
  %5638 = vmatprep.subr.mxu0 0.0
  %5639 = vmatpush1.msra.mxu0 0.0
  %5640 = vmatprep.subr.mxu0 0.0
  %5641 = vmatpush1.msra.mxu0 0.0
  %5642 = vmatprep.subr.mxu0 0.0
  %5643 = vmatpush1.msra.mxu0 0.0
  %5644 = vmatprep.subr.mxu0 0.0
  %5645 = vmatpush1.msra.mxu0 0.0
  %5646 = vmatprep.subr.mxu0 0.0
  %5647 = vmatpush1.msra.mxu0 0.0
  %5648 = vmatprep.subr.mxu0 0.0
  %5649 = vmatpush1.msra.mxu0 0.0
  %5650 = vmatprep.mubr.f32.mxu0 0.0
  %5651 = vmatmul.mubr.f32.gmra.mrb[0].mxu0 %v5584
  %v5652 = vpop.f32.mrb[0].mxu0
  %v5653 = vadd.f32 0.0, %v5652
  %v5654 = vpop.f32.mrb[0].mxu0
  %5655 = vdwg.mxu0
  %v5656 = vadd.f32 %v5583, %v5653
  %v5657 = vxor.u32 %v5656, 2147483648
  %v5658 = vmul.f32 %v5657, 1.442695
  %v5659 = vpow.pop %v5658
  %v5660 = vadd.f32 %v5659, 1.0
  %v5661 = vrcp.pop %v5660
  %v5662 = vmul.f32 1.0, %v5661
  %v5663 = vtanh.pop %v5656
  %v5664 = vmul.f32 %v5662, %v5463
  %5666 = vrot.lane.b32.xlu0 %v5663, 32
  %v5667 = vpop.permute.xlu0 %5666
  %v5669 = vmul.f32 %v5662, %v5667
  %5671 = vrot.lane.b32.xlu0 %v5669, 32
  %v5672 = vpop.permute.xlu0 %5671
  %v5674 = vadd.f32 %v5664, %v5672
  %v5675 = vtanh.pop %v5674
  %5677 = vrot.lane.b32.xlu0 %v5675, 32
  %v5678 = vpop.permute.xlu0 %5677
  %v5680 = vmul.f32 %v5662, %v5678
  %s5681 = sadd.s32 %s78, 7
  %p5682 = scmp.lt.s32.totalorder %s5681, 8
  %s5683 = scalar_select %p5682, 1, 0
  %v5684 = vstv %s5683
  %vm5685 = vcmp.eq.s32.totalorder %v5684, 1
  %v5686 = vsel %vm5685, %v5680, %v5462
  %v5687 = vsel %vm5685, %v5674, %v5463
  %5689 = vrot.lane.b32.xlu0 %v5686, 64
  %v5690 = vpop.permute.xlu0 %5689
  %s5692 = scalar_lea.vmem %s51, 14
  %5693 = vst.msk [vmem:[%s5692] sm:$0x3] %vm196, %v5690
  %s5694 = scalar_lea.vmem %s0, 50
  %v5695 = vld [vmem:[%s5694] sm:$0x3]
  %v5696 = vsel %vm80, %v5578, 0
  %5698 = vmatprep.subr.mxu0 0.0
  %5699 = vmatpush1.msra.mxu0 %v63
  %5700 = vmatprep.subr.mxu0 0.0
  %5701 = vmatpush1.msra.mxu0 %v64
  %5702 = vmatprep.subr.mxu0 0.0
  %5703 = vmatpush1.msra.mxu0 %v65
  %5704 = vmatprep.subr.mxu0 0.0
  %5705 = vmatpush1.msra.mxu0 %v66
  %5706 = vmatprep.subr.mxu0 0.0
  %5707 = vmatpush1.msra.mxu0 0.0
  %5708 = vmatprep.subr.mxu0 0.0
  %5709 = vmatpush1.msra.mxu0 0.0
  %5710 = vmatprep.subr.mxu0 0.0
  %5711 = vmatpush1.msra.mxu0 0.0
  %5712 = vmatprep.subr.mxu0 0.0
  %5713 = vmatpush1.msra.mxu0 0.0
  %5714 = vmatprep.subr.mxu0 0.0
  %5715 = vmatpush1.msra.mxu0 0.0
  %5716 = vmatprep.subr.mxu0 0.0
  %5717 = vmatpush1.msra.mxu0 0.0
  %5718 = vmatprep.subr.mxu0 0.0
  %5719 = vmatpush1.msra.mxu0 0.0
  %5720 = vmatprep.subr.mxu0 0.0
  %5721 = vmatpush1.msra.mxu0 0.0
  %5722 = vmatprep.subr.mxu0 0.0
  %5723 = vmatpush1.msra.mxu0 0.0
  %5724 = vmatprep.subr.mxu0 0.0
  %5725 = vmatpush1.msra.mxu0 0.0
  %5726 = vmatprep.subr.mxu0 0.0
  %5727 = vmatpush1.msra.mxu0 0.0
  %5728 = vmatprep.subr.mxu0 0.0
  %5729 = vmatpush1.msra.mxu0 0.0
  %5730 = vmatprep.subr.mxu0 0.0
  %5731 = vmatpush1.msra.mxu0 0.0
  %5732 = vmatprep.subr.mxu0 0.0
  %5733 = vmatpush1.msra.mxu0 0.0
  %5734 = vmatprep.subr.mxu0 0.0
  %5735 = vmatpush1.msra.mxu0 0.0
  %5736 = vmatprep.subr.mxu0 0.0
  %5737 = vmatpush1.msra.mxu0 0.0
  %5738 = vmatprep.subr.mxu0 0.0
  %5739 = vmatpush1.msra.mxu0 0.0
  %5740 = vmatprep.subr.mxu0 0.0
  %5741 = vmatpush1.msra.mxu0 0.0
  %5742 = vmatprep.subr.mxu0 0.0
  %5743 = vmatpush1.msra.mxu0 0.0
  %5744 = vmatprep.subr.mxu0 0.0
  %5745 = vmatpush1.msra.mxu0 0.0
  %5746 = vmatprep.subr.mxu0 0.0
  %5747 = vmatpush1.msra.mxu0 0.0
  %5748 = vmatprep.subr.mxu0 0.0
  %5749 = vmatpush1.msra.mxu0 0.0
  %5750 = vmatprep.subr.mxu0 0.0
  %5751 = vmatpush1.msra.mxu0 0.0
  %5752 = vmatprep.subr.mxu0 0.0
  %5753 = vmatpush1.msra.mxu0 0.0
  %5754 = vmatprep.subr.mxu0 0.0
  %5755 = vmatpush1.msra.mxu0 0.0
  %5756 = vmatprep.subr.mxu0 0.0
  %5757 = vmatpush1.msra.mxu0 0.0
  %5758 = vmatprep.subr.mxu0 0.0
  %5759 = vmatpush1.msra.mxu0 0.0
  %5760 = vmatprep.subr.mxu0 0.0
  %5761 = vmatpush1.msra.mxu0 0.0
  %5762 = vmatprep.mubr.f32.mxu0 0.0
  %5763 = vmatmul.mubr.f32.gmra.mrb[0].mxu0 %v5696
  %v5764 = vpop.f32.mrb[0].mxu0
  %v5765 = vadd.f32 0.0, %v5764
  %v5766 = vpop.f32.mrb[0].mxu0
  %5767 = vdwg.mxu0
  %v5768 = vadd.f32 %v5695, %v5765
  %v5769 = vxor.u32 %v5768, 2147483648
  %v5770 = vmul.f32 %v5769, 1.442695
  %v5771 = vpow.pop %v5770
  %v5772 = vadd.f32 %v5771, 1.0
  %v5773 = vrcp.pop %v5772
  %v5774 = vmul.f32 1.0, %v5773
  %v5775 = vtanh.pop %v5768
  %v5776 = vmul.f32 %v5774, %v5575
  %5778 = vrot.lane.b32.xlu0 %v5775, 32
  %v5779 = vpop.permute.xlu0 %5778
  %v5781 = vmul.f32 %v5774, %v5779
  %5783 = vrot.lane.b32.xlu0 %v5781, 32
  %v5784 = vpop.permute.xlu0 %5783
  %v5786 = vadd.f32 %v5776, %v5784
  %v5787 = vtanh.pop %v5786
  %5789 = vrot.lane.b32.xlu0 %v5787, 32
  %v5790 = vpop.permute.xlu0 %5789
  %v5792 = vmul.f32 %v5774, %v5790
  %s5793 = sadd.s32 %s76, 25
  %p5794 = scmp.lt.s32.totalorder %s5793, 8
  %s5795 = scalar_select %p5794, 1, 0
  %v5796 = vstv %s5795
  %vm5797 = vcmp.eq.s32.totalorder %v5796, 1
  %v5798 = vsel %vm5797, %v5792, %v5574
  %v5799 = vsel %vm5797, %v5786, %v5575
  %5801 = vrot.lane.b32.xlu0 %v5798, 64
  %v5802 = vpop.permute.xlu0 %5801
  %s5804 = scalar_lea.vmem %s3, 50
  %5805 = vst.msk [vmem:[%s5804] sm:$0x3] %vm196, %v5802
  %s5806 = scalar_lea.vmem %s43, 12
  %v5807 = vld [vmem:[%s5806] sm:$0x3]
  %v5808 = vsel %vm80, %v5690, 0
  %5810 = vmatprep.subr.mxu0 0.0
  %5811 = vmatpush1.msra.mxu0 %v68
  %5812 = vmatprep.subr.mxu0 0.0
  %5813 = vmatpush1.msra.mxu0 %v69
  %5814 = vmatprep.subr.mxu0 0.0
  %5815 = vmatpush1.msra.mxu0 %v70
  %5816 = vmatprep.subr.mxu0 0.0
  %5817 = vmatpush1.msra.mxu0 %v71
  %5818 = vmatprep.subr.mxu0 0.0
  %5819 = vmatpush1.msra.mxu0 0.0
  %5820 = vmatprep.subr.mxu0 0.0
  %5821 = vmatpush1.msra.mxu0 0.0
  %5822 = vmatprep.subr.mxu0 0.0
  %5823 = vmatpush1.msra.mxu0 0.0
  %5824 = vmatprep.subr.mxu0 0.0
  %5825 = vmatpush1.msra.mxu0 0.0
  %5826 = vmatprep.subr.mxu0 0.0
  %5827 = vmatpush1.msra.mxu0 0.0
  %5828 = vmatprep.subr.mxu0 0.0
  %5829 = vmatpush1.msra.mxu0 0.0
  %5830 = vmatprep.subr.mxu0 0.0
  %5831 = vmatpush1.msra.mxu0 0.0
  %5832 = vmatprep.subr.mxu0 0.0
  %5833 = vmatpush1.msra.mxu0 0.0
  %5834 = vmatprep.subr.mxu0 0.0
  %5835 = vmatpush1.msra.mxu0 0.0
  %5836 = vmatprep.subr.mxu0 0.0
  %5837 = vmatpush1.msra.mxu0 0.0
  %5838 = vmatprep.subr.mxu0 0.0
  %5839 = vmatpush1.msra.mxu0 0.0
  %5840 = vmatprep.subr.mxu0 0.0
  %5841 = vmatpush1.msra.mxu0 0.0
  %5842 = vmatprep.subr.mxu0 0.0
  %5843 = vmatpush1.msra.mxu0 0.0
  %5844 = vmatprep.subr.mxu0 0.0
  %5845 = vmatpush1.msra.mxu0 0.0
  %5846 = vmatprep.subr.mxu0 0.0
  %5847 = vmatpush1.msra.mxu0 0.0
  %5848 = vmatprep.subr.mxu0 0.0
  %5849 = vmatpush1.msra.mxu0 0.0
  %5850 = vmatprep.subr.mxu0 0.0
  %5851 = vmatpush1.msra.mxu0 0.0
  %5852 = vmatprep.subr.mxu0 0.0
  %5853 = vmatpush1.msra.mxu0 0.0
  %5854 = vmatprep.subr.mxu0 0.0
  %5855 = vmatpush1.msra.mxu0 0.0
  %5856 = vmatprep.subr.mxu0 0.0
  %5857 = vmatpush1.msra.mxu0 0.0
  %5858 = vmatprep.subr.mxu0 0.0
  %5859 = vmatpush1.msra.mxu0 0.0
  %5860 = vmatprep.subr.mxu0 0.0
  %5861 = vmatpush1.msra.mxu0 0.0
  %5862 = vmatprep.subr.mxu0 0.0
  %5863 = vmatpush1.msra.mxu0 0.0
  %5864 = vmatprep.subr.mxu0 0.0
  %5865 = vmatpush1.msra.mxu0 0.0
  %5866 = vmatprep.subr.mxu0 0.0
  %5867 = vmatpush1.msra.mxu0 0.0
  %5868 = vmatprep.subr.mxu0 0.0
  %5869 = vmatpush1.msra.mxu0 0.0
  %5870 = vmatprep.subr.mxu0 0.0
  %5871 = vmatpush1.msra.mxu0 0.0
  %5872 = vmatprep.subr.mxu0 0.0
  %5873 = vmatpush1.msra.mxu0 0.0
  %5874 = vmatprep.mubr.f32.mxu0 0.0
  %5875 = vmatmul.mubr.f32.gmra.mrb[0].mxu0 %v5808
  %v5876 = vpop.f32.mrb[0].mxu0
  %v5877 = vadd.f32 0.0, %v5876
  %v5878 = vpop.f32.mrb[0].mxu0
  %5879 = vdwg.mxu0
  %v5880 = vadd.f32 %v5807, %v5877
  %v5881 = vxor.u32 %v5880, 2147483648
  %v5882 = vmul.f32 %v5881, 1.442695
  %v5883 = vpow.pop %v5882
  %v5884 = vadd.f32 %v5883, 1.0
  %v5885 = vrcp.pop %v5884
  %v5886 = vmul.f32 1.0, %v5885
  %v5887 = vtanh.pop %v5880
  %v5888 = vmul.f32 %v5886, %v5687
  %5890 = vrot.lane.b32.xlu0 %v5887, 32
  %v5891 = vpop.permute.xlu0 %5890
  %v5893 = vmul.f32 %v5886, %v5891
  %5895 = vrot.lane.b32.xlu0 %v5893, 32
  %v5896 = vpop.permute.xlu0 %5895
  %v5898 = vadd.f32 %v5888, %v5896
  %v5899 = vtanh.pop %v5898
  %5901 = vrot.lane.b32.xlu0 %v5899, 32
  %v5902 = vpop.permute.xlu0 %5901
  %v5904 = vmul.f32 %v5886, %v5902
  %s5905 = sadd.s32 %s78, 6
  %p5906 = scmp.lt.s32.totalorder %s5905, 8
  %s5907 = scalar_select %p5906, 1, 0
  %v5908 = vstv %s5907
  %vm5909 = vcmp.eq.s32.totalorder %v5908, 1
  %v5910 = vsel %vm5909, %v5904, %v5686
  %v5911 = vsel %vm5909, %v5898, %v5687
  %5913 = vrot.lane.b32.xlu0 %v5910, 64
  %v5914 = vpop.permute.xlu0 %5913
  %s5916 = scalar_lea.vmem %s51, 12
  %5917 = vst.msk [vmem:[%s5916] sm:$0x3] %vm196, %v5914
  %s5918 = scalar_lea.vmem %s0, 52
  %v5919 = vld [vmem:[%s5918] sm:$0x3]
  %v5920 = vsel %vm80, %v5802, 0
  %5922 = vmatprep.subr.mxu0 0.0
  %5923 = vmatpush1.msra.mxu0 %v63
  %5924 = vmatprep.subr.mxu0 0.0
  %5925 = vmatpush1.msra.mxu0 %v64
  %5926 = vmatprep.subr.mxu0 0.0
  %5927 = vmatpush1.msra.mxu0 %v65
  %5928 = vmatprep.subr.mxu0 0.0
  %5929 = vmatpush1.msra.mxu0 %v66
  %5930 = vmatprep.subr.mxu0 0.0
  %5931 = vmatpush1.msra.mxu0 0.0
  %5932 = vmatprep.subr.mxu0 0.0
  %5933 = vmatpush1.msra.mxu0 0.0
  %5934 = vmatprep.subr.mxu0 0.0
  %5935 = vmatpush1.msra.mxu0 0.0
  %5936 = vmatprep.subr.mxu0 0.0
  %5937 = vmatpush1.msra.mxu0 0.0
  %5938 = vmatprep.subr.mxu0 0.0
  %5939 = vmatpush1.msra.mxu0 0.0
  %5940 = vmatprep.subr.mxu0 0.0
  %5941 = vmatpush1.msra.mxu0 0.0
  %5942 = vmatprep.subr.mxu0 0.0
  %5943 = vmatpush1.msra.mxu0 0.0
  %5944 = vmatprep.subr.mxu0 0.0
  %5945 = vmatpush1.msra.mxu0 0.0
  %5946 = vmatprep.subr.mxu0 0.0
  %5947 = vmatpush1.msra.mxu0 0.0
  %5948 = vmatprep.subr.mxu0 0.0
  %5949 = vmatpush1.msra.mxu0 0.0
  %5950 = vmatprep.subr.mxu0 0.0
  %5951 = vmatpush1.msra.mxu0 0.0
  %5952 = vmatprep.subr.mxu0 0.0
  %5953 = vmatpush1.msra.mxu0 0.0
  %5954 = vmatprep.subr.mxu0 0.0
  %5955 = vmatpush1.msra.mxu0 0.0
  %5956 = vmatprep.subr.mxu0 0.0
  %5957 = vmatpush1.msra.mxu0 0.0
  %5958 = vmatprep.subr.mxu0 0.0
  %5959 = vmatpush1.msra.mxu0 0.0
  %5960 = vmatprep.subr.mxu0 0.0
  %5961 = vmatpush1.msra.mxu0 0.0
  %5962 = vmatprep.subr.mxu0 0.0
  %5963 = vmatpush1.msra.mxu0 0.0
  %5964 = vmatprep.subr.mxu0 0.0
  %5965 = vmatpush1.msra.mxu0 0.0
  %5966 = vmatprep.subr.mxu0 0.0
  %5967 = vmatpush1.msra.mxu0 0.0
  %5968 = vmatprep.subr.mxu0 0.0
  %5969 = vmatpush1.msra.mxu0 0.0
  %5970 = vmatprep.subr.mxu0 0.0
  %5971 = vmatpush1.msra.mxu0 0.0
  %5972 = vmatprep.subr.mxu0 0.0
  %5973 = vmatpush1.msra.mxu0 0.0
  %5974 = vmatprep.subr.mxu0 0.0
  %5975 = vmatpush1.msra.mxu0 0.0
  %5976 = vmatprep.subr.mxu0 0.0
  %5977 = vmatpush1.msra.mxu0 0.0
  %5978 = vmatprep.subr.mxu0 0.0
  %5979 = vmatpush1.msra.mxu0 0.0
  %5980 = vmatprep.subr.mxu0 0.0
  %5981 = vmatpush1.msra.mxu0 0.0
  %5982 = vmatprep.subr.mxu0 0.0
  %5983 = vmatpush1.msra.mxu0 0.0
  %5984 = vmatprep.subr.mxu0 0.0
  %5985 = vmatpush1.msra.mxu0 0.0
  %5986 = vmatprep.mubr.f32.mxu0 0.0
  %5987 = vmatmul.mubr.f32.gmra.mrb[0].mxu0 %v5920
  %v5988 = vpop.f32.mrb[0].mxu0
  %v5989 = vadd.f32 0.0, %v5988
  %v5990 = vpop.f32.mrb[0].mxu0
  %5991 = vdwg.mxu0
  %v5992 = vadd.f32 %v5919, %v5989
  %v5993 = vxor.u32 %v5992, 2147483648
  %v5994 = vmul.f32 %v5993, 1.442695
  %v5995 = vpow.pop %v5994
  %v5996 = vadd.f32 %v5995, 1.0
  %v5997 = vrcp.pop %v5996
  %v5998 = vmul.f32 1.0, %v5997
  %v5999 = vtanh.pop %v5992
  %v6000 = vmul.f32 %v5998, %v5799
  %6002 = vrot.lane.b32.xlu0 %v5999, 32
  %v6003 = vpop.permute.xlu0 %6002
  %v6005 = vmul.f32 %v5998, %v6003
  %6007 = vrot.lane.b32.xlu0 %v6005, 32
  %v6008 = vpop.permute.xlu0 %6007
  %v6010 = vadd.f32 %v6000, %v6008
  %v6011 = vtanh.pop %v6010
  %6013 = vrot.lane.b32.xlu0 %v6011, 32
  %v6014 = vpop.permute.xlu0 %6013
  %v6016 = vmul.f32 %v5998, %v6014
  %s6017 = sadd.s32 %s76, 26
  %p6018 = scmp.lt.s32.totalorder %s6017, 8
  %s6019 = scalar_select %p6018, 1, 0
  %v6020 = vstv %s6019
  %vm6021 = vcmp.eq.s32.totalorder %v6020, 1
  %v6022 = vsel %vm6021, %v6016, %v5798
  %v6023 = vsel %vm6021, %v6010, %v5799
  %6025 = vrot.lane.b32.xlu0 %v6022, 64
  %v6026 = vpop.permute.xlu0 %6025
  %s6028 = scalar_lea.vmem %s3, 52
  %6029 = vst.msk [vmem:[%s6028] sm:$0x3] %vm196, %v6026
  %s6030 = scalar_lea.vmem %s43, 10
  %v6031 = vld [vmem:[%s6030] sm:$0x3]
  %v6032 = vsel %vm80, %v5914, 0
  %6034 = vmatprep.subr.mxu0 0.0
  %6035 = vmatpush1.msra.mxu0 %v68
  %6036 = vmatprep.subr.mxu0 0.0
  %6037 = vmatpush1.msra.mxu0 %v69
  %6038 = vmatprep.subr.mxu0 0.0
  %6039 = vmatpush1.msra.mxu0 %v70
  %6040 = vmatprep.subr.mxu0 0.0
  %6041 = vmatpush1.msra.mxu0 %v71
  %6042 = vmatprep.subr.mxu0 0.0
  %6043 = vmatpush1.msra.mxu0 0.0
  %6044 = vmatprep.subr.mxu0 0.0
  %6045 = vmatpush1.msra.mxu0 0.0
  %6046 = vmatprep.subr.mxu0 0.0
  %6047 = vmatpush1.msra.mxu0 0.0
  %6048 = vmatprep.subr.mxu0 0.0
  %6049 = vmatpush1.msra.mxu0 0.0
  %6050 = vmatprep.subr.mxu0 0.0
  %6051 = vmatpush1.msra.mxu0 0.0
  %6052 = vmatprep.subr.mxu0 0.0
  %6053 = vmatpush1.msra.mxu0 0.0
  %6054 = vmatprep.subr.mxu0 0.0
  %6055 = vmatpush1.msra.mxu0 0.0
  %6056 = vmatprep.subr.mxu0 0.0
  %6057 = vmatpush1.msra.mxu0 0.0
  %6058 = vmatprep.subr.mxu0 0.0
  %6059 = vmatpush1.msra.mxu0 0.0
  %6060 = vmatprep.subr.mxu0 0.0
  %6061 = vmatpush1.msra.mxu0 0.0
  %6062 = vmatprep.subr.mxu0 0.0
  %6063 = vmatpush1.msra.mxu0 0.0
  %6064 = vmatprep.subr.mxu0 0.0
  %6065 = vmatpush1.msra.mxu0 0.0
  %6066 = vmatprep.subr.mxu0 0.0
  %6067 = vmatpush1.msra.mxu0 0.0
  %6068 = vmatprep.subr.mxu0 0.0
  %6069 = vmatpush1.msra.mxu0 0.0
  %6070 = vmatprep.subr.mxu0 0.0
  %6071 = vmatpush1.msra.mxu0 0.0
  %6072 = vmatprep.subr.mxu0 0.0
  %6073 = vmatpush1.msra.mxu0 0.0
  %6074 = vmatprep.subr.mxu0 0.0
  %6075 = vmatpush1.msra.mxu0 0.0
  %6076 = vmatprep.subr.mxu0 0.0
  %6077 = vmatpush1.msra.mxu0 0.0
  %6078 = vmatprep.subr.mxu0 0.0
  %6079 = vmatpush1.msra.mxu0 0.0
  %6080 = vmatprep.subr.mxu0 0.0
  %6081 = vmatpush1.msra.mxu0 0.0
  %6082 = vmatprep.subr.mxu0 0.0
  %6083 = vmatpush1.msra.mxu0 0.0
  %6084 = vmatprep.subr.mxu0 0.0
  %6085 = vmatpush1.msra.mxu0 0.0
  %6086 = vmatprep.subr.mxu0 0.0
  %6087 = vmatpush1.msra.mxu0 0.0
  %6088 = vmatprep.subr.mxu0 0.0
  %6089 = vmatpush1.msra.mxu0 0.0
  %6090 = vmatprep.subr.mxu0 0.0
  %6091 = vmatpush1.msra.mxu0 0.0
  %6092 = vmatprep.subr.mxu0 0.0
  %6093 = vmatpush1.msra.mxu0 0.0
  %6094 = vmatprep.subr.mxu0 0.0
  %6095 = vmatpush1.msra.mxu0 0.0
  %6096 = vmatprep.subr.mxu0 0.0
  %6097 = vmatpush1.msra.mxu0 0.0
  %6098 = vmatprep.mubr.f32.mxu0 0.0
  %6099 = vmatmul.mubr.f32.gmra.mrb[0].mxu0 %v6032
  %v6100 = vpop.f32.mrb[0].mxu0
  %v6101 = vadd.f32 0.0, %v6100
  %v6102 = vpop.f32.mrb[0].mxu0
  %6103 = vdwg.mxu0
  %v6104 = vadd.f32 %v6031, %v6101
  %v6105 = vxor.u32 %v6104, 2147483648
  %v6106 = vmul.f32 %v6105, 1.442695
  %v6107 = vpow.pop %v6106
  %v6108 = vadd.f32 %v6107, 1.0
  %v6109 = vrcp.pop %v6108
  %v6110 = vmul.f32 1.0, %v6109
  %v6111 = vtanh.pop %v6104
  %v6112 = vmul.f32 %v6110, %v5911
  %6114 = vrot.lane.b32.xlu0 %v6111, 32
  %v6115 = vpop.permute.xlu0 %6114
  %v6117 = vmul.f32 %v6110, %v6115
  %6119 = vrot.lane.b32.xlu0 %v6117, 32
  %v6120 = vpop.permute.xlu0 %6119
  %v6122 = vadd.f32 %v6112, %v6120
  %v6123 = vtanh.pop %v6122
  %6125 = vrot.lane.b32.xlu0 %v6123, 32
  %v6126 = vpop.permute.xlu0 %6125
  %v6128 = vmul.f32 %v6110, %v6126
  %s6129 = sadd.s32 %s78, 5
  %p6130 = scmp.lt.s32.totalorder %s6129, 8
  %s6131 = scalar_select %p6130, 1, 0
  %v6132 = vstv %s6131
  %vm6133 = vcmp.eq.s32.totalorder %v6132, 1
  %v6134 = vsel %vm6133, %v6128, %v5910
  %v6135 = vsel %vm6133, %v6122, %v5911
  %6137 = vrot.lane.b32.xlu0 %v6134, 64
  %v6138 = vpop.permute.xlu0 %6137
  %s6140 = scalar_lea.vmem %s51, 10
  %6141 = vst.msk [vmem:[%s6140] sm:$0x3] %vm196, %v6138
  %s6142 = scalar_lea.vmem %s0, 54
  %v6143 = vld [vmem:[%s6142] sm:$0x3]
  %v6144 = vsel %vm80, %v6026, 0
  %6146 = vmatprep.subr.mxu0 0.0
  %6147 = vmatpush1.msra.mxu0 %v63
  %6148 = vmatprep.subr.mxu0 0.0
  %6149 = vmatpush1.msra.mxu0 %v64
  %6150 = vmatprep.subr.mxu0 0.0
  %6151 = vmatpush1.msra.mxu0 %v65
  %6152 = vmatprep.subr.mxu0 0.0
  %6153 = vmatpush1.msra.mxu0 %v66
  %6154 = vmatprep.subr.mxu0 0.0
  %6155 = vmatpush1.msra.mxu0 0.0
  %6156 = vmatprep.subr.mxu0 0.0
  %6157 = vmatpush1.msra.mxu0 0.0
  %6158 = vmatprep.subr.mxu0 0.0
  %6159 = vmatpush1.msra.mxu0 0.0
  %6160 = vmatprep.subr.mxu0 0.0
  %6161 = vmatpush1.msra.mxu0 0.0
  %6162 = vmatprep.subr.mxu0 0.0
  %6163 = vmatpush1.msra.mxu0 0.0
  %6164 = vmatprep.subr.mxu0 0.0
  %6165 = vmatpush1.msra.mxu0 0.0
  %6166 = vmatprep.subr.mxu0 0.0
  %6167 = vmatpush1.msra.mxu0 0.0
  %6168 = vmatprep.subr.mxu0 0.0
  %6169 = vmatpush1.msra.mxu0 0.0
  %6170 = vmatprep.subr.mxu0 0.0
  %6171 = vmatpush1.msra.mxu0 0.0
  %6172 = vmatprep.subr.mxu0 0.0
  %6173 = vmatpush1.msra.mxu0 0.0
  %6174 = vmatprep.subr.mxu0 0.0
  %6175 = vmatpush1.msra.mxu0 0.0
  %6176 = vmatprep.subr.mxu0 0.0
  %6177 = vmatpush1.msra.mxu0 0.0
  %6178 = vmatprep.subr.mxu0 0.0
  %6179 = vmatpush1.msra.mxu0 0.0
  %6180 = vmatprep.subr.mxu0 0.0
  %6181 = vmatpush1.msra.mxu0 0.0
  %6182 = vmatprep.subr.mxu0 0.0
  %6183 = vmatpush1.msra.mxu0 0.0
  %6184 = vmatprep.subr.mxu0 0.0
  %6185 = vmatpush1.msra.mxu0 0.0
  %6186 = vmatprep.subr.mxu0 0.0
  %6187 = vmatpush1.msra.mxu0 0.0
  %6188 = vmatprep.subr.mxu0 0.0
  %6189 = vmatpush1.msra.mxu0 0.0
  %6190 = vmatprep.subr.mxu0 0.0
  %6191 = vmatpush1.msra.mxu0 0.0
  %6192 = vmatprep.subr.mxu0 0.0
  %6193 = vmatpush1.msra.mxu0 0.0
  %6194 = vmatprep.subr.mxu0 0.0
  %6195 = vmatpush1.msra.mxu0 0.0
  %6196 = vmatprep.subr.mxu0 0.0
  %6197 = vmatpush1.msra.mxu0 0.0
  %6198 = vmatprep.subr.mxu0 0.0
  %6199 = vmatpush1.msra.mxu0 0.0
  %6200 = vmatprep.subr.mxu0 0.0
  %6201 = vmatpush1.msra.mxu0 0.0
  %6202 = vmatprep.subr.mxu0 0.0
  %6203 = vmatpush1.msra.mxu0 0.0
  %6204 = vmatprep.subr.mxu0 0.0
  %6205 = vmatpush1.msra.mxu0 0.0
  %6206 = vmatprep.subr.mxu0 0.0
  %6207 = vmatpush1.msra.mxu0 0.0
  %6208 = vmatprep.subr.mxu0 0.0
  %6209 = vmatpush1.msra.mxu0 0.0
  %6210 = vmatprep.mubr.f32.mxu0 0.0
  %6211 = vmatmul.mubr.f32.gmra.mrb[0].mxu0 %v6144
  %v6212 = vpop.f32.mrb[0].mxu0
  %v6213 = vadd.f32 0.0, %v6212
  %v6214 = vpop.f32.mrb[0].mxu0
  %6215 = vdwg.mxu0
  %v6216 = vadd.f32 %v6143, %v6213
  %v6217 = vxor.u32 %v6216, 2147483648
  %v6218 = vmul.f32 %v6217, 1.442695
  %v6219 = vpow.pop %v6218
  %v6220 = vadd.f32 %v6219, 1.0
  %v6221 = vrcp.pop %v6220
  %v6222 = vmul.f32 1.0, %v6221
  %v6223 = vtanh.pop %v6216
  %v6224 = vmul.f32 %v6222, %v6023
  %6226 = vrot.lane.b32.xlu0 %v6223, 32
  %v6227 = vpop.permute.xlu0 %6226
  %v6229 = vmul.f32 %v6222, %v6227
  %6231 = vrot.lane.b32.xlu0 %v6229, 32
  %v6232 = vpop.permute.xlu0 %6231
  %v6234 = vadd.f32 %v6224, %v6232
  %v6235 = vtanh.pop %v6234
  %6237 = vrot.lane.b32.xlu0 %v6235, 32
  %v6238 = vpop.permute.xlu0 %6237
  %v6240 = vmul.f32 %v6222, %v6238
  %s6241 = sadd.s32 %s76, 27
  %p6242 = scmp.lt.s32.totalorder %s6241, 8
  %s6243 = scalar_select %p6242, 1, 0
  %v6244 = vstv %s6243
  %vm6245 = vcmp.eq.s32.totalorder %v6244, 1
  %v6246 = vsel %vm6245, %v6240, %v6022
  %v6247 = vsel %vm6245, %v6234, %v6023
  %6249 = vrot.lane.b32.xlu0 %v6246, 64
  %v6250 = vpop.permute.xlu0 %6249
  %s6252 = scalar_lea.vmem %s3, 54
  %6253 = vst.msk [vmem:[%s6252] sm:$0x3] %vm196, %v6250
  %s6254 = scalar_lea.vmem %s43, 8
  %v6255 = vld [vmem:[%s6254] sm:$0x3]
  %v6256 = vsel %vm80, %v6138, 0
  %6258 = vmatprep.subr.mxu0 0.0
  %6259 = vmatpush1.msra.mxu0 %v68
  %6260 = vmatprep.subr.mxu0 0.0
  %6261 = vmatpush1.msra.mxu0 %v69
  %6262 = vmatprep.subr.mxu0 0.0
  %6263 = vmatpush1.msra.mxu0 %v70
  %6264 = vmatprep.subr.mxu0 0.0
  %6265 = vmatpush1.msra.mxu0 %v71
  %6266 = vmatprep.subr.mxu0 0.0
  %6267 = vmatpush1.msra.mxu0 0.0
  %6268 = vmatprep.subr.mxu0 0.0
  %6269 = vmatpush1.msra.mxu0 0.0
  %6270 = vmatprep.subr.mxu0 0.0
  %6271 = vmatpush1.msra.mxu0 0.0
  %6272 = vmatprep.subr.mxu0 0.0
  %6273 = vmatpush1.msra.mxu0 0.0
  %6274 = vmatprep.subr.mxu0 0.0
  %6275 = vmatpush1.msra.mxu0 0.0
  %6276 = vmatprep.subr.mxu0 0.0
  %6277 = vmatpush1.msra.mxu0 0.0
  %6278 = vmatprep.subr.mxu0 0.0
  %6279 = vmatpush1.msra.mxu0 0.0
  %6280 = vmatprep.subr.mxu0 0.0
  %6281 = vmatpush1.msra.mxu0 0.0
  %6282 = vmatprep.subr.mxu0 0.0
  %6283 = vmatpush1.msra.mxu0 0.0
  %6284 = vmatprep.subr.mxu0 0.0
  %6285 = vmatpush1.msra.mxu0 0.0
  %6286 = vmatprep.subr.mxu0 0.0
  %6287 = vmatpush1.msra.mxu0 0.0
  %6288 = vmatprep.subr.mxu0 0.0
  %6289 = vmatpush1.msra.mxu0 0.0
  %6290 = vmatprep.subr.mxu0 0.0
  %6291 = vmatpush1.msra.mxu0 0.0
  %6292 = vmatprep.subr.mxu0 0.0
  %6293 = vmatpush1.msra.mxu0 0.0
  %6294 = vmatprep.subr.mxu0 0.0
  %6295 = vmatpush1.msra.mxu0 0.0
  %6296 = vmatprep.subr.mxu0 0.0
  %6297 = vmatpush1.msra.mxu0 0.0
  %6298 = vmatprep.subr.mxu0 0.0
  %6299 = vmatpush1.msra.mxu0 0.0
  %6300 = vmatprep.subr.mxu0 0.0
  %6301 = vmatpush1.msra.mxu0 0.0
  %6302 = vmatprep.subr.mxu0 0.0
  %6303 = vmatpush1.msra.mxu0 0.0
  %6304 = vmatprep.subr.mxu0 0.0
  %6305 = vmatpush1.msra.mxu0 0.0
  %6306 = vmatprep.subr.mxu0 0.0
  %6307 = vmatpush1.msra.mxu0 0.0
  %6308 = vmatprep.subr.mxu0 0.0
  %6309 = vmatpush1.msra.mxu0 0.0
  %6310 = vmatprep.subr.mxu0 0.0
  %6311 = vmatpush1.msra.mxu0 0.0
  %6312 = vmatprep.subr.mxu0 0.0
  %6313 = vmatpush1.msra.mxu0 0.0
  %6314 = vmatprep.subr.mxu0 0.0
  %6315 = vmatpush1.msra.mxu0 0.0
  %6316 = vmatprep.subr.mxu0 0.0
  %6317 = vmatpush1.msra.mxu0 0.0
  %6318 = vmatprep.subr.mxu0 0.0
  %6319 = vmatpush1.msra.mxu0 0.0
  %6320 = vmatprep.subr.mxu0 0.0
  %6321 = vmatpush1.msra.mxu0 0.0
  %6322 = vmatprep.mubr.f32.mxu0 0.0
  %6323 = vmatmul.mubr.f32.gmra.mrb[0].mxu0 %v6256
  %v6324 = vpop.f32.mrb[0].mxu0
  %v6325 = vadd.f32 0.0, %v6324
  %v6326 = vpop.f32.mrb[0].mxu0
  %6327 = vdwg.mxu0
  %v6328 = vadd.f32 %v6255, %v6325
  %v6329 = vxor.u32 %v6328, 2147483648
  %v6330 = vmul.f32 %v6329, 1.442695
  %v6331 = vpow.pop %v6330
  %v6332 = vadd.f32 %v6331, 1.0
  %v6333 = vrcp.pop %v6332
  %v6334 = vmul.f32 1.0, %v6333
  %v6335 = vtanh.pop %v6328
  %v6336 = vmul.f32 %v6334, %v6135
  %6338 = vrot.lane.b32.xlu0 %v6335, 32
  %v6339 = vpop.permute.xlu0 %6338
  %v6341 = vmul.f32 %v6334, %v6339
  %6343 = vrot.lane.b32.xlu0 %v6341, 32
  %v6344 = vpop.permute.xlu0 %6343
  %v6346 = vadd.f32 %v6336, %v6344
  %v6347 = vtanh.pop %v6346
  %6349 = vrot.lane.b32.xlu0 %v6347, 32
  %v6350 = vpop.permute.xlu0 %6349
  %v6352 = vmul.f32 %v6334, %v6350
  %s6353 = sadd.s32 %s78, 4
  %p6354 = scmp.lt.s32.totalorder %s6353, 8
  %s6355 = scalar_select %p6354, 1, 0
  %v6356 = vstv %s6355
  %vm6357 = vcmp.eq.s32.totalorder %v6356, 1
  %v6358 = vsel %vm6357, %v6352, %v6134
  %v6359 = vsel %vm6357, %v6346, %v6135
  %6361 = vrot.lane.b32.xlu0 %v6358, 64
  %v6362 = vpop.permute.xlu0 %6361
  %s6364 = scalar_lea.vmem %s51, 8
  %6365 = vst.msk [vmem:[%s6364] sm:$0x3] %vm196, %v6362
  %s6366 = scalar_lea.vmem %s0, 56
  %v6367 = vld [vmem:[%s6366] sm:$0x3]
  %v6368 = vsel %vm80, %v6250, 0
  %6370 = vmatprep.subr.mxu0 0.0
  %6371 = vmatpush1.msra.mxu0 %v63
  %6372 = vmatprep.subr.mxu0 0.0
  %6373 = vmatpush1.msra.mxu0 %v64
  %6374 = vmatprep.subr.mxu0 0.0
  %6375 = vmatpush1.msra.mxu0 %v65
  %6376 = vmatprep.subr.mxu0 0.0
  %6377 = vmatpush1.msra.mxu0 %v66
  %6378 = vmatprep.subr.mxu0 0.0
  %6379 = vmatpush1.msra.mxu0 0.0
  %6380 = vmatprep.subr.mxu0 0.0
  %6381 = vmatpush1.msra.mxu0 0.0
  %6382 = vmatprep.subr.mxu0 0.0
  %6383 = vmatpush1.msra.mxu0 0.0
  %6384 = vmatprep.subr.mxu0 0.0
  %6385 = vmatpush1.msra.mxu0 0.0
  %6386 = vmatprep.subr.mxu0 0.0
  %6387 = vmatpush1.msra.mxu0 0.0
  %6388 = vmatprep.subr.mxu0 0.0
  %6389 = vmatpush1.msra.mxu0 0.0
  %6390 = vmatprep.subr.mxu0 0.0
  %6391 = vmatpush1.msra.mxu0 0.0
  %6392 = vmatprep.subr.mxu0 0.0
  %6393 = vmatpush1.msra.mxu0 0.0
  %6394 = vmatprep.subr.mxu0 0.0
  %6395 = vmatpush1.msra.mxu0 0.0
  %6396 = vmatprep.subr.mxu0 0.0
  %6397 = vmatpush1.msra.mxu0 0.0
  %6398 = vmatprep.subr.mxu0 0.0
  %6399 = vmatpush1.msra.mxu0 0.0
  %6400 = vmatprep.subr.mxu0 0.0
  %6401 = vmatpush1.msra.mxu0 0.0
  %6402 = vmatprep.subr.mxu0 0.0
  %6403 = vmatpush1.msra.mxu0 0.0
  %6404 = vmatprep.subr.mxu0 0.0
  %6405 = vmatpush1.msra.mxu0 0.0
  %6406 = vmatprep.subr.mxu0 0.0
  %6407 = vmatpush1.msra.mxu0 0.0
  %6408 = vmatprep.subr.mxu0 0.0
  %6409 = vmatpush1.msra.mxu0 0.0
  %6410 = vmatprep.subr.mxu0 0.0
  %6411 = vmatpush1.msra.mxu0 0.0
  %6412 = vmatprep.subr.mxu0 0.0
  %6413 = vmatpush1.msra.mxu0 0.0
  %6414 = vmatprep.subr.mxu0 0.0
  %6415 = vmatpush1.msra.mxu0 0.0
  %6416 = vmatprep.subr.mxu0 0.0
  %6417 = vmatpush1.msra.mxu0 0.0
  %6418 = vmatprep.subr.mxu0 0.0
  %6419 = vmatpush1.msra.mxu0 0.0
  %6420 = vmatprep.subr.mxu0 0.0
  %6421 = vmatpush1.msra.mxu0 0.0
  %6422 = vmatprep.subr.mxu0 0.0
  %6423 = vmatpush1.msra.mxu0 0.0
  %6424 = vmatprep.subr.mxu0 0.0
  %6425 = vmatpush1.msra.mxu0 0.0
  %6426 = vmatprep.subr.mxu0 0.0
  %6427 = vmatpush1.msra.mxu0 0.0
  %6428 = vmatprep.subr.mxu0 0.0
  %6429 = vmatpush1.msra.mxu0 0.0
  %6430 = vmatprep.subr.mxu0 0.0
  %6431 = vmatpush1.msra.mxu0 0.0
  %6432 = vmatprep.subr.mxu0 0.0
  %6433 = vmatpush1.msra.mxu0 0.0
  %6434 = vmatprep.mubr.f32.mxu0 0.0
  %6435 = vmatmul.mubr.f32.gmra.mrb[0].mxu0 %v6368
  %v6436 = vpop.f32.mrb[0].mxu0
  %v6437 = vadd.f32 0.0, %v6436
  %v6438 = vpop.f32.mrb[0].mxu0
  %6439 = vdwg.mxu0
  %v6440 = vadd.f32 %v6367, %v6437
  %v6441 = vxor.u32 %v6440, 2147483648
  %v6442 = vmul.f32 %v6441, 1.442695
  %v6443 = vpow.pop %v6442
  %v6444 = vadd.f32 %v6443, 1.0
  %v6445 = vrcp.pop %v6444
  %v6446 = vmul.f32 1.0, %v6445
  %v6447 = vtanh.pop %v6440
  %v6448 = vmul.f32 %v6446, %v6247
  %6450 = vrot.lane.b32.xlu0 %v6447, 32
  %v6451 = vpop.permute.xlu0 %6450
  %v6453 = vmul.f32 %v6446, %v6451
  %6455 = vrot.lane.b32.xlu0 %v6453, 32
  %v6456 = vpop.permute.xlu0 %6455
  %v6458 = vadd.f32 %v6448, %v6456
  %v6459 = vtanh.pop %v6458
  %6461 = vrot.lane.b32.xlu0 %v6459, 32
  %v6462 = vpop.permute.xlu0 %6461
  %v6464 = vmul.f32 %v6446, %v6462
  %s6465 = sadd.s32 %s76, 28
  %p6466 = scmp.lt.s32.totalorder %s6465, 8
  %s6467 = scalar_select %p6466, 1, 0
  %v6468 = vstv %s6467
  %vm6469 = vcmp.eq.s32.totalorder %v6468, 1
  %v6470 = vsel %vm6469, %v6464, %v6246
  %v6471 = vsel %vm6469, %v6458, %v6247
  %6473 = vrot.lane.b32.xlu0 %v6470, 64
  %v6474 = vpop.permute.xlu0 %6473
  %s6476 = scalar_lea.vmem %s3, 56
  %6477 = vst.msk [vmem:[%s6476] sm:$0x3] %vm196, %v6474
  %s6478 = scalar_lea.vmem %s43, 6
  %v6479 = vld [vmem:[%s6478] sm:$0x3]
  %v6480 = vsel %vm80, %v6362, 0
  %6482 = vmatprep.subr.mxu0 0.0
  %6483 = vmatpush1.msra.mxu0 %v68
  %6484 = vmatprep.subr.mxu0 0.0
  %6485 = vmatpush1.msra.mxu0 %v69
  %6486 = vmatprep.subr.mxu0 0.0
  %6487 = vmatpush1.msra.mxu0 %v70
  %6488 = vmatprep.subr.mxu0 0.0
  %6489 = vmatpush1.msra.mxu0 %v71
  %6490 = vmatprep.subr.mxu0 0.0
  %6491 = vmatpush1.msra.mxu0 0.0
  %6492 = vmatprep.subr.mxu0 0.0
  %6493 = vmatpush1.msra.mxu0 0.0
  %6494 = vmatprep.subr.mxu0 0.0
  %6495 = vmatpush1.msra.mxu0 0.0
  %6496 = vmatprep.subr.mxu0 0.0
  %6497 = vmatpush1.msra.mxu0 0.0
  %6498 = vmatprep.subr.mxu0 0.0
  %6499 = vmatpush1.msra.mxu0 0.0
  %6500 = vmatprep.subr.mxu0 0.0
  %6501 = vmatpush1.msra.mxu0 0.0
  %6502 = vmatprep.subr.mxu0 0.0
  %6503 = vmatpush1.msra.mxu0 0.0
  %6504 = vmatprep.subr.mxu0 0.0
  %6505 = vmatpush1.msra.mxu0 0.0
  %6506 = vmatprep.subr.mxu0 0.0
  %6507 = vmatpush1.msra.mxu0 0.0
  %6508 = vmatprep.subr.mxu0 0.0
  %6509 = vmatpush1.msra.mxu0 0.0
  %6510 = vmatprep.subr.mxu0 0.0
  %6511 = vmatpush1.msra.mxu0 0.0
  %6512 = vmatprep.subr.mxu0 0.0
  %6513 = vmatpush1.msra.mxu0 0.0
  %6514 = vmatprep.subr.mxu0 0.0
  %6515 = vmatpush1.msra.mxu0 0.0
  %6516 = vmatprep.subr.mxu0 0.0
  %6517 = vmatpush1.msra.mxu0 0.0
  %6518 = vmatprep.subr.mxu0 0.0
  %6519 = vmatpush1.msra.mxu0 0.0
  %6520 = vmatprep.subr.mxu0 0.0
  %6521 = vmatpush1.msra.mxu0 0.0
  %6522 = vmatprep.subr.mxu0 0.0
  %6523 = vmatpush1.msra.mxu0 0.0
  %6524 = vmatprep.subr.mxu0 0.0
  %6525 = vmatpush1.msra.mxu0 0.0
  %6526 = vmatprep.subr.mxu0 0.0
  %6527 = vmatpush1.msra.mxu0 0.0
  %6528 = vmatprep.subr.mxu0 0.0
  %6529 = vmatpush1.msra.mxu0 0.0
  %6530 = vmatprep.subr.mxu0 0.0
  %6531 = vmatpush1.msra.mxu0 0.0
  %6532 = vmatprep.subr.mxu0 0.0
  %6533 = vmatpush1.msra.mxu0 0.0
  %6534 = vmatprep.subr.mxu0 0.0
  %6535 = vmatpush1.msra.mxu0 0.0
  %6536 = vmatprep.subr.mxu0 0.0
  %6537 = vmatpush1.msra.mxu0 0.0
  %6538 = vmatprep.subr.mxu0 0.0
  %6539 = vmatpush1.msra.mxu0 0.0
  %6540 = vmatprep.subr.mxu0 0.0
  %6541 = vmatpush1.msra.mxu0 0.0
  %6542 = vmatprep.subr.mxu0 0.0
  %6543 = vmatpush1.msra.mxu0 0.0
  %6544 = vmatprep.subr.mxu0 0.0
  %6545 = vmatpush1.msra.mxu0 0.0
  %6546 = vmatprep.mubr.f32.mxu0 0.0
  %6547 = vmatmul.mubr.f32.gmra.mrb[0].mxu0 %v6480
  %v6548 = vpop.f32.mrb[0].mxu0
  %v6549 = vadd.f32 0.0, %v6548
  %v6550 = vpop.f32.mrb[0].mxu0
  %6551 = vdwg.mxu0
  %v6552 = vadd.f32 %v6479, %v6549
  %v6553 = vxor.u32 %v6552, 2147483648
  %v6554 = vmul.f32 %v6553, 1.442695
  %v6555 = vpow.pop %v6554
  %v6556 = vadd.f32 %v6555, 1.0
  %v6557 = vrcp.pop %v6556
  %v6558 = vmul.f32 1.0, %v6557
  %v6559 = vtanh.pop %v6552
  %v6560 = vmul.f32 %v6558, %v6359
  %6562 = vrot.lane.b32.xlu0 %v6559, 32
  %v6563 = vpop.permute.xlu0 %6562
  %v6565 = vmul.f32 %v6558, %v6563
  %6567 = vrot.lane.b32.xlu0 %v6565, 32
  %v6568 = vpop.permute.xlu0 %6567
  %v6570 = vadd.f32 %v6560, %v6568
  %v6571 = vtanh.pop %v6570
  %6573 = vrot.lane.b32.xlu0 %v6571, 32
  %v6574 = vpop.permute.xlu0 %6573
  %v6576 = vmul.f32 %v6558, %v6574
  %s6577 = sadd.s32 %s78, 3
  %p6578 = scmp.lt.s32.totalorder %s6577, 8
  %s6579 = scalar_select %p6578, 1, 0
  %v6580 = vstv %s6579
  %vm6581 = vcmp.eq.s32.totalorder %v6580, 1
  %v6582 = vsel %vm6581, %v6576, %v6358
  %v6583 = vsel %vm6581, %v6570, %v6359
  %6585 = vrot.lane.b32.xlu0 %v6582, 64
  %v6586 = vpop.permute.xlu0 %6585
  %s6588 = scalar_lea.vmem %s51, 6
  %6589 = vst.msk [vmem:[%s6588] sm:$0x3] %vm196, %v6586
  %s6590 = scalar_lea.vmem %s0, 58
  %v6591 = vld [vmem:[%s6590] sm:$0x3]
  %v6592 = vsel %vm80, %v6474, 0
  %6594 = vmatprep.subr.mxu0 0.0
  %6595 = vmatpush1.msra.mxu0 %v63
  %6596 = vmatprep.subr.mxu0 0.0
  %6597 = vmatpush1.msra.mxu0 %v64
  %6598 = vmatprep.subr.mxu0 0.0
  %6599 = vmatpush1.msra.mxu0 %v65
  %6600 = vmatprep.subr.mxu0 0.0
  %6601 = vmatpush1.msra.mxu0 %v66
  %6602 = vmatprep.subr.mxu0 0.0
  %6603 = vmatpush1.msra.mxu0 0.0
  %6604 = vmatprep.subr.mxu0 0.0
  %6605 = vmatpush1.msra.mxu0 0.0
  %6606 = vmatprep.subr.mxu0 0.0
  %6607 = vmatpush1.msra.mxu0 0.0
  %6608 = vmatprep.subr.mxu0 0.0
  %6609 = vmatpush1.msra.mxu0 0.0
  %6610 = vmatprep.subr.mxu0 0.0
  %6611 = vmatpush1.msra.mxu0 0.0
  %6612 = vmatprep.subr.mxu0 0.0
  %6613 = vmatpush1.msra.mxu0 0.0
  %6614 = vmatprep.subr.mxu0 0.0
  %6615 = vmatpush1.msra.mxu0 0.0
  %6616 = vmatprep.subr.mxu0 0.0
  %6617 = vmatpush1.msra.mxu0 0.0
  %6618 = vmatprep.subr.mxu0 0.0
  %6619 = vmatpush1.msra.mxu0 0.0
  %6620 = vmatprep.subr.mxu0 0.0
  %6621 = vmatpush1.msra.mxu0 0.0
  %6622 = vmatprep.subr.mxu0 0.0
  %6623 = vmatpush1.msra.mxu0 0.0
  %6624 = vmatprep.subr.mxu0 0.0
  %6625 = vmatpush1.msra.mxu0 0.0
  %6626 = vmatprep.subr.mxu0 0.0
  %6627 = vmatpush1.msra.mxu0 0.0
  %6628 = vmatprep.subr.mxu0 0.0
  %6629 = vmatpush1.msra.mxu0 0.0
  %6630 = vmatprep.subr.mxu0 0.0
  %6631 = vmatpush1.msra.mxu0 0.0
  %6632 = vmatprep.subr.mxu0 0.0
  %6633 = vmatpush1.msra.mxu0 0.0
  %6634 = vmatprep.subr.mxu0 0.0
  %6635 = vmatpush1.msra.mxu0 0.0
  %6636 = vmatprep.subr.mxu0 0.0
  %6637 = vmatpush1.msra.mxu0 0.0
  %6638 = vmatprep.subr.mxu0 0.0
  %6639 = vmatpush1.msra.mxu0 0.0
  %6640 = vmatprep.subr.mxu0 0.0
  %6641 = vmatpush1.msra.mxu0 0.0
  %6642 = vmatprep.subr.mxu0 0.0
  %6643 = vmatpush1.msra.mxu0 0.0
  %6644 = vmatprep.subr.mxu0 0.0
  %6645 = vmatpush1.msra.mxu0 0.0
  %6646 = vmatprep.subr.mxu0 0.0
  %6647 = vmatpush1.msra.mxu0 0.0
  %6648 = vmatprep.subr.mxu0 0.0
  %6649 = vmatpush1.msra.mxu0 0.0
  %6650 = vmatprep.subr.mxu0 0.0
  %6651 = vmatpush1.msra.mxu0 0.0
  %6652 = vmatprep.subr.mxu0 0.0
  %6653 = vmatpush1.msra.mxu0 0.0
  %6654 = vmatprep.subr.mxu0 0.0
  %6655 = vmatpush1.msra.mxu0 0.0
  %6656 = vmatprep.subr.mxu0 0.0
  %6657 = vmatpush1.msra.mxu0 0.0
  %6658 = vmatprep.mubr.f32.mxu0 0.0
  %6659 = vmatmul.mubr.f32.gmra.mrb[0].mxu0 %v6592
  %v6660 = vpop.f32.mrb[0].mxu0
  %v6661 = vadd.f32 0.0, %v6660
  %v6662 = vpop.f32.mrb[0].mxu0
  %6663 = vdwg.mxu0
  %v6664 = vadd.f32 %v6591, %v6661
  %v6665 = vxor.u32 %v6664, 2147483648
  %v6666 = vmul.f32 %v6665, 1.442695
  %v6667 = vpow.pop %v6666
  %v6668 = vadd.f32 %v6667, 1.0
  %v6669 = vrcp.pop %v6668
  %v6670 = vmul.f32 1.0, %v6669
  %v6671 = vtanh.pop %v6664
  %v6672 = vmul.f32 %v6670, %v6471
  %6674 = vrot.lane.b32.xlu0 %v6671, 32
  %v6675 = vpop.permute.xlu0 %6674
  %v6677 = vmul.f32 %v6670, %v6675
  %6679 = vrot.lane.b32.xlu0 %v6677, 32
  %v6680 = vpop.permute.xlu0 %6679
  %v6682 = vadd.f32 %v6672, %v6680
  %v6683 = vtanh.pop %v6682
  %6685 = vrot.lane.b32.xlu0 %v6683, 32
  %v6686 = vpop.permute.xlu0 %6685
  %v6688 = vmul.f32 %v6670, %v6686
  %s6689 = sadd.s32 %s76, 29
  %p6690 = scmp.lt.s32.totalorder %s6689, 8
  %s6691 = scalar_select %p6690, 1, 0
  %v6692 = vstv %s6691
  %vm6693 = vcmp.eq.s32.totalorder %v6692, 1
  %v6694 = vsel %vm6693, %v6688, %v6470
  %v6695 = vsel %vm6693, %v6682, %v6471
  %6697 = vrot.lane.b32.xlu0 %v6694, 64
  %v6698 = vpop.permute.xlu0 %6697
  %s6700 = scalar_lea.vmem %s3, 58
  %6701 = vst.msk [vmem:[%s6700] sm:$0x3] %vm196, %v6698
  %s6702 = scalar_lea.vmem %s43, 4
  %v6703 = vld [vmem:[%s6702] sm:$0x3]
  %v6704 = vsel %vm80, %v6586, 0
  %6706 = vmatprep.subr.mxu0 0.0
  %6707 = vmatpush1.msra.mxu0 %v68
  %6708 = vmatprep.subr.mxu0 0.0
  %6709 = vmatpush1.msra.mxu0 %v69
  %6710 = vmatprep.subr.mxu0 0.0
  %6711 = vmatpush1.msra.mxu0 %v70
  %6712 = vmatprep.subr.mxu0 0.0
  %6713 = vmatpush1.msra.mxu0 %v71
  %6714 = vmatprep.subr.mxu0 0.0
  %6715 = vmatpush1.msra.mxu0 0.0
  %6716 = vmatprep.subr.mxu0 0.0
  %6717 = vmatpush1.msra.mxu0 0.0
  %6718 = vmatprep.subr.mxu0 0.0
  %6719 = vmatpush1.msra.mxu0 0.0
  %6720 = vmatprep.subr.mxu0 0.0
  %6721 = vmatpush1.msra.mxu0 0.0
  %6722 = vmatprep.subr.mxu0 0.0
  %6723 = vmatpush1.msra.mxu0 0.0
  %6724 = vmatprep.subr.mxu0 0.0
  %6725 = vmatpush1.msra.mxu0 0.0
  %6726 = vmatprep.subr.mxu0 0.0
  %6727 = vmatpush1.msra.mxu0 0.0
  %6728 = vmatprep.subr.mxu0 0.0
  %6729 = vmatpush1.msra.mxu0 0.0
  %6730 = vmatprep.subr.mxu0 0.0
  %6731 = vmatpush1.msra.mxu0 0.0
  %6732 = vmatprep.subr.mxu0 0.0
  %6733 = vmatpush1.msra.mxu0 0.0
  %6734 = vmatprep.subr.mxu0 0.0
  %6735 = vmatpush1.msra.mxu0 0.0
  %6736 = vmatprep.subr.mxu0 0.0
  %6737 = vmatpush1.msra.mxu0 0.0
  %6738 = vmatprep.subr.mxu0 0.0
  %6739 = vmatpush1.msra.mxu0 0.0
  %6740 = vmatprep.subr.mxu0 0.0
  %6741 = vmatpush1.msra.mxu0 0.0
  %6742 = vmatprep.subr.mxu0 0.0
  %6743 = vmatpush1.msra.mxu0 0.0
  %6744 = vmatprep.subr.mxu0 0.0
  %6745 = vmatpush1.msra.mxu0 0.0
  %6746 = vmatprep.subr.mxu0 0.0
  %6747 = vmatpush1.msra.mxu0 0.0
  %6748 = vmatprep.subr.mxu0 0.0
  %6749 = vmatpush1.msra.mxu0 0.0
  %6750 = vmatprep.subr.mxu0 0.0
  %6751 = vmatpush1.msra.mxu0 0.0
  %6752 = vmatprep.subr.mxu0 0.0
  %6753 = vmatpush1.msra.mxu0 0.0
  %6754 = vmatprep.subr.mxu0 0.0
  %6755 = vmatpush1.msra.mxu0 0.0
  %6756 = vmatprep.subr.mxu0 0.0
  %6757 = vmatpush1.msra.mxu0 0.0
  %6758 = vmatprep.subr.mxu0 0.0
  %6759 = vmatpush1.msra.mxu0 0.0
  %6760 = vmatprep.subr.mxu0 0.0
  %6761 = vmatpush1.msra.mxu0 0.0
  %6762 = vmatprep.subr.mxu0 0.0
  %6763 = vmatpush1.msra.mxu0 0.0
  %6764 = vmatprep.subr.mxu0 0.0
  %6765 = vmatpush1.msra.mxu0 0.0
  %6766 = vmatprep.subr.mxu0 0.0
  %6767 = vmatpush1.msra.mxu0 0.0
  %6768 = vmatprep.subr.mxu0 0.0
  %6769 = vmatpush1.msra.mxu0 0.0
  %6770 = vmatprep.mubr.f32.mxu0 0.0
  %6771 = vmatmul.mubr.f32.gmra.mrb[0].mxu0 %v6704
  %v6772 = vpop.f32.mrb[0].mxu0
  %v6773 = vadd.f32 0.0, %v6772
  %v6774 = vpop.f32.mrb[0].mxu0
  %6775 = vdwg.mxu0
  %v6776 = vadd.f32 %v6703, %v6773
  %v6777 = vxor.u32 %v6776, 2147483648
  %v6778 = vmul.f32 %v6777, 1.442695
  %v6779 = vpow.pop %v6778
  %v6780 = vadd.f32 %v6779, 1.0
  %v6781 = vrcp.pop %v6780
  %v6782 = vmul.f32 1.0, %v6781
  %v6783 = vtanh.pop %v6776
  %v6784 = vmul.f32 %v6782, %v6583
  %6786 = vrot.lane.b32.xlu0 %v6783, 32
  %v6787 = vpop.permute.xlu0 %6786
  %v6789 = vmul.f32 %v6782, %v6787
  %6791 = vrot.lane.b32.xlu0 %v6789, 32
  %v6792 = vpop.permute.xlu0 %6791
  %v6794 = vadd.f32 %v6784, %v6792
  %v6795 = vtanh.pop %v6794
  %6797 = vrot.lane.b32.xlu0 %v6795, 32
  %v6798 = vpop.permute.xlu0 %6797
  %v6800 = vmul.f32 %v6782, %v6798
  %s6801 = sadd.s32 %s78, 2
  %p6802 = scmp.lt.s32.totalorder %s6801, 8
  %s6803 = scalar_select %p6802, 1, 0
  %v6804 = vstv %s6803
  %vm6805 = vcmp.eq.s32.totalorder %v6804, 1
  %v6806 = vsel %vm6805, %v6800, %v6582
  %v6807 = vsel %vm6805, %v6794, %v6583
  %6809 = vrot.lane.b32.xlu0 %v6806, 64
  %v6810 = vpop.permute.xlu0 %6809
  %s6812 = scalar_lea.vmem %s51, 4
  %6813 = vst.msk [vmem:[%s6812] sm:$0x3] %vm196, %v6810
  %s6814 = scalar_lea.vmem %s0, 60
  %v6815 = vld [vmem:[%s6814] sm:$0x3]
  %v6816 = vsel %vm80, %v6698, 0
  %6818 = vmatprep.subr.mxu0 0.0
  %6819 = vmatpush1.msra.mxu0 %v63
  %6820 = vmatprep.subr.mxu0 0.0
  %6821 = vmatpush1.msra.mxu0 %v64
  %6822 = vmatprep.subr.mxu0 0.0
  %6823 = vmatpush1.msra.mxu0 %v65
  %6824 = vmatprep.subr.mxu0 0.0
  %6825 = vmatpush1.msra.mxu0 %v66
  %6826 = vmatprep.subr.mxu0 0.0
  %6827 = vmatpush1.msra.mxu0 0.0
  %6828 = vmatprep.subr.mxu0 0.0
  %6829 = vmatpush1.msra.mxu0 0.0
  %6830 = vmatprep.subr.mxu0 0.0
  %6831 = vmatpush1.msra.mxu0 0.0
  %6832 = vmatprep.subr.mxu0 0.0
  %6833 = vmatpush1.msra.mxu0 0.0
  %6834 = vmatprep.subr.mxu0 0.0
  %6835 = vmatpush1.msra.mxu0 0.0
  %6836 = vmatprep.subr.mxu0 0.0
  %6837 = vmatpush1.msra.mxu0 0.0
  %6838 = vmatprep.subr.mxu0 0.0
  %6839 = vmatpush1.msra.mxu0 0.0
  %6840 = vmatprep.subr.mxu0 0.0
  %6841 = vmatpush1.msra.mxu0 0.0
  %6842 = vmatprep.subr.mxu0 0.0
  %6843 = vmatpush1.msra.mxu0 0.0
  %6844 = vmatprep.subr.mxu0 0.0
  %6845 = vmatpush1.msra.mxu0 0.0
  %6846 = vmatprep.subr.mxu0 0.0
  %6847 = vmatpush1.msra.mxu0 0.0
  %6848 = vmatprep.subr.mxu0 0.0
  %6849 = vmatpush1.msra.mxu0 0.0
  %6850 = vmatprep.subr.mxu0 0.0
  %6851 = vmatpush1.msra.mxu0 0.0
  %6852 = vmatprep.subr.mxu0 0.0
  %6853 = vmatpush1.msra.mxu0 0.0
  %6854 = vmatprep.subr.mxu0 0.0
  %6855 = vmatpush1.msra.mxu0 0.0
  %6856 = vmatprep.subr.mxu0 0.0
  %6857 = vmatpush1.msra.mxu0 0.0
  %6858 = vmatprep.subr.mxu0 0.0
  %6859 = vmatpush1.msra.mxu0 0.0
  %6860 = vmatprep.subr.mxu0 0.0
  %6861 = vmatpush1.msra.mxu0 0.0
  %6862 = vmatprep.subr.mxu0 0.0
  %6863 = vmatpush1.msra.mxu0 0.0
  %6864 = vmatprep.subr.mxu0 0.0
  %6865 = vmatpush1.msra.mxu0 0.0
  %6866 = vmatprep.subr.mxu0 0.0
  %6867 = vmatpush1.msra.mxu0 0.0
  %6868 = vmatprep.subr.mxu0 0.0
  %6869 = vmatpush1.msra.mxu0 0.0
  %6870 = vmatprep.subr.mxu0 0.0
  %6871 = vmatpush1.msra.mxu0 0.0
  %6872 = vmatprep.subr.mxu0 0.0
  %6873 = vmatpush1.msra.mxu0 0.0
  %6874 = vmatprep.subr.mxu0 0.0
  %6875 = vmatpush1.msra.mxu0 0.0
  %6876 = vmatprep.subr.mxu0 0.0
  %6877 = vmatpush1.msra.mxu0 0.0
  %6878 = vmatprep.subr.mxu0 0.0
  %6879 = vmatpush1.msra.mxu0 0.0
  %6880 = vmatprep.subr.mxu0 0.0
  %6881 = vmatpush1.msra.mxu0 0.0
  %6882 = vmatprep.mubr.f32.mxu0 0.0
  %6883 = vmatmul.mubr.f32.gmra.mrb[0].mxu0 %v6816
  %v6884 = vpop.f32.mrb[0].mxu0
  %v6885 = vadd.f32 0.0, %v6884
  %v6886 = vpop.f32.mrb[0].mxu0
  %6887 = vdwg.mxu0
  %v6888 = vadd.f32 %v6815, %v6885
  %v6889 = vxor.u32 %v6888, 2147483648
  %v6890 = vmul.f32 %v6889, 1.442695
  %v6891 = vpow.pop %v6890
  %v6892 = vadd.f32 %v6891, 1.0
  %v6893 = vrcp.pop %v6892
  %v6894 = vmul.f32 1.0, %v6893
  %v6895 = vtanh.pop %v6888
  %v6896 = vmul.f32 %v6894, %v6695
  %6898 = vrot.lane.b32.xlu0 %v6895, 32
  %v6899 = vpop.permute.xlu0 %6898
  %v6901 = vmul.f32 %v6894, %v6899
  %6903 = vrot.lane.b32.xlu0 %v6901, 32
  %v6904 = vpop.permute.xlu0 %6903
  %v6906 = vadd.f32 %v6896, %v6904
  %v6907 = vtanh.pop %v6906
  %6909 = vrot.lane.b32.xlu0 %v6907, 32
  %v6910 = vpop.permute.xlu0 %6909
  %v6912 = vmul.f32 %v6894, %v6910
  %s6913 = sadd.s32 %s76, 30
  %p6914 = scmp.lt.s32.totalorder %s6913, 8
  %s6915 = scalar_select %p6914, 1, 0
  %v6916 = vstv %s6915
  %vm6917 = vcmp.eq.s32.totalorder %v6916, 1
  %v6918 = vsel %vm6917, %v6912, %v6694
  %v6919 = vsel %vm6917, %v6906, %v6695
  %6921 = vrot.lane.b32.xlu0 %v6918, 64
  %v6922 = vpop.permute.xlu0 %6921
  %s6924 = scalar_lea.vmem %s3, 60
  %6925 = vst.msk [vmem:[%s6924] sm:$0x3] %vm196, %v6922
  %s6926 = scalar_lea.vmem %s43, 2
  %v6927 = vld [vmem:[%s6926] sm:$0x3]
  %v6928 = vsel %vm80, %v6810, 0
  %6930 = vmatprep.subr.mxu0 0.0
  %6931 = vmatpush1.msra.mxu0 %v68
  %6932 = vmatprep.subr.mxu0 0.0
  %6933 = vmatpush1.msra.mxu0 %v69
  %6934 = vmatprep.subr.mxu0 0.0
  %6935 = vmatpush1.msra.mxu0 %v70
  %6936 = vmatprep.subr.mxu0 0.0
  %6937 = vmatpush1.msra.mxu0 %v71
  %6938 = vmatprep.subr.mxu0 0.0
  %6939 = vmatpush1.msra.mxu0 0.0
  %6940 = vmatprep.subr.mxu0 0.0
  %6941 = vmatpush1.msra.mxu0 0.0
  %6942 = vmatprep.subr.mxu0 0.0
  %6943 = vmatpush1.msra.mxu0 0.0
  %6944 = vmatprep.subr.mxu0 0.0
  %6945 = vmatpush1.msra.mxu0 0.0
  %6946 = vmatprep.subr.mxu0 0.0
  %6947 = vmatpush1.msra.mxu0 0.0
  %6948 = vmatprep.subr.mxu0 0.0
  %6949 = vmatpush1.msra.mxu0 0.0
  %6950 = vmatprep.subr.mxu0 0.0
  %6951 = vmatpush1.msra.mxu0 0.0
  %6952 = vmatprep.subr.mxu0 0.0
  %6953 = vmatpush1.msra.mxu0 0.0
  %6954 = vmatprep.subr.mxu0 0.0
  %6955 = vmatpush1.msra.mxu0 0.0
  %6956 = vmatprep.subr.mxu0 0.0
  %6957 = vmatpush1.msra.mxu0 0.0
  %6958 = vmatprep.subr.mxu0 0.0
  %6959 = vmatpush1.msra.mxu0 0.0
  %6960 = vmatprep.subr.mxu0 0.0
  %6961 = vmatpush1.msra.mxu0 0.0
  %6962 = vmatprep.subr.mxu0 0.0
  %6963 = vmatpush1.msra.mxu0 0.0
  %6964 = vmatprep.subr.mxu0 0.0
  %6965 = vmatpush1.msra.mxu0 0.0
  %6966 = vmatprep.subr.mxu0 0.0
  %6967 = vmatpush1.msra.mxu0 0.0
  %6968 = vmatprep.subr.mxu0 0.0
  %6969 = vmatpush1.msra.mxu0 0.0
  %6970 = vmatprep.subr.mxu0 0.0
  %6971 = vmatpush1.msra.mxu0 0.0
  %6972 = vmatprep.subr.mxu0 0.0
  %6973 = vmatpush1.msra.mxu0 0.0
  %6974 = vmatprep.subr.mxu0 0.0
  %6975 = vmatpush1.msra.mxu0 0.0
  %6976 = vmatprep.subr.mxu0 0.0
  %6977 = vmatpush1.msra.mxu0 0.0
  %6978 = vmatprep.subr.mxu0 0.0
  %6979 = vmatpush1.msra.mxu0 0.0
  %6980 = vmatprep.subr.mxu0 0.0
  %6981 = vmatpush1.msra.mxu0 0.0
  %6982 = vmatprep.subr.mxu0 0.0
  %6983 = vmatpush1.msra.mxu0 0.0
  %6984 = vmatprep.subr.mxu0 0.0
  %6985 = vmatpush1.msra.mxu0 0.0
  %6986 = vmatprep.subr.mxu0 0.0
  %6987 = vmatpush1.msra.mxu0 0.0
  %6988 = vmatprep.subr.mxu0 0.0
  %6989 = vmatpush1.msra.mxu0 0.0
  %6990 = vmatprep.subr.mxu0 0.0
  %6991 = vmatpush1.msra.mxu0 0.0
  %6992 = vmatprep.subr.mxu0 0.0
  %6993 = vmatpush1.msra.mxu0 0.0
  %6994 = vmatprep.mubr.f32.mxu0 0.0
  %6995 = vmatmul.mubr.f32.gmra.mrb[0].mxu0 %v6928
  %v6996 = vpop.f32.mrb[0].mxu0
  %v6997 = vadd.f32 0.0, %v6996
  %v6998 = vpop.f32.mrb[0].mxu0
  %6999 = vdwg.mxu0
  %v7000 = vadd.f32 %v6927, %v6997
  %v7001 = vxor.u32 %v7000, 2147483648
  %v7002 = vmul.f32 %v7001, 1.442695
  %v7003 = vpow.pop %v7002
  %v7004 = vadd.f32 %v7003, 1.0
  %v7005 = vrcp.pop %v7004
  %v7006 = vmul.f32 1.0, %v7005
  %v7007 = vtanh.pop %v7000
  %v7008 = vmul.f32 %v7006, %v6807
  %7010 = vrot.lane.b32.xlu0 %v7007, 32
  %v7011 = vpop.permute.xlu0 %7010
  %v7013 = vmul.f32 %v7006, %v7011
  %7015 = vrot.lane.b32.xlu0 %v7013, 32
  %v7016 = vpop.permute.xlu0 %7015
  %v7018 = vadd.f32 %v7008, %v7016
  %v7019 = vtanh.pop %v7018
  %7021 = vrot.lane.b32.xlu0 %v7019, 32
  %v7022 = vpop.permute.xlu0 %7021
  %v7024 = vmul.f32 %v7006, %v7022
  %s7025 = sadd.s32 %s78, 1
  %p7026 = scmp.lt.s32.totalorder %s7025, 8
  %s7027 = scalar_select %p7026, 1, 0
  %v7028 = vstv %s7027
  %vm7029 = vcmp.eq.s32.totalorder %v7028, 1
  %v7030 = vsel %vm7029, %v7024, %v6806
  %v7031 = vsel %vm7029, %v7018, %v6807
  %7033 = vrot.lane.b32.xlu0 %v7030, 64
  %v7034 = vpop.permute.xlu0 %7033
  %s7036 = scalar_lea.vmem %s51, 2
  %7037 = vst.msk [vmem:[%s7036] sm:$0x3] %vm196, %v7034
  %s7038 = scalar_lea.vmem %s0, 62
  %v7039 = vld [vmem:[%s7038] sm:$0x3]
  %v7040 = vsel %vm80, %v6922, 0
  %7042 = vmatprep.subr.mxu0 0.0
  %7043 = vmatpush1.msra.mxu0 %v63
  %7044 = vmatprep.subr.mxu0 0.0
  %7045 = vmatpush1.msra.mxu0 %v64
  %7046 = vmatprep.subr.mxu0 0.0
  %7047 = vmatpush1.msra.mxu0 %v65
  %7048 = vmatprep.subr.mxu0 0.0
  %7049 = vmatpush1.msra.mxu0 %v66
  %7050 = vmatprep.subr.mxu0 0.0
  %7051 = vmatpush1.msra.mxu0 0.0
  %7052 = vmatprep.subr.mxu0 0.0
  %7053 = vmatpush1.msra.mxu0 0.0
  %7054 = vmatprep.subr.mxu0 0.0
  %7055 = vmatpush1.msra.mxu0 0.0
  %7056 = vmatprep.subr.mxu0 0.0
  %7057 = vmatpush1.msra.mxu0 0.0
  %7058 = vmatprep.subr.mxu0 0.0
  %7059 = vmatpush1.msra.mxu0 0.0
  %7060 = vmatprep.subr.mxu0 0.0
  %7061 = vmatpush1.msra.mxu0 0.0
  %7062 = vmatprep.subr.mxu0 0.0
  %7063 = vmatpush1.msra.mxu0 0.0
  %7064 = vmatprep.subr.mxu0 0.0
  %7065 = vmatpush1.msra.mxu0 0.0
  %7066 = vmatprep.subr.mxu0 0.0
  %7067 = vmatpush1.msra.mxu0 0.0
  %7068 = vmatprep.subr.mxu0 0.0
  %7069 = vmatpush1.msra.mxu0 0.0
  %7070 = vmatprep.subr.mxu0 0.0
  %7071 = vmatpush1.msra.mxu0 0.0
  %7072 = vmatprep.subr.mxu0 0.0
  %7073 = vmatpush1.msra.mxu0 0.0
  %7074 = vmatprep.subr.mxu0 0.0
  %7075 = vmatpush1.msra.mxu0 0.0
  %7076 = vmatprep.subr.mxu0 0.0
  %7077 = vmatpush1.msra.mxu0 0.0
  %7078 = vmatprep.subr.mxu0 0.0
  %7079 = vmatpush1.msra.mxu0 0.0
  %7080 = vmatprep.subr.mxu0 0.0
  %7081 = vmatpush1.msra.mxu0 0.0
  %7082 = vmatprep.subr.mxu0 0.0
  %7083 = vmatpush1.msra.mxu0 0.0
  %7084 = vmatprep.subr.mxu0 0.0
  %7085 = vmatpush1.msra.mxu0 0.0
  %7086 = vmatprep.subr.mxu0 0.0
  %7087 = vmatpush1.msra.mxu0 0.0
  %7088 = vmatprep.subr.mxu0 0.0
  %7089 = vmatpush1.msra.mxu0 0.0
  %7090 = vmatprep.subr.mxu0 0.0
  %7091 = vmatpush1.msra.mxu0 0.0
  %7092 = vmatprep.subr.mxu0 0.0
  %7093 = vmatpush1.msra.mxu0 0.0
  %7094 = vmatprep.subr.mxu0 0.0
  %7095 = vmatpush1.msra.mxu0 0.0
  %7096 = vmatprep.subr.mxu0 0.0
  %7097 = vmatpush1.msra.mxu0 0.0
  %7098 = vmatprep.subr.mxu0 0.0
  %7099 = vmatpush1.msra.mxu0 0.0
  %7100 = vmatprep.subr.mxu0 0.0
  %7101 = vmatpush1.msra.mxu0 0.0
  %7102 = vmatprep.subr.mxu0 0.0
  %7103 = vmatpush1.msra.mxu0 0.0
  %7104 = vmatprep.subr.mxu0 0.0
  %7105 = vmatpush1.msra.mxu0 0.0
  %7106 = vmatprep.mubr.f32.mxu0 0.0
  %7107 = vmatmul.mubr.f32.gmra.mrb[0].mxu0 %v7040
  %v7108 = vpop.f32.mrb[0].mxu0
  %v7109 = vadd.f32 0.0, %v7108
  %v7110 = vpop.f32.mrb[0].mxu0
  %7111 = vdwg.mxu0
  %v7112 = vadd.f32 %v7039, %v7109
  %v7113 = vxor.u32 %v7112, 2147483648
  %v7114 = vmul.f32 %v7113, 1.442695
  %v7115 = vpow.pop %v7114
  %v7116 = vadd.f32 %v7115, 1.0
  %v7117 = vrcp.pop %v7116
  %v7118 = vmul.f32 1.0, %v7117
  %v7119 = vtanh.pop %v7112
  %v7120 = vmul.f32 %v7118, %v6919
  %7122 = vrot.lane.b32.xlu0 %v7119, 32
  %v7123 = vpop.permute.xlu0 %7122
  %v7125 = vmul.f32 %v7118, %v7123
  %7127 = vrot.lane.b32.xlu0 %v7125, 32
  %v7128 = vpop.permute.xlu0 %7127
  %v7130 = vadd.f32 %v7120, %v7128
  %v7131 = vtanh.pop %v7130
  %7133 = vrot.lane.b32.xlu0 %v7131, 32
  %v7134 = vpop.permute.xlu0 %7133
  %v7136 = vmul.f32 %v7118, %v7134
  %s7137 = sadd.s32 %s76, 31
  %p7138 = scmp.lt.s32.totalorder %s7137, 8
  %s7139 = scalar_select %p7138, 1, 0
  %v7140 = vstv %s7139
  %vm7141 = vcmp.eq.s32.totalorder %v7140, 1
  %v7142 = vsel %vm7141, %v7136, %v6918
  %v7143 = vsel %vm7141, %v7130, %v6919
  %7145 = vrot.lane.b32.xlu0 %v7142, 64
  %v7146 = vpop.permute.xlu0 %7145
  %s7148 = scalar_lea.vmem %s3, 62
  %7149 = vst.msk [vmem:[%s7148] sm:$0x3] %vm196, %v7146
  %v7150 = vld [vmem:[%s43] sm:$0x3]
  %v7151 = vsel %vm80, %v7034, 0
  %7153 = vmatprep.subr.mxu0 0.0
  %7154 = vmatpush1.msra.mxu0 %v68
  %7155 = vmatprep.subr.mxu0 0.0
  %7156 = vmatpush1.msra.mxu0 %v69
  %7157 = vmatprep.subr.mxu0 0.0
  %7158 = vmatpush1.msra.mxu0 %v70
  %7159 = vmatprep.subr.mxu0 0.0
  %7160 = vmatpush1.msra.mxu0 %v71
  %7161 = vmatprep.subr.mxu0 0.0
  %7162 = vmatpush1.msra.mxu0 0.0
  %7163 = vmatprep.subr.mxu0 0.0
  %7164 = vmatpush1.msra.mxu0 0.0
  %7165 = vmatprep.subr.mxu0 0.0
  %7166 = vmatpush1.msra.mxu0 0.0
  %7167 = vmatprep.subr.mxu0 0.0
  %7168 = vmatpush1.msra.mxu0 0.0
  %7169 = vmatprep.subr.mxu0 0.0
  %7170 = vmatpush1.msra.mxu0 0.0
  %7171 = vmatprep.subr.mxu0 0.0
  %7172 = vmatpush1.msra.mxu0 0.0
  %7173 = vmatprep.subr.mxu0 0.0
  %7174 = vmatpush1.msra.mxu0 0.0
  %7175 = vmatprep.subr.mxu0 0.0
  %7176 = vmatpush1.msra.mxu0 0.0
  %7177 = vmatprep.subr.mxu0 0.0
  %7178 = vmatpush1.msra.mxu0 0.0
  %7179 = vmatprep.subr.mxu0 0.0
  %7180 = vmatpush1.msra.mxu0 0.0
  %7181 = vmatprep.subr.mxu0 0.0
  %7182 = vmatpush1.msra.mxu0 0.0
  %7183 = vmatprep.subr.mxu0 0.0
  %7184 = vmatpush1.msra.mxu0 0.0
  %7185 = vmatprep.subr.mxu0 0.0
  %7186 = vmatpush1.msra.mxu0 0.0
  %7187 = vmatprep.subr.mxu0 0.0
  %7188 = vmatpush1.msra.mxu0 0.0
  %7189 = vmatprep.subr.mxu0 0.0
  %7190 = vmatpush1.msra.mxu0 0.0
  %7191 = vmatprep.subr.mxu0 0.0
  %7192 = vmatpush1.msra.mxu0 0.0
  %7193 = vmatprep.subr.mxu0 0.0
  %7194 = vmatpush1.msra.mxu0 0.0
  %7195 = vmatprep.subr.mxu0 0.0
  %7196 = vmatpush1.msra.mxu0 0.0
  %7197 = vmatprep.subr.mxu0 0.0
  %7198 = vmatpush1.msra.mxu0 0.0
  %7199 = vmatprep.subr.mxu0 0.0
  %7200 = vmatpush1.msra.mxu0 0.0
  %7201 = vmatprep.subr.mxu0 0.0
  %7202 = vmatpush1.msra.mxu0 0.0
  %7203 = vmatprep.subr.mxu0 0.0
  %7204 = vmatpush1.msra.mxu0 0.0
  %7205 = vmatprep.subr.mxu0 0.0
  %7206 = vmatpush1.msra.mxu0 0.0
  %7207 = vmatprep.subr.mxu0 0.0
  %7208 = vmatpush1.msra.mxu0 0.0
  %7209 = vmatprep.subr.mxu0 0.0
  %7210 = vmatpush1.msra.mxu0 0.0
  %7211 = vmatprep.subr.mxu0 0.0
  %7212 = vmatpush1.msra.mxu0 0.0
  %7213 = vmatprep.subr.mxu0 0.0
  %7214 = vmatpush1.msra.mxu0 0.0
  %7215 = vmatprep.subr.mxu0 0.0
  %7216 = vmatpush1.msra.mxu0 0.0
  %7217 = vmatprep.mubr.f32.mxu0 0.0
  %7218 = vmatmul.mubr.f32.gmra.mrb[0].mxu0 %v7151
  %v7219 = vpop.f32.mrb[0].mxu0
  %v7220 = vadd.f32 0.0, %v7219
  %v7221 = vpop.f32.mrb[0].mxu0
  %7222 = vdwg.mxu0
  %v7223 = vadd.f32 %v7150, %v7220
  %v7224 = vxor.u32 %v7223, 2147483648
  %v7225 = vmul.f32 %v7224, 1.442695
  %v7226 = vpow.pop %v7225
  %v7227 = vadd.f32 %v7226, 1.0
  %v7228 = vrcp.pop %v7227
  %v7229 = vmul.f32 1.0, %v7228
  %v7230 = vtanh.pop %v7223
  %v7231 = vmul.f32 %v7229, %v7031
  %7233 = vrot.lane.b32.xlu0 %v7230, 32
  %v7234 = vpop.permute.xlu0 %7233
  %v7236 = vmul.f32 %v7229, %v7234
  %7238 = vrot.lane.b32.xlu0 %v7236, 32
  %v7239 = vpop.permute.xlu0 %7238
  %v7241 = vadd.f32 %v7231, %v7239
  %v7242 = vtanh.pop %v7241
  %7244 = vrot.lane.b32.xlu0 %v7242, 32
  %v7245 = vpop.permute.xlu0 %7244
  %v7247 = vmul.f32 %v7229, %v7245
  %p7248 = scmp.lt.s32.totalorder %s78, 8
  %s7249 = scalar_select %p7248, 1, 0
  %v7250 = vstv %s7249
  %vm7251 = vcmp.eq.s32.totalorder %v7250, 1
  %v7252 = vsel %vm7251, %v7247, %v7030
  %v7253 = vsel %vm7251, %v7241, %v7031
  %7255 = vrot.lane.b32.xlu0 %v7252, 64
  %v7256 = vpop.permute.xlu0 %7255
  %7258 = vst.msk [vmem:[%s51] sm:$0x3] %vm196, %v7256
  %7259 = vst.msk [vmem:[#allocation2] sm:$0x3] %vm196, %v7146
  %7261 = vrot.lane.b32.xlu0 %v7143, 96
  %v7262 = vpop.permute.xlu0 %7261
  %7264 = vst.msk [vmem:[#allocation3] sm:$0x3] %vm196, %v7262
  %7265 = vst.msk [vmem:[#allocation4] sm:$0x3] %vm196, %v7256
  %7267 = vrot.lane.b32.xlu0 %v7253, 96
  %v7268 = vpop.permute.xlu0 %7267
  %7270 = vst.msk [vmem:[#allocation5] sm:$0x3] %vm196, %v7268
  // Predicated region
  $region18: #{encoder_forward.1} parent=0 // pred_check
    %p7271 = pneg %p54
  $region19: #{encoder_forward.1} parent=0 // pred_check_branch
    %7273 = sbr.rel (%p7271) target = $region21
  $region20: #{encoder_forward.1} parent=0 // pred_region
    %7274 = vst.msk [vmem:[%s5] sm:$0x3] %vm196, %v7146
    %s7275 = scalar_lea.vmem %s5, 2
    %7276 = vst.msk [vmem:[%s7275] sm:$0x3] %vm196, %v7256
    %7277 = vst.msk [vmem:[%s6] sm:$0x3] %vm196, %v7262
    %s7278 = scalar_lea.vmem %s6, 2
    %7279 = vst.msk [vmem:[%s7278] sm:$0x3] %vm196, %v7268
  $region21: #{encoder_forward.1} parent=0 // pred_fallthru
    _
  %s7280 = ssub.s32 0, 0
  %s7281 = smul.u32 32, %s7280
  %p7282 = scmp.lt.s32.totalorder %s7281, 31
  %s7283 = scalar_select %p7282, %s7281, 31
  %s7284 = smul.addr %s7283, 2
  %s7285 = scalar_lea.vmem %s4, %s7284
  // Predicated region
  $region22: #{encoder_forward.1} parent=0 // pred_check
    _
  $region23: #{encoder_forward.1} parent=0 // pred_check_branch
    %7287 = sbr.rel (0) target = $region25
  $region24: #{encoder_forward.1} parent=0 // pred_region
    _
  $region25: #{encoder_forward.1} parent=0 // pred_fallthru
    _
  // Predicated region
  $region26: #{encoder_forward.1} parent=0 // pred_check
    _
  $region27: #{encoder_forward.1} parent=0 // pred_check_branch
    %7289 = sbr.rel (0) target = $region29
  $region28: #{encoder_forward.1} parent=0 // pred_region
    %s7290 = ssub.s32 0, 0
    %s7291 = smul.u32 32, %s7290
  $region29: #{encoder_forward.1} parent=0 // pred_fallthru
    _
  // Predicated region
  $region30: #{encoder_forward.1} parent=0 // pred_check
    _
  $region31: #{encoder_forward.1} parent=0 // pred_check_branch
    %7293 = sbr.rel (0) target = $region33
  $region32: #{encoder_forward.1} parent=0 // pred_region
    _
  $region33: #{encoder_forward.1} parent=0 // pred_fallthru
    _
  // Predicated region
  $region34: #{encoder_forward.1} parent=0 // pred_check
    _
  $region35: #{encoder_forward.1} parent=0 // pred_check_branch
    %7295 = sbr.rel (0) target = $region37
  $region36: #{encoder_forward.1} parent=0 // pred_region
    _
  $region37: #{encoder_forward.1} parent=0 // pred_fallthru
    _
  // Predicated region
  $region38: #{encoder_forward.1} parent=0 // pred_check
    _
  $region39: #{encoder_forward.1} parent=0 // pred_check_branch
    %7297 = sbr.rel (0) target = $region41
  $region40: #{encoder_forward.1} parent=0 // pred_region
    _
  $region41: #{encoder_forward.1} parent=0 // pred_fallthru
    _
  // Predicated region
  $region42: #{encoder_forward.1} parent=0 // pred_check
    _
  $region43: #{encoder_forward.1} parent=0 // pred_check_branch
    %7299 = sbr.rel (0) target = $region45
  $region44: #{encoder_forward.1} parent=0 // pred_region
    %s7300 = ssub.s32 0, 0
    %s7301 = smul.u32 32, %s7300
    %p7302 = scmp.lt.s32.totalorder %s7301, 31
    %s7303 = scalar_select %p7302, %s7301, 31
    %s7304 = smul.addr %s7303, 2
    %s7305 = scalar_lea.vmem %s4, %s7304
  $region45: #{encoder_forward.1} parent=0 // pred_fallthru
    _
  // Predicated region
  $region46: #{encoder_forward.1} parent=0 // pred_check
    _
  $region47: #{encoder_forward.1} parent=0 // pred_check_branch
    %7307 = sbr.rel (0) target = $region49
  $region48: #{encoder_forward.1} parent=0 // pred_region
    _
  $region49: #{encoder_forward.1} parent=0 // pred_fallthru
    _
  // Predicated region
  $region50: #{encoder_forward.1} parent=0 // pred_check
    _
  $region51: #{encoder_forward.1} parent=0 // pred_check_branch
    %7309 = sbr.rel (0) target = $region53
  $region52: #{encoder_forward.1} parent=0 // pred_region
    _
  $region53: #{encoder_forward.1} parent=0 // pred_fallthru
    _

</llo_original>
